<compile_context>
chip_gen: v6e
topology: v6e:2x2x1
jax: 0.10.0
libtpu: 0.0.40
codegen_flags: <defaults>
</compile_context>

<pallas_src>
import functools

import numpy as np
import jax
import jax.numpy as jnp
from jax.experimental import pallas as pl
from jax.experimental.pallas import tpu as pltpu


KSIZE = 4          # every conv in GradConCAE uses a 4x4 kernel
LANE = 128


def _ceil_to(x, m):
    return -(-x // m) * m


# ----------------------------------------------------------------------------
# Pallas kernel: the whole 8-layer forward fused into one kernel.
# ----------------------------------------------------------------------------
def _fused_cae_kernel(*refs, acts):
    """refs = (x_ref, A_1, ..., A_L, epi_ref, o_ref).

    x_ref   : (TM, D0p)        f32   NCHW-flattened images (rows = batch tile)
    A_l     : (D_{l-1}p, D_lp) int8  per-column-quantized dense layer map
    epi_ref : (2L, Dmax)       f32   rows 0..L-1 = dequant scales,
                                     rows L..2L-1 = biases (lane padded)
    o_ref   : (TM, D_Lp)       f32   NCHW-flattened reconstruction
    """
    x_ref = refs[0]
    o_ref = refs[-1]
    epi_ref = refs[-2]
    a_refs = refs[1:-2]
    n_layers = len(a_refs)

    h = x_ref[...].astype(jnp.bfloat16)               # bf16 LHS for the MXU
    for l in range(n_layers):
        d = a_refs[l].shape[1]                        # padded (multiple of 128)
        a = a_refs[l][...].astype(jnp.bfloat16)       # int8 -> bf16 (lossless)
        acc = jnp.dot(h, a, preferred_element_type=jnp.float32)
        scale = epi_ref[l:l + 1, :d]                  # (1, d) f32
        bias = epi_ref[n_layers + l:n_layers + l + 1, :d]
        z = acc * scale + bias                        # dequant + bias, f32 VPU
        if acts[l] == "relu":
            h = jnp.maximum(z, 0.0).astype(jnp.bfloat16)
        else:                                         # "sigmoid" (last layer)
            h = jax.nn.sigmoid(z)                     # EUP, f32
    o_ref[...] = h.astype(o_ref.dtype)                # lane-dense f32 store


def gradcon_cae_forward(layers, epi, x_nchw, *, acts, d0, d0_pad, d_last,
                        out_chw, tile_m=256):
    """Fused GradConCAE forward.  `layers`/`epi` come from
    precompute_dense_params; the rest is static metadata.
    x_nchw: (N, C, H, W) f32 -> (N, C, H, W) f32."""
    N = x_nchw.shape[0]
    c_out, h_out, w_out = out_chw

    # NCHW flatten is contiguous -> free reshape; the permutation into the
    # layer's expected order is folded into A_1 / A_L, so no transposes here.
    x2d = x_nchw.reshape(N, -1).astype(jnp.float32)

    # Row tile: small batches run as one grid step (padded to 16 sublanes so
    # the bf16 LHS vregs are fully packed); big batches tile at `tile_m`.
    if N >= tile_m:
        tm = tile_m
        m_pad = _ceil_to(N, tm)
    else:
        tm = _ceil_to(max(N, 8), 16)
        m_pad = tm
    # single pad op: batch rows (sublanes) + input features (lanes)
    x2d = jnp.pad(x2d, ((0, m_pad - N), (0, d0_pad - d0)))

    d_out_pad = layers[-1].shape[1]
    grid = (m_pad // tm,)

    in_specs = [pl.BlockSpec((tm, d0_pad), lambda i: (i, 0))]
    # constant index_map -> weights/epilogue DMA'd once, VMEM-resident
    in_specs += [pl.BlockSpec(a.shape, lambda i: (0, 0)) for a in layers]
    in_specs += [pl.BlockSpec(epi.shape, lambda i: (0, 0))]
    out_specs = pl.BlockSpec((tm, d_out_pad), lambda i: (i, 0))

    w_bytes = sum(int(a.size) * a.dtype.itemsize for a in layers)
    epi_bytes = int(epi.size) * epi.dtype.itemsize
    flops = 2 * m_pad * sum(int(a.shape[0]) * int(a.shape[1]) for a in layers)
    bytes_accessed = int(x2d.size) * 4 + m_pad * d_out_pad * 4 + w_bytes \
        + epi_bytes
    # explicit VMEM budget (double/triple buffers + bf16 weight casts + slack),
    # capped safely below v7x's 64 MiB physical VMEM.
    vmem_limit = min(48 * 1024 * 1024, 3 * (w_bytes + epi_bytes) + (16 << 20))

    kernel = functools.partial(_fused_cae_kernel, acts=tuple(acts))
    y = pl.pallas_call(
        kernel,
        grid=grid,
        out_shape=jax.ShapeDtypeStruct((m_pad, d_out_pad), jnp.float32),
        in_specs=in_specs,
        out_specs=out_specs,
        compiler_params=pltpu.CompilerParams(
            dimension_semantics=("parallel",),
            vmem_limit_bytes=int(vmem_limit)),
        cost_estimate=pl.CostEstimate(flops=int(flops),
                                      transcendentals=int(m_pad * d_out_pad),
                                      bytes_accessed=int(bytes_accessed)),
    )(x2d, *layers, epi)

    # Output columns are already NCHW-ordered (perm folded into A_L):
    # drop padding rows/lanes and reshape — no transpose.
    return y[:N, :d_last].reshape(N, c_out, h_out, w_out)


def make_forward_fn(dense_params):
    fn = functools.partial(gradcon_cae_forward,
                           acts=tuple(dense_params["acts"]),
                           d0=dense_params["d0"],
                           d0_pad=dense_params["d0_pad"],
                           d_last=dense_params["d_last"],
                           out_chw=tuple(dense_params["out_chw"]))
    return jax.jit(fn)


# ----------------------------------------------------------------------------
# One-time weight repack: fold each conv layer into a dense (In, Out) matrix,
# fold the NCHW<->NHWC permutations into the first/last layers, lane-pad all
# widths to multiples of 128, and quantize the weights to per-column int8.
# ----------------------------------------------------------------------------
def _conv_out(h, k, s, p):
    return (h + 2 * p - k) // s + 1


def _convt_out(h, k, s, p):
    return (h - 1) * s - 2 * p + k


def _conv_select(Hi, Wi, Ho, Wo, k, s, p):
    """S[t, o_sp, i_sp] = 1 iff input pixel i_sp feeds output o_sp at tap t."""
    S = np.zeros((k * k, Ho * Wo, Hi * Wi), np.float32)
    for oh in range(Ho):
        for ow in range(Wo):
            for kh in range(k):
                for kw in range(k):
                    ih = oh * s + kh - p
                    iw = ow * s + kw - p
                    if 0 <= ih < Hi and 0 <= iw < Wi:
                        S[kh * k + kw, oh * Wo + ow, ih * Wi + iw] = 1.0
    return S


def _convt_select(Hi, Wi, Ho, Wo, k, s, p):
    """PyTorch ConvTranspose2d: oh = ih*s - p + kh  =>  ih = (oh+p-kh)/s."""
    S = np.zeros((k * k, Ho * Wo, Hi * Wi), np.float32)
    for oh in range(Ho):
        for ow in range(Wo):
            for kh in range(k):
                for kw in range(k):
                    ihs = oh + p - kh
                    iws = ow + p - kw
                    if ihs % s != 0 or iws % s != 0:
                        continue
                    ih, iw = ihs // s, iws // s
                    if 0 <= ih < Hi and 0 <= iw < Wi:
                        S[kh * k + kw, oh * Wo + ow, ih * Wi + iw] = 1.0
    return S


def _dense_layer_np(S, w_taps, Hi, Wi, Ho, Wo, cin, cout):
    """A[i_sp*cin+ci, o_sp*cout+co] = sum_t S[t,o_sp,i_sp] * w_taps[t,ci,co]."""
    A = np.einsum("toi,tcd->icod", S, w_taps)
    return A.reshape(Hi * Wi * cin, Ho * Wo * cout)


def _nchw_perm(C, H, W):
    """perm[r_nchw_flat] = corresponding NHWC flat index."""
    return np.arange(H * W * C).reshape(H, W, C).transpose(2, 0, 1).ravel()


def precompute_dense_params(params, in_hw, weight_dtype=jnp.int8):
    """Fold all Conv2d / ConvTranspose2d layers (fixed geometry, PyTorch
    layouts) into dense matrices + a packed scale/bias epilogue.  Run once."""
    H = W = in_hw
    k = KSIZE
    mats, biases, acts = [], [], []

    down_sp = [(2, 2), (2, 2), (2, 2), (2, 2)]        # (stride, pad)
    up_sp = [(2, 2), (2, 1), (2, 2), (2, 1)]

    c_in0 = int(np.asarray(params["down"][0][0]).shape[1])
    shapes = [(H, W, c_in0)]

    for (w, b), (s, p) in zip(params["down"], down_sp):
        w = np.asarray(w, np.float32)
        b = np.asarray(b, np.float32)
        cout, cin = w.shape[0], w.shape[1]
        Ho, Wo = _conv_out(H, k, s, p), _conv_out(W, k, s, p)
        S = _conv_select(H, W, Ho, Wo, k, s, p)
        w_taps = w.transpose(2, 3, 1, 0).reshape(k * k, cin, cout)
        mats.append(_dense_layer_np(S, w_taps, H, W, Ho, Wo, cin, cout))
        biases.append(np.tile(b, Ho * Wo))
        acts.append("relu")
        H, W = Ho, Wo
        shapes.append((H, W, cout))

    n_up = len(params["up"])
    for i, ((w, b), (s, p)) in enumerate(zip(params["up"], up_sp)):
        w = np.asarray(w, np.float32)
        b = np.asarray(b, np.float32)
        cin, cout = w.shape[0], w.shape[1]
        Ho, Wo = _convt_out(H, k, s, p), _convt_out(W, k, s, p)
        S = _convt_select(H, W, Ho, Wo, k, s, p)
        w_taps = w.transpose(2, 3, 0, 1).reshape(k * k, cin, cout)
        mats.append(_dense_layer_np(S, w_taps, H, W, Ho, Wo, cin, cout))
        biases.append(np.tile(b, Ho * Wo))
        acts.append("sigmoid" if i == n_up - 1 else "relu")
        H, W = Ho, Wo
        shapes.append((H, W, cout))

    # fold NCHW->NHWC (input) into rows of A_1, NHWC->NCHW (output) into
    # columns of A_L and its bias -> the wrapper needs no transposes.
    H0, W0, C0 = shapes[0]
    mats[0] = mats[0][_nchw_perm(C0, H0, W0), :]
    HL, WL, CL = shapes[-1]
    perm_out = _nchw_perm(CL, HL, WL)
    mats[-1] = mats[-1][:, perm_out]
    biases[-1] = biases[-1][perm_out]

    # lane-pad every layer width to a multiple of 128 and quantize.
    dims = [m.shape[0] for m in mats] + [mats[-1].shape[1]]
    dims_pad = [_ceil_to(d, LANE) for d in dims]
    d_max = max(dims_pad[1:])
    L = len(mats)

    layers = []
    epi = np.zeros((2 * L, d_max), np.float32)
    total_w_bytes = 0
    for l, (A, b) in enumerate(zip(mats, biases)):
        din_p, dout_p = dims_pad[l], dims_pad[l + 1]
        Ap = np.zeros((din_p, dout_p), np.float32)
        Ap[:A.shape[0], :A.shape[1]] = A
        if weight_dtype == jnp.int8:
            col_max = np.abs(Ap).max(axis=0)
            scale = np.where(col_max > 0, col_max / 127.0, 1.0)
            q = np.clip(np.rint(Ap / scale), -127, 127).astype(np.int8)
            layers.append(jnp.asarray(q))
            epi[l, :dout_p] = scale
        else:
            layers.append(jnp.asarray(Ap, dtype=weight_dtype))
            epi[l, :dout_p] = 1.0
        epi[L + l, :A.shape[1]] = b
        total_w_bytes += int(layers[-1].size) * layers[-1].dtype.itemsize

    # The dense fold grows as (H*W*C)^2; the all-in-VMEM design only holds for
    # small geometries (v7x's 64 MiB physical VMEM breaks first).
    assert total_w_bytes < 24 * 1024 * 1024, (
        "folded weights too large for a single VMEM-resident kernel; tile the "
        "layer output dims over an 'arbitrary' grid axis instead")
    # TODO(synk): add a layer-output-dim tiled fallback for larger geometries.

    return {
        "layers": layers,
        "epi": jnp.asarray(epi),
        "acts": acts,
        "d0": dims[0],
        "d0_pad": dims_pad[0],
        "d_last": dims[-1],
        "out_chw": (CL, HL, WL),
    }


# ----------------------------------------------------------------------------
# Deterministic parameter initialisation (PyTorch-like uniform ranges)
# ----------------------------------------------------------------------------
def init_params(key, in_channel=3):
    def conv_p(key, cout, cin, k):
        kw, kb = jax.random.split(key)
        bound = 1.0 / float(np.sqrt(cin * k * k))
        w = jax.random.uniform(kw, (cout, cin, k, k), jnp.float32, -bound, bound)
        b = jax.random.uniform(kb, (cout,), jnp.float32, -bound, bound)
        return w, b

    def convt_p(key, cin, cout, k):
        kw, kb = jax.random.split(key)
        bound = 1.0 / float(np.sqrt(cout * k * k))
        w = jax.random.uniform(kw, (cin, cout, k, k), jnp.float32, -bound, bound)
        b = jax.random.uniform(kb, (cout,), jnp.float32, -bound, bound)
        return w, b

    ks = jax.random.split(key, 8)
    down = [conv_p(ks[0], 32, in_channel, 4), conv_p(ks[1], 32, 32, 4),
            conv_p(ks[2], 64, 32, 4), conv_p(ks[3], 64, 64, 4)]
    up = [convt_p(ks[4], 64, 64, 4), convt_p(ks[5], 64, 32, 4),
          convt_p(ks[6], 32, 32, 4), convt_p(ks[7], 32, in_channel, 4)]
    return {"down": down, "up": up}


# ----------------------------------------------------------------------------
# Pure-JAX f32 reference (independent im2col / flipped-kernel formulation)
# ----------------------------------------------------------------------------
def _extract_patches(x_pad, k, stride, Ho, Wo):
    cols = []
    for kh in range(k):
        for kw in range(k):
            sl = x_pad[:, kh:kh + stride * (Ho - 1) + 1:stride,
                          kw:kw + stride * (Wo - 1) + 1:stride, :]
            cols.append(sl)
    patches = jnp.concatenate(cols, axis=-1)
    N = x_pad.shape[0]
    return patches.reshape(N * Ho * Wo, -1)


def _conv2d_ref(x, w, b, stride, pad, act):
    N, H, W, Cin = x.shape
    Cout, _, k, _ = w.shape
    x_pad = jnp.pad(x, ((0, 0), (pad, pad), (pad, pad), (0, 0)))
    Ho = (H + 2 * pad - k) // stride + 1
    Wo = (W + 2 * pad - k) // stride + 1
    patches = _extract_patches(x_pad, k, stride, Ho, Wo)
    w2 = jnp.transpose(w, (2, 3, 1, 0)).reshape(k * k * Cin, Cout)
    y = patches @ w2 + b[None, :]
    y = jnp.maximum(y, 0.0) if act == "relu" else jax.nn.sigmoid(y)
    return y.reshape(N, Ho, Wo, Cout)


def _conv_transpose2d_ref(x, w, b, stride, pad, act):
    N, H, W, Cin = x.shape
    _, Cout, k, _ = w.shape
    Hd, Wd = (H - 1) * stride + 1, (W - 1) * stride + 1
    xd = jnp.zeros((N, Hd, Wd, Cin), x.dtype).at[:, ::stride, ::stride, :].set(x)
    ep = k - 1 - pad
    x_pad = jnp.pad(xd, ((0, 0), (ep, ep), (ep, ep), (0, 0)))
    Ho, Wo = Hd + 2 * ep - k + 1, Wd + 2 * ep - k + 1
    patches = _extract_patches(x_pad, k, 1, Ho, Wo)
    wc = jnp.transpose(jnp.flip(w, axis=(2, 3)), (1, 0, 2, 3))
    w2 = jnp.transpose(wc, (2, 3, 1, 0)).reshape(k * k * Cin, Cout)
    y = patches @ w2 + b[None, :]
    y = jnp.maximum(y, 0.0) if act == "relu" else jax.nn.sigmoid(y)
    return y.reshape(N, Ho, Wo, Cout)


def gradcon_cae_forward_ref(params, x_nchw):
    h = jnp.transpose(x_nchw, (0, 2, 3, 1))
    for (w, b), (s, p) in zip(params["down"], [(2, 2)] * 4):
        h = _conv2d_ref(h, w, b, s, p, "relu")
    up_sp = [(2, 2), (2, 1), (2, 2), (2, 1)]
    for i, ((w, b), (s, p)) in enumerate(zip(params["up"], up_sp)):
        h = _conv_transpose2d_ref(h, w, b, s, p,
                                  "sigmoid" if i == 3 else "relu")
    return jnp.transpose(h, (0, 3, 1, 2))


if __name__ == "__main__":
    key = jax.random.PRNGKey(0)
    k_param, k_x = jax.random.split(key)

    in_channel = 3
    # 12x12 input reconstructs to 12x12 with this encoder/decoder geometry
    # (12 -> 7 -> 4 -> 3 -> 2 -> 2 -> 4 -> 6 -> 12).
    x = jax.random.uniform(k_x, (2, in_channel, 12, 12), jnp.float32)

    params = init_params(k_param, in_channel=in_channel)
    dense_params = precompute_dense_params(params, in_hw=12)   # int8 weights

    fwd = make_forward_fn(dense_params)
    out = jax.block_until_ready(fwd(dense_params["layers"],
                                    dense_params["epi"], x))

    # self-check vs an independent pure-JAX f32 conv/conv-transpose reference
    ref = jax.block_until_ready(gradcon_cae_forward_ref(params, x))

    assert out.shape == x.shape, (out.shape, x.shape)
    assert bool(jnp.all(jnp.isfinite(out)))
    assert bool(jnp.all((out >= 0.0) & (out <= 1.0)))          # sigmoid output
    # per-column int8 weights + bf16 MXU (f32 accumulate) vs full-f32 reference
    max_err = float(jnp.max(jnp.abs(out - ref)))
    assert max_err < 2e-2, max_err

    print("KERNEL_OK")
</pallas_src>

<mosaic_0001>
module attributes {stable_mosaic.version = 11 : i64} {
  func.func @_fused_cae_kernel(%arg0: i32, %arg1: memref<16x512xf32, #tpu.memory_space<vmem>>, %arg2: memref<512x1664xi8, #tpu.memory_space<vmem>>, %arg3: memref<1664x512xi8, #tpu.memory_space<vmem>>, %arg4: memref<512x640xi8, #tpu.memory_space<vmem>>, %arg5: memref<640x256xi8, #tpu.memory_space<vmem>>, %arg6: memref<256x256xi8, #tpu.memory_space<vmem>>, %arg7: memref<256x512xi8, #tpu.memory_space<vmem>>, %arg8: memref<512x1152xi8, #tpu.memory_space<vmem>>, %arg9: memref<1152x512xi8, #tpu.memory_space<vmem>>, %arg10: memref<16x1664xf32, #tpu.memory_space<vmem>>, %arg11: memref<16x512xf32, #tpu.memory_space<vmem>>) attributes {dimension_semantics = [#tpu.dimension_semantics<parallel>], iteration_bounds = array<i64: 1>, scalar_prefetch = 0 : i64, scratch_operands = 0 : i64, tpu.core_type = #tpu.core_type<tc>, window_params = [{transform_indices = @transform_0, window_bounds = array<i64: 16, 512>}, {pipeline_mode = #tpu.pipeline_mode<synchronous>, transform_indices = @transform_1, window_bounds = array<i64: 512, 1664>}, {pipeline_mode = #tpu.pipeline_mode<synchronous>, transform_indices = @transform_2, window_bounds = array<i64: 1664, 512>}, {pipeline_mode = #tpu.pipeline_mode<synchronous>, transform_indices = @transform_3, window_bounds = array<i64: 512, 640>}, {pipeline_mode = #tpu.pipeline_mode<synchronous>, transform_indices = @transform_4, window_bounds = array<i64: 640, 256>}, {pipeline_mode = #tpu.pipeline_mode<synchronous>, transform_indices = @transform_5, window_bounds = array<i64: 256, 256>}, {pipeline_mode = #tpu.pipeline_mode<synchronous>, transform_indices = @transform_6, window_bounds = array<i64: 256, 512>}, {pipeline_mode = #tpu.pipeline_mode<synchronous>, transform_indices = @transform_7, window_bounds = array<i64: 512, 1152>}, {pipeline_mode = #tpu.pipeline_mode<synchronous>, transform_indices = @transform_8, window_bounds = array<i64: 1152, 512>}, {pipeline_mode = #tpu.pipeline_mode<synchronous>, transform_indices = @transform_9, window_bounds = array<i64: 16, 1664>}, {transform_indices = @transform_10, window_bounds = array<i64: 16, 512>}]} {
    %c0 = arith.constant 0 : index
    %c0_0 = arith.constant 0 : index
    %0 = vector.load %arg1[%c0, %c0_0] : memref<16x512xf32, #tpu.memory_space<vmem>>, vector<16x512xf32>
    %1 = arith.truncf %0 : vector<16x512xf32> to vector<16x512xbf16>
    %c0_1 = arith.constant 0 : index
    %c0_2 = arith.constant 0 : index
    %2 = vector.load %arg2[%c0_1, %c0_2] : memref<512x1664xi8, #tpu.memory_space<vmem>>, vector<512x1664xi8>
    %3 = arith.sitofp %2 : vector<512x1664xi8> to vector<512x1664xbf16>
    %cst = arith.constant dense<0.000000e+00> : vector<16x1664xf32>
    %4 = tpu.matmul %1, %3, %cst {dimension_numbers = #tpu.dot_dimension_numbers<[1], [0], [0], [1], [0, 0, 1, 1], [], []>} : vector<16x512xbf16>, vector<512x1664xbf16>, vector<16x1664xf32> -> vector<16x1664xf32>
    %c0_3 = arith.constant 0 : index
    %c0_4 = arith.constant 0 : index
    %5 = vector.load %arg10[%c0_3, %c0_4] : memref<16x1664xf32, #tpu.memory_space<vmem>>, vector<1x1664xf32>
    %c8 = arith.constant 8 : index
    %c0_5 = arith.constant 0 : index
    %6 = vector.load %arg10[%c8, %c0_5] : memref<16x1664xf32, #tpu.memory_space<vmem>>, vector<1x1664xf32>
    %7 = vector.broadcast %5 : vector<1x1664xf32> to vector<16x1664xf32>
    %8 = arith.mulf %4, %7 : vector<16x1664xf32>
    %9 = vector.broadcast %6 : vector<1x1664xf32> to vector<16x1664xf32>
    %10 = arith.addf %8, %9 : vector<16x1664xf32>
    %cst_6 = arith.constant 0.000000e+00 : f32
    %11 = vector.broadcast %cst_6 : f32 to vector<16x1664xf32>
    %12 = arith.maximumf %10, %11 : vector<16x1664xf32>
    %13 = arith.truncf %12 : vector<16x1664xf32> to vector<16x1664xbf16>
    %c0_7 = arith.constant 0 : index
    %c0_8 = arith.constant 0 : index
    %14 = vector.load %arg3[%c0_7, %c0_8] : memref<1664x512xi8, #tpu.memory_space<vmem>>, vector<1664x512xi8>
    %15 = arith.sitofp %14 : vector<1664x512xi8> to vector<1664x512xbf16>
    %cst_9 = arith.constant dense<0.000000e+00> : vector<16x512xf32>
    %16 = tpu.matmul %13, %15, %cst_9 {dimension_numbers = #tpu.dot_dimension_numbers<[1], [0], [0], [1], [0, 0, 1, 1], [], []>} : vector<16x1664xbf16>, vector<1664x512xbf16>, vector<16x512xf32> -> vector<16x512xf32>
    %c1 = arith.constant 1 : index
    %c0_10 = arith.constant 0 : index
    %17 = vector.load %arg10[%c1, %c0_10] : memref<16x1664xf32, #tpu.memory_space<vmem>>, vector<1x512xf32>
    %c9 = arith.constant 9 : index
    %c0_11 = arith.constant 0 : index
    %18 = vector.load %arg10[%c9, %c0_11] : memref<16x1664xf32, #tpu.memory_space<vmem>>, vector<1x512xf32>
    %19 = vector.broadcast %17 : vector<1x512xf32> to vector<16x512xf32>
    %20 = arith.mulf %16, %19 : vector<16x512xf32>
    %21 = vector.broadcast %18 : vector<1x512xf32> to vector<16x512xf32>
    %22 = arith.addf %20, %21 : vector<16x512xf32>
    %cst_12 = arith.constant 0.000000e+00 : f32
    %23 = vector.broadcast %cst_12 : f32 to vector<16x512xf32>
    %24 = arith.maximumf %22, %23 : vector<16x512xf32>
    %25 = arith.truncf %24 : vector<16x512xf32> to vector<16x512xbf16>
    %c0_13 = arith.constant 0 : index
    %c0_14 = arith.constant 0 : index
    %26 = vector.load %arg4[%c0_13, %c0_14] : memref<512x640xi8, #tpu.memory_space<vmem>>, vector<512x640xi8>
    %27 = arith.sitofp %26 : vector<512x640xi8> to vector<512x640xbf16>
    %cst_15 = arith.constant dense<0.000000e+00> : vector<16x640xf32>
    %28 = tpu.matmul %25, %27, %cst_15 {dimension_numbers = #tpu.dot_dimension_numbers<[1], [0], [0], [1], [0, 0, 1, 1], [], []>} : vector<16x512xbf16>, vector<512x640xbf16>, vector<16x640xf32> -> vector<16x640xf32>
    %c2 = arith.constant 2 : index
    %c0_16 = arith.constant 0 : index
    %29 = vector.load %arg10[%c2, %c0_16] : memref<16x1664xf32, #tpu.memory_space<vmem>>, vector<1x640xf32>
    %c10 = arith.constant 10 : index
    %c0_17 = arith.constant 0 : index
    %30 = vector.load %arg10[%c10, %c0_17] : memref<16x1664xf32, #tpu.memory_space<vmem>>, vector<1x640xf32>
    %31 = vector.broadcast %29 : vector<1x640xf32> to vector<16x640xf32>
    %32 = arith.mulf %28, %31 : vector<16x640xf32>
    %33 = vector.broadcast %30 : vector<1x640xf32> to vector<16x640xf32>
    %34 = arith.addf %32, %33 : vector<16x640xf32>
    %cst_18 = arith.constant 0.000000e+00 : f32
    %35 = vector.broadcast %cst_18 : f32 to vector<16x640xf32>
    %36 = arith.maximumf %34, %35 : vector<16x640xf32>
    %37 = arith.truncf %36 : vector<16x640xf32> to vector<16x640xbf16>
    %c0_19 = arith.constant 0 : index
    %c0_20 = arith.constant 0 : index
    %38 = vector.load %arg5[%c0_19, %c0_20] : memref<640x256xi8, #tpu.memory_space<vmem>>, vector<640x256xi8>
    %39 = arith.sitofp %38 : vector<640x256xi8> to vector<640x256xbf16>
    %cst_21 = arith.constant dense<0.000000e+00> : vector<16x256xf32>
    %40 = tpu.matmul %37, %39, %cst_21 {dimension_numbers = #tpu.dot_dimension_numbers<[1], [0], [0], [1], [0, 0, 1, 1], [], []>} : vector<16x640xbf16>, vector<640x256xbf16>, vector<16x256xf32> -> vector<16x256xf32>
    %c3 = arith.constant 3 : index
    %c0_22 = arith.constant 0 : index
    %41 = vector.load %arg10[%c3, %c0_22] : memref<16x1664xf32, #tpu.memory_space<vmem>>, vector<1x256xf32>
    %c11 = arith.constant 11 : index
    %c0_23 = arith.constant 0 : index
    %42 = vector.load %arg10[%c11, %c0_23] : memref<16x1664xf32, #tpu.memory_space<vmem>>, vector<1x256xf32>
    %43 = vector.broadcast %41 : vector<1x256xf32> to vector<16x256xf32>
    %44 = arith.mulf %40, %43 : vector<16x256xf32>
    %45 = vector.broadcast %42 : vector<1x256xf32> to vector<16x256xf32>
    %46 = arith.addf %44, %45 : vector<16x256xf32>
    %cst_24 = arith.constant 0.000000e+00 : f32
    %47 = vector.broadcast %cst_24 : f32 to vector<16x256xf32>
    %48 = arith.maximumf %46, %47 : vector<16x256xf32>
    %49 = arith.truncf %48 : vector<16x256xf32> to vector<16x256xbf16>
    %c0_25 = arith.constant 0 : index
    %c0_26 = arith.constant 0 : index
    %50 = vector.load %arg6[%c0_25, %c0_26] : memref<256x256xi8, #tpu.memory_space<vmem>>, vector<256x256xi8>
    %51 = arith.sitofp %50 : vector<256x256xi8> to vector<256x256xbf16>
    %cst_27 = arith.constant dense<0.000000e+00> : vector<16x256xf32>
    %52 = tpu.matmul %49, %51, %cst_27 {dimension_numbers = #tpu.dot_dimension_numbers<[1], [0], [0], [1], [0, 0, 1, 1], [], []>} : vector<16x256xbf16>, vector<256x256xbf16>, vector<16x256xf32> -> vector<16x256xf32>
    %c4 = arith.constant 4 : index
    %c0_28 = arith.constant 0 : index
    %53 = vector.load %arg10[%c4, %c0_28] : memref<16x1664xf32, #tpu.memory_space<vmem>>, vector<1x256xf32>
    %c12 = arith.constant 12 : index
    %c0_29 = arith.constant 0 : index
    %54 = vector.load %arg10[%c12, %c0_29] : memref<16x1664xf32, #tpu.memory_space<vmem>>, vector<1x256xf32>
    %55 = vector.broadcast %53 : vector<1x256xf32> to vector<16x256xf32>
    %56 = arith.mulf %52, %55 : vector<16x256xf32>
    %57 = vector.broadcast %54 : vector<1x256xf32> to vector<16x256xf32>
    %58 = arith.addf %56, %57 : vector<16x256xf32>
    %cst_30 = arith.constant 0.000000e+00 : f32
    %59 = vector.broadcast %cst_30 : f32 to vector<16x256xf32>
    %60 = arith.maximumf %58, %59 : vector<16x256xf32>
    %61 = arith.truncf %60 : vector<16x256xf32> to vector<16x256xbf16>
    %c0_31 = arith.constant 0 : index
    %c0_32 = arith.constant 0 : index
    %62 = vector.load %arg7[%c0_31, %c0_32] : memref<256x512xi8, #tpu.memory_space<vmem>>, vector<256x512xi8>
    %63 = arith.sitofp %62 : vector<256x512xi8> to vector<256x512xbf16>
    %cst_33 = arith.constant dense<0.000000e+00> : vector<16x512xf32>
    %64 = tpu.matmul %61, %63, %cst_33 {dimension_numbers = #tpu.dot_dimension_numbers<[1], [0], [0], [1], [0, 0, 1, 1], [], []>} : vector<16x256xbf16>, vector<256x512xbf16>, vector<16x512xf32> -> vector<16x512xf32>
    %c5 = arith.constant 5 : index
    %c0_34 = arith.constant 0 : index
    %65 = vector.load %arg10[%c5, %c0_34] : memref<16x1664xf32, #tpu.memory_space<vmem>>, vector<1x512xf32>
    %c13 = arith.constant 13 : index
    %c0_35 = arith.constant 0 : index
    %66 = vector.load %arg10[%c13, %c0_35] : memref<16x1664xf32, #tpu.memory_space<vmem>>, vector<1x512xf32>
    %67 = vector.broadcast %65 : vector<1x512xf32> to vector<16x512xf32>
    %68 = arith.mulf %64, %67 : vector<16x512xf32>
    %69 = vector.broadcast %66 : vector<1x512xf32> to vector<16x512xf32>
    %70 = arith.addf %68, %69 : vector<16x512xf32>
    %cst_36 = arith.constant 0.000000e+00 : f32
    %71 = vector.broadcast %cst_36 : f32 to vector<16x512xf32>
    %72 = arith.maximumf %70, %71 : vector<16x512xf32>
    %73 = arith.truncf %72 : vector<16x512xf32> to vector<16x512xbf16>
    %c0_37 = arith.constant 0 : index
    %c0_38 = arith.constant 0 : index
    %74 = vector.load %arg8[%c0_37, %c0_38] : memref<512x1152xi8, #tpu.memory_space<vmem>>, vector<512x1152xi8>
    %75 = arith.sitofp %74 : vector<512x1152xi8> to vector<512x1152xbf16>
    %cst_39 = arith.constant dense<0.000000e+00> : vector<16x1152xf32>
    %76 = tpu.matmul %73, %75, %cst_39 {dimension_numbers = #tpu.dot_dimension_numbers<[1], [0], [0], [1], [0, 0, 1, 1], [], []>} : vector<16x512xbf16>, vector<512x1152xbf16>, vector<16x1152xf32> -> vector<16x1152xf32>
    %c6 = arith.constant 6 : index
    %c0_40 = arith.constant 0 : index
    %77 = vector.load %arg10[%c6, %c0_40] : memref<16x1664xf32, #tpu.memory_space<vmem>>, vector<1x1152xf32>
    %c14 = arith.constant 14 : index
    %c0_41 = arith.constant 0 : index
    %78 = vector.load %arg10[%c14, %c0_41] : memref<16x1664xf32, #tpu.memory_space<vmem>>, vector<1x1152xf32>
    %79 = vector.broadcast %77 : vector<1x1152xf32> to vector<16x1152xf32>
    %80 = arith.mulf %76, %79 : vector<16x1152xf32>
    %81 = vector.broadcast %78 : vector<1x1152xf32> to vector<16x1152xf32>
    %82 = arith.addf %80, %81 : vector<16x1152xf32>
    %cst_42 = arith.constant 0.000000e+00 : f32
    %83 = vector.broadcast %cst_42 : f32 to vector<16x1152xf32>
    %84 = arith.maximumf %82, %83 : vector<16x1152xf32>
    %85 = arith.truncf %84 : vector<16x1152xf32> to vector<16x1152xbf16>
    %c0_43 = arith.constant 0 : index
    %c0_44 = arith.constant 0 : index
    %86 = vector.load %arg9[%c0_43, %c0_44] : memref<1152x512xi8, #tpu.memory_space<vmem>>, vector<1152x512xi8>
    %87 = arith.sitofp %86 : vector<1152x512xi8> to vector<1152x512xbf16>
    %cst_45 = arith.constant dense<0.000000e+00> : vector<16x512xf32>
    %88 = tpu.matmul %85, %87, %cst_45 {dimension_numbers = #tpu.dot_dimension_numbers<[1], [0], [0], [1], [0, 0, 1, 1], [], []>} : vector<16x1152xbf16>, vector<1152x512xbf16>, vector<16x512xf32> -> vector<16x512xf32>
    %c7 = arith.constant 7 : index
    %c0_46 = arith.constant 0 : index
    %89 = vector.load %arg10[%c7, %c0_46] : memref<16x1664xf32, #tpu.memory_space<vmem>>, vector<1x512xf32>
    %c15 = arith.constant 15 : index
    %c0_47 = arith.constant 0 : index
    %90 = vector.load %arg10[%c15, %c0_47] : memref<16x1664xf32, #tpu.memory_space<vmem>>, vector<1x512xf32>
    %91 = vector.broadcast %89 : vector<1x512xf32> to vector<16x512xf32>
    %92 = arith.mulf %88, %91 : vector<16x512xf32>
    %93 = vector.broadcast %90 : vector<1x512xf32> to vector<16x512xf32>
    %94 = arith.addf %92, %93 : vector<16x512xf32>
    %95 = arith.negf %94 : vector<16x512xf32>
    %96 = math.exp %95 : vector<16x512xf32>
    %cst_48 = arith.constant 1.000000e+00 : f32
    %97 = vector.broadcast %cst_48 : f32 to vector<16x512xf32>
    %98 = arith.addf %97, %96 : vector<16x512xf32>
    %99 = arith.divf %97, %98 : vector<16x512xf32>
    %c0_49 = arith.constant 0 : index
    %c0_50 = arith.constant 0 : index
    %100 = vector.load %arg11[%c0_49, %c0_50] : memref<16x512xf32, #tpu.memory_space<vmem>>, vector<16x512xf32>
    tpu.vector_store %arg11[%c0_49, %c0_50], %99 {strides = array<i32>} : memref<16x512xf32, #tpu.memory_space<vmem>>, vector<16x512xf32>,
    return
  }
  func.func @transform_0(%arg0: i32) -> (i32, i32) {
    %c0_i32 = arith.constant 0 : i32
    %c0_i32_0 = arith.constant 0 : i32
    return %arg0, %c0_i32 : i32, i32
  }
  func.func @transform_1(%arg0: i32) -> (i32, i32) {
    %c0_i32 = arith.constant 0 : i32
    %c0_i32_0 = arith.constant 0 : i32
    %c0_i32_1 = arith.constant 0 : i32
    return %c0_i32, %c0_i32_0 : i32, i32
  }
  func.func @transform_2(%arg0: i32) -> (i32, i32) {
    %c0_i32 = arith.constant 0 : i32
    %c0_i32_0 = arith.constant 0 : i32
    %c0_i32_1 = arith.constant 0 : i32
    return %c0_i32, %c0_i32_0 : i32, i32
  }
  func.func @transform_3(%arg0: i32) -> (i32, i32) {
    %c0_i32 = arith.constant 0 : i32
    %c0_i32_0 = arith.constant 0 : i32
    %c0_i32_1 = arith.constant 0 : i32
    return %c0_i32, %c0_i32_0 : i32, i32
  }
  func.func @transform_4(%arg0: i32) -> (i32, i32) {
    %c0_i32 = arith.constant 0 : i32
    %c0_i32_0 = arith.constant 0 : i32
    %c0_i32_1 = arith.constant 0 : i32
    return %c0_i32, %c0_i32_0 : i32, i32
  }
  func.func @transform_5(%arg0: i32) -> (i32, i32) {
    %c0_i32 = arith.constant 0 : i32
    %c0_i32_0 = arith.constant 0 : i32
    %c0_i32_1 = arith.constant 0 : i32
    return %c0_i32, %c0_i32_0 : i32, i32
  }
  func.func @transform_6(%arg0: i32) -> (i32, i32) {
    %c0_i32 = arith.constant 0 : i32
    %c0_i32_0 = arith.constant 0 : i32
    %c0_i32_1 = arith.constant 0 : i32
    return %c0_i32, %c0_i32_0 : i32, i32
  }
  func.func @transform_7(%arg0: i32) -> (i32, i32) {
    %c0_i32 = arith.constant 0 : i32
    %c0_i32_0 = arith.constant 0 : i32
    %c0_i32_1 = arith.constant 0 : i32
    return %c0_i32, %c0_i32_0 : i32, i32
  }
  func.func @transform_8(%arg0: i32) -> (i32, i32) {
    %c0_i32 = arith.constant 0 : i32
    %c0_i32_0 = arith.constant 0 : i32
    %c0_i32_1 = arith.constant 0 : i32
    return %c0_i32, %c0_i32_0 : i32, i32
  }
  func.func @transform_9(%arg0: i32) -> (i32, i32) {
    %c0_i32 = arith.constant 0 : i32
    %c0_i32_0 = arith.constant 0 : i32
    %c0_i32_1 = arith.constant 0 : i32
    return %c0_i32, %c0_i32_0 : i32, i32
  }
  func.func @transform_10(%arg0: i32) -> (i32, i32) {
    %c0_i32 = arith.constant 0 : i32
    %c0_i32_0 = arith.constant 0 : i32
    return %arg0, %c0_i32 : i32, i32
  }
}

</mosaic_0001>

<llo_original>
// kernel: gradcon_cae_forward.1
$region0: #{gradcon_cae_forward.1}
  #allocation0 [shape = 'u32[]', space=smem, size = 0x4, offset = 0x4, fixed_abs, tag = 'smem constant byte address 0x4 - core index']
  #allocation1 [shape = 'u32[144,128]{1,0:T(1,128)}', space=vmem, size = 0x12000, scoped, tag = 'internal scratch']
  %s0 = inlined_call_operand.vmem [shape: f32[16,512], index: 0, kind: input, shape index: {}]
  %s1 = inlined_call_operand.hbm [shape: s8[512,1664], index: 1, kind: input, shape index: {}]
  %s2 = inlined_call_operand.hbm [shape: s8[1664,512], index: 2, kind: input, shape index: {}]
  %s3 = inlined_call_operand.hbm [shape: s8[512,640], index: 3, kind: input, shape index: {}]
  %s4 = inlined_call_operand.vmem [shape: s8[640,256], index: 4, kind: input, shape index: {}]
  %s5 = inlined_call_operand.hbm [shape: s8[256,256], index: 5, kind: input, shape index: {}]
  %s6 = inlined_call_operand.hbm [shape: s8[256,512], index: 6, kind: input, shape index: {}]
  %s7 = inlined_call_operand.hbm [shape: s8[512,1152], index: 7, kind: input, shape index: {}]
  %s8 = inlined_call_operand.hbm [shape: s8[1152,512], index: 8, kind: input, shape index: {}]
  %s9 = inlined_call_operand.hbm [shape: f32[16,1664], index: 9, kind: input, shape index: {}]
  %s10 = inlined_call_operand.vmem [shape: f32[16,512], index: 10, kind: output, shape index: {}]
  %s11 = sld [smem:[#allocation0]]
  $region82: #{gradcon_cae_forward.1} parent=0
    _
  %s13 = ssub.s32 1, %s11
  %s14 = scalar_select 0, %s13, %s11
  $region1: #{gradcon_cae_forward.1} parent=0
    #allocation2 [shape = 'u8[851968]{0}', space=vmem, size = 0xd0000, scoped, tag = 'input window, operand 1, single buffered']
    #allocation3 [shape = 's32[1]{0}', space=sflag, size = 0x4, scoped, tag = 'scoped memory for gradcon_cae_forward.1']
    #allocation4 [shape = 'u8[851968]{0}', space=vmem, size = 0xd0000, scoped, tag = 'input window, operand 2, single buffered']
    #allocation5 [shape = 's32[1]{0}', space=sflag, size = 0x4, scoped, tag = 'scoped memory for gradcon_cae_forward.1']
    #allocation6 [shape = 'u8[327680]{0}', space=vmem, size = 0x50000, scoped, tag = 'input window, operand 3, single buffered']
    #allocation7 [shape = 'u8[65536]{0}', space=vmem, size = 0x10000, scoped, tag = 'input window, operand 5, single buffered']
    #allocation8 [shape = 's32[1]{0}', space=sflag, size = 0x4, scoped, tag = 'scoped memory for gradcon_cae_forward.1']
    #allocation9 [shape = 'u8[131072]{0}', space=vmem, size = 0x20000, scoped, tag = 'input window, operand 6, single buffered']
    #allocation10 [shape = 'u8[589824]{0}', space=vmem, size = 0x90000, scoped, tag = 'input window, operand 7, single buffered']
    #allocation11 [shape = 's32[1]{0}', space=sflag, size = 0x4, scoped, tag = 'scoped memory for gradcon_cae_forward.1']
    #allocation12 [shape = 'u8[589824]{0}', space=vmem, size = 0x90000, scoped, tag = 'input window, operand 8, single buffered']
    #allocation13 [shape = 'u8[106496]{0}', space=vmem, size = 0x1a000, scoped, tag = 'input window, operand 9, single buffered']
    #allocation14 [shape = 's32[1]{0}', space=sflag, size = 0x4, scoped, tag = 'scoped memory for gradcon_cae_forward.1']
    %15 = vsyncpa [#allocation3], 0
    %16 = vsyncpa [#allocation5], 0
    %17 = vsyncpa [#allocation8], 0
    %18 = vsyncpa [#allocation11], 0
    %19 = vsyncpa [#allocation14], 0
    // Predicated region
    $region2: #{gradcon_cae_forward.1} parent=1 // pred_check
      _
    $region3: #{gradcon_cae_forward.1} parent=1 // pred_check_branch
      %21 = sbr.rel (0) target = $region5
    $region4: #{gradcon_cae_forward.1} parent=1 // pred_region
      _
    $region5: #{gradcon_cae_forward.1} parent=1 // pred_fallthru
      _
    // Predicated region
    $region6: #{gradcon_cae_forward.1} parent=1 // pred_check
      _
    $region7: #{gradcon_cae_forward.1} parent=1 // pred_check_branch
      %23 = sbr.rel (0) target = $region9
    $region8: #{gradcon_cae_forward.1} parent=1 // pred_region
      %s25 = ssub.s32 26624, 26624
      %26 = vsyncadd [#allocation3], %s25
      %s27 = sshll.u32 [#allocation2], 4
      %s28 = int_to_ptr.vmem [resolvable:$true] %s27
      %33 = dma.hbm_to_vmem [thread:$0]  %s1, 26624, %s28, [#allocation3], 1664, 1664, 104
    $region9: #{gradcon_cae_forward.1} parent=1 // pred_fallthru
      _
    // Predicated region
    $region10: #{gradcon_cae_forward.1} parent=1 // pred_check
      _
    $region11: #{gradcon_cae_forward.1} parent=1 // pred_check_branch
      %35 = sbr.rel (0) target = $region13
    $region12: #{gradcon_cae_forward.1} parent=1 // pred_region
      %s37 = ssub.s32 26624, 26624
      %38 = vsyncadd [#allocation5], %s37
      %s39 = sshll.u32 [#allocation4], 4
      %s40 = int_to_ptr.vmem [resolvable:$true] %s39
      %45 = dma.hbm_to_vmem [thread:$0]  %s2, 26624, %s40, [#allocation5], 512, 512, 32
    $region13: #{gradcon_cae_forward.1} parent=1 // pred_fallthru
      _
    // Predicated region
    $region14: #{gradcon_cae_forward.1} parent=1 // pred_check
      _
    $region15: #{gradcon_cae_forward.1} parent=1 // pred_check_branch
      %47 = sbr.rel (0) target = $region17
    $region16: #{gradcon_cae_forward.1} parent=1 // pred_region
      %s49 = ssub.s32 10240, 10240
      %50 = vsyncadd [#allocation5], %s49
      %s51 = sshll.u32 [#allocation6], 4
      %s52 = int_to_ptr.vmem [resolvable:$true] %s51
      %57 = dma.hbm_to_vmem [thread:$0]  %s3, 10240, %s52, [#allocation5], 640, 640, 40
    $region17: #{gradcon_cae_forward.1} parent=1 // pred_fallthru
      _
    // Predicated region
    $region18: #{gradcon_cae_forward.1} parent=1 // pred_check
      _
    $region19: #{gradcon_cae_forward.1} parent=1 // pred_check_branch
      %59 = sbr.rel (0) target = $region21
    $region20: #{gradcon_cae_forward.1} parent=1 // pred_region
      _
    $region21: #{gradcon_cae_forward.1} parent=1 // pred_fallthru
      _
    // Predicated region
    $region22: #{gradcon_cae_forward.1} parent=1 // pred_check
      _
    $region23: #{gradcon_cae_forward.1} parent=1 // pred_check_branch
      %61 = sbr.rel (0) target = $region25
    $region24: #{gradcon_cae_forward.1} parent=1 // pred_region
      %s63 = ssub.s32 2048, 2048
      %64 = vsyncadd [#allocation8], %s63
      %s65 = sshll.u32 [#allocation7], 4
      %s66 = int_to_ptr.vmem [resolvable:$true] %s65
      %71 = dma.hbm_to_vmem [thread:$0]  %s5, 2048, %s66, [#allocation8], 256, 256, 16
    $region25: #{gradcon_cae_forward.1} parent=1 // pred_fallthru
      _
    // Predicated region
    $region26: #{gradcon_cae_forward.1} parent=1 // pred_check
      _
    $region27: #{gradcon_cae_forward.1} parent=1 // pred_check_branch
      %73 = sbr.rel (0) target = $region29
    $region28: #{gradcon_cae_forward.1} parent=1 // pred_region
      %s75 = ssub.s32 4096, 4096
      %76 = vsyncadd [#allocation8], %s75
      %s77 = sshll.u32 [#allocation9], 4
      %s78 = int_to_ptr.vmem [resolvable:$true] %s77
      %83 = dma.hbm_to_vmem [thread:$0]  %s6, 4096, %s78, [#allocation8], 512, 512, 32
    $region29: #{gradcon_cae_forward.1} parent=1 // pred_fallthru
      _
    // Predicated region
    $region30: #{gradcon_cae_forward.1} parent=1 // pred_check
      _
    $region31: #{gradcon_cae_forward.1} parent=1 // pred_check_branch
      %85 = sbr.rel (0) target = $region33
    $region32: #{gradcon_cae_forward.1} parent=1 // pred_region
      %s87 = ssub.s32 18432, 18432
      %88 = vsyncadd [#allocation11], %s87
      %s89 = sshll.u32 [#allocation10], 4
      %s90 = int_to_ptr.vmem [resolvable:$true] %s89
      %95 = dma.hbm_to_vmem [thread:$0]  %s7, 18432, %s90, [#allocation11], 1152, 1152, 72
    $region33: #{gradcon_cae_forward.1} parent=1 // pred_fallthru
      _
    // Predicated region
    $region34: #{gradcon_cae_forward.1} parent=1 // pred_check
      _
    $region35: #{gradcon_cae_forward.1} parent=1 // pred_check_branch
      %97 = sbr.rel (0) target = $region37
    $region36: #{gradcon_cae_forward.1} parent=1 // pred_region
      %s99 = ssub.s32 18432, 18432
      %100 = vsyncadd [#allocation11], %s99
      %s101 = sshll.u32 [#allocation12], 4
      %s102 = int_to_ptr.vmem [resolvable:$true] %s101
      %107 = dma.hbm_to_vmem [thread:$0]  %s8, 18432, %s102, [#allocation11], 512, 512, 32
    $region37: #{gradcon_cae_forward.1} parent=1 // pred_fallthru
      _
    // Predicated region
    $region38: #{gradcon_cae_forward.1} parent=1 // pred_check
      _
    $region39: #{gradcon_cae_forward.1} parent=1 // pred_check_branch
      %109 = sbr.rel (0) target = $region41
    $region40: #{gradcon_cae_forward.1} parent=1 // pred_region
      %s111 = ssub.s32 3328, 3328
      %112 = vsyncadd [#allocation14], %s111
      %s113 = sshll.u32 [#allocation13], 4
      %s114 = int_to_ptr.vmem [resolvable:$true] %s113
      %119 = dma.hbm_to_vmem [thread:$0]  %s9, 3328, %s114, [#allocation14], 1664, 1664, 104
    $region41: #{gradcon_cae_forward.1} parent=1 // pred_fallthru
      _
    // Predicated region
    $region42: #{gradcon_cae_forward.1} parent=1 // pred_check
      _
    $region43: #{gradcon_cae_forward.1} parent=1 // pred_check_branch
      %121 = sbr.rel (0) target = $region45
    $region44: #{gradcon_cae_forward.1} parent=1 // pred_region
      %122 = dma.done [#allocation3], 26624
    $region45: #{gradcon_cae_forward.1} parent=1 // pred_fallthru
      _
    // Predicated region
    $region46: #{gradcon_cae_forward.1} parent=1 // pred_check
      _
    $region47: #{gradcon_cae_forward.1} parent=1 // pred_check_branch
      %124 = sbr.rel (0) target = $region49
    $region48: #{gradcon_cae_forward.1} parent=1 // pred_region
      %125 = dma.done [#allocation5], 26624
    $region49: #{gradcon_cae_forward.1} parent=1 // pred_fallthru
      _
    // Predicated region
    $region50: #{gradcon_cae_forward.1} parent=1 // pred_check
      _
    $region51: #{gradcon_cae_forward.1} parent=1 // pred_check_branch
      %127 = sbr.rel (0) target = $region53
    $region52: #{gradcon_cae_forward.1} parent=1 // pred_region
      %128 = dma.done [#allocation5], 10240
    $region53: #{gradcon_cae_forward.1} parent=1 // pred_fallthru
      _
    // Predicated region
    $region54: #{gradcon_cae_forward.1} parent=1 // pred_check
      _
    $region55: #{gradcon_cae_forward.1} parent=1 // pred_check_branch
      %130 = sbr.rel (0) target = $region57
    $region56: #{gradcon_cae_forward.1} parent=1 // pred_region
      %131 = dma.done [#allocation8], 2048
    $region57: #{gradcon_cae_forward.1} parent=1 // pred_fallthru
      _
    // Predicated region
    $region58: #{gradcon_cae_forward.1} parent=1 // pred_check
      _
    $region59: #{gradcon_cae_forward.1} parent=1 // pred_check_branch
      %133 = sbr.rel (0) target = $region61
    $region60: #{gradcon_cae_forward.1} parent=1 // pred_region
      %134 = dma.done [#allocation8], 4096
    $region61: #{gradcon_cae_forward.1} parent=1 // pred_fallthru
      _
    // Predicated region
    $region62: #{gradcon_cae_forward.1} parent=1 // pred_check
      _
    $region63: #{gradcon_cae_forward.1} parent=1 // pred_check_branch
      %136 = sbr.rel (0) target = $region65
    $region64: #{gradcon_cae_forward.1} parent=1 // pred_region
      %137 = dma.done [#allocation11], 18432
    $region65: #{gradcon_cae_forward.1} parent=1 // pred_fallthru
      _
    // Predicated region
    $region66: #{gradcon_cae_forward.1} parent=1 // pred_check
      _
    $region67: #{gradcon_cae_forward.1} parent=1 // pred_check_branch
      %139 = sbr.rel (0) target = $region69
    $region68: #{gradcon_cae_forward.1} parent=1 // pred_region
      %140 = dma.done [#allocation11], 18432
    $region69: #{gradcon_cae_forward.1} parent=1 // pred_fallthru
      _
    // Predicated region
    $region70: #{gradcon_cae_forward.1} parent=1 // pred_check
      _
    $region71: #{gradcon_cae_forward.1} parent=1 // pred_check_branch
      %142 = sbr.rel (0) target = $region73
    $region72: #{gradcon_cae_forward.1} parent=1 // pred_region
      %143 = dma.done [#allocation14], 3328
    $region73: #{gradcon_cae_forward.1} parent=1 // pred_fallthru
      _
    %v145 = vld [vmem:[%s0] sm:$0xff]
    %v146 = vld [vmem:[%s0 + $0x8] sm:$0xff]
    %v147 = vld [vmem:[%s0 + $0x10] sm:$0xff]
    %v148 = vld [vmem:[%s0 + $0x18] sm:$0xff]
    %v149 = vld [vmem:[%s0 + $0x20] sm:$0xff]
    %v150 = vld [vmem:[%s0 + $0x28] sm:$0xff]
    %v151 = vld [vmem:[%s0 + $0x30] sm:$0xff]
    %v152 = vld [vmem:[%s0 + $0x38] sm:$0xff]
    %v153 = vpack.c.bf16 %v149, %v145
    %v154 = vpack.c.bf16 %v150, %v146
    %v155 = vpack.c.bf16 %v151, %v147
    %v156 = vpack.c.bf16 %v152, %v148
    %v157 = vld [vmem:[#allocation2] sm:$0xff]
    %v158 = vld [vmem:[#allocation2 + $0x8] sm:$0xff]
    %v159 = vld [vmem:[#allocation2 + $0x10] sm:$0xff]
    %v160 = vld [vmem:[#allocation2 + $0x18] sm:$0xff]
    %v161 = vld [vmem:[#allocation2 + $0x20] sm:$0xff]
    %v162 = vld [vmem:[#allocation2 + $0x28] sm:$0xff]
    %v163 = vld [vmem:[#allocation2 + $0x30] sm:$0xff]
    %v164 = vld [vmem:[#allocation2 + $0x38] sm:$0xff]
    %v165 = vld [vmem:[#allocation2 + $0x40] sm:$0xff]
    %v166 = vld [vmem:[#allocation2 + $0x48] sm:$0xff]
    %v167 = vld [vmem:[#allocation2 + $0x50] sm:$0xff]
    %v168 = vld [vmem:[#allocation2 + $0x58] sm:$0xff]
    %v169 = vld [vmem:[#allocation2 + $0x60] sm:$0xff]
    %v170 = vld [vmem:[#allocation2 + $0x68] sm:$0xff]
    %v171 = vld [vmem:[#allocation2 + $0x70] sm:$0xff]
    %v172 = vld [vmem:[#allocation2 + $0x78] sm:$0xff]
    %v173 = vld [vmem:[#allocation2 + $0x80] sm:$0xff]
    %v174 = vld [vmem:[#allocation2 + $0x88] sm:$0xff]
    %v175 = vld [vmem:[#allocation2 + $0x90] sm:$0xff]
    %v176 = vld [vmem:[#allocation2 + $0x98] sm:$0xff]
    %v177 = vld [vmem:[#allocation2 + $0xa0] sm:$0xff]
    %v178 = vld [vmem:[#allocation2 + $0xa8] sm:$0xff]
    %v179 = vld [vmem:[#allocation2 + $0xb0] sm:$0xff]
    %v180 = vld [vmem:[#allocation2 + $0xb8] sm:$0xff]
    %v181 = vld [vmem:[#allocation2 + $0xc0] sm:$0xff]
    %v182 = vld [vmem:[#allocation2 + $0xc8] sm:$0xff]
    %v183 = vld [vmem:[#allocation2 + $0xd0] sm:$0xff]
    %v184 = vld [vmem:[#allocation2 + $0xd8] sm:$0xff]
    %v185 = vld [vmem:[#allocation2 + $0xe0] sm:$0xff]
    %v186 = vld [vmem:[#allocation2 + $0xe8] sm:$0xff]
    %v187 = vld [vmem:[#allocation2 + $0xf0] sm:$0xff]
    %v188 = vld [vmem:[#allocation2 + $0xf8] sm:$0xff]
    %v189 = vld [vmem:[#allocation2 + $0x100] sm:$0xff]
    %v190 = vld [vmem:[#allocation2 + $0x108] sm:$0xff]
    %v191 = vld [vmem:[#allocation2 + $0x110] sm:$0xff]
    %v192 = vld [vmem:[#allocation2 + $0x118] sm:$0xff]
    %v193 = vld [vmem:[#allocation2 + $0x120] sm:$0xff]
    %v194 = vld [vmem:[#allocation2 + $0x128] sm:$0xff]
    %v195 = vld [vmem:[#allocation2 + $0x130] sm:$0xff]
    %v196 = vld [vmem:[#allocation2 + $0x138] sm:$0xff]
    %v197 = vld [vmem:[#allocation2 + $0x140] sm:$0xff]
    %v198 = vld [vmem:[#allocation2 + $0x148] sm:$0xff]
    %v199 = vld [vmem:[#allocation2 + $0x150] sm:$0xff]
    %v200 = vld [vmem:[#allocation2 + $0x158] sm:$0xff]
    %v201 = vld [vmem:[#allocation2 + $0x160] sm:$0xff]
    %v202 = vld [vmem:[#allocation2 + $0x168] sm:$0xff]
    %v203 = vld [vmem:[#allocation2 + $0x170] sm:$0xff]
    %v204 = vld [vmem:[#allocation2 + $0x178] sm:$0xff]
    %v205 = vld [vmem:[#allocation2 + $0x180] sm:$0xff]
    %v206 = vld [vmem:[#allocation2 + $0x188] sm:$0xff]
    %v207 = vld [vmem:[#allocation2 + $0x190] sm:$0xff]
    %v208 = vld [vmem:[#allocation2 + $0x198] sm:$0xff]
    %v209 = vld [vmem:[#allocation2 + $0x1a0] sm:$0xff]
    %v210 = vld [vmem:[#allocation2 + $0x1a8] sm:$0xff]
    %v211 = vld [vmem:[#allocation2 + $0x1b0] sm:$0xff]
    %v212 = vld [vmem:[#allocation2 + $0x1b8] sm:$0xff]
    %v213 = vld [vmem:[#allocation2 + $0x1c0] sm:$0xff]
    %v214 = vld [vmem:[#allocation2 + $0x1c8] sm:$0xff]
    %v215 = vld [vmem:[#allocation2 + $0x1d0] sm:$0xff]
    %v216 = vld [vmem:[#allocation2 + $0x1d8] sm:$0xff]
    %v217 = vld [vmem:[#allocation2 + $0x1e0] sm:$0xff]
    %v218 = vld [vmem:[#allocation2 + $0x1e8] sm:$0xff]
    %v219 = vld [vmem:[#allocation2 + $0x1f0] sm:$0xff]
    %v220 = vld [vmem:[#allocation2 + $0x1f8] sm:$0xff]
    %v221 = vld [vmem:[#allocation2 + $0x200] sm:$0xff]
    %v222 = vld [vmem:[#allocation2 + $0x208] sm:$0xff]
    %v223 = vld [vmem:[#allocation2 + $0x210] sm:$0xff]
    %v224 = vld [vmem:[#allocation2 + $0x218] sm:$0xff]
    %v225 = vld [vmem:[#allocation2 + $0x220] sm:$0xff]
    %v226 = vld [vmem:[#allocation2 + $0x228] sm:$0xff]
    %v227 = vld [vmem:[#allocation2 + $0x230] sm:$0xff]
    %v228 = vld [vmem:[#allocation2 + $0x238] sm:$0xff]
    %v229 = vld [vmem:[#allocation2 + $0x240] sm:$0xff]
    %v230 = vld [vmem:[#allocation2 + $0x248] sm:$0xff]
    %v231 = vld [vmem:[#allocation2 + $0x250] sm:$0xff]
    %v232 = vld [vmem:[#allocation2 + $0x258] sm:$0xff]
    %v233 = vld [vmem:[#allocation2 + $0x260] sm:$0xff]
    %v234 = vld [vmem:[#allocation2 + $0x268] sm:$0xff]
    %v235 = vld [vmem:[#allocation2 + $0x270] sm:$0xff]
    %v236 = vld [vmem:[#allocation2 + $0x278] sm:$0xff]
    %v237 = vld [vmem:[#allocation2 + $0x280] sm:$0xff]
    %v238 = vld [vmem:[#allocation2 + $0x288] sm:$0xff]
    %v239 = vld [vmem:[#allocation2 + $0x290] sm:$0xff]
    %v240 = vld [vmem:[#allocation2 + $0x298] sm:$0xff]
    %v241 = vld [vmem:[#allocation2 + $0x2a0] sm:$0xff]
    %v242 = vld [vmem:[#allocation2 + $0x2a8] sm:$0xff]
    %v243 = vld [vmem:[#allocation2 + $0x2b0] sm:$0xff]
    %v244 = vld [vmem:[#allocation2 + $0x2b8] sm:$0xff]
    %v245 = vld [vmem:[#allocation2 + $0x2c0] sm:$0xff]
    %v246 = vld [vmem:[#allocation2 + $0x2c8] sm:$0xff]
    %v247 = vld [vmem:[#allocation2 + $0x2d0] sm:$0xff]
    %v248 = vld [vmem:[#allocation2 + $0x2d8] sm:$0xff]
    %v249 = vld [vmem:[#allocation2 + $0x2e0] sm:$0xff]
    %v250 = vld [vmem:[#allocation2 + $0x2e8] sm:$0xff]
    %v251 = vld [vmem:[#allocation2 + $0x2f0] sm:$0xff]
    %v252 = vld [vmem:[#allocation2 + $0x2f8] sm:$0xff]
    %v253 = vld [vmem:[#allocation2 + $0x300] sm:$0xff]
    %v254 = vld [vmem:[#allocation2 + $0x308] sm:$0xff]
    %v255 = vld [vmem:[#allocation2 + $0x310] sm:$0xff]
    %v256 = vld [vmem:[#allocation2 + $0x318] sm:$0xff]
    %v257 = vld [vmem:[#allocation2 + $0x320] sm:$0xff]
    %v258 = vld [vmem:[#allocation2 + $0x328] sm:$0xff]
    %v259 = vld [vmem:[#allocation2 + $0x330] sm:$0xff]
    %v260 = vld [vmem:[#allocation2 + $0x338] sm:$0xff]
    %v261 = vld [vmem:[#allocation2 + $0x340] sm:$0xff]
    %v262 = vld [vmem:[#allocation2 + $0x348] sm:$0xff]
    %v263 = vld [vmem:[#allocation2 + $0x350] sm:$0xff]
    %v264 = vld [vmem:[#allocation2 + $0x358] sm:$0xff]
    %v265 = vld [vmem:[#allocation2 + $0x360] sm:$0xff]
    %v266 = vld [vmem:[#allocation2 + $0x368] sm:$0xff]
    %v267 = vld [vmem:[#allocation2 + $0x370] sm:$0xff]
    %v268 = vld [vmem:[#allocation2 + $0x378] sm:$0xff]
    %v269 = vld [vmem:[#allocation2 + $0x380] sm:$0xff]
    %v270 = vld [vmem:[#allocation2 + $0x388] sm:$0xff]
    %v271 = vld [vmem:[#allocation2 + $0x390] sm:$0xff]
    %v272 = vld [vmem:[#allocation2 + $0x398] sm:$0xff]
    %v273 = vld [vmem:[#allocation2 + $0x3a0] sm:$0xff]
    %v274 = vld [vmem:[#allocation2 + $0x3a8] sm:$0xff]
    %v275 = vld [vmem:[#allocation2 + $0x3b0] sm:$0xff]
    %v276 = vld [vmem:[#allocation2 + $0x3b8] sm:$0xff]
    %v277 = vld [vmem:[#allocation2 + $0x3c0] sm:$0xff]
    %v278 = vld [vmem:[#allocation2 + $0x3c8] sm:$0xff]
    %v279 = vld [vmem:[#allocation2 + $0x3d0] sm:$0xff]
    %v280 = vld [vmem:[#allocation2 + $0x3d8] sm:$0xff]
    %v281 = vld [vmem:[#allocation2 + $0x3e0] sm:$0xff]
    %v282 = vld [vmem:[#allocation2 + $0x3e8] sm:$0xff]
    %v283 = vld [vmem:[#allocation2 + $0x3f0] sm:$0xff]
    %v284 = vld [vmem:[#allocation2 + $0x3f8] sm:$0xff]
    %v285 = vld [vmem:[#allocation2 + $0x400] sm:$0xff]
    %v286 = vld [vmem:[#allocation2 + $0x408] sm:$0xff]
    %v287 = vld [vmem:[#allocation2 + $0x410] sm:$0xff]
    %v288 = vld [vmem:[#allocation2 + $0x418] sm:$0xff]
    %v289 = vld [vmem:[#allocation2 + $0x420] sm:$0xff]
    %v290 = vld [vmem:[#allocation2 + $0x428] sm:$0xff]
    %v291 = vld [vmem:[#allocation2 + $0x430] sm:$0xff]
    %v292 = vld [vmem:[#allocation2 + $0x438] sm:$0xff]
    %v293 = vld [vmem:[#allocation2 + $0x440] sm:$0xff]
    %v294 = vld [vmem:[#allocation2 + $0x448] sm:$0xff]
    %v295 = vld [vmem:[#allocation2 + $0x450] sm:$0xff]
    %v296 = vld [vmem:[#allocation2 + $0x458] sm:$0xff]
    %v297 = vld [vmem:[#allocation2 + $0x460] sm:$0xff]
    %v298 = vld [vmem:[#allocation2 + $0x468] sm:$0xff]
    %v299 = vld [vmem:[#allocation2 + $0x470] sm:$0xff]
    %v300 = vld [vmem:[#allocation2 + $0x478] sm:$0xff]
    %v301 = vld [vmem:[#allocation2 + $0x480] sm:$0xff]
    %v302 = vld [vmem:[#allocation2 + $0x488] sm:$0xff]
    %v303 = vld [vmem:[#allocation2 + $0x490] sm:$0xff]
    %v304 = vld [vmem:[#allocation2 + $0x498] sm:$0xff]
    %v305 = vld [vmem:[#allocation2 + $0x4a0] sm:$0xff]
    %v306 = vld [vmem:[#allocation2 + $0x4a8] sm:$0xff]
    %v307 = vld [vmem:[#allocation2 + $0x4b0] sm:$0xff]
    %v308 = vld [vmem:[#allocation2 + $0x4b8] sm:$0xff]
    %v309 = vld [vmem:[#allocation2 + $0x4c0] sm:$0xff]
    %v310 = vld [vmem:[#allocation2 + $0x4c8] sm:$0xff]
    %v311 = vld [vmem:[#allocation2 + $0x4d0] sm:$0xff]
    %v312 = vld [vmem:[#allocation2 + $0x4d8] sm:$0xff]
    %v313 = vld [vmem:[#allocation2 + $0x4e0] sm:$0xff]
    %v314 = vld [vmem:[#allocation2 + $0x4e8] sm:$0xff]
    %v315 = vld [vmem:[#allocation2 + $0x4f0] sm:$0xff]
    %v316 = vld [vmem:[#allocation2 + $0x4f8] sm:$0xff]
    %v317 = vld [vmem:[#allocation2 + $0x500] sm:$0xff]
    %v318 = vld [vmem:[#allocation2 + $0x508] sm:$0xff]
    %v319 = vld [vmem:[#allocation2 + $0x510] sm:$0xff]
    %v320 = vld [vmem:[#allocation2 + $0x518] sm:$0xff]
    %v321 = vld [vmem:[#allocation2 + $0x520] sm:$0xff]
    %v322 = vld [vmem:[#allocation2 + $0x528] sm:$0xff]
    %v323 = vld [vmem:[#allocation2 + $0x530] sm:$0xff]
    %v324 = vld [vmem:[#allocation2 + $0x538] sm:$0xff]
    %v325 = vld [vmem:[#allocation2 + $0x540] sm:$0xff]
    %v326 = vld [vmem:[#allocation2 + $0x548] sm:$0xff]
    %v327 = vld [vmem:[#allocation2 + $0x550] sm:$0xff]
    %v328 = vld [vmem:[#allocation2 + $0x558] sm:$0xff]
    %v329 = vld [vmem:[#allocation2 + $0x560] sm:$0xff]
    %v330 = vld [vmem:[#allocation2 + $0x568] sm:$0xff]
    %v331 = vld [vmem:[#allocation2 + $0x570] sm:$0xff]
    %v332 = vld [vmem:[#allocation2 + $0x578] sm:$0xff]
    %v333 = vld [vmem:[#allocation2 + $0x580] sm:$0xff]
    %v334 = vld [vmem:[#allocation2 + $0x588] sm:$0xff]
    %v335 = vld [vmem:[#allocation2 + $0x590] sm:$0xff]
    %v336 = vld [vmem:[#allocation2 + $0x598] sm:$0xff]
    %v337 = vld [vmem:[#allocation2 + $0x5a0] sm:$0xff]
    %v338 = vld [vmem:[#allocation2 + $0x5a8] sm:$0xff]
    %v339 = vld [vmem:[#allocation2 + $0x5b0] sm:$0xff]
    %v340 = vld [vmem:[#allocation2 + $0x5b8] sm:$0xff]
    %v341 = vld [vmem:[#allocation2 + $0x5c0] sm:$0xff]
    %v342 = vld [vmem:[#allocation2 + $0x5c8] sm:$0xff]
    %v343 = vld [vmem:[#allocation2 + $0x5d0] sm:$0xff]
    %v344 = vld [vmem:[#allocation2 + $0x5d8] sm:$0xff]
    %v345 = vld [vmem:[#allocation2 + $0x5e0] sm:$0xff]
    %v346 = vld [vmem:[#allocation2 + $0x5e8] sm:$0xff]
    %v347 = vld [vmem:[#allocation2 + $0x5f0] sm:$0xff]
    %v348 = vld [vmem:[#allocation2 + $0x5f8] sm:$0xff]
    %v349 = vld [vmem:[#allocation2 + $0x600] sm:$0xff]
    %v350 = vld [vmem:[#allocation2 + $0x608] sm:$0xff]
    %v351 = vld [vmem:[#allocation2 + $0x610] sm:$0xff]
    %v352 = vld [vmem:[#allocation2 + $0x618] sm:$0xff]
    %v353 = vld [vmem:[#allocation2 + $0x620] sm:$0xff]
    %v354 = vld [vmem:[#allocation2 + $0x628] sm:$0xff]
    %v355 = vld [vmem:[#allocation2 + $0x630] sm:$0xff]
    %v356 = vld [vmem:[#allocation2 + $0x638] sm:$0xff]
    %v357 = vld [vmem:[#allocation2 + $0x640] sm:$0xff]
    %v358 = vld [vmem:[#allocation2 + $0x648] sm:$0xff]
    %v359 = vld [vmem:[#allocation2 + $0x650] sm:$0xff]
    %v360 = vld [vmem:[#allocation2 + $0x658] sm:$0xff]
    %v361 = vld [vmem:[#allocation2 + $0x660] sm:$0xff]
    %v362 = vld [vmem:[#allocation2 + $0x668] sm:$0xff]
    %v363 = vld [vmem:[#allocation2 + $0x670] sm:$0xff]
    %v364 = vld [vmem:[#allocation2 + $0x678] sm:$0xff]
    %v365 = vunpack.c.l.s8.bf16 %v157
    %v366 = vunpack.c.l.s8.bf16 %v158
    %v367 = vunpack.c.l.s8.bf16 %v159
    %v368 = vunpack.c.l.s8.bf16 %v160
    %v369 = vunpack.c.l.s8.bf16 %v161
    %v370 = vunpack.c.l.s8.bf16 %v162
    %v371 = vunpack.c.l.s8.bf16 %v163
    %v372 = vunpack.c.l.s8.bf16 %v164
    %v373 = vunpack.c.l.s8.bf16 %v165
    %v374 = vunpack.c.l.s8.bf16 %v166
    %v375 = vunpack.c.l.s8.bf16 %v167
    %v376 = vunpack.c.l.s8.bf16 %v168
    %v377 = vunpack.c.l.s8.bf16 %v169
    %v378 = vunpack.c.h.s8.bf16 %v157
    %v379 = vunpack.c.h.s8.bf16 %v158
    %v380 = vunpack.c.h.s8.bf16 %v159
    %v381 = vunpack.c.h.s8.bf16 %v160
    %v382 = vunpack.c.h.s8.bf16 %v161
    %v383 = vunpack.c.h.s8.bf16 %v162
    %v384 = vunpack.c.h.s8.bf16 %v163
    %v385 = vunpack.c.h.s8.bf16 %v164
    %v386 = vunpack.c.h.s8.bf16 %v165
    %v387 = vunpack.c.h.s8.bf16 %v166
    %v388 = vunpack.c.h.s8.bf16 %v167
    %v389 = vunpack.c.h.s8.bf16 %v168
    %v390 = vunpack.c.h.s8.bf16 %v169
    %v391 = vunpack.c.l.s8.bf16 %v170
    %v392 = vunpack.c.l.s8.bf16 %v171
    %v393 = vunpack.c.l.s8.bf16 %v172
    %v394 = vunpack.c.l.s8.bf16 %v173
    %v395 = vunpack.c.l.s8.bf16 %v174
    %v396 = vunpack.c.l.s8.bf16 %v175
    %v397 = vunpack.c.l.s8.bf16 %v176
    %v398 = vunpack.c.l.s8.bf16 %v177
    %v399 = vunpack.c.l.s8.bf16 %v178
    %v400 = vunpack.c.l.s8.bf16 %v179
    %v401 = vunpack.c.l.s8.bf16 %v180
    %v402 = vunpack.c.l.s8.bf16 %v181
    %v403 = vunpack.c.l.s8.bf16 %v182
    %v404 = vunpack.c.h.s8.bf16 %v170
    %v405 = vunpack.c.h.s8.bf16 %v171
    %v406 = vunpack.c.h.s8.bf16 %v172
    %v407 = vunpack.c.h.s8.bf16 %v173
    %v408 = vunpack.c.h.s8.bf16 %v174
    %v409 = vunpack.c.h.s8.bf16 %v175
    %v410 = vunpack.c.h.s8.bf16 %v176
    %v411 = vunpack.c.h.s8.bf16 %v177
    %v412 = vunpack.c.h.s8.bf16 %v178
    %v413 = vunpack.c.h.s8.bf16 %v179
    %v414 = vunpack.c.h.s8.bf16 %v180
    %v415 = vunpack.c.h.s8.bf16 %v181
    %v416 = vunpack.c.h.s8.bf16 %v182
    %v417 = vunpack.c.l.s8.bf16 %v183
    %v418 = vunpack.c.l.s8.bf16 %v184
    %v419 = vunpack.c.l.s8.bf16 %v185
    %v420 = vunpack.c.l.s8.bf16 %v186
    %v421 = vunpack.c.l.s8.bf16 %v187
    %v422 = vunpack.c.l.s8.bf16 %v188
    %v423 = vunpack.c.l.s8.bf16 %v189
    %v424 = vunpack.c.l.s8.bf16 %v190
    %v425 = vunpack.c.l.s8.bf16 %v191
    %v426 = vunpack.c.l.s8.bf16 %v192
    %v427 = vunpack.c.l.s8.bf16 %v193
    %v428 = vunpack.c.l.s8.bf16 %v194
    %v429 = vunpack.c.l.s8.bf16 %v195
    %v430 = vunpack.c.h.s8.bf16 %v183
    %v431 = vunpack.c.h.s8.bf16 %v184
    %v432 = vunpack.c.h.s8.bf16 %v185
    %v433 = vunpack.c.h.s8.bf16 %v186
    %v434 = vunpack.c.h.s8.bf16 %v187
    %v435 = vunpack.c.h.s8.bf16 %v188
    %v436 = vunpack.c.h.s8.bf16 %v189
    %v437 = vunpack.c.h.s8.bf16 %v190
    %v438 = vunpack.c.h.s8.bf16 %v191
    %v439 = vunpack.c.h.s8.bf16 %v192
    %v440 = vunpack.c.h.s8.bf16 %v193
    %v441 = vunpack.c.h.s8.bf16 %v194
    %v442 = vunpack.c.h.s8.bf16 %v195
    %v443 = vunpack.c.l.s8.bf16 %v196
    %v444 = vunpack.c.l.s8.bf16 %v197
    %v445 = vunpack.c.l.s8.bf16 %v198
    %v446 = vunpack.c.l.s8.bf16 %v199
    %v447 = vunpack.c.l.s8.bf16 %v200
    %v448 = vunpack.c.l.s8.bf16 %v201
    %v449 = vunpack.c.l.s8.bf16 %v202
    %v450 = vunpack.c.l.s8.bf16 %v203
    %v451 = vunpack.c.l.s8.bf16 %v204
    %v452 = vunpack.c.l.s8.bf16 %v205
    %v453 = vunpack.c.l.s8.bf16 %v206
    %v454 = vunpack.c.l.s8.bf16 %v207
    %v455 = vunpack.c.l.s8.bf16 %v208
    %v456 = vunpack.c.h.s8.bf16 %v196
    %v457 = vunpack.c.h.s8.bf16 %v197
    %v458 = vunpack.c.h.s8.bf16 %v198
    %v459 = vunpack.c.h.s8.bf16 %v199
    %v460 = vunpack.c.h.s8.bf16 %v200
    %v461 = vunpack.c.h.s8.bf16 %v201
    %v462 = vunpack.c.h.s8.bf16 %v202
    %v463 = vunpack.c.h.s8.bf16 %v203
    %v464 = vunpack.c.h.s8.bf16 %v204
    %v465 = vunpack.c.h.s8.bf16 %v205
    %v466 = vunpack.c.h.s8.bf16 %v206
    %v467 = vunpack.c.h.s8.bf16 %v207
    %v468 = vunpack.c.h.s8.bf16 %v208
    %v469 = vunpack.c.l.s8.bf16 %v209
    %v470 = vunpack.c.l.s8.bf16 %v210
    %v471 = vunpack.c.l.s8.bf16 %v211
    %v472 = vunpack.c.l.s8.bf16 %v212
    %v473 = vunpack.c.l.s8.bf16 %v213
    %v474 = vunpack.c.l.s8.bf16 %v214
    %v475 = vunpack.c.l.s8.bf16 %v215
    %v476 = vunpack.c.l.s8.bf16 %v216
    %v477 = vunpack.c.l.s8.bf16 %v217
    %v478 = vunpack.c.l.s8.bf16 %v218
    %v479 = vunpack.c.l.s8.bf16 %v219
    %v480 = vunpack.c.l.s8.bf16 %v220
    %v481 = vunpack.c.l.s8.bf16 %v221
    %v482 = vunpack.c.h.s8.bf16 %v209
    %v483 = vunpack.c.h.s8.bf16 %v210
    %v484 = vunpack.c.h.s8.bf16 %v211
    %v485 = vunpack.c.h.s8.bf16 %v212
    %v486 = vunpack.c.h.s8.bf16 %v213
    %v487 = vunpack.c.h.s8.bf16 %v214
    %v488 = vunpack.c.h.s8.bf16 %v215
    %v489 = vunpack.c.h.s8.bf16 %v216
    %v490 = vunpack.c.h.s8.bf16 %v217
    %v491 = vunpack.c.h.s8.bf16 %v218
    %v492 = vunpack.c.h.s8.bf16 %v219
    %v493 = vunpack.c.h.s8.bf16 %v220
    %v494 = vunpack.c.h.s8.bf16 %v221
    %v495 = vunpack.c.l.s8.bf16 %v222
    %v496 = vunpack.c.l.s8.bf16 %v223
    %v497 = vunpack.c.l.s8.bf16 %v224
    %v498 = vunpack.c.l.s8.bf16 %v225
    %v499 = vunpack.c.l.s8.bf16 %v226
    %v500 = vunpack.c.l.s8.bf16 %v227
    %v501 = vunpack.c.l.s8.bf16 %v228
    %v502 = vunpack.c.l.s8.bf16 %v229
    %v503 = vunpack.c.l.s8.bf16 %v230
    %v504 = vunpack.c.l.s8.bf16 %v231
    %v505 = vunpack.c.l.s8.bf16 %v232
    %v506 = vunpack.c.l.s8.bf16 %v233
    %v507 = vunpack.c.l.s8.bf16 %v234
    %v508 = vunpack.c.h.s8.bf16 %v222
    %v509 = vunpack.c.h.s8.bf16 %v223
    %v510 = vunpack.c.h.s8.bf16 %v224
    %v511 = vunpack.c.h.s8.bf16 %v225
    %v512 = vunpack.c.h.s8.bf16 %v226
    %v513 = vunpack.c.h.s8.bf16 %v227
    %v514 = vunpack.c.h.s8.bf16 %v228
    %v515 = vunpack.c.h.s8.bf16 %v229
    %v516 = vunpack.c.h.s8.bf16 %v230
    %v517 = vunpack.c.h.s8.bf16 %v231
    %v518 = vunpack.c.h.s8.bf16 %v232
    %v519 = vunpack.c.h.s8.bf16 %v233
    %v520 = vunpack.c.h.s8.bf16 %v234
    %v521 = vunpack.c.l.s8.bf16 %v235
    %v522 = vunpack.c.l.s8.bf16 %v236
    %v523 = vunpack.c.l.s8.bf16 %v237
    %v524 = vunpack.c.l.s8.bf16 %v238
    %v525 = vunpack.c.l.s8.bf16 %v239
    %v526 = vunpack.c.l.s8.bf16 %v240
    %v527 = vunpack.c.l.s8.bf16 %v241
    %v528 = vunpack.c.l.s8.bf16 %v242
    %v529 = vunpack.c.l.s8.bf16 %v243
    %v530 = vunpack.c.l.s8.bf16 %v244
    %v531 = vunpack.c.l.s8.bf16 %v245
    %v532 = vunpack.c.l.s8.bf16 %v246
    %v533 = vunpack.c.l.s8.bf16 %v247
    %v534 = vunpack.c.h.s8.bf16 %v235
    %v535 = vunpack.c.h.s8.bf16 %v236
    %v536 = vunpack.c.h.s8.bf16 %v237
    %v537 = vunpack.c.h.s8.bf16 %v238
    %v538 = vunpack.c.h.s8.bf16 %v239
    %v539 = vunpack.c.h.s8.bf16 %v240
    %v540 = vunpack.c.h.s8.bf16 %v241
    %v541 = vunpack.c.h.s8.bf16 %v242
    %v542 = vunpack.c.h.s8.bf16 %v243
    %v543 = vunpack.c.h.s8.bf16 %v244
    %v544 = vunpack.c.h.s8.bf16 %v245
    %v545 = vunpack.c.h.s8.bf16 %v246
    %v546 = vunpack.c.h.s8.bf16 %v247
    %v547 = vunpack.c.l.s8.bf16 %v248
    %v548 = vunpack.c.l.s8.bf16 %v249
    %v549 = vunpack.c.l.s8.bf16 %v250
    %v550 = vunpack.c.l.s8.bf16 %v251
    %v551 = vunpack.c.l.s8.bf16 %v252
    %v552 = vunpack.c.l.s8.bf16 %v253
    %v553 = vunpack.c.l.s8.bf16 %v254
    %v554 = vunpack.c.l.s8.bf16 %v255
    %v555 = vunpack.c.l.s8.bf16 %v256
    %v556 = vunpack.c.l.s8.bf16 %v257
    %v557 = vunpack.c.l.s8.bf16 %v258
    %v558 = vunpack.c.l.s8.bf16 %v259
    %v559 = vunpack.c.l.s8.bf16 %v260
    %v560 = vunpack.c.h.s8.bf16 %v248
    %v561 = vunpack.c.h.s8.bf16 %v249
    %v562 = vunpack.c.h.s8.bf16 %v250
    %v563 = vunpack.c.h.s8.bf16 %v251
    %v564 = vunpack.c.h.s8.bf16 %v252
    %v565 = vunpack.c.h.s8.bf16 %v253
    %v566 = vunpack.c.h.s8.bf16 %v254
    %v567 = vunpack.c.h.s8.bf16 %v255
    %v568 = vunpack.c.h.s8.bf16 %v256
    %v569 = vunpack.c.h.s8.bf16 %v257
    %v570 = vunpack.c.h.s8.bf16 %v258
    %v571 = vunpack.c.h.s8.bf16 %v259
    %v572 = vunpack.c.h.s8.bf16 %v260
    %v573 = vunpack.c.l.s8.bf16 %v261
    %v574 = vunpack.c.l.s8.bf16 %v262
    %v575 = vunpack.c.l.s8.bf16 %v263
    %v576 = vunpack.c.l.s8.bf16 %v264
    %v577 = vunpack.c.l.s8.bf16 %v265
    %v578 = vunpack.c.l.s8.bf16 %v266
    %v579 = vunpack.c.l.s8.bf16 %v267
    %v580 = vunpack.c.l.s8.bf16 %v268
    %v581 = vunpack.c.l.s8.bf16 %v269
    %v582 = vunpack.c.l.s8.bf16 %v270
    %v583 = vunpack.c.l.s8.bf16 %v271
    %v584 = vunpack.c.l.s8.bf16 %v272
    %v585 = vunpack.c.l.s8.bf16 %v273
    %v586 = vunpack.c.h.s8.bf16 %v261
    %v587 = vunpack.c.h.s8.bf16 %v262
    %v588 = vunpack.c.h.s8.bf16 %v263
    %v589 = vunpack.c.h.s8.bf16 %v264
    %v590 = vunpack.c.h.s8.bf16 %v265
    %v591 = vunpack.c.h.s8.bf16 %v266
    %v592 = vunpack.c.h.s8.bf16 %v267
    %v593 = vunpack.c.h.s8.bf16 %v268
    %v594 = vunpack.c.h.s8.bf16 %v269
    %v595 = vunpack.c.h.s8.bf16 %v270
    %v596 = vunpack.c.h.s8.bf16 %v271
    %v597 = vunpack.c.h.s8.bf16 %v272
    %v598 = vunpack.c.h.s8.bf16 %v273
    %v599 = vunpack.c.l.s8.bf16 %v274
    %v600 = vunpack.c.l.s8.bf16 %v275
    %v601 = vunpack.c.l.s8.bf16 %v276
    %v602 = vunpack.c.l.s8.bf16 %v277
    %v603 = vunpack.c.l.s8.bf16 %v278
    %v604 = vunpack.c.l.s8.bf16 %v279
    %v605 = vunpack.c.l.s8.bf16 %v280
    %v606 = vunpack.c.l.s8.bf16 %v281
    %v607 = vunpack.c.l.s8.bf16 %v282
    %v608 = vunpack.c.l.s8.bf16 %v283
    %v609 = vunpack.c.l.s8.bf16 %v284
    %v610 = vunpack.c.l.s8.bf16 %v285
    %v611 = vunpack.c.l.s8.bf16 %v286
    %v612 = vunpack.c.h.s8.bf16 %v274
    %v613 = vunpack.c.h.s8.bf16 %v275
    %v614 = vunpack.c.h.s8.bf16 %v276
    %v615 = vunpack.c.h.s8.bf16 %v277
    %v616 = vunpack.c.h.s8.bf16 %v278
    %v617 = vunpack.c.h.s8.bf16 %v279
    %v618 = vunpack.c.h.s8.bf16 %v280
    %v619 = vunpack.c.h.s8.bf16 %v281
    %v620 = vunpack.c.h.s8.bf16 %v282
    %v621 = vunpack.c.h.s8.bf16 %v283
    %v622 = vunpack.c.h.s8.bf16 %v284
    %v623 = vunpack.c.h.s8.bf16 %v285
    %v624 = vunpack.c.h.s8.bf16 %v286
    %v625 = vunpack.c.l.s8.bf16 %v287
    %v626 = vunpack.c.l.s8.bf16 %v288
    %v627 = vunpack.c.l.s8.bf16 %v289
    %v628 = vunpack.c.l.s8.bf16 %v290
    %v629 = vunpack.c.l.s8.bf16 %v291
    %v630 = vunpack.c.l.s8.bf16 %v292
    %v631 = vunpack.c.l.s8.bf16 %v293
    %v632 = vunpack.c.l.s8.bf16 %v294
    %v633 = vunpack.c.l.s8.bf16 %v295
    %v634 = vunpack.c.l.s8.bf16 %v296
    %v635 = vunpack.c.l.s8.bf16 %v297
    %v636 = vunpack.c.l.s8.bf16 %v298
    %v637 = vunpack.c.l.s8.bf16 %v299
    %v638 = vunpack.c.h.s8.bf16 %v287
    %v639 = vunpack.c.h.s8.bf16 %v288
    %v640 = vunpack.c.h.s8.bf16 %v289
    %v641 = vunpack.c.h.s8.bf16 %v290
    %v642 = vunpack.c.h.s8.bf16 %v291
    %v643 = vunpack.c.h.s8.bf16 %v292
    %v644 = vunpack.c.h.s8.bf16 %v293
    %v645 = vunpack.c.h.s8.bf16 %v294
    %v646 = vunpack.c.h.s8.bf16 %v295
    %v647 = vunpack.c.h.s8.bf16 %v296
    %v648 = vunpack.c.h.s8.bf16 %v297
    %v649 = vunpack.c.h.s8.bf16 %v298
    %v650 = vunpack.c.h.s8.bf16 %v299
    %v651 = vunpack.c.l.s8.bf16 %v300
    %v652 = vunpack.c.l.s8.bf16 %v301
    %v653 = vunpack.c.l.s8.bf16 %v302
    %v654 = vunpack.c.l.s8.bf16 %v303
    %v655 = vunpack.c.l.s8.bf16 %v304
    %v656 = vunpack.c.l.s8.bf16 %v305
    %v657 = vunpack.c.l.s8.bf16 %v306
    %v658 = vunpack.c.l.s8.bf16 %v307
    %v659 = vunpack.c.l.s8.bf16 %v308
    %v660 = vunpack.c.l.s8.bf16 %v309
    %v661 = vunpack.c.l.s8.bf16 %v310
    %v662 = vunpack.c.l.s8.bf16 %v311
    %v663 = vunpack.c.l.s8.bf16 %v312
    %v664 = vunpack.c.h.s8.bf16 %v300
    %v665 = vunpack.c.h.s8.bf16 %v301
    %v666 = vunpack.c.h.s8.bf16 %v302
    %v667 = vunpack.c.h.s8.bf16 %v303
    %v668 = vunpack.c.h.s8.bf16 %v304
    %v669 = vunpack.c.h.s8.bf16 %v305
    %v670 = vunpack.c.h.s8.bf16 %v306
    %v671 = vunpack.c.h.s8.bf16 %v307
    %v672 = vunpack.c.h.s8.bf16 %v308
    %v673 = vunpack.c.h.s8.bf16 %v309
    %v674 = vunpack.c.h.s8.bf16 %v310
    %v675 = vunpack.c.h.s8.bf16 %v311
    %v676 = vunpack.c.h.s8.bf16 %v312
    %v677 = vunpack.c.l.s8.bf16 %v313
    %v678 = vunpack.c.l.s8.bf16 %v314
    %v679 = vunpack.c.l.s8.bf16 %v315
    %v680 = vunpack.c.l.s8.bf16 %v316
    %v681 = vunpack.c.l.s8.bf16 %v317
    %v682 = vunpack.c.l.s8.bf16 %v318
    %v683 = vunpack.c.l.s8.bf16 %v319
    %v684 = vunpack.c.l.s8.bf16 %v320
    %v685 = vunpack.c.l.s8.bf16 %v321
    %v686 = vunpack.c.l.s8.bf16 %v322
    %v687 = vunpack.c.l.s8.bf16 %v323
    %v688 = vunpack.c.l.s8.bf16 %v324
    %v689 = vunpack.c.l.s8.bf16 %v325
    %v690 = vunpack.c.h.s8.bf16 %v313
    %v691 = vunpack.c.h.s8.bf16 %v314
    %v692 = vunpack.c.h.s8.bf16 %v315
    %v693 = vunpack.c.h.s8.bf16 %v316
    %v694 = vunpack.c.h.s8.bf16 %v317
    %v695 = vunpack.c.h.s8.bf16 %v318
    %v696 = vunpack.c.h.s8.bf16 %v319
    %v697 = vunpack.c.h.s8.bf16 %v320
    %v698 = vunpack.c.h.s8.bf16 %v321
    %v699 = vunpack.c.h.s8.bf16 %v322
    %v700 = vunpack.c.h.s8.bf16 %v323
    %v701 = vunpack.c.h.s8.bf16 %v324
    %v702 = vunpack.c.h.s8.bf16 %v325
    %v703 = vunpack.c.l.s8.bf16 %v326
    %v704 = vunpack.c.l.s8.bf16 %v327
    %v705 = vunpack.c.l.s8.bf16 %v328
    %v706 = vunpack.c.l.s8.bf16 %v329
    %v707 = vunpack.c.l.s8.bf16 %v330
    %v708 = vunpack.c.l.s8.bf16 %v331
    %v709 = vunpack.c.l.s8.bf16 %v332
    %v710 = vunpack.c.l.s8.bf16 %v333
    %v711 = vunpack.c.l.s8.bf16 %v334
    %v712 = vunpack.c.l.s8.bf16 %v335
    %v713 = vunpack.c.l.s8.bf16 %v336
    %v714 = vunpack.c.l.s8.bf16 %v337
    %v715 = vunpack.c.l.s8.bf16 %v338
    %v716 = vunpack.c.h.s8.bf16 %v326
    %v717 = vunpack.c.h.s8.bf16 %v327
    %v718 = vunpack.c.h.s8.bf16 %v328
    %v719 = vunpack.c.h.s8.bf16 %v329
    %v720 = vunpack.c.h.s8.bf16 %v330
    %v721 = vunpack.c.h.s8.bf16 %v331
    %v722 = vunpack.c.h.s8.bf16 %v332
    %v723 = vunpack.c.h.s8.bf16 %v333
    %v724 = vunpack.c.h.s8.bf16 %v334
    %v725 = vunpack.c.h.s8.bf16 %v335
    %v726 = vunpack.c.h.s8.bf16 %v336
    %v727 = vunpack.c.h.s8.bf16 %v337
    %v728 = vunpack.c.h.s8.bf16 %v338
    %v729 = vunpack.c.l.s8.bf16 %v339
    %v730 = vunpack.c.l.s8.bf16 %v340
    %v731 = vunpack.c.l.s8.bf16 %v341
    %v732 = vunpack.c.l.s8.bf16 %v342
    %v733 = vunpack.c.l.s8.bf16 %v343
    %v734 = vunpack.c.l.s8.bf16 %v344
    %v735 = vunpack.c.l.s8.bf16 %v345
    %v736 = vunpack.c.l.s8.bf16 %v346
    %v737 = vunpack.c.l.s8.bf16 %v347
    %v738 = vunpack.c.l.s8.bf16 %v348
    %v739 = vunpack.c.l.s8.bf16 %v349
    %v740 = vunpack.c.l.s8.bf16 %v350
    %v741 = vunpack.c.l.s8.bf16 %v351
    %v742 = vunpack.c.h.s8.bf16 %v339
    %v743 = vunpack.c.h.s8.bf16 %v340
    %v744 = vunpack.c.h.s8.bf16 %v341
    %v745 = vunpack.c.h.s8.bf16 %v342
    %v746 = vunpack.c.h.s8.bf16 %v343
    %v747 = vunpack.c.h.s8.bf16 %v344
    %v748 = vunpack.c.h.s8.bf16 %v345
    %v749 = vunpack.c.h.s8.bf16 %v346
    %v750 = vunpack.c.h.s8.bf16 %v347
    %v751 = vunpack.c.h.s8.bf16 %v348
    %v752 = vunpack.c.h.s8.bf16 %v349
    %v753 = vunpack.c.h.s8.bf16 %v350
    %v754 = vunpack.c.h.s8.bf16 %v351
    %v755 = vunpack.c.l.s8.bf16 %v352
    %v756 = vunpack.c.l.s8.bf16 %v353
    %v757 = vunpack.c.l.s8.bf16 %v354
    %v758 = vunpack.c.l.s8.bf16 %v355
    %v759 = vunpack.c.l.s8.bf16 %v356
    %v760 = vunpack.c.l.s8.bf16 %v357
    %v761 = vunpack.c.l.s8.bf16 %v358
    %v762 = vunpack.c.l.s8.bf16 %v359
    %v763 = vunpack.c.l.s8.bf16 %v360
    %v764 = vunpack.c.l.s8.bf16 %v361
    %v765 = vunpack.c.l.s8.bf16 %v362
    %v766 = vunpack.c.l.s8.bf16 %v363
    %v767 = vunpack.c.l.s8.bf16 %v364
    %v768 = vunpack.c.h.s8.bf16 %v352
    %v769 = vunpack.c.h.s8.bf16 %v353
    %v770 = vunpack.c.h.s8.bf16 %v354
    %v771 = vunpack.c.h.s8.bf16 %v355
    %v772 = vunpack.c.h.s8.bf16 %v356
    %v773 = vunpack.c.h.s8.bf16 %v357
    %v774 = vunpack.c.h.s8.bf16 %v358
    %v775 = vunpack.c.h.s8.bf16 %v359
    %v776 = vunpack.c.h.s8.bf16 %v360
    %v777 = vunpack.c.h.s8.bf16 %v361
    %v778 = vunpack.c.h.s8.bf16 %v362
    %v779 = vunpack.c.h.s8.bf16 %v363
    %v780 = vunpack.c.h.s8.bf16 %v364
    %781 = vmatprep.subr.bf16.mxu0 %v457
    %782 = vmatpush1.bf16.msra.mxu0 %v456
    %783 = vmatprep.subr.bf16.mxu0 %v444
    %784 = vmatpush1.bf16.msra.mxu0 %v443
    %785 = vmatprep.subr.bf16.mxu0 %v431
    %786 = vmatpush1.bf16.msra.mxu0 %v430
    %787 = vmatprep.subr.bf16.mxu0 %v418
    %788 = vmatpush1.bf16.msra.mxu0 %v417
    %789 = vmatprep.subr.bf16.mxu0 %v405
    %790 = vmatpush1.bf16.msra.mxu0 %v404
    %791 = vmatprep.subr.bf16.mxu0 %v392
    %792 = vmatpush1.bf16.msra.mxu0 %v391
    %793 = vmatprep.subr.bf16.mxu0 %v379
    %794 = vmatpush1.bf16.msra.mxu0 %v378
    %795 = vmatprep.subr.bf16.mxu0 %v366
    %796 = vmatpush1.bf16.msra.mxu0 %v365
    %797 = vmatprep.subr.bf16.mxu0 %v561
    %798 = vmatpush2.bf16.msra.mxu0 %v560
    %799 = vmatprep.subr.bf16.mxu0 %v548
    %800 = vmatpush2.bf16.msra.mxu0 %v547
    %801 = vmatprep.subr.bf16.mxu0 %v535
    %802 = vmatpush2.bf16.msra.mxu0 %v534
    %803 = vmatprep.subr.bf16.mxu0 %v522
    %804 = vmatpush2.bf16.msra.mxu0 %v521
    %805 = vmatprep.subr.bf16.mxu0 %v509
    %806 = vmatpush2.bf16.msra.mxu0 %v508
    %807 = vmatprep.subr.bf16.mxu0 %v496
    %808 = vmatpush2.bf16.msra.mxu0 %v495
    %809 = vmatprep.subr.bf16.mxu0 %v483
    %810 = vmatpush2.bf16.msra.mxu0 %v482
    %811 = vmatprep.subr.bf16.mxu0 %v470
    %812 = vmatpush2.bf16.msra.mxu0 %v469
    %813 = vmatprep.mubr.bf16.mxu0 %v154
    %814 = vmatmul.mubr.bf16.gmra.mxu0 %v153
    %v815 = vpop.f32.mrf.mxu0
    %v816 = vadd.f32 0.0, %v815
    %v817 = vpop.f32.mrf.mxu0
    %v818 = vadd.f32 0.0, %v817
    %v819 = vpop.f32.mrf.mxu0
    %v820 = vadd.f32 0.0, %v819
    %v821 = vpop.f32.mrf.mxu0
    %v822 = vadd.f32 0.0, %v821
    %823 = vdwg.mxu0
    %824 = vmatprep.subr.bf16.mxu0 %v665
    %825 = vmatpush1.bf16.msra.mxu0 %v664
    %826 = vmatprep.subr.bf16.mxu0 %v652
    %827 = vmatpush1.bf16.msra.mxu0 %v651
    %828 = vmatprep.subr.bf16.mxu0 %v639
    %829 = vmatpush1.bf16.msra.mxu0 %v638
    %830 = vmatprep.subr.bf16.mxu0 %v626
    %831 = vmatpush1.bf16.msra.mxu0 %v625
    %832 = vmatprep.subr.bf16.mxu0 %v613
    %833 = vmatpush1.bf16.msra.mxu0 %v612
    %834 = vmatprep.subr.bf16.mxu0 %v600
    %835 = vmatpush1.bf16.msra.mxu0 %v599
    %836 = vmatprep.subr.bf16.mxu0 %v587
    %837 = vmatpush1.bf16.msra.mxu0 %v586
    %838 = vmatprep.subr.bf16.mxu0 %v574
    %839 = vmatpush1.bf16.msra.mxu0 %v573
    %840 = vmatprep.subr.bf16.mxu0 %v769
    %841 = vmatpush2.bf16.msra.mxu0 %v768
    %842 = vmatprep.subr.bf16.mxu0 %v756
    %843 = vmatpush2.bf16.msra.mxu0 %v755
    %844 = vmatprep.subr.bf16.mxu0 %v743
    %845 = vmatpush2.bf16.msra.mxu0 %v742
    %846 = vmatprep.subr.bf16.mxu0 %v730
    %847 = vmatpush2.bf16.msra.mxu0 %v729
    %848 = vmatprep.subr.bf16.mxu0 %v717
    %849 = vmatpush2.bf16.msra.mxu0 %v716
    %850 = vmatprep.subr.bf16.mxu0 %v704
    %851 = vmatpush2.bf16.msra.mxu0 %v703
    %852 = vmatprep.subr.bf16.mxu0 %v691
    %853 = vmatpush2.bf16.msra.mxu0 %v690
    %854 = vmatprep.subr.bf16.mxu0 %v678
    %855 = vmatpush2.bf16.msra.mxu0 %v677
    %856 = vmatprep.mubr.bf16.mxu0 %v156
    %857 = vmatmul.mubr.bf16.gmra.mxu0 %v155
    %v858 = vpop.f32.mrf.mxu0
    %v859 = vadd.f32 %v816, %v858
    %v860 = vpop.f32.mrf.mxu0
    %v861 = vadd.f32 %v818, %v860
    %v862 = vpop.f32.mrf.mxu0
    %v863 = vadd.f32 %v820, %v862
    %v864 = vpop.f32.mrf.mxu0
    %v865 = vadd.f32 %v822, %v864
    %866 = vdwg.mxu0
    %867 = vmatprep.subr.bf16.mxu0 %v459
    %868 = vmatpush1.bf16.msra.mxu0 %v458
    %869 = vmatprep.subr.bf16.mxu0 %v446
    %870 = vmatpush1.bf16.msra.mxu0 %v445
    %871 = vmatprep.subr.bf16.mxu0 %v433
    %872 = vmatpush1.bf16.msra.mxu0 %v432
    %873 = vmatprep.subr.bf16.mxu0 %v420
    %874 = vmatpush1.bf16.msra.mxu0 %v419
    %875 = vmatprep.subr.bf16.mxu0 %v407
    %876 = vmatpush1.bf16.msra.mxu0 %v406
    %877 = vmatprep.subr.bf16.mxu0 %v394
    %878 = vmatpush1.bf16.msra.mxu0 %v393
    %879 = vmatprep.subr.bf16.mxu0 %v381
    %880 = vmatpush1.bf16.msra.mxu0 %v380
    %881 = vmatprep.subr.bf16.mxu0 %v368
    %882 = vmatpush1.bf16.msra.mxu0 %v367
    %883 = vmatprep.subr.bf16.mxu0 %v563
    %884 = vmatpush2.bf16.msra.mxu0 %v562
    %885 = vmatprep.subr.bf16.mxu0 %v550
    %886 = vmatpush2.bf16.msra.mxu0 %v549
    %887 = vmatprep.subr.bf16.mxu0 %v537
    %888 = vmatpush2.bf16.msra.mxu0 %v536
    %889 = vmatprep.subr.bf16.mxu0 %v524
    %890 = vmatpush2.bf16.msra.mxu0 %v523
    %891 = vmatprep.subr.bf16.mxu0 %v511
    %892 = vmatpush2.bf16.msra.mxu0 %v510
    %893 = vmatprep.subr.bf16.mxu0 %v498
    %894 = vmatpush2.bf16.msra.mxu0 %v497
    %895 = vmatprep.subr.bf16.mxu0 %v485
    %896 = vmatpush2.bf16.msra.mxu0 %v484
    %897 = vmatprep.subr.bf16.mxu0 %v472
    %898 = vmatpush2.bf16.msra.mxu0 %v471
    %899 = vmatprep.mubr.bf16.mxu0 %v154
    %900 = vmatmul.mubr.bf16.gmra.mxu0 %v153
    %v901 = vpop.f32.mrf.mxu0
    %v902 = vadd.f32 0.0, %v901
    %v903 = vpop.f32.mrf.mxu0
    %v904 = vadd.f32 0.0, %v903
    %v905 = vpop.f32.mrf.mxu0
    %v906 = vadd.f32 0.0, %v905
    %v907 = vpop.f32.mrf.mxu0
    %v908 = vadd.f32 0.0, %v907
    %909 = vdwg.mxu0
    %910 = vmatprep.subr.bf16.mxu0 %v667
    %911 = vmatpush1.bf16.msra.mxu0 %v666
    %912 = vmatprep.subr.bf16.mxu0 %v654
    %913 = vmatpush1.bf16.msra.mxu0 %v653
    %914 = vmatprep.subr.bf16.mxu0 %v641
    %915 = vmatpush1.bf16.msra.mxu0 %v640
    %916 = vmatprep.subr.bf16.mxu0 %v628
    %917 = vmatpush1.bf16.msra.mxu0 %v627
    %918 = vmatprep.subr.bf16.mxu0 %v615
    %919 = vmatpush1.bf16.msra.mxu0 %v614
    %920 = vmatprep.subr.bf16.mxu0 %v602
    %921 = vmatpush1.bf16.msra.mxu0 %v601
    %922 = vmatprep.subr.bf16.mxu0 %v589
    %923 = vmatpush1.bf16.msra.mxu0 %v588
    %924 = vmatprep.subr.bf16.mxu0 %v576
    %925 = vmatpush1.bf16.msra.mxu0 %v575
    %926 = vmatprep.subr.bf16.mxu0 %v771
    %927 = vmatpush2.bf16.msra.mxu0 %v770
    %928 = vmatprep.subr.bf16.mxu0 %v758
    %929 = vmatpush2.bf16.msra.mxu0 %v757
    %930 = vmatprep.subr.bf16.mxu0 %v745
    %931 = vmatpush2.bf16.msra.mxu0 %v744
    %932 = vmatprep.subr.bf16.mxu0 %v732
    %933 = vmatpush2.bf16.msra.mxu0 %v731
    %934 = vmatprep.subr.bf16.mxu0 %v719
    %935 = vmatpush2.bf16.msra.mxu0 %v718
    %936 = vmatprep.subr.bf16.mxu0 %v706
    %937 = vmatpush2.bf16.msra.mxu0 %v705
    %938 = vmatprep.subr.bf16.mxu0 %v693
    %939 = vmatpush2.bf16.msra.mxu0 %v692
    %940 = vmatprep.subr.bf16.mxu0 %v680
    %941 = vmatpush2.bf16.msra.mxu0 %v679
    %942 = vmatprep.mubr.bf16.mxu0 %v156
    %943 = vmatmul.mubr.bf16.gmra.mxu0 %v155
    %v944 = vpop.f32.mrf.mxu0
    %v945 = vadd.f32 %v902, %v944
    %v946 = vpop.f32.mrf.mxu0
    %v947 = vadd.f32 %v904, %v946
    %v948 = vpop.f32.mrf.mxu0
    %v949 = vadd.f32 %v906, %v948
    %v950 = vpop.f32.mrf.mxu0
    %v951 = vadd.f32 %v908, %v950
    %952 = vdwg.mxu0
    %953 = vmatprep.subr.bf16.mxu0 %v461
    %954 = vmatpush1.bf16.msra.mxu0 %v460
    %955 = vmatprep.subr.bf16.mxu0 %v448
    %956 = vmatpush1.bf16.msra.mxu0 %v447
    %957 = vmatprep.subr.bf16.mxu0 %v435
    %958 = vmatpush1.bf16.msra.mxu0 %v434
    %959 = vmatprep.subr.bf16.mxu0 %v422
    %960 = vmatpush1.bf16.msra.mxu0 %v421
    %961 = vmatprep.subr.bf16.mxu0 %v409
    %962 = vmatpush1.bf16.msra.mxu0 %v408
    %963 = vmatprep.subr.bf16.mxu0 %v396
    %964 = vmatpush1.bf16.msra.mxu0 %v395
    %965 = vmatprep.subr.bf16.mxu0 %v383
    %966 = vmatpush1.bf16.msra.mxu0 %v382
    %967 = vmatprep.subr.bf16.mxu0 %v370
    %968 = vmatpush1.bf16.msra.mxu0 %v369
    %969 = vmatprep.subr.bf16.mxu0 %v565
    %970 = vmatpush2.bf16.msra.mxu0 %v564
    %971 = vmatprep.subr.bf16.mxu0 %v552
    %972 = vmatpush2.bf16.msra.mxu0 %v551
    %973 = vmatprep.subr.bf16.mxu0 %v539
    %974 = vmatpush2.bf16.msra.mxu0 %v538
    %975 = vmatprep.subr.bf16.mxu0 %v526
    %976 = vmatpush2.bf16.msra.mxu0 %v525
    %977 = vmatprep.subr.bf16.mxu0 %v513
    %978 = vmatpush2.bf16.msra.mxu0 %v512
    %979 = vmatprep.subr.bf16.mxu0 %v500
    %980 = vmatpush2.bf16.msra.mxu0 %v499
    %981 = vmatprep.subr.bf16.mxu0 %v487
    %982 = vmatpush2.bf16.msra.mxu0 %v486
    %983 = vmatprep.subr.bf16.mxu0 %v474
    %984 = vmatpush2.bf16.msra.mxu0 %v473
    %985 = vmatprep.mubr.bf16.mxu0 %v154
    %986 = vmatmul.mubr.bf16.gmra.mxu0 %v153
    %v987 = vpop.f32.mrf.mxu0
    %v988 = vadd.f32 0.0, %v987
    %v989 = vpop.f32.mrf.mxu0
    %v990 = vadd.f32 0.0, %v989
    %v991 = vpop.f32.mrf.mxu0
    %v992 = vadd.f32 0.0, %v991
    %v993 = vpop.f32.mrf.mxu0
    %v994 = vadd.f32 0.0, %v993
    %995 = vdwg.mxu0
    %996 = vmatprep.subr.bf16.mxu0 %v669
    %997 = vmatpush1.bf16.msra.mxu0 %v668
    %998 = vmatprep.subr.bf16.mxu0 %v656
    %999 = vmatpush1.bf16.msra.mxu0 %v655
    %1000 = vmatprep.subr.bf16.mxu0 %v643
    %1001 = vmatpush1.bf16.msra.mxu0 %v642
    %1002 = vmatprep.subr.bf16.mxu0 %v630
    %1003 = vmatpush1.bf16.msra.mxu0 %v629
    %1004 = vmatprep.subr.bf16.mxu0 %v617
    %1005 = vmatpush1.bf16.msra.mxu0 %v616
    %1006 = vmatprep.subr.bf16.mxu0 %v604
    %1007 = vmatpush1.bf16.msra.mxu0 %v603
    %1008 = vmatprep.subr.bf16.mxu0 %v591
    %1009 = vmatpush1.bf16.msra.mxu0 %v590
    %1010 = vmatprep.subr.bf16.mxu0 %v578
    %1011 = vmatpush1.bf16.msra.mxu0 %v577
    %1012 = vmatprep.subr.bf16.mxu0 %v773
    %1013 = vmatpush2.bf16.msra.mxu0 %v772
    %1014 = vmatprep.subr.bf16.mxu0 %v760
    %1015 = vmatpush2.bf16.msra.mxu0 %v759
    %1016 = vmatprep.subr.bf16.mxu0 %v747
    %1017 = vmatpush2.bf16.msra.mxu0 %v746
    %1018 = vmatprep.subr.bf16.mxu0 %v734
    %1019 = vmatpush2.bf16.msra.mxu0 %v733
    %1020 = vmatprep.subr.bf16.mxu0 %v721
    %1021 = vmatpush2.bf16.msra.mxu0 %v720
    %1022 = vmatprep.subr.bf16.mxu0 %v708
    %1023 = vmatpush2.bf16.msra.mxu0 %v707
    %1024 = vmatprep.subr.bf16.mxu0 %v695
    %1025 = vmatpush2.bf16.msra.mxu0 %v694
    %1026 = vmatprep.subr.bf16.mxu0 %v682
    %1027 = vmatpush2.bf16.msra.mxu0 %v681
    %1028 = vmatprep.mubr.bf16.mxu0 %v156
    %1029 = vmatmul.mubr.bf16.gmra.mxu0 %v155
    %v1030 = vpop.f32.mrf.mxu0
    %v1031 = vadd.f32 %v988, %v1030
    %v1032 = vpop.f32.mrf.mxu0
    %v1033 = vadd.f32 %v990, %v1032
    %v1034 = vpop.f32.mrf.mxu0
    %v1035 = vadd.f32 %v992, %v1034
    %v1036 = vpop.f32.mrf.mxu0
    %v1037 = vadd.f32 %v994, %v1036
    %1038 = vdwg.mxu0
    %1039 = vmatprep.subr.bf16.mxu0 %v463
    %1040 = vmatpush1.bf16.msra.mxu0 %v462
    %1041 = vmatprep.subr.bf16.mxu0 %v450
    %1042 = vmatpush1.bf16.msra.mxu0 %v449
    %1043 = vmatprep.subr.bf16.mxu0 %v437
    %1044 = vmatpush1.bf16.msra.mxu0 %v436
    %1045 = vmatprep.subr.bf16.mxu0 %v424
    %1046 = vmatpush1.bf16.msra.mxu0 %v423
    %1047 = vmatprep.subr.bf16.mxu0 %v411
    %1048 = vmatpush1.bf16.msra.mxu0 %v410
    %1049 = vmatprep.subr.bf16.mxu0 %v398
    %1050 = vmatpush1.bf16.msra.mxu0 %v397
    %1051 = vmatprep.subr.bf16.mxu0 %v385
    %1052 = vmatpush1.bf16.msra.mxu0 %v384
    %1053 = vmatprep.subr.bf16.mxu0 %v372
    %1054 = vmatpush1.bf16.msra.mxu0 %v371
    %1055 = vmatprep.subr.bf16.mxu0 %v567
    %1056 = vmatpush2.bf16.msra.mxu0 %v566
    %1057 = vmatprep.subr.bf16.mxu0 %v554
    %1058 = vmatpush2.bf16.msra.mxu0 %v553
    %1059 = vmatprep.subr.bf16.mxu0 %v541
    %1060 = vmatpush2.bf16.msra.mxu0 %v540
    %1061 = vmatprep.subr.bf16.mxu0 %v528
    %1062 = vmatpush2.bf16.msra.mxu0 %v527
    %1063 = vmatprep.subr.bf16.mxu0 %v515
    %1064 = vmatpush2.bf16.msra.mxu0 %v514
    %1065 = vmatprep.subr.bf16.mxu0 %v502
    %1066 = vmatpush2.bf16.msra.mxu0 %v501
    %1067 = vmatprep.subr.bf16.mxu0 %v489
    %1068 = vmatpush2.bf16.msra.mxu0 %v488
    %1069 = vmatprep.subr.bf16.mxu0 %v476
    %1070 = vmatpush2.bf16.msra.mxu0 %v475
    %1071 = vmatprep.mubr.bf16.mxu0 %v154
    %1072 = vmatmul.mubr.bf16.gmra.mxu0 %v153
    %v1073 = vpop.f32.mrf.mxu0
    %v1074 = vadd.f32 0.0, %v1073
    %v1075 = vpop.f32.mrf.mxu0
    %v1076 = vadd.f32 0.0, %v1075
    %v1077 = vpop.f32.mrf.mxu0
    %v1078 = vadd.f32 0.0, %v1077
    %v1079 = vpop.f32.mrf.mxu0
    %v1080 = vadd.f32 0.0, %v1079
    %1081 = vdwg.mxu0
    %1082 = vmatprep.subr.bf16.mxu0 %v671
    %1083 = vmatpush1.bf16.msra.mxu0 %v670
    %1084 = vmatprep.subr.bf16.mxu0 %v658
    %1085 = vmatpush1.bf16.msra.mxu0 %v657
    %1086 = vmatprep.subr.bf16.mxu0 %v645
    %1087 = vmatpush1.bf16.msra.mxu0 %v644
    %1088 = vmatprep.subr.bf16.mxu0 %v632
    %1089 = vmatpush1.bf16.msra.mxu0 %v631
    %1090 = vmatprep.subr.bf16.mxu0 %v619
    %1091 = vmatpush1.bf16.msra.mxu0 %v618
    %1092 = vmatprep.subr.bf16.mxu0 %v606
    %1093 = vmatpush1.bf16.msra.mxu0 %v605
    %1094 = vmatprep.subr.bf16.mxu0 %v593
    %1095 = vmatpush1.bf16.msra.mxu0 %v592
    %1096 = vmatprep.subr.bf16.mxu0 %v580
    %1097 = vmatpush1.bf16.msra.mxu0 %v579
    %1098 = vmatprep.subr.bf16.mxu0 %v775
    %1099 = vmatpush2.bf16.msra.mxu0 %v774
    %1100 = vmatprep.subr.bf16.mxu0 %v762
    %1101 = vmatpush2.bf16.msra.mxu0 %v761
    %1102 = vmatprep.subr.bf16.mxu0 %v749
    %1103 = vmatpush2.bf16.msra.mxu0 %v748
    %1104 = vmatprep.subr.bf16.mxu0 %v736
    %1105 = vmatpush2.bf16.msra.mxu0 %v735
    %1106 = vmatprep.subr.bf16.mxu0 %v723
    %1107 = vmatpush2.bf16.msra.mxu0 %v722
    %1108 = vmatprep.subr.bf16.mxu0 %v710
    %1109 = vmatpush2.bf16.msra.mxu0 %v709
    %1110 = vmatprep.subr.bf16.mxu0 %v697
    %1111 = vmatpush2.bf16.msra.mxu0 %v696
    %1112 = vmatprep.subr.bf16.mxu0 %v684
    %1113 = vmatpush2.bf16.msra.mxu0 %v683
    %1114 = vmatprep.mubr.bf16.mxu0 %v156
    %1115 = vmatmul.mubr.bf16.gmra.mxu0 %v155
    %v1116 = vpop.f32.mrf.mxu0
    %v1117 = vadd.f32 %v1074, %v1116
    %v1118 = vpop.f32.mrf.mxu0
    %v1119 = vadd.f32 %v1076, %v1118
    %v1120 = vpop.f32.mrf.mxu0
    %v1121 = vadd.f32 %v1078, %v1120
    %v1122 = vpop.f32.mrf.mxu0
    %v1123 = vadd.f32 %v1080, %v1122
    %1124 = vdwg.mxu0
    %1125 = vmatprep.subr.bf16.mxu0 %v465
    %1126 = vmatpush1.bf16.msra.mxu0 %v464
    %1127 = vmatprep.subr.bf16.mxu0 %v452
    %1128 = vmatpush1.bf16.msra.mxu0 %v451
    %1129 = vmatprep.subr.bf16.mxu0 %v439
    %1130 = vmatpush1.bf16.msra.mxu0 %v438
    %1131 = vmatprep.subr.bf16.mxu0 %v426
    %1132 = vmatpush1.bf16.msra.mxu0 %v425
    %1133 = vmatprep.subr.bf16.mxu0 %v413
    %1134 = vmatpush1.bf16.msra.mxu0 %v412
    %1135 = vmatprep.subr.bf16.mxu0 %v400
    %1136 = vmatpush1.bf16.msra.mxu0 %v399
    %1137 = vmatprep.subr.bf16.mxu0 %v387
    %1138 = vmatpush1.bf16.msra.mxu0 %v386
    %1139 = vmatprep.subr.bf16.mxu0 %v374
    %1140 = vmatpush1.bf16.msra.mxu0 %v373
    %1141 = vmatprep.subr.bf16.mxu0 %v569
    %1142 = vmatpush2.bf16.msra.mxu0 %v568
    %1143 = vmatprep.subr.bf16.mxu0 %v556
    %1144 = vmatpush2.bf16.msra.mxu0 %v555
    %1145 = vmatprep.subr.bf16.mxu0 %v543
    %1146 = vmatpush2.bf16.msra.mxu0 %v542
    %1147 = vmatprep.subr.bf16.mxu0 %v530
    %1148 = vmatpush2.bf16.msra.mxu0 %v529
    %1149 = vmatprep.subr.bf16.mxu0 %v517
    %1150 = vmatpush2.bf16.msra.mxu0 %v516
    %1151 = vmatprep.subr.bf16.mxu0 %v504
    %1152 = vmatpush2.bf16.msra.mxu0 %v503
    %1153 = vmatprep.subr.bf16.mxu0 %v491
    %1154 = vmatpush2.bf16.msra.mxu0 %v490
    %1155 = vmatprep.subr.bf16.mxu0 %v478
    %1156 = vmatpush2.bf16.msra.mxu0 %v477
    %1157 = vmatprep.mubr.bf16.mxu0 %v154
    %1158 = vmatmul.mubr.bf16.gmra.mxu0 %v153
    %v1159 = vpop.f32.mrf.mxu0
    %v1160 = vadd.f32 0.0, %v1159
    %v1161 = vpop.f32.mrf.mxu0
    %v1162 = vadd.f32 0.0, %v1161
    %v1163 = vpop.f32.mrf.mxu0
    %v1164 = vadd.f32 0.0, %v1163
    %v1165 = vpop.f32.mrf.mxu0
    %v1166 = vadd.f32 0.0, %v1165
    %1167 = vdwg.mxu0
    %1168 = vmatprep.subr.bf16.mxu0 %v673
    %1169 = vmatpush1.bf16.msra.mxu0 %v672
    %1170 = vmatprep.subr.bf16.mxu0 %v660
    %1171 = vmatpush1.bf16.msra.mxu0 %v659
    %1172 = vmatprep.subr.bf16.mxu0 %v647
    %1173 = vmatpush1.bf16.msra.mxu0 %v646
    %1174 = vmatprep.subr.bf16.mxu0 %v634
    %1175 = vmatpush1.bf16.msra.mxu0 %v633
    %1176 = vmatprep.subr.bf16.mxu0 %v621
    %1177 = vmatpush1.bf16.msra.mxu0 %v620
    %1178 = vmatprep.subr.bf16.mxu0 %v608
    %1179 = vmatpush1.bf16.msra.mxu0 %v607
    %1180 = vmatprep.subr.bf16.mxu0 %v595
    %1181 = vmatpush1.bf16.msra.mxu0 %v594
    %1182 = vmatprep.subr.bf16.mxu0 %v582
    %1183 = vmatpush1.bf16.msra.mxu0 %v581
    %1184 = vmatprep.subr.bf16.mxu0 %v777
    %1185 = vmatpush2.bf16.msra.mxu0 %v776
    %1186 = vmatprep.subr.bf16.mxu0 %v764
    %1187 = vmatpush2.bf16.msra.mxu0 %v763
    %1188 = vmatprep.subr.bf16.mxu0 %v751
    %1189 = vmatpush2.bf16.msra.mxu0 %v750
    %1190 = vmatprep.subr.bf16.mxu0 %v738
    %1191 = vmatpush2.bf16.msra.mxu0 %v737
    %1192 = vmatprep.subr.bf16.mxu0 %v725
    %1193 = vmatpush2.bf16.msra.mxu0 %v724
    %1194 = vmatprep.subr.bf16.mxu0 %v712
    %1195 = vmatpush2.bf16.msra.mxu0 %v711
    %1196 = vmatprep.subr.bf16.mxu0 %v699
    %1197 = vmatpush2.bf16.msra.mxu0 %v698
    %1198 = vmatprep.subr.bf16.mxu0 %v686
    %1199 = vmatpush2.bf16.msra.mxu0 %v685
    %1200 = vmatprep.mubr.bf16.mxu0 %v156
    %1201 = vmatmul.mubr.bf16.gmra.mxu0 %v155
    %v1202 = vpop.f32.mrf.mxu0
    %v1203 = vadd.f32 %v1160, %v1202
    %v1204 = vpop.f32.mrf.mxu0
    %v1205 = vadd.f32 %v1162, %v1204
    %v1206 = vpop.f32.mrf.mxu0
    %v1207 = vadd.f32 %v1164, %v1206
    %v1208 = vpop.f32.mrf.mxu0
    %v1209 = vadd.f32 %v1166, %v1208
    %1210 = vdwg.mxu0
    %1211 = vmatprep.subr.bf16.mxu0 %v467
    %1212 = vmatpush1.bf16.msra.mxu0 %v466
    %1213 = vmatprep.subr.bf16.mxu0 %v454
    %1214 = vmatpush1.bf16.msra.mxu0 %v453
    %1215 = vmatprep.subr.bf16.mxu0 %v441
    %1216 = vmatpush1.bf16.msra.mxu0 %v440
    %1217 = vmatprep.subr.bf16.mxu0 %v428
    %1218 = vmatpush1.bf16.msra.mxu0 %v427
    %1219 = vmatprep.subr.bf16.mxu0 %v415
    %1220 = vmatpush1.bf16.msra.mxu0 %v414
    %1221 = vmatprep.subr.bf16.mxu0 %v402
    %1222 = vmatpush1.bf16.msra.mxu0 %v401
    %1223 = vmatprep.subr.bf16.mxu0 %v389
    %1224 = vmatpush1.bf16.msra.mxu0 %v388
    %1225 = vmatprep.subr.bf16.mxu0 %v376
    %1226 = vmatpush1.bf16.msra.mxu0 %v375
    %1227 = vmatprep.subr.bf16.mxu0 %v571
    %1228 = vmatpush2.bf16.msra.mxu0 %v570
    %1229 = vmatprep.subr.bf16.mxu0 %v558
    %1230 = vmatpush2.bf16.msra.mxu0 %v557
    %1231 = vmatprep.subr.bf16.mxu0 %v545
    %1232 = vmatpush2.bf16.msra.mxu0 %v544
    %1233 = vmatprep.subr.bf16.mxu0 %v532
    %1234 = vmatpush2.bf16.msra.mxu0 %v531
    %1235 = vmatprep.subr.bf16.mxu0 %v519
    %1236 = vmatpush2.bf16.msra.mxu0 %v518
    %1237 = vmatprep.subr.bf16.mxu0 %v506
    %1238 = vmatpush2.bf16.msra.mxu0 %v505
    %1239 = vmatprep.subr.bf16.mxu0 %v493
    %1240 = vmatpush2.bf16.msra.mxu0 %v492
    %1241 = vmatprep.subr.bf16.mxu0 %v480
    %1242 = vmatpush2.bf16.msra.mxu0 %v479
    %1243 = vmatprep.mubr.bf16.mxu0 %v154
    %1244 = vmatmul.mubr.bf16.gmra.mxu0 %v153
    %v1245 = vpop.f32.mrf.mxu0
    %v1246 = vadd.f32 0.0, %v1245
    %v1247 = vpop.f32.mrf.mxu0
    %v1248 = vadd.f32 0.0, %v1247
    %v1249 = vpop.f32.mrf.mxu0
    %v1250 = vadd.f32 0.0, %v1249
    %v1251 = vpop.f32.mrf.mxu0
    %v1252 = vadd.f32 0.0, %v1251
    %1253 = vdwg.mxu0
    %1254 = vmatprep.subr.bf16.mxu0 %v675
    %1255 = vmatpush1.bf16.msra.mxu0 %v674
    %1256 = vmatprep.subr.bf16.mxu0 %v662
    %1257 = vmatpush1.bf16.msra.mxu0 %v661
    %1258 = vmatprep.subr.bf16.mxu0 %v649
    %1259 = vmatpush1.bf16.msra.mxu0 %v648
    %1260 = vmatprep.subr.bf16.mxu0 %v636
    %1261 = vmatpush1.bf16.msra.mxu0 %v635
    %1262 = vmatprep.subr.bf16.mxu0 %v623
    %1263 = vmatpush1.bf16.msra.mxu0 %v622
    %1264 = vmatprep.subr.bf16.mxu0 %v610
    %1265 = vmatpush1.bf16.msra.mxu0 %v609
    %1266 = vmatprep.subr.bf16.mxu0 %v597
    %1267 = vmatpush1.bf16.msra.mxu0 %v596
    %1268 = vmatprep.subr.bf16.mxu0 %v584
    %1269 = vmatpush1.bf16.msra.mxu0 %v583
    %1270 = vmatprep.subr.bf16.mxu0 %v779
    %1271 = vmatpush2.bf16.msra.mxu0 %v778
    %1272 = vmatprep.subr.bf16.mxu0 %v766
    %1273 = vmatpush2.bf16.msra.mxu0 %v765
    %1274 = vmatprep.subr.bf16.mxu0 %v753
    %1275 = vmatpush2.bf16.msra.mxu0 %v752
    %1276 = vmatprep.subr.bf16.mxu0 %v740
    %1277 = vmatpush2.bf16.msra.mxu0 %v739
    %1278 = vmatprep.subr.bf16.mxu0 %v727
    %1279 = vmatpush2.bf16.msra.mxu0 %v726
    %1280 = vmatprep.subr.bf16.mxu0 %v714
    %1281 = vmatpush2.bf16.msra.mxu0 %v713
    %1282 = vmatprep.subr.bf16.mxu0 %v701
    %1283 = vmatpush2.bf16.msra.mxu0 %v700
    %1284 = vmatprep.subr.bf16.mxu0 %v688
    %1285 = vmatpush2.bf16.msra.mxu0 %v687
    %1286 = vmatprep.mubr.bf16.mxu0 %v156
    %1287 = vmatmul.mubr.bf16.gmra.mxu0 %v155
    %v1288 = vpop.f32.mrf.mxu0
    %v1289 = vadd.f32 %v1246, %v1288
    %v1290 = vpop.f32.mrf.mxu0
    %v1291 = vadd.f32 %v1248, %v1290
    %v1292 = vpop.f32.mrf.mxu0
    %v1293 = vadd.f32 %v1250, %v1292
    %v1294 = vpop.f32.mrf.mxu0
    %v1295 = vadd.f32 %v1252, %v1294
    %1296 = vdwg.mxu0
    %1297 = vmatprep.subr.bf16.mxu0 0
    %1298 = vmatpush1.bf16.msra.mxu0 %v468
    %1299 = vmatprep.subr.bf16.mxu0 0
    %1300 = vmatpush1.bf16.msra.mxu0 %v455
    %1301 = vmatprep.subr.bf16.mxu0 0
    %1302 = vmatpush1.bf16.msra.mxu0 %v442
    %1303 = vmatprep.subr.bf16.mxu0 0
    %1304 = vmatpush1.bf16.msra.mxu0 %v429
    %1305 = vmatprep.subr.bf16.mxu0 0
    %1306 = vmatpush1.bf16.msra.mxu0 %v416
    %1307 = vmatprep.subr.bf16.mxu0 0
    %1308 = vmatpush1.bf16.msra.mxu0 %v403
    %1309 = vmatprep.subr.bf16.mxu0 0
    %1310 = vmatpush1.bf16.msra.mxu0 %v390
    %1311 = vmatprep.subr.bf16.mxu0 0
    %1312 = vmatpush1.bf16.msra.mxu0 %v377
    %1313 = vmatprep.subr.bf16.mxu0 0
    %1314 = vmatpush2.bf16.msra.mxu0 %v572
    %1315 = vmatprep.subr.bf16.mxu0 0
    %1316 = vmatpush2.bf16.msra.mxu0 %v559
    %1317 = vmatprep.subr.bf16.mxu0 0
    %1318 = vmatpush2.bf16.msra.mxu0 %v546
    %1319 = vmatprep.subr.bf16.mxu0 0
    %1320 = vmatpush2.bf16.msra.mxu0 %v533
    %1321 = vmatprep.subr.bf16.mxu0 0
    %1322 = vmatpush2.bf16.msra.mxu0 %v520
    %1323 = vmatprep.subr.bf16.mxu0 0
    %1324 = vmatpush2.bf16.msra.mxu0 %v507
    %1325 = vmatprep.subr.bf16.mxu0 0
    %1326 = vmatpush2.bf16.msra.mxu0 %v494
    %1327 = vmatprep.subr.bf16.mxu0 0
    %1328 = vmatpush2.bf16.msra.mxu0 %v481
    %1329 = vmatprep.mubr.bf16.mxu0 %v154
    %1330 = vmatmul.mubr.bf16.gmra.mxu0 %v153
    %v1331 = vpop.f32.mrf.mxu0
    %v1332 = vadd.f32 0.0, %v1331
    %v1333 = vpop.f32.mrf.mxu0
    %v1334 = vpop.f32.mrf.mxu0
    %v1335 = vadd.f32 0.0, %v1334
    %v1336 = vpop.f32.mrf.mxu0
    %1337 = vdwg.mxu0
    %1338 = vmatprep.subr.bf16.mxu0 0
    %1339 = vmatpush1.bf16.msra.mxu0 %v676
    %1340 = vmatprep.subr.bf16.mxu0 0
    %1341 = vmatpush1.bf16.msra.mxu0 %v663
    %1342 = vmatprep.subr.bf16.mxu0 0
    %1343 = vmatpush1.bf16.msra.mxu0 %v650
    %1344 = vmatprep.subr.bf16.mxu0 0
    %1345 = vmatpush1.bf16.msra.mxu0 %v637
    %1346 = vmatprep.subr.bf16.mxu0 0
    %1347 = vmatpush1.bf16.msra.mxu0 %v624
    %1348 = vmatprep.subr.bf16.mxu0 0
    %1349 = vmatpush1.bf16.msra.mxu0 %v611
    %1350 = vmatprep.subr.bf16.mxu0 0
    %1351 = vmatpush1.bf16.msra.mxu0 %v598
    %1352 = vmatprep.subr.bf16.mxu0 0
    %1353 = vmatpush1.bf16.msra.mxu0 %v585
    %1354 = vmatprep.subr.bf16.mxu0 0
    %1355 = vmatpush2.bf16.msra.mxu0 %v780
    %1356 = vmatprep.subr.bf16.mxu0 0
    %1357 = vmatpush2.bf16.msra.mxu0 %v767
    %1358 = vmatprep.subr.bf16.mxu0 0
    %1359 = vmatpush2.bf16.msra.mxu0 %v754
    %1360 = vmatprep.subr.bf16.mxu0 0
    %1361 = vmatpush2.bf16.msra.mxu0 %v741
    %1362 = vmatprep.subr.bf16.mxu0 0
    %1363 = vmatpush2.bf16.msra.mxu0 %v728
    %1364 = vmatprep.subr.bf16.mxu0 0
    %1365 = vmatpush2.bf16.msra.mxu0 %v715
    %1366 = vmatprep.subr.bf16.mxu0 0
    %1367 = vmatpush2.bf16.msra.mxu0 %v702
    %1368 = vmatprep.subr.bf16.mxu0 0
    %1369 = vmatpush2.bf16.msra.mxu0 %v689
    %1370 = vmatprep.mubr.bf16.mxu0 %v156
    %1371 = vmatmul.mubr.bf16.gmra.mxu0 %v155
    %v1372 = vpop.f32.mrf.mxu0
    %v1373 = vadd.f32 %v1332, %v1372
    %v1374 = vpop.f32.mrf.mxu0
    %v1375 = vpop.f32.mrf.mxu0
    %v1376 = vadd.f32 %v1335, %v1375
    %v1377 = vpop.f32.mrf.mxu0
    %1378 = vdwg.mxu0
    %v1379 = vld [vmem:[#allocation13] ss:$8 sm:$0xf]
    %v1380 = vld [vmem:[#allocation13] ss:$8 sm:$0xf0]
    %v1381 = vor.u32 %v1379, %v1380
    %s1382 = scalar_lea.vmem [#allocation13], 64
    %v1383 = vld [vmem:[%s1382] ss:$8 sm:$0xf]
    %v1384 = vld [vmem:[%s1382] ss:$8 sm:$0x10]
    %v1385 = vor.u32 %v1383, %v1384
    %s1386 = scalar_lea.vmem [#allocation13], 104
    %v1387 = vld [vmem:[%s1386] ss:$8 sm:$0xf]
    %v1388 = vld [vmem:[%s1386] ss:$8 sm:$0xf0]
    %v1389 = vor.u32 %v1387, %v1388
    %s1390 = scalar_lea.vmem [#allocation13], 168
    %v1391 = vld [vmem:[%s1390] ss:$8 sm:$0xf]
    %v1392 = vld [vmem:[%s1390] ss:$8 sm:$0x10]
    %v1393 = vor.u32 %v1391, %v1392
    %v1396 = vlaneseq
    %v1397 = vshrl.u32 %v1396, 7
    %v1398 = vsub.s32 0, %v1397
    %v1399 = vrot.slane %v1381, %v1398
    %v1400 = vlaneseq
    %v1401 = vshrl.u32 %v1400, 7
    %v1402 = vsub.s32 1, %v1401
    %v1403 = vrot.slane %v1381, %v1402
    %v1404 = vlaneseq
    %v1405 = vshrl.u32 %v1404, 7
    %v1406 = vsub.s32 2, %v1405
    %v1407 = vrot.slane %v1381, %v1406
    %v1408 = vlaneseq
    %v1409 = vshrl.u32 %v1408, 7
    %v1410 = vsub.s32 3, %v1409
    %v1411 = vrot.slane %v1381, %v1410
    %v1412 = vlaneseq
    %v1413 = vshrl.u32 %v1412, 7
    %v1414 = vsub.s32 4, %v1413
    %v1415 = vrot.slane %v1381, %v1414
    %v1416 = vlaneseq
    %v1417 = vshrl.u32 %v1416, 7
    %v1418 = vsub.s32 5, %v1417
    %v1419 = vrot.slane %v1381, %v1418
    %v1420 = vlaneseq
    %v1421 = vshrl.u32 %v1420, 7
    %v1422 = vsub.s32 6, %v1421
    %v1423 = vrot.slane %v1381, %v1422
    %v1424 = vlaneseq
    %v1425 = vshrl.u32 %v1424, 7
    %v1426 = vsub.s32 7, %v1425
    %v1427 = vrot.slane %v1381, %v1426
    %v1428 = vlaneseq
    %v1429 = vshrl.u32 %v1428, 7
    %v1430 = vsub.s32 0, %v1429
    %v1431 = vrot.slane %v1385, %v1430
    %v1432 = vlaneseq
    %v1433 = vshrl.u32 %v1432, 7
    %v1434 = vsub.s32 1, %v1433
    %v1435 = vrot.slane %v1385, %v1434
    %v1436 = vlaneseq
    %v1437 = vshrl.u32 %v1436, 7
    %v1438 = vsub.s32 2, %v1437
    %v1439 = vrot.slane %v1385, %v1438
    %v1440 = vlaneseq
    %v1441 = vshrl.u32 %v1440, 7
    %v1442 = vsub.s32 3, %v1441
    %v1443 = vrot.slane %v1385, %v1442
    %v1444 = vlaneseq
    %v1445 = vshrl.u32 %v1444, 7
    %v1446 = vsub.s32 4, %v1445
    %v1447 = vrot.slane %v1385, %v1446
    %v1461 = vmul.f32 %v859, %v1399
    %v1462 = vmul.f32 %v861, %v1403
    %v1463 = vmul.f32 %v945, %v1407
    %v1464 = vmul.f32 %v947, %v1411
    %v1465 = vmul.f32 %v1031, %v1415
    %v1466 = vmul.f32 %v1033, %v1419
    %v1467 = vmul.f32 %v1117, %v1423
    %v1468 = vmul.f32 %v1119, %v1427
    %v1469 = vmul.f32 %v1203, %v1431
    %v1470 = vmul.f32 %v1205, %v1435
    %v1471 = vmul.f32 %v1289, %v1439
    %v1472 = vmul.f32 %v1291, %v1443
    %v1473 = vmul.f32 %v1373, %v1447
    %v1474 = vmul.f32 %v863, %v1399
    %v1475 = vmul.f32 %v865, %v1403
    %v1476 = vmul.f32 %v949, %v1407
    %v1477 = vmul.f32 %v951, %v1411
    %v1478 = vmul.f32 %v1035, %v1415
    %v1479 = vmul.f32 %v1037, %v1419
    %v1480 = vmul.f32 %v1121, %v1423
    %v1481 = vmul.f32 %v1123, %v1427
    %v1482 = vmul.f32 %v1207, %v1431
    %v1483 = vmul.f32 %v1209, %v1435
    %v1484 = vmul.f32 %v1293, %v1439
    %v1485 = vmul.f32 %v1295, %v1443
    %v1486 = vmul.f32 %v1376, %v1447
    %v1489 = vlaneseq
    %v1490 = vshrl.u32 %v1489, 7
    %v1491 = vsub.s32 0, %v1490
    %v1492 = vrot.slane %v1389, %v1491
    %v1493 = vlaneseq
    %v1494 = vshrl.u32 %v1493, 7
    %v1495 = vsub.s32 1, %v1494
    %v1496 = vrot.slane %v1389, %v1495
    %v1497 = vlaneseq
    %v1498 = vshrl.u32 %v1497, 7
    %v1499 = vsub.s32 2, %v1498
    %v1500 = vrot.slane %v1389, %v1499
    %v1501 = vlaneseq
    %v1502 = vshrl.u32 %v1501, 7
    %v1503 = vsub.s32 3, %v1502
    %v1504 = vrot.slane %v1389, %v1503
    %v1505 = vlaneseq
    %v1506 = vshrl.u32 %v1505, 7
    %v1507 = vsub.s32 4, %v1506
    %v1508 = vrot.slane %v1389, %v1507
    %v1509 = vlaneseq
    %v1510 = vshrl.u32 %v1509, 7
    %v1511 = vsub.s32 5, %v1510
    %v1512 = vrot.slane %v1389, %v1511
    %v1513 = vlaneseq
    %v1514 = vshrl.u32 %v1513, 7
    %v1515 = vsub.s32 6, %v1514
    %v1516 = vrot.slane %v1389, %v1515
    %v1517 = vlaneseq
    %v1518 = vshrl.u32 %v1517, 7
    %v1519 = vsub.s32 7, %v1518
    %v1520 = vrot.slane %v1389, %v1519
    %v1521 = vlaneseq
    %v1522 = vshrl.u32 %v1521, 7
    %v1523 = vsub.s32 0, %v1522
    %v1524 = vrot.slane %v1393, %v1523
    %v1525 = vlaneseq
    %v1526 = vshrl.u32 %v1525, 7
    %v1527 = vsub.s32 1, %v1526
    %v1528 = vrot.slane %v1393, %v1527
    %v1529 = vlaneseq
    %v1530 = vshrl.u32 %v1529, 7
    %v1531 = vsub.s32 2, %v1530
    %v1532 = vrot.slane %v1393, %v1531
    %v1533 = vlaneseq
    %v1534 = vshrl.u32 %v1533, 7
    %v1535 = vsub.s32 3, %v1534
    %v1536 = vrot.slane %v1393, %v1535
    %v1537 = vlaneseq
    %v1538 = vshrl.u32 %v1537, 7
    %v1539 = vsub.s32 4, %v1538
    %v1540 = vrot.slane %v1393, %v1539
    %v1554 = vadd.f32 %v1461, %v1492
    %v1555 = vadd.f32 %v1462, %v1496
    %v1556 = vadd.f32 %v1463, %v1500
    %v1557 = vadd.f32 %v1464, %v1504
    %v1558 = vadd.f32 %v1465, %v1508
    %v1559 = vadd.f32 %v1466, %v1512
    %v1560 = vadd.f32 %v1467, %v1516
    %v1561 = vadd.f32 %v1468, %v1520
    %v1562 = vadd.f32 %v1469, %v1524
    %v1563 = vadd.f32 %v1470, %v1528
    %v1564 = vadd.f32 %v1471, %v1532
    %v1565 = vadd.f32 %v1472, %v1536
    %v1566 = vadd.f32 %v1473, %v1540
    %v1567 = vadd.f32 %v1474, %v1492
    %v1568 = vadd.f32 %v1475, %v1496
    %v1569 = vadd.f32 %v1476, %v1500
    %v1570 = vadd.f32 %v1477, %v1504
    %v1571 = vadd.f32 %v1478, %v1508
    %v1572 = vadd.f32 %v1479, %v1512
    %v1573 = vadd.f32 %v1480, %v1516
    %v1574 = vadd.f32 %v1481, %v1520
    %v1575 = vadd.f32 %v1482, %v1524
    %v1576 = vadd.f32 %v1483, %v1528
    %v1577 = vadd.f32 %v1484, %v1532
    %v1578 = vadd.f32 %v1485, %v1536
    %v1579 = vadd.f32 %v1486, %v1540
    %v1580 = vmax.f32 %v1554, 0.0
    %v1581 = vmax.f32 %v1555, 0.0
    %v1582 = vmax.f32 %v1556, 0.0
    %v1583 = vmax.f32 %v1557, 0.0
    %v1584 = vmax.f32 %v1558, 0.0
    %v1585 = vmax.f32 %v1559, 0.0
    %v1586 = vmax.f32 %v1560, 0.0
    %v1587 = vmax.f32 %v1561, 0.0
    %v1588 = vmax.f32 %v1562, 0.0
    %v1589 = vmax.f32 %v1563, 0.0
    %v1590 = vmax.f32 %v1564, 0.0
    %v1591 = vmax.f32 %v1565, 0.0
    %v1592 = vmax.f32 %v1566, 0.0
    %v1593 = vmax.f32 %v1567, 0.0
    %v1594 = vmax.f32 %v1568, 0.0
    %v1595 = vmax.f32 %v1569, 0.0
    %v1596 = vmax.f32 %v1570, 0.0
    %v1597 = vmax.f32 %v1571, 0.0
    %v1598 = vmax.f32 %v1572, 0.0
    %v1599 = vmax.f32 %v1573, 0.0
    %v1600 = vmax.f32 %v1574, 0.0
    %v1601 = vmax.f32 %v1575, 0.0
    %v1602 = vmax.f32 %v1576, 0.0
    %v1603 = vmax.f32 %v1577, 0.0
    %v1604 = vmax.f32 %v1578, 0.0
    %v1605 = vmax.f32 %v1579, 0.0
    %v1606 = vpack.c.bf16 %v1593, %v1580
    %v1607 = vpack.c.bf16 %v1594, %v1581
    %v1608 = vpack.c.bf16 %v1595, %v1582
    %v1609 = vpack.c.bf16 %v1596, %v1583
    %v1610 = vpack.c.bf16 %v1597, %v1584
    %v1611 = vpack.c.bf16 %v1598, %v1585
    %v1612 = vpack.c.bf16 %v1599, %v1586
    %v1613 = vpack.c.bf16 %v1600, %v1587
    %v1614 = vpack.c.bf16 %v1601, %v1588
    %v1615 = vpack.c.bf16 %v1602, %v1589
    %v1616 = vpack.c.bf16 %v1603, %v1590
    %v1617 = vpack.c.bf16 %v1604, %v1591
    %v1618 = vpack.c.bf16 %v1605, %v1592
    %v1619 = vld [vmem:[#allocation4] sm:$0xff]
    %v1620 = vld [vmem:[#allocation4 + $0x8] sm:$0xff]
    %v1621 = vld [vmem:[#allocation4 + $0x10] sm:$0xff]
    %v1622 = vld [vmem:[#allocation4 + $0x18] sm:$0xff]
    %v1623 = vld [vmem:[#allocation4 + $0x20] sm:$0xff]
    %v1624 = vld [vmem:[#allocation4 + $0x28] sm:$0xff]
    %v1625 = vld [vmem:[#allocation4 + $0x30] sm:$0xff]
    %v1626 = vld [vmem:[#allocation4 + $0x38] sm:$0xff]
    %v1627 = vld [vmem:[#allocation4 + $0x40] sm:$0xff]
    %v1628 = vld [vmem:[#allocation4 + $0x48] sm:$0xff]
    %v1629 = vld [vmem:[#allocation4 + $0x50] sm:$0xff]
    %v1630 = vld [vmem:[#allocation4 + $0x58] sm:$0xff]
    %v1631 = vld [vmem:[#allocation4 + $0x60] sm:$0xff]
    %v1632 = vld [vmem:[#allocation4 + $0x68] sm:$0xff]
    %v1633 = vld [vmem:[#allocation4 + $0x70] sm:$0xff]
    %v1634 = vld [vmem:[#allocation4 + $0x78] sm:$0xff]
    %v1635 = vld [vmem:[#allocation4 + $0x80] sm:$0xff]
    %v1636 = vld [vmem:[#allocation4 + $0x88] sm:$0xff]
    %v1637 = vld [vmem:[#allocation4 + $0x90] sm:$0xff]
    %v1638 = vld [vmem:[#allocation4 + $0x98] sm:$0xff]
    %v1639 = vld [vmem:[#allocation4 + $0xa0] sm:$0xff]
    %v1640 = vld [vmem:[#allocation4 + $0xa8] sm:$0xff]
    %v1641 = vld [vmem:[#allocation4 + $0xb0] sm:$0xff]
    %v1642 = vld [vmem:[#allocation4 + $0xb8] sm:$0xff]
    %v1643 = vld [vmem:[#allocation4 + $0xc0] sm:$0xff]
    %v1644 = vld [vmem:[#allocation4 + $0xc8] sm:$0xff]
    %v1645 = vld [vmem:[#allocation4 + $0xd0] sm:$0xff]
    %v1646 = vld [vmem:[#allocation4 + $0xd8] sm:$0xff]
    %v1647 = vld [vmem:[#allocation4 + $0xe0] sm:$0xff]
    %v1648 = vld [vmem:[#allocation4 + $0xe8] sm:$0xff]
    %v1649 = vld [vmem:[#allocation4 + $0xf0] sm:$0xff]
    %v1650 = vld [vmem:[#allocation4 + $0xf8] sm:$0xff]
    %v1651 = vld [vmem:[#allocation4 + $0x100] sm:$0xff]
    %v1652 = vld [vmem:[#allocation4 + $0x108] sm:$0xff]
    %v1653 = vld [vmem:[#allocation4 + $0x110] sm:$0xff]
    %v1654 = vld [vmem:[#allocation4 + $0x118] sm:$0xff]
    %v1655 = vld [vmem:[#allocation4 + $0x120] sm:$0xff]
    %v1656 = vld [vmem:[#allocation4 + $0x128] sm:$0xff]
    %v1657 = vld [vmem:[#allocation4 + $0x130] sm:$0xff]
    %v1658 = vld [vmem:[#allocation4 + $0x138] sm:$0xff]
    %v1659 = vld [vmem:[#allocation4 + $0x140] sm:$0xff]
    %v1660 = vld [vmem:[#allocation4 + $0x148] sm:$0xff]
    %v1661 = vld [vmem:[#allocation4 + $0x150] sm:$0xff]
    %v1662 = vld [vmem:[#allocation4 + $0x158] sm:$0xff]
    %v1663 = vld [vmem:[#allocation4 + $0x160] sm:$0xff]
    %v1664 = vld [vmem:[#allocation4 + $0x168] sm:$0xff]
    %v1665 = vld [vmem:[#allocation4 + $0x170] sm:$0xff]
    %v1666 = vld [vmem:[#allocation4 + $0x178] sm:$0xff]
    %v1667 = vld [vmem:[#allocation4 + $0x180] sm:$0xff]
    %v1668 = vld [vmem:[#allocation4 + $0x188] sm:$0xff]
    %v1669 = vld [vmem:[#allocation4 + $0x190] sm:$0xff]
    %v1670 = vld [vmem:[#allocation4 + $0x198] sm:$0xff]
    %v1671 = vld [vmem:[#allocation4 + $0x1a0] sm:$0xff]
    %v1672 = vld [vmem:[#allocation4 + $0x1a8] sm:$0xff]
    %v1673 = vld [vmem:[#allocation4 + $0x1b0] sm:$0xff]
    %v1674 = vld [vmem:[#allocation4 + $0x1b8] sm:$0xff]
    %v1675 = vld [vmem:[#allocation4 + $0x1c0] sm:$0xff]
    %v1676 = vld [vmem:[#allocation4 + $0x1c8] sm:$0xff]
    %v1677 = vld [vmem:[#allocation4 + $0x1d0] sm:$0xff]
    %v1678 = vld [vmem:[#allocation4 + $0x1d8] sm:$0xff]
    %v1679 = vld [vmem:[#allocation4 + $0x1e0] sm:$0xff]
    %v1680 = vld [vmem:[#allocation4 + $0x1e8] sm:$0xff]
    %v1681 = vld [vmem:[#allocation4 + $0x1f0] sm:$0xff]
    %v1682 = vld [vmem:[#allocation4 + $0x1f8] sm:$0xff]
    %v1683 = vld [vmem:[#allocation4 + $0x200] sm:$0xff]
    %v1684 = vld [vmem:[#allocation4 + $0x208] sm:$0xff]
    %v1685 = vld [vmem:[#allocation4 + $0x210] sm:$0xff]
    %v1686 = vld [vmem:[#allocation4 + $0x218] sm:$0xff]
    %v1687 = vld [vmem:[#allocation4 + $0x220] sm:$0xff]
    %v1688 = vld [vmem:[#allocation4 + $0x228] sm:$0xff]
    %v1689 = vld [vmem:[#allocation4 + $0x230] sm:$0xff]
    %v1690 = vld [vmem:[#allocation4 + $0x238] sm:$0xff]
    %v1691 = vld [vmem:[#allocation4 + $0x240] sm:$0xff]
    %v1692 = vld [vmem:[#allocation4 + $0x248] sm:$0xff]
    %v1693 = vld [vmem:[#allocation4 + $0x250] sm:$0xff]
    %v1694 = vld [vmem:[#allocation4 + $0x258] sm:$0xff]
    %v1695 = vld [vmem:[#allocation4 + $0x260] sm:$0xff]
    %v1696 = vld [vmem:[#allocation4 + $0x268] sm:$0xff]
    %v1697 = vld [vmem:[#allocation4 + $0x270] sm:$0xff]
    %v1698 = vld [vmem:[#allocation4 + $0x278] sm:$0xff]
    %v1699 = vld [vmem:[#allocation4 + $0x280] sm:$0xff]
    %v1700 = vld [vmem:[#allocation4 + $0x288] sm:$0xff]
    %v1701 = vld [vmem:[#allocation4 + $0x290] sm:$0xff]
    %v1702 = vld [vmem:[#allocation4 + $0x298] sm:$0xff]
    %v1703 = vld [vmem:[#allocation4 + $0x2a0] sm:$0xff]
    %v1704 = vld [vmem:[#allocation4 + $0x2a8] sm:$0xff]
    %v1705 = vld [vmem:[#allocation4 + $0x2b0] sm:$0xff]
    %v1706 = vld [vmem:[#allocation4 + $0x2b8] sm:$0xff]
    %v1707 = vld [vmem:[#allocation4 + $0x2c0] sm:$0xff]
    %v1708 = vld [vmem:[#allocation4 + $0x2c8] sm:$0xff]
    %v1709 = vld [vmem:[#allocation4 + $0x2d0] sm:$0xff]
    %v1710 = vld [vmem:[#allocation4 + $0x2d8] sm:$0xff]
    %v1711 = vld [vmem:[#allocation4 + $0x2e0] sm:$0xff]
    %v1712 = vld [vmem:[#allocation4 + $0x2e8] sm:$0xff]
    %v1713 = vld [vmem:[#allocation4 + $0x2f0] sm:$0xff]
    %v1714 = vld [vmem:[#allocation4 + $0x2f8] sm:$0xff]
    %v1715 = vld [vmem:[#allocation4 + $0x300] sm:$0xff]
    %v1716 = vld [vmem:[#allocation4 + $0x308] sm:$0xff]
    %v1717 = vld [vmem:[#allocation4 + $0x310] sm:$0xff]
    %v1718 = vld [vmem:[#allocation4 + $0x318] sm:$0xff]
    %v1719 = vld [vmem:[#allocation4 + $0x320] sm:$0xff]
    %v1720 = vld [vmem:[#allocation4 + $0x328] sm:$0xff]
    %v1721 = vld [vmem:[#allocation4 + $0x330] sm:$0xff]
    %v1722 = vld [vmem:[#allocation4 + $0x338] sm:$0xff]
    %v1723 = vld [vmem:[#allocation4 + $0x340] sm:$0xff]
    %v1724 = vld [vmem:[#allocation4 + $0x348] sm:$0xff]
    %v1725 = vld [vmem:[#allocation4 + $0x350] sm:$0xff]
    %v1726 = vld [vmem:[#allocation4 + $0x358] sm:$0xff]
    %v1727 = vld [vmem:[#allocation4 + $0x360] sm:$0xff]
    %v1728 = vld [vmem:[#allocation4 + $0x368] sm:$0xff]
    %v1729 = vld [vmem:[#allocation4 + $0x370] sm:$0xff]
    %v1730 = vld [vmem:[#allocation4 + $0x378] sm:$0xff]
    %v1731 = vld [vmem:[#allocation4 + $0x380] sm:$0xff]
    %v1732 = vld [vmem:[#allocation4 + $0x388] sm:$0xff]
    %v1733 = vld [vmem:[#allocation4 + $0x390] sm:$0xff]
    %v1734 = vld [vmem:[#allocation4 + $0x398] sm:$0xff]
    %v1735 = vld [vmem:[#allocation4 + $0x3a0] sm:$0xff]
    %v1736 = vld [vmem:[#allocation4 + $0x3a8] sm:$0xff]
    %v1737 = vld [vmem:[#allocation4 + $0x3b0] sm:$0xff]
    %v1738 = vld [vmem:[#allocation4 + $0x3b8] sm:$0xff]
    %v1739 = vld [vmem:[#allocation4 + $0x3c0] sm:$0xff]
    %v1740 = vld [vmem:[#allocation4 + $0x3c8] sm:$0xff]
    %v1741 = vld [vmem:[#allocation4 + $0x3d0] sm:$0xff]
    %v1742 = vld [vmem:[#allocation4 + $0x3d8] sm:$0xff]
    %v1743 = vld [vmem:[#allocation4 + $0x3e0] sm:$0xff]
    %v1744 = vld [vmem:[#allocation4 + $0x3e8] sm:$0xff]
    %v1745 = vld [vmem:[#allocation4 + $0x3f0] sm:$0xff]
    %v1746 = vld [vmem:[#allocation4 + $0x3f8] sm:$0xff]
    %v1747 = vld [vmem:[#allocation4 + $0x400] sm:$0xff]
    %v1748 = vld [vmem:[#allocation4 + $0x408] sm:$0xff]
    %v1749 = vld [vmem:[#allocation4 + $0x410] sm:$0xff]
    %v1750 = vld [vmem:[#allocation4 + $0x418] sm:$0xff]
    %v1751 = vld [vmem:[#allocation4 + $0x420] sm:$0xff]
    %v1752 = vld [vmem:[#allocation4 + $0x428] sm:$0xff]
    %v1753 = vld [vmem:[#allocation4 + $0x430] sm:$0xff]
    %v1754 = vld [vmem:[#allocation4 + $0x438] sm:$0xff]
    %v1755 = vld [vmem:[#allocation4 + $0x440] sm:$0xff]
    %v1756 = vld [vmem:[#allocation4 + $0x448] sm:$0xff]
    %v1757 = vld [vmem:[#allocation4 + $0x450] sm:$0xff]
    %v1758 = vld [vmem:[#allocation4 + $0x458] sm:$0xff]
    %v1759 = vld [vmem:[#allocation4 + $0x460] sm:$0xff]
    %v1760 = vld [vmem:[#allocation4 + $0x468] sm:$0xff]
    %v1761 = vld [vmem:[#allocation4 + $0x470] sm:$0xff]
    %v1762 = vld [vmem:[#allocation4 + $0x478] sm:$0xff]
    %v1763 = vld [vmem:[#allocation4 + $0x480] sm:$0xff]
    %v1764 = vld [vmem:[#allocation4 + $0x488] sm:$0xff]
    %v1765 = vld [vmem:[#allocation4 + $0x490] sm:$0xff]
    %v1766 = vld [vmem:[#allocation4 + $0x498] sm:$0xff]
    %v1767 = vld [vmem:[#allocation4 + $0x4a0] sm:$0xff]
    %v1768 = vld [vmem:[#allocation4 + $0x4a8] sm:$0xff]
    %v1769 = vld [vmem:[#allocation4 + $0x4b0] sm:$0xff]
    %v1770 = vld [vmem:[#allocation4 + $0x4b8] sm:$0xff]
    %v1771 = vld [vmem:[#allocation4 + $0x4c0] sm:$0xff]
    %v1772 = vld [vmem:[#allocation4 + $0x4c8] sm:$0xff]
    %v1773 = vld [vmem:[#allocation4 + $0x4d0] sm:$0xff]
    %v1774 = vld [vmem:[#allocation4 + $0x4d8] sm:$0xff]
    %v1775 = vld [vmem:[#allocation4 + $0x4e0] sm:$0xff]
    %v1776 = vld [vmem:[#allocation4 + $0x4e8] sm:$0xff]
    %v1777 = vld [vmem:[#allocation4 + $0x4f0] sm:$0xff]
    %v1778 = vld [vmem:[#allocation4 + $0x4f8] sm:$0xff]
    %v1779 = vld [vmem:[#allocation4 + $0x500] sm:$0xff]
    %v1780 = vld [vmem:[#allocation4 + $0x508] sm:$0xff]
    %v1781 = vld [vmem:[#allocation4 + $0x510] sm:$0xff]
    %v1782 = vld [vmem:[#allocation4 + $0x518] sm:$0xff]
    %v1783 = vld [vmem:[#allocation4 + $0x520] sm:$0xff]
    %v1784 = vld [vmem:[#allocation4 + $0x528] sm:$0xff]
    %v1785 = vld [vmem:[#allocation4 + $0x530] sm:$0xff]
    %v1786 = vld [vmem:[#allocation4 + $0x538] sm:$0xff]
    %v1787 = vld [vmem:[#allocation4 + $0x540] sm:$0xff]
    %v1788 = vld [vmem:[#allocation4 + $0x548] sm:$0xff]
    %v1789 = vld [vmem:[#allocation4 + $0x550] sm:$0xff]
    %v1790 = vld [vmem:[#allocation4 + $0x558] sm:$0xff]
    %v1791 = vld [vmem:[#allocation4 + $0x560] sm:$0xff]
    %v1792 = vld [vmem:[#allocation4 + $0x568] sm:$0xff]
    %v1793 = vld [vmem:[#allocation4 + $0x570] sm:$0xff]
    %v1794 = vld [vmem:[#allocation4 + $0x578] sm:$0xff]
    %v1795 = vld [vmem:[#allocation4 + $0x580] sm:$0xff]
    %v1796 = vld [vmem:[#allocation4 + $0x588] sm:$0xff]
    %v1797 = vld [vmem:[#allocation4 + $0x590] sm:$0xff]
    %v1798 = vld [vmem:[#allocation4 + $0x598] sm:$0xff]
    %v1799 = vld [vmem:[#allocation4 + $0x5a0] sm:$0xff]
    %v1800 = vld [vmem:[#allocation4 + $0x5a8] sm:$0xff]
    %v1801 = vld [vmem:[#allocation4 + $0x5b0] sm:$0xff]
    %v1802 = vld [vmem:[#allocation4 + $0x5b8] sm:$0xff]
    %v1803 = vld [vmem:[#allocation4 + $0x5c0] sm:$0xff]
    %v1804 = vld [vmem:[#allocation4 + $0x5c8] sm:$0xff]
    %v1805 = vld [vmem:[#allocation4 + $0x5d0] sm:$0xff]
    %v1806 = vld [vmem:[#allocation4 + $0x5d8] sm:$0xff]
    %v1807 = vld [vmem:[#allocation4 + $0x5e0] sm:$0xff]
    %v1808 = vld [vmem:[#allocation4 + $0x5e8] sm:$0xff]
    %v1809 = vld [vmem:[#allocation4 + $0x5f0] sm:$0xff]
    %v1810 = vld [vmem:[#allocation4 + $0x5f8] sm:$0xff]
    %v1811 = vld [vmem:[#allocation4 + $0x600] sm:$0xff]
    %v1812 = vld [vmem:[#allocation4 + $0x608] sm:$0xff]
    %v1813 = vld [vmem:[#allocation4 + $0x610] sm:$0xff]
    %v1814 = vld [vmem:[#allocation4 + $0x618] sm:$0xff]
    %v1815 = vld [vmem:[#allocation4 + $0x620] sm:$0xff]
    %v1816 = vld [vmem:[#allocation4 + $0x628] sm:$0xff]
    %v1817 = vld [vmem:[#allocation4 + $0x630] sm:$0xff]
    %v1818 = vld [vmem:[#allocation4 + $0x638] sm:$0xff]
    %v1819 = vld [vmem:[#allocation4 + $0x640] sm:$0xff]
    %v1820 = vld [vmem:[#allocation4 + $0x648] sm:$0xff]
    %v1821 = vld [vmem:[#allocation4 + $0x650] sm:$0xff]
    %v1822 = vld [vmem:[#allocation4 + $0x658] sm:$0xff]
    %v1823 = vld [vmem:[#allocation4 + $0x660] sm:$0xff]
    %v1824 = vld [vmem:[#allocation4 + $0x668] sm:$0xff]
    %v1825 = vld [vmem:[#allocation4 + $0x670] sm:$0xff]
    %v1826 = vld [vmem:[#allocation4 + $0x678] sm:$0xff]
    %v1827 = vunpack.c.l.s8.bf16 %v1619
    %v1828 = vunpack.c.l.s8.bf16 %v1620
    %v1829 = vunpack.c.l.s8.bf16 %v1621
    %v1830 = vunpack.c.l.s8.bf16 %v1622
    %v1831 = vunpack.c.h.s8.bf16 %v1619
    %v1832 = vunpack.c.h.s8.bf16 %v1620
    %v1833 = vunpack.c.h.s8.bf16 %v1621
    %v1834 = vunpack.c.h.s8.bf16 %v1622
    %v1835 = vunpack.c.l.s8.bf16 %v1623
    %v1836 = vunpack.c.l.s8.bf16 %v1624
    %v1837 = vunpack.c.l.s8.bf16 %v1625
    %v1838 = vunpack.c.l.s8.bf16 %v1626
    %v1839 = vunpack.c.h.s8.bf16 %v1623
    %v1840 = vunpack.c.h.s8.bf16 %v1624
    %v1841 = vunpack.c.h.s8.bf16 %v1625
    %v1842 = vunpack.c.h.s8.bf16 %v1626
    %v1843 = vunpack.c.l.s8.bf16 %v1627
    %v1844 = vunpack.c.l.s8.bf16 %v1628
    %v1845 = vunpack.c.l.s8.bf16 %v1629
    %v1846 = vunpack.c.l.s8.bf16 %v1630
    %v1847 = vunpack.c.h.s8.bf16 %v1627
    %v1848 = vunpack.c.h.s8.bf16 %v1628
    %v1849 = vunpack.c.h.s8.bf16 %v1629
    %v1850 = vunpack.c.h.s8.bf16 %v1630
    %v1851 = vunpack.c.l.s8.bf16 %v1631
    %v1852 = vunpack.c.l.s8.bf16 %v1632
    %v1853 = vunpack.c.l.s8.bf16 %v1633
    %v1854 = vunpack.c.l.s8.bf16 %v1634
    %v1855 = vunpack.c.h.s8.bf16 %v1631
    %v1856 = vunpack.c.h.s8.bf16 %v1632
    %v1857 = vunpack.c.h.s8.bf16 %v1633
    %v1858 = vunpack.c.h.s8.bf16 %v1634
    %v1859 = vunpack.c.l.s8.bf16 %v1635
    %v1860 = vunpack.c.l.s8.bf16 %v1636
    %v1861 = vunpack.c.l.s8.bf16 %v1637
    %v1862 = vunpack.c.l.s8.bf16 %v1638
    %v1863 = vunpack.c.h.s8.bf16 %v1635
    %v1864 = vunpack.c.h.s8.bf16 %v1636
    %v1865 = vunpack.c.h.s8.bf16 %v1637
    %v1866 = vunpack.c.h.s8.bf16 %v1638
    %v1867 = vunpack.c.l.s8.bf16 %v1639
    %v1868 = vunpack.c.l.s8.bf16 %v1640
    %v1869 = vunpack.c.l.s8.bf16 %v1641
    %v1870 = vunpack.c.l.s8.bf16 %v1642
    %v1871 = vunpack.c.h.s8.bf16 %v1639
    %v1872 = vunpack.c.h.s8.bf16 %v1640
    %v1873 = vunpack.c.h.s8.bf16 %v1641
    %v1874 = vunpack.c.h.s8.bf16 %v1642
    %v1875 = vunpack.c.l.s8.bf16 %v1643
    %v1876 = vunpack.c.l.s8.bf16 %v1644
    %v1877 = vunpack.c.l.s8.bf16 %v1645
    %v1878 = vunpack.c.l.s8.bf16 %v1646
    %v1879 = vunpack.c.h.s8.bf16 %v1643
    %v1880 = vunpack.c.h.s8.bf16 %v1644
    %v1881 = vunpack.c.h.s8.bf16 %v1645
    %v1882 = vunpack.c.h.s8.bf16 %v1646
    %v1883 = vunpack.c.l.s8.bf16 %v1647
    %v1884 = vunpack.c.l.s8.bf16 %v1648
    %v1885 = vunpack.c.l.s8.bf16 %v1649
    %v1886 = vunpack.c.l.s8.bf16 %v1650
    %v1887 = vunpack.c.h.s8.bf16 %v1647
    %v1888 = vunpack.c.h.s8.bf16 %v1648
    %v1889 = vunpack.c.h.s8.bf16 %v1649
    %v1890 = vunpack.c.h.s8.bf16 %v1650
    %v1891 = vunpack.c.l.s8.bf16 %v1651
    %v1892 = vunpack.c.l.s8.bf16 %v1652
    %v1893 = vunpack.c.l.s8.bf16 %v1653
    %v1894 = vunpack.c.l.s8.bf16 %v1654
    %v1895 = vunpack.c.h.s8.bf16 %v1651
    %v1896 = vunpack.c.h.s8.bf16 %v1652
    %v1897 = vunpack.c.h.s8.bf16 %v1653
    %v1898 = vunpack.c.h.s8.bf16 %v1654
    %v1899 = vunpack.c.l.s8.bf16 %v1655
    %v1900 = vunpack.c.l.s8.bf16 %v1656
    %v1901 = vunpack.c.l.s8.bf16 %v1657
    %v1902 = vunpack.c.l.s8.bf16 %v1658
    %v1903 = vunpack.c.h.s8.bf16 %v1655
    %v1904 = vunpack.c.h.s8.bf16 %v1656
    %v1905 = vunpack.c.h.s8.bf16 %v1657
    %v1906 = vunpack.c.h.s8.bf16 %v1658
    %v1907 = vunpack.c.l.s8.bf16 %v1659
    %v1908 = vunpack.c.l.s8.bf16 %v1660
    %v1909 = vunpack.c.l.s8.bf16 %v1661
    %v1910 = vunpack.c.l.s8.bf16 %v1662
    %v1911 = vunpack.c.h.s8.bf16 %v1659
    %v1912 = vunpack.c.h.s8.bf16 %v1660
    %v1913 = vunpack.c.h.s8.bf16 %v1661
    %v1914 = vunpack.c.h.s8.bf16 %v1662
    %v1915 = vunpack.c.l.s8.bf16 %v1663
    %v1916 = vunpack.c.l.s8.bf16 %v1664
    %v1917 = vunpack.c.l.s8.bf16 %v1665
    %v1918 = vunpack.c.l.s8.bf16 %v1666
    %v1919 = vunpack.c.h.s8.bf16 %v1663
    %v1920 = vunpack.c.h.s8.bf16 %v1664
    %v1921 = vunpack.c.h.s8.bf16 %v1665
    %v1922 = vunpack.c.h.s8.bf16 %v1666
    %v1923 = vunpack.c.l.s8.bf16 %v1667
    %v1924 = vunpack.c.l.s8.bf16 %v1668
    %v1925 = vunpack.c.l.s8.bf16 %v1669
    %v1926 = vunpack.c.l.s8.bf16 %v1670
    %v1927 = vunpack.c.h.s8.bf16 %v1667
    %v1928 = vunpack.c.h.s8.bf16 %v1668
    %v1929 = vunpack.c.h.s8.bf16 %v1669
    %v1930 = vunpack.c.h.s8.bf16 %v1670
    %v1931 = vunpack.c.l.s8.bf16 %v1671
    %v1932 = vunpack.c.l.s8.bf16 %v1672
    %v1933 = vunpack.c.l.s8.bf16 %v1673
    %v1934 = vunpack.c.l.s8.bf16 %v1674
    %v1935 = vunpack.c.h.s8.bf16 %v1671
    %v1936 = vunpack.c.h.s8.bf16 %v1672
    %v1937 = vunpack.c.h.s8.bf16 %v1673
    %v1938 = vunpack.c.h.s8.bf16 %v1674
    %v1939 = vunpack.c.l.s8.bf16 %v1675
    %v1940 = vunpack.c.l.s8.bf16 %v1676
    %v1941 = vunpack.c.l.s8.bf16 %v1677
    %v1942 = vunpack.c.l.s8.bf16 %v1678
    %v1943 = vunpack.c.h.s8.bf16 %v1675
    %v1944 = vunpack.c.h.s8.bf16 %v1676
    %v1945 = vunpack.c.h.s8.bf16 %v1677
    %v1946 = vunpack.c.h.s8.bf16 %v1678
    %v1947 = vunpack.c.l.s8.bf16 %v1679
    %v1948 = vunpack.c.l.s8.bf16 %v1680
    %v1949 = vunpack.c.l.s8.bf16 %v1681
    %v1950 = vunpack.c.l.s8.bf16 %v1682
    %v1951 = vunpack.c.h.s8.bf16 %v1679
    %v1952 = vunpack.c.h.s8.bf16 %v1680
    %v1953 = vunpack.c.h.s8.bf16 %v1681
    %v1954 = vunpack.c.h.s8.bf16 %v1682
    %v1955 = vunpack.c.l.s8.bf16 %v1683
    %v1956 = vunpack.c.l.s8.bf16 %v1684
    %v1957 = vunpack.c.l.s8.bf16 %v1685
    %v1958 = vunpack.c.l.s8.bf16 %v1686
    %v1959 = vunpack.c.h.s8.bf16 %v1683
    %v1960 = vunpack.c.h.s8.bf16 %v1684
    %v1961 = vunpack.c.h.s8.bf16 %v1685
    %v1962 = vunpack.c.h.s8.bf16 %v1686
    %v1963 = vunpack.c.l.s8.bf16 %v1687
    %v1964 = vunpack.c.l.s8.bf16 %v1688
    %v1965 = vunpack.c.l.s8.bf16 %v1689
    %v1966 = vunpack.c.l.s8.bf16 %v1690
    %v1967 = vunpack.c.h.s8.bf16 %v1687
    %v1968 = vunpack.c.h.s8.bf16 %v1688
    %v1969 = vunpack.c.h.s8.bf16 %v1689
    %v1970 = vunpack.c.h.s8.bf16 %v1690
    %v1971 = vunpack.c.l.s8.bf16 %v1691
    %v1972 = vunpack.c.l.s8.bf16 %v1692
    %v1973 = vunpack.c.l.s8.bf16 %v1693
    %v1974 = vunpack.c.l.s8.bf16 %v1694
    %v1975 = vunpack.c.h.s8.bf16 %v1691
    %v1976 = vunpack.c.h.s8.bf16 %v1692
    %v1977 = vunpack.c.h.s8.bf16 %v1693
    %v1978 = vunpack.c.h.s8.bf16 %v1694
    %v1979 = vunpack.c.l.s8.bf16 %v1695
    %v1980 = vunpack.c.l.s8.bf16 %v1696
    %v1981 = vunpack.c.l.s8.bf16 %v1697
    %v1982 = vunpack.c.l.s8.bf16 %v1698
    %v1983 = vunpack.c.h.s8.bf16 %v1695
    %v1984 = vunpack.c.h.s8.bf16 %v1696
    %v1985 = vunpack.c.h.s8.bf16 %v1697
    %v1986 = vunpack.c.h.s8.bf16 %v1698
    %v1987 = vunpack.c.l.s8.bf16 %v1699
    %v1988 = vunpack.c.l.s8.bf16 %v1700
    %v1989 = vunpack.c.l.s8.bf16 %v1701
    %v1990 = vunpack.c.l.s8.bf16 %v1702
    %v1991 = vunpack.c.h.s8.bf16 %v1699
    %v1992 = vunpack.c.h.s8.bf16 %v1700
    %v1993 = vunpack.c.h.s8.bf16 %v1701
    %v1994 = vunpack.c.h.s8.bf16 %v1702
    %v1995 = vunpack.c.l.s8.bf16 %v1703
    %v1996 = vunpack.c.l.s8.bf16 %v1704
    %v1997 = vunpack.c.l.s8.bf16 %v1705
    %v1998 = vunpack.c.l.s8.bf16 %v1706
    %v1999 = vunpack.c.h.s8.bf16 %v1703
    %v2000 = vunpack.c.h.s8.bf16 %v1704
    %v2001 = vunpack.c.h.s8.bf16 %v1705
    %v2002 = vunpack.c.h.s8.bf16 %v1706
    %v2003 = vunpack.c.l.s8.bf16 %v1707
    %v2004 = vunpack.c.l.s8.bf16 %v1708
    %v2005 = vunpack.c.l.s8.bf16 %v1709
    %v2006 = vunpack.c.l.s8.bf16 %v1710
    %v2007 = vunpack.c.h.s8.bf16 %v1707
    %v2008 = vunpack.c.h.s8.bf16 %v1708
    %v2009 = vunpack.c.h.s8.bf16 %v1709
    %v2010 = vunpack.c.h.s8.bf16 %v1710
    %v2011 = vunpack.c.l.s8.bf16 %v1711
    %v2012 = vunpack.c.l.s8.bf16 %v1712
    %v2013 = vunpack.c.l.s8.bf16 %v1713
    %v2014 = vunpack.c.l.s8.bf16 %v1714
    %v2015 = vunpack.c.h.s8.bf16 %v1711
    %v2016 = vunpack.c.h.s8.bf16 %v1712
    %v2017 = vunpack.c.h.s8.bf16 %v1713
    %v2018 = vunpack.c.h.s8.bf16 %v1714
    %v2019 = vunpack.c.l.s8.bf16 %v1715
    %v2020 = vunpack.c.l.s8.bf16 %v1716
    %v2021 = vunpack.c.l.s8.bf16 %v1717
    %v2022 = vunpack.c.l.s8.bf16 %v1718
    %v2023 = vunpack.c.h.s8.bf16 %v1715
    %v2024 = vunpack.c.h.s8.bf16 %v1716
    %v2025 = vunpack.c.h.s8.bf16 %v1717
    %v2026 = vunpack.c.h.s8.bf16 %v1718
    %v2027 = vunpack.c.l.s8.bf16 %v1719
    %v2028 = vunpack.c.l.s8.bf16 %v1720
    %v2029 = vunpack.c.l.s8.bf16 %v1721
    %v2030 = vunpack.c.l.s8.bf16 %v1722
    %v2031 = vunpack.c.h.s8.bf16 %v1719
    %v2032 = vunpack.c.h.s8.bf16 %v1720
    %v2033 = vunpack.c.h.s8.bf16 %v1721
    %v2034 = vunpack.c.h.s8.bf16 %v1722
    %v2035 = vunpack.c.l.s8.bf16 %v1723
    %v2036 = vunpack.c.l.s8.bf16 %v1724
    %v2037 = vunpack.c.l.s8.bf16 %v1725
    %v2038 = vunpack.c.l.s8.bf16 %v1726
    %v2039 = vunpack.c.h.s8.bf16 %v1723
    %v2040 = vunpack.c.h.s8.bf16 %v1724
    %v2041 = vunpack.c.h.s8.bf16 %v1725
    %v2042 = vunpack.c.h.s8.bf16 %v1726
    %v2043 = vunpack.c.l.s8.bf16 %v1727
    %v2044 = vunpack.c.l.s8.bf16 %v1728
    %v2045 = vunpack.c.l.s8.bf16 %v1729
    %v2046 = vunpack.c.l.s8.bf16 %v1730
    %v2047 = vunpack.c.h.s8.bf16 %v1727
    %v2048 = vunpack.c.h.s8.bf16 %v1728
    %v2049 = vunpack.c.h.s8.bf16 %v1729
    %v2050 = vunpack.c.h.s8.bf16 %v1730
    %v2051 = vunpack.c.l.s8.bf16 %v1731
    %v2052 = vunpack.c.l.s8.bf16 %v1732
    %v2053 = vunpack.c.l.s8.bf16 %v1733
    %v2054 = vunpack.c.l.s8.bf16 %v1734
    %v2055 = vunpack.c.h.s8.bf16 %v1731
    %v2056 = vunpack.c.h.s8.bf16 %v1732
    %v2057 = vunpack.c.h.s8.bf16 %v1733
    %v2058 = vunpack.c.h.s8.bf16 %v1734
    %v2059 = vunpack.c.l.s8.bf16 %v1735
    %v2060 = vunpack.c.l.s8.bf16 %v1736
    %v2061 = vunpack.c.l.s8.bf16 %v1737
    %v2062 = vunpack.c.l.s8.bf16 %v1738
    %v2063 = vunpack.c.h.s8.bf16 %v1735
    %v2064 = vunpack.c.h.s8.bf16 %v1736
    %v2065 = vunpack.c.h.s8.bf16 %v1737
    %v2066 = vunpack.c.h.s8.bf16 %v1738
    %v2067 = vunpack.c.l.s8.bf16 %v1739
    %v2068 = vunpack.c.l.s8.bf16 %v1740
    %v2069 = vunpack.c.l.s8.bf16 %v1741
    %v2070 = vunpack.c.l.s8.bf16 %v1742
    %v2071 = vunpack.c.h.s8.bf16 %v1739
    %v2072 = vunpack.c.h.s8.bf16 %v1740
    %v2073 = vunpack.c.h.s8.bf16 %v1741
    %v2074 = vunpack.c.h.s8.bf16 %v1742
    %v2075 = vunpack.c.l.s8.bf16 %v1743
    %v2076 = vunpack.c.l.s8.bf16 %v1744
    %v2077 = vunpack.c.l.s8.bf16 %v1745
    %v2078 = vunpack.c.l.s8.bf16 %v1746
    %v2079 = vunpack.c.h.s8.bf16 %v1743
    %v2080 = vunpack.c.h.s8.bf16 %v1744
    %v2081 = vunpack.c.h.s8.bf16 %v1745
    %v2082 = vunpack.c.h.s8.bf16 %v1746
    %v2083 = vunpack.c.l.s8.bf16 %v1747
    %v2084 = vunpack.c.l.s8.bf16 %v1748
    %v2085 = vunpack.c.l.s8.bf16 %v1749
    %v2086 = vunpack.c.l.s8.bf16 %v1750
    %v2087 = vunpack.c.h.s8.bf16 %v1747
    %v2088 = vunpack.c.h.s8.bf16 %v1748
    %v2089 = vunpack.c.h.s8.bf16 %v1749
    %v2090 = vunpack.c.h.s8.bf16 %v1750
    %v2091 = vunpack.c.l.s8.bf16 %v1751
    %v2092 = vunpack.c.l.s8.bf16 %v1752
    %v2093 = vunpack.c.l.s8.bf16 %v1753
    %v2094 = vunpack.c.l.s8.bf16 %v1754
    %v2095 = vunpack.c.h.s8.bf16 %v1751
    %v2096 = vunpack.c.h.s8.bf16 %v1752
    %v2097 = vunpack.c.h.s8.bf16 %v1753
    %v2098 = vunpack.c.h.s8.bf16 %v1754
    %v2099 = vunpack.c.l.s8.bf16 %v1755
    %v2100 = vunpack.c.l.s8.bf16 %v1756
    %v2101 = vunpack.c.l.s8.bf16 %v1757
    %v2102 = vunpack.c.l.s8.bf16 %v1758
    %v2103 = vunpack.c.h.s8.bf16 %v1755
    %v2104 = vunpack.c.h.s8.bf16 %v1756
    %v2105 = vunpack.c.h.s8.bf16 %v1757
    %v2106 = vunpack.c.h.s8.bf16 %v1758
    %v2107 = vunpack.c.l.s8.bf16 %v1759
    %v2108 = vunpack.c.l.s8.bf16 %v1760
    %v2109 = vunpack.c.l.s8.bf16 %v1761
    %v2110 = vunpack.c.l.s8.bf16 %v1762
    %v2111 = vunpack.c.h.s8.bf16 %v1759
    %v2112 = vunpack.c.h.s8.bf16 %v1760
    %v2113 = vunpack.c.h.s8.bf16 %v1761
    %v2114 = vunpack.c.h.s8.bf16 %v1762
    %v2115 = vunpack.c.l.s8.bf16 %v1763
    %v2116 = vunpack.c.l.s8.bf16 %v1764
    %v2117 = vunpack.c.l.s8.bf16 %v1765
    %v2118 = vunpack.c.l.s8.bf16 %v1766
    %v2119 = vunpack.c.h.s8.bf16 %v1763
    %v2120 = vunpack.c.h.s8.bf16 %v1764
    %v2121 = vunpack.c.h.s8.bf16 %v1765
    %v2122 = vunpack.c.h.s8.bf16 %v1766
    %v2123 = vunpack.c.l.s8.bf16 %v1767
    %v2124 = vunpack.c.l.s8.bf16 %v1768
    %v2125 = vunpack.c.l.s8.bf16 %v1769
    %v2126 = vunpack.c.l.s8.bf16 %v1770
    %v2127 = vunpack.c.h.s8.bf16 %v1767
    %v2128 = vunpack.c.h.s8.bf16 %v1768
    %v2129 = vunpack.c.h.s8.bf16 %v1769
    %v2130 = vunpack.c.h.s8.bf16 %v1770
    %v2131 = vunpack.c.l.s8.bf16 %v1771
    %v2132 = vunpack.c.l.s8.bf16 %v1772
    %v2133 = vunpack.c.l.s8.bf16 %v1773
    %v2134 = vunpack.c.l.s8.bf16 %v1774
    %v2135 = vunpack.c.h.s8.bf16 %v1771
    %v2136 = vunpack.c.h.s8.bf16 %v1772
    %v2137 = vunpack.c.h.s8.bf16 %v1773
    %v2138 = vunpack.c.h.s8.bf16 %v1774
    %v2139 = vunpack.c.l.s8.bf16 %v1775
    %v2140 = vunpack.c.l.s8.bf16 %v1776
    %v2141 = vunpack.c.l.s8.bf16 %v1777
    %v2142 = vunpack.c.l.s8.bf16 %v1778
    %v2143 = vunpack.c.h.s8.bf16 %v1775
    %v2144 = vunpack.c.h.s8.bf16 %v1776
    %v2145 = vunpack.c.h.s8.bf16 %v1777
    %v2146 = vunpack.c.h.s8.bf16 %v1778
    %v2147 = vunpack.c.l.s8.bf16 %v1779
    %v2148 = vunpack.c.l.s8.bf16 %v1780
    %v2149 = vunpack.c.l.s8.bf16 %v1781
    %v2150 = vunpack.c.l.s8.bf16 %v1782
    %v2151 = vunpack.c.h.s8.bf16 %v1779
    %v2152 = vunpack.c.h.s8.bf16 %v1780
    %v2153 = vunpack.c.h.s8.bf16 %v1781
    %v2154 = vunpack.c.h.s8.bf16 %v1782
    %v2155 = vunpack.c.l.s8.bf16 %v1783
    %v2156 = vunpack.c.l.s8.bf16 %v1784
    %v2157 = vunpack.c.l.s8.bf16 %v1785
    %v2158 = vunpack.c.l.s8.bf16 %v1786
    %v2159 = vunpack.c.h.s8.bf16 %v1783
    %v2160 = vunpack.c.h.s8.bf16 %v1784
    %v2161 = vunpack.c.h.s8.bf16 %v1785
    %v2162 = vunpack.c.h.s8.bf16 %v1786
    %v2163 = vunpack.c.l.s8.bf16 %v1787
    %v2164 = vunpack.c.l.s8.bf16 %v1788
    %v2165 = vunpack.c.l.s8.bf16 %v1789
    %v2166 = vunpack.c.l.s8.bf16 %v1790
    %v2167 = vunpack.c.h.s8.bf16 %v1787
    %v2168 = vunpack.c.h.s8.bf16 %v1788
    %v2169 = vunpack.c.h.s8.bf16 %v1789
    %v2170 = vunpack.c.h.s8.bf16 %v1790
    %v2171 = vunpack.c.l.s8.bf16 %v1791
    %v2172 = vunpack.c.l.s8.bf16 %v1792
    %v2173 = vunpack.c.l.s8.bf16 %v1793
    %v2174 = vunpack.c.l.s8.bf16 %v1794
    %v2175 = vunpack.c.h.s8.bf16 %v1791
    %v2176 = vunpack.c.h.s8.bf16 %v1792
    %v2177 = vunpack.c.h.s8.bf16 %v1793
    %v2178 = vunpack.c.h.s8.bf16 %v1794
    %v2179 = vunpack.c.l.s8.bf16 %v1795
    %v2180 = vunpack.c.l.s8.bf16 %v1796
    %v2181 = vunpack.c.l.s8.bf16 %v1797
    %v2182 = vunpack.c.l.s8.bf16 %v1798
    %v2183 = vunpack.c.h.s8.bf16 %v1795
    %v2184 = vunpack.c.h.s8.bf16 %v1796
    %v2185 = vunpack.c.h.s8.bf16 %v1797
    %v2186 = vunpack.c.h.s8.bf16 %v1798
    %v2187 = vunpack.c.l.s8.bf16 %v1799
    %v2188 = vunpack.c.l.s8.bf16 %v1800
    %v2189 = vunpack.c.l.s8.bf16 %v1801
    %v2190 = vunpack.c.l.s8.bf16 %v1802
    %v2191 = vunpack.c.h.s8.bf16 %v1799
    %v2192 = vunpack.c.h.s8.bf16 %v1800
    %v2193 = vunpack.c.h.s8.bf16 %v1801
    %v2194 = vunpack.c.h.s8.bf16 %v1802
    %v2195 = vunpack.c.l.s8.bf16 %v1803
    %v2196 = vunpack.c.l.s8.bf16 %v1804
    %v2197 = vunpack.c.l.s8.bf16 %v1805
    %v2198 = vunpack.c.l.s8.bf16 %v1806
    %v2199 = vunpack.c.h.s8.bf16 %v1803
    %v2200 = vunpack.c.h.s8.bf16 %v1804
    %v2201 = vunpack.c.h.s8.bf16 %v1805
    %v2202 = vunpack.c.h.s8.bf16 %v1806
    %v2203 = vunpack.c.l.s8.bf16 %v1807
    %v2204 = vunpack.c.l.s8.bf16 %v1808
    %v2205 = vunpack.c.l.s8.bf16 %v1809
    %v2206 = vunpack.c.l.s8.bf16 %v1810
    %v2207 = vunpack.c.h.s8.bf16 %v1807
    %v2208 = vunpack.c.h.s8.bf16 %v1808
    %v2209 = vunpack.c.h.s8.bf16 %v1809
    %v2210 = vunpack.c.h.s8.bf16 %v1810
    %v2211 = vunpack.c.l.s8.bf16 %v1811
    %v2212 = vunpack.c.l.s8.bf16 %v1812
    %v2213 = vunpack.c.l.s8.bf16 %v1813
    %v2214 = vunpack.c.l.s8.bf16 %v1814
    %v2215 = vunpack.c.h.s8.bf16 %v1811
    %v2216 = vunpack.c.h.s8.bf16 %v1812
    %v2217 = vunpack.c.h.s8.bf16 %v1813
    %v2218 = vunpack.c.h.s8.bf16 %v1814
    %v2219 = vunpack.c.l.s8.bf16 %v1815
    %v2220 = vunpack.c.l.s8.bf16 %v1816
    %v2221 = vunpack.c.l.s8.bf16 %v1817
    %v2222 = vunpack.c.l.s8.bf16 %v1818
    %v2223 = vunpack.c.h.s8.bf16 %v1815
    %v2224 = vunpack.c.h.s8.bf16 %v1816
    %v2225 = vunpack.c.h.s8.bf16 %v1817
    %v2226 = vunpack.c.h.s8.bf16 %v1818
    %v2227 = vunpack.c.l.s8.bf16 %v1819
    %v2228 = vunpack.c.l.s8.bf16 %v1820
    %v2229 = vunpack.c.l.s8.bf16 %v1821
    %v2230 = vunpack.c.l.s8.bf16 %v1822
    %v2231 = vunpack.c.h.s8.bf16 %v1819
    %v2232 = vunpack.c.h.s8.bf16 %v1820
    %v2233 = vunpack.c.h.s8.bf16 %v1821
    %v2234 = vunpack.c.h.s8.bf16 %v1822
    %v2235 = vunpack.c.l.s8.bf16 %v1823
    %v2236 = vunpack.c.l.s8.bf16 %v1824
    %v2237 = vunpack.c.l.s8.bf16 %v1825
    %v2238 = vunpack.c.l.s8.bf16 %v1826
    %v2239 = vunpack.c.h.s8.bf16 %v1823
    %v2240 = vunpack.c.h.s8.bf16 %v1824
    %v2241 = vunpack.c.h.s8.bf16 %v1825
    %v2242 = vunpack.c.h.s8.bf16 %v1826
    %2243 = vmatprep.subr.bf16.mxu0 %v1856
    %2244 = vmatpush1.bf16.msra.mxu0 %v1855
    %2245 = vmatprep.subr.bf16.mxu0 %v1852
    %2246 = vmatpush1.bf16.msra.mxu0 %v1851
    %2247 = vmatprep.subr.bf16.mxu0 %v1848
    %2248 = vmatpush1.bf16.msra.mxu0 %v1847
    %2249 = vmatprep.subr.bf16.mxu0 %v1844
    %2250 = vmatpush1.bf16.msra.mxu0 %v1843
    %2251 = vmatprep.subr.bf16.mxu0 %v1840
    %2252 = vmatpush1.bf16.msra.mxu0 %v1839
    %2253 = vmatprep.subr.bf16.mxu0 %v1836
    %2254 = vmatpush1.bf16.msra.mxu0 %v1835
    %2255 = vmatprep.subr.bf16.mxu0 %v1832
    %2256 = vmatpush1.bf16.msra.mxu0 %v1831
    %2257 = vmatprep.subr.bf16.mxu0 %v1828
    %2258 = vmatpush1.bf16.msra.mxu0 %v1827
    %2259 = vmatprep.subr.bf16.mxu0 %v1888
    %2260 = vmatpush2.bf16.msra.mxu0 %v1887
    %2261 = vmatprep.subr.bf16.mxu0 %v1884
    %2262 = vmatpush2.bf16.msra.mxu0 %v1883
    %2263 = vmatprep.subr.bf16.mxu0 %v1880
    %2264 = vmatpush2.bf16.msra.mxu0 %v1879
    %2265 = vmatprep.subr.bf16.mxu0 %v1876
    %2266 = vmatpush2.bf16.msra.mxu0 %v1875
    %2267 = vmatprep.subr.bf16.mxu0 %v1872
    %2268 = vmatpush2.bf16.msra.mxu0 %v1871
    %2269 = vmatprep.subr.bf16.mxu0 %v1868
    %2270 = vmatpush2.bf16.msra.mxu0 %v1867
    %2271 = vmatprep.subr.bf16.mxu0 %v1864
    %2272 = vmatpush2.bf16.msra.mxu0 %v1863
    %2273 = vmatprep.subr.bf16.mxu0 %v1860
    %2274 = vmatpush2.bf16.msra.mxu0 %v1859
    %2275 = vmatprep.mubr.bf16.mxu0 %v1607
    %2276 = vmatmul.mubr.bf16.gmra.mxu0 %v1606
    %v2277 = vpop.f32.mrf.mxu0
    %v2278 = vadd.f32 0.0, %v2277
    %v2279 = vpop.f32.mrf.mxu0
    %v2280 = vadd.f32 0.0, %v2279
    %v2281 = vpop.f32.mrf.mxu0
    %v2282 = vadd.f32 0.0, %v2281
    %v2283 = vpop.f32.mrf.mxu0
    %v2284 = vadd.f32 0.0, %v2283
    %2285 = vdwg.mxu0
    %2286 = vmatprep.subr.bf16.mxu0 %v1920
    %2287 = vmatpush1.bf16.msra.mxu0 %v1919
    %2288 = vmatprep.subr.bf16.mxu0 %v1916
    %2289 = vmatpush1.bf16.msra.mxu0 %v1915
    %2290 = vmatprep.subr.bf16.mxu0 %v1912
    %2291 = vmatpush1.bf16.msra.mxu0 %v1911
    %2292 = vmatprep.subr.bf16.mxu0 %v1908
    %2293 = vmatpush1.bf16.msra.mxu0 %v1907
    %2294 = vmatprep.subr.bf16.mxu0 %v1904
    %2295 = vmatpush1.bf16.msra.mxu0 %v1903
    %2296 = vmatprep.subr.bf16.mxu0 %v1900
    %2297 = vmatpush1.bf16.msra.mxu0 %v1899
    %2298 = vmatprep.subr.bf16.mxu0 %v1896
    %2299 = vmatpush1.bf16.msra.mxu0 %v1895
    %2300 = vmatprep.subr.bf16.mxu0 %v1892
    %2301 = vmatpush1.bf16.msra.mxu0 %v1891
    %2302 = vmatprep.subr.bf16.mxu0 %v1952
    %2303 = vmatpush2.bf16.msra.mxu0 %v1951
    %2304 = vmatprep.subr.bf16.mxu0 %v1948
    %2305 = vmatpush2.bf16.msra.mxu0 %v1947
    %2306 = vmatprep.subr.bf16.mxu0 %v1944
    %2307 = vmatpush2.bf16.msra.mxu0 %v1943
    %2308 = vmatprep.subr.bf16.mxu0 %v1940
    %2309 = vmatpush2.bf16.msra.mxu0 %v1939
    %2310 = vmatprep.subr.bf16.mxu0 %v1936
    %2311 = vmatpush2.bf16.msra.mxu0 %v1935
    %2312 = vmatprep.subr.bf16.mxu0 %v1932
    %2313 = vmatpush2.bf16.msra.mxu0 %v1931
    %2314 = vmatprep.subr.bf16.mxu0 %v1928
    %2315 = vmatpush2.bf16.msra.mxu0 %v1927
    %2316 = vmatprep.subr.bf16.mxu0 %v1924
    %2317 = vmatpush2.bf16.msra.mxu0 %v1923
    %2318 = vmatprep.mubr.bf16.mxu0 %v1609
    %2319 = vmatmul.mubr.bf16.gmra.mxu0 %v1608
    %v2320 = vpop.f32.mrf.mxu0
    %v2321 = vadd.f32 %v2278, %v2320
    %v2322 = vpop.f32.mrf.mxu0
    %v2323 = vadd.f32 %v2280, %v2322
    %v2324 = vpop.f32.mrf.mxu0
    %v2325 = vadd.f32 %v2282, %v2324
    %v2326 = vpop.f32.mrf.mxu0
    %v2327 = vadd.f32 %v2284, %v2326
    %2328 = vdwg.mxu0
    %2329 = vmatprep.subr.bf16.mxu0 %v1984
    %2330 = vmatpush1.bf16.msra.mxu0 %v1983
    %2331 = vmatprep.subr.bf16.mxu0 %v1980
    %2332 = vmatpush1.bf16.msra.mxu0 %v1979
    %2333 = vmatprep.subr.bf16.mxu0 %v1976
    %2334 = vmatpush1.bf16.msra.mxu0 %v1975
    %2335 = vmatprep.subr.bf16.mxu0 %v1972
    %2336 = vmatpush1.bf16.msra.mxu0 %v1971
    %2337 = vmatprep.subr.bf16.mxu0 %v1968
    %2338 = vmatpush1.bf16.msra.mxu0 %v1967
    %2339 = vmatprep.subr.bf16.mxu0 %v1964
    %2340 = vmatpush1.bf16.msra.mxu0 %v1963
    %2341 = vmatprep.subr.bf16.mxu0 %v1960
    %2342 = vmatpush1.bf16.msra.mxu0 %v1959
    %2343 = vmatprep.subr.bf16.mxu0 %v1956
    %2344 = vmatpush1.bf16.msra.mxu0 %v1955
    %2345 = vmatprep.subr.bf16.mxu0 %v2016
    %2346 = vmatpush2.bf16.msra.mxu0 %v2015
    %2347 = vmatprep.subr.bf16.mxu0 %v2012
    %2348 = vmatpush2.bf16.msra.mxu0 %v2011
    %2349 = vmatprep.subr.bf16.mxu0 %v2008
    %2350 = vmatpush2.bf16.msra.mxu0 %v2007
    %2351 = vmatprep.subr.bf16.mxu0 %v2004
    %2352 = vmatpush2.bf16.msra.mxu0 %v2003
    %2353 = vmatprep.subr.bf16.mxu0 %v2000
    %2354 = vmatpush2.bf16.msra.mxu0 %v1999
    %2355 = vmatprep.subr.bf16.mxu0 %v1996
    %2356 = vmatpush2.bf16.msra.mxu0 %v1995
    %2357 = vmatprep.subr.bf16.mxu0 %v1992
    %2358 = vmatpush2.bf16.msra.mxu0 %v1991
    %2359 = vmatprep.subr.bf16.mxu0 %v1988
    %2360 = vmatpush2.bf16.msra.mxu0 %v1987
    %2361 = vmatprep.mubr.bf16.mxu0 %v1611
    %2362 = vmatmul.mubr.bf16.gmra.mxu0 %v1610
    %v2363 = vpop.f32.mrf.mxu0
    %v2364 = vadd.f32 %v2321, %v2363
    %v2365 = vpop.f32.mrf.mxu0
    %v2366 = vadd.f32 %v2323, %v2365
    %v2367 = vpop.f32.mrf.mxu0
    %v2368 = vadd.f32 %v2325, %v2367
    %v2369 = vpop.f32.mrf.mxu0
    %v2370 = vadd.f32 %v2327, %v2369
    %2371 = vdwg.mxu0
    %2372 = vmatprep.subr.bf16.mxu0 %v2048
    %2373 = vmatpush1.bf16.msra.mxu0 %v2047
    %2374 = vmatprep.subr.bf16.mxu0 %v2044
    %2375 = vmatpush1.bf16.msra.mxu0 %v2043
    %2376 = vmatprep.subr.bf16.mxu0 %v2040
    %2377 = vmatpush1.bf16.msra.mxu0 %v2039
    %2378 = vmatprep.subr.bf16.mxu0 %v2036
    %2379 = vmatpush1.bf16.msra.mxu0 %v2035
    %2380 = vmatprep.subr.bf16.mxu0 %v2032
    %2381 = vmatpush1.bf16.msra.mxu0 %v2031
    %2382 = vmatprep.subr.bf16.mxu0 %v2028
    %2383 = vmatpush1.bf16.msra.mxu0 %v2027
    %2384 = vmatprep.subr.bf16.mxu0 %v2024
    %2385 = vmatpush1.bf16.msra.mxu0 %v2023
    %2386 = vmatprep.subr.bf16.mxu0 %v2020
    %2387 = vmatpush1.bf16.msra.mxu0 %v2019
    %2388 = vmatprep.subr.bf16.mxu0 %v2080
    %2389 = vmatpush2.bf16.msra.mxu0 %v2079
    %2390 = vmatprep.subr.bf16.mxu0 %v2076
    %2391 = vmatpush2.bf16.msra.mxu0 %v2075
    %2392 = vmatprep.subr.bf16.mxu0 %v2072
    %2393 = vmatpush2.bf16.msra.mxu0 %v2071
    %2394 = vmatprep.subr.bf16.mxu0 %v2068
    %2395 = vmatpush2.bf16.msra.mxu0 %v2067
    %2396 = vmatprep.subr.bf16.mxu0 %v2064
    %2397 = vmatpush2.bf16.msra.mxu0 %v2063
    %2398 = vmatprep.subr.bf16.mxu0 %v2060
    %2399 = vmatpush2.bf16.msra.mxu0 %v2059
    %2400 = vmatprep.subr.bf16.mxu0 %v2056
    %2401 = vmatpush2.bf16.msra.mxu0 %v2055
    %2402 = vmatprep.subr.bf16.mxu0 %v2052
    %2403 = vmatpush2.bf16.msra.mxu0 %v2051
    %2404 = vmatprep.mubr.bf16.mxu0 %v1613
    %2405 = vmatmul.mubr.bf16.gmra.mxu0 %v1612
    %v2406 = vpop.f32.mrf.mxu0
    %v2407 = vadd.f32 %v2364, %v2406
    %v2408 = vpop.f32.mrf.mxu0
    %v2409 = vadd.f32 %v2366, %v2408
    %v2410 = vpop.f32.mrf.mxu0
    %v2411 = vadd.f32 %v2368, %v2410
    %v2412 = vpop.f32.mrf.mxu0
    %v2413 = vadd.f32 %v2370, %v2412
    %2414 = vdwg.mxu0
    %2415 = vmatprep.subr.bf16.mxu0 %v2112
    %2416 = vmatpush1.bf16.msra.mxu0 %v2111
    %2417 = vmatprep.subr.bf16.mxu0 %v2108
    %2418 = vmatpush1.bf16.msra.mxu0 %v2107
    %2419 = vmatprep.subr.bf16.mxu0 %v2104
    %2420 = vmatpush1.bf16.msra.mxu0 %v2103
    %2421 = vmatprep.subr.bf16.mxu0 %v2100
    %2422 = vmatpush1.bf16.msra.mxu0 %v2099
    %2423 = vmatprep.subr.bf16.mxu0 %v2096
    %2424 = vmatpush1.bf16.msra.mxu0 %v2095
    %2425 = vmatprep.subr.bf16.mxu0 %v2092
    %2426 = vmatpush1.bf16.msra.mxu0 %v2091
    %2427 = vmatprep.subr.bf16.mxu0 %v2088
    %2428 = vmatpush1.bf16.msra.mxu0 %v2087
    %2429 = vmatprep.subr.bf16.mxu0 %v2084
    %2430 = vmatpush1.bf16.msra.mxu0 %v2083
    %2431 = vmatprep.subr.bf16.mxu0 %v2144
    %2432 = vmatpush2.bf16.msra.mxu0 %v2143
    %2433 = vmatprep.subr.bf16.mxu0 %v2140
    %2434 = vmatpush2.bf16.msra.mxu0 %v2139
    %2435 = vmatprep.subr.bf16.mxu0 %v2136
    %2436 = vmatpush2.bf16.msra.mxu0 %v2135
    %2437 = vmatprep.subr.bf16.mxu0 %v2132
    %2438 = vmatpush2.bf16.msra.mxu0 %v2131
    %2439 = vmatprep.subr.bf16.mxu0 %v2128
    %2440 = vmatpush2.bf16.msra.mxu0 %v2127
    %2441 = vmatprep.subr.bf16.mxu0 %v2124
    %2442 = vmatpush2.bf16.msra.mxu0 %v2123
    %2443 = vmatprep.subr.bf16.mxu0 %v2120
    %2444 = vmatpush2.bf16.msra.mxu0 %v2119
    %2445 = vmatprep.subr.bf16.mxu0 %v2116
    %2446 = vmatpush2.bf16.msra.mxu0 %v2115
    %2447 = vmatprep.mubr.bf16.mxu0 %v1615
    %2448 = vmatmul.mubr.bf16.gmra.mxu0 %v1614
    %v2449 = vpop.f32.mrf.mxu0
    %v2450 = vadd.f32 %v2407, %v2449
    %v2451 = vpop.f32.mrf.mxu0
    %v2452 = vadd.f32 %v2409, %v2451
    %v2453 = vpop.f32.mrf.mxu0
    %v2454 = vadd.f32 %v2411, %v2453
    %v2455 = vpop.f32.mrf.mxu0
    %v2456 = vadd.f32 %v2413, %v2455
    %2457 = vdwg.mxu0
    %2458 = vmatprep.subr.bf16.mxu0 %v2176
    %2459 = vmatpush1.bf16.msra.mxu0 %v2175
    %2460 = vmatprep.subr.bf16.mxu0 %v2172
    %2461 = vmatpush1.bf16.msra.mxu0 %v2171
    %2462 = vmatprep.subr.bf16.mxu0 %v2168
    %2463 = vmatpush1.bf16.msra.mxu0 %v2167
    %2464 = vmatprep.subr.bf16.mxu0 %v2164
    %2465 = vmatpush1.bf16.msra.mxu0 %v2163
    %2466 = vmatprep.subr.bf16.mxu0 %v2160
    %2467 = vmatpush1.bf16.msra.mxu0 %v2159
    %2468 = vmatprep.subr.bf16.mxu0 %v2156
    %2469 = vmatpush1.bf16.msra.mxu0 %v2155
    %2470 = vmatprep.subr.bf16.mxu0 %v2152
    %2471 = vmatpush1.bf16.msra.mxu0 %v2151
    %2472 = vmatprep.subr.bf16.mxu0 %v2148
    %2473 = vmatpush1.bf16.msra.mxu0 %v2147
    %2474 = vmatprep.subr.bf16.mxu0 %v2208
    %2475 = vmatpush2.bf16.msra.mxu0 %v2207
    %2476 = vmatprep.subr.bf16.mxu0 %v2204
    %2477 = vmatpush2.bf16.msra.mxu0 %v2203
    %2478 = vmatprep.subr.bf16.mxu0 %v2200
    %2479 = vmatpush2.bf16.msra.mxu0 %v2199
    %2480 = vmatprep.subr.bf16.mxu0 %v2196
    %2481 = vmatpush2.bf16.msra.mxu0 %v2195
    %2482 = vmatprep.subr.bf16.mxu0 %v2192
    %2483 = vmatpush2.bf16.msra.mxu0 %v2191
    %2484 = vmatprep.subr.bf16.mxu0 %v2188
    %2485 = vmatpush2.bf16.msra.mxu0 %v2187
    %2486 = vmatprep.subr.bf16.mxu0 %v2184
    %2487 = vmatpush2.bf16.msra.mxu0 %v2183
    %2488 = vmatprep.subr.bf16.mxu0 %v2180
    %2489 = vmatpush2.bf16.msra.mxu0 %v2179
    %2490 = vmatprep.mubr.bf16.mxu0 %v1617
    %2491 = vmatmul.mubr.bf16.gmra.mxu0 %v1616
    %v2492 = vpop.f32.mrf.mxu0
    %v2493 = vadd.f32 %v2450, %v2492
    %v2494 = vpop.f32.mrf.mxu0
    %v2495 = vadd.f32 %v2452, %v2494
    %v2496 = vpop.f32.mrf.mxu0
    %v2497 = vadd.f32 %v2454, %v2496
    %v2498 = vpop.f32.mrf.mxu0
    %v2499 = vadd.f32 %v2456, %v2498
    %2500 = vdwg.mxu0
    %2501 = vmatprep.subr.bf16.mxu0 %v2240
    %2502 = vmatpush1.bf16.msra.mxu0 %v2239
    %2503 = vmatprep.subr.bf16.mxu0 %v2236
    %2504 = vmatpush1.bf16.msra.mxu0 %v2235
    %2505 = vmatprep.subr.bf16.mxu0 %v2232
    %2506 = vmatpush1.bf16.msra.mxu0 %v2231
    %2507 = vmatprep.subr.bf16.mxu0 %v2228
    %2508 = vmatpush1.bf16.msra.mxu0 %v2227
    %2509 = vmatprep.subr.bf16.mxu0 %v2224
    %2510 = vmatpush1.bf16.msra.mxu0 %v2223
    %2511 = vmatprep.subr.bf16.mxu0 %v2220
    %2512 = vmatpush1.bf16.msra.mxu0 %v2219
    %2513 = vmatprep.subr.bf16.mxu0 %v2216
    %2514 = vmatpush1.bf16.msra.mxu0 %v2215
    %2515 = vmatprep.subr.bf16.mxu0 %v2212
    %2516 = vmatpush1.bf16.msra.mxu0 %v2211
    %2517 = vmatprep.subr.bf16.mxu0 0
    %2518 = vmatpush2.bf16.msra.mxu0 0
    %2519 = vmatprep.subr.bf16.mxu0 0
    %2520 = vmatpush2.bf16.msra.mxu0 0
    %2521 = vmatprep.subr.bf16.mxu0 0
    %2522 = vmatpush2.bf16.msra.mxu0 0
    %2523 = vmatprep.subr.bf16.mxu0 0
    %2524 = vmatpush2.bf16.msra.mxu0 0
    %2525 = vmatprep.subr.bf16.mxu0 0
    %2526 = vmatpush2.bf16.msra.mxu0 0
    %2527 = vmatprep.subr.bf16.mxu0 0
    %2528 = vmatpush2.bf16.msra.mxu0 0
    %2529 = vmatprep.subr.bf16.mxu0 0
    %2530 = vmatpush2.bf16.msra.mxu0 0
    %2531 = vmatprep.subr.bf16.mxu0 0
    %2532 = vmatpush2.bf16.msra.mxu0 0
    %2533 = vmatprep.mubr.bf16.mxu0 0
    %2534 = vmatmul.mubr.bf16.gmra.mxu0 %v1618
    %v2535 = vpop.f32.mrf.mxu0
    %v2536 = vadd.f32 %v2493, %v2535
    %v2537 = vpop.f32.mrf.mxu0
    %v2538 = vadd.f32 %v2495, %v2537
    %v2539 = vpop.f32.mrf.mxu0
    %v2540 = vadd.f32 %v2497, %v2539
    %v2541 = vpop.f32.mrf.mxu0
    %v2542 = vadd.f32 %v2499, %v2541
    %2543 = vdwg.mxu0
    %2544 = vmatprep.subr.bf16.mxu0 %v1858
    %2545 = vmatpush1.bf16.msra.mxu0 %v1857
    %2546 = vmatprep.subr.bf16.mxu0 %v1854
    %2547 = vmatpush1.bf16.msra.mxu0 %v1853
    %2548 = vmatprep.subr.bf16.mxu0 %v1850
    %2549 = vmatpush1.bf16.msra.mxu0 %v1849
    %2550 = vmatprep.subr.bf16.mxu0 %v1846
    %2551 = vmatpush1.bf16.msra.mxu0 %v1845
    %2552 = vmatprep.subr.bf16.mxu0 %v1842
    %2553 = vmatpush1.bf16.msra.mxu0 %v1841
    %2554 = vmatprep.subr.bf16.mxu0 %v1838
    %2555 = vmatpush1.bf16.msra.mxu0 %v1837
    %2556 = vmatprep.subr.bf16.mxu0 %v1834
    %2557 = vmatpush1.bf16.msra.mxu0 %v1833
    %2558 = vmatprep.subr.bf16.mxu0 %v1830
    %2559 = vmatpush1.bf16.msra.mxu0 %v1829
    %2560 = vmatprep.subr.bf16.mxu0 %v1890
    %2561 = vmatpush2.bf16.msra.mxu0 %v1889
    %2562 = vmatprep.subr.bf16.mxu0 %v1886
    %2563 = vmatpush2.bf16.msra.mxu0 %v1885
    %2564 = vmatprep.subr.bf16.mxu0 %v1882
    %2565 = vmatpush2.bf16.msra.mxu0 %v1881
    %2566 = vmatprep.subr.bf16.mxu0 %v1878
    %2567 = vmatpush2.bf16.msra.mxu0 %v1877
    %2568 = vmatprep.subr.bf16.mxu0 %v1874
    %2569 = vmatpush2.bf16.msra.mxu0 %v1873
    %2570 = vmatprep.subr.bf16.mxu0 %v1870
    %2571 = vmatpush2.bf16.msra.mxu0 %v1869
    %2572 = vmatprep.subr.bf16.mxu0 %v1866
    %2573 = vmatpush2.bf16.msra.mxu0 %v1865
    %2574 = vmatprep.subr.bf16.mxu0 %v1862
    %2575 = vmatpush2.bf16.msra.mxu0 %v1861
    %2576 = vmatprep.mubr.bf16.mxu0 %v1607
    %2577 = vmatmul.mubr.bf16.gmra.mxu0 %v1606
    %v2578 = vpop.f32.mrf.mxu0
    %v2579 = vadd.f32 0.0, %v2578
    %v2580 = vpop.f32.mrf.mxu0
    %v2581 = vadd.f32 0.0, %v2580
    %v2582 = vpop.f32.mrf.mxu0
    %v2583 = vadd.f32 0.0, %v2582
    %v2584 = vpop.f32.mrf.mxu0
    %v2585 = vadd.f32 0.0, %v2584
    %2586 = vdwg.mxu0
    %2587 = vmatprep.subr.bf16.mxu0 %v1922
    %2588 = vmatpush1.bf16.msra.mxu0 %v1921
    %2589 = vmatprep.subr.bf16.mxu0 %v1918
    %2590 = vmatpush1.bf16.msra.mxu0 %v1917
    %2591 = vmatprep.subr.bf16.mxu0 %v1914
    %2592 = vmatpush1.bf16.msra.mxu0 %v1913
    %2593 = vmatprep.subr.bf16.mxu0 %v1910
    %2594 = vmatpush1.bf16.msra.mxu0 %v1909
    %2595 = vmatprep.subr.bf16.mxu0 %v1906
    %2596 = vmatpush1.bf16.msra.mxu0 %v1905
    %2597 = vmatprep.subr.bf16.mxu0 %v1902
    %2598 = vmatpush1.bf16.msra.mxu0 %v1901
    %2599 = vmatprep.subr.bf16.mxu0 %v1898
    %2600 = vmatpush1.bf16.msra.mxu0 %v1897
    %2601 = vmatprep.subr.bf16.mxu0 %v1894
    %2602 = vmatpush1.bf16.msra.mxu0 %v1893
    %2603 = vmatprep.subr.bf16.mxu0 %v1954
    %2604 = vmatpush2.bf16.msra.mxu0 %v1953
    %2605 = vmatprep.subr.bf16.mxu0 %v1950
    %2606 = vmatpush2.bf16.msra.mxu0 %v1949
    %2607 = vmatprep.subr.bf16.mxu0 %v1946
    %2608 = vmatpush2.bf16.msra.mxu0 %v1945
    %2609 = vmatprep.subr.bf16.mxu0 %v1942
    %2610 = vmatpush2.bf16.msra.mxu0 %v1941
    %2611 = vmatprep.subr.bf16.mxu0 %v1938
    %2612 = vmatpush2.bf16.msra.mxu0 %v1937
    %2613 = vmatprep.subr.bf16.mxu0 %v1934
    %2614 = vmatpush2.bf16.msra.mxu0 %v1933
    %2615 = vmatprep.subr.bf16.mxu0 %v1930
    %2616 = vmatpush2.bf16.msra.mxu0 %v1929
    %2617 = vmatprep.subr.bf16.mxu0 %v1926
    %2618 = vmatpush2.bf16.msra.mxu0 %v1925
    %2619 = vmatprep.mubr.bf16.mxu0 %v1609
    %2620 = vmatmul.mubr.bf16.gmra.mxu0 %v1608
    %v2621 = vpop.f32.mrf.mxu0
    %v2622 = vadd.f32 %v2579, %v2621
    %v2623 = vpop.f32.mrf.mxu0
    %v2624 = vadd.f32 %v2581, %v2623
    %v2625 = vpop.f32.mrf.mxu0
    %v2626 = vadd.f32 %v2583, %v2625
    %v2627 = vpop.f32.mrf.mxu0
    %v2628 = vadd.f32 %v2585, %v2627
    %2629 = vdwg.mxu0
    %2630 = vmatprep.subr.bf16.mxu0 %v1986
    %2631 = vmatpush1.bf16.msra.mxu0 %v1985
    %2632 = vmatprep.subr.bf16.mxu0 %v1982
    %2633 = vmatpush1.bf16.msra.mxu0 %v1981
    %2634 = vmatprep.subr.bf16.mxu0 %v1978
    %2635 = vmatpush1.bf16.msra.mxu0 %v1977
    %2636 = vmatprep.subr.bf16.mxu0 %v1974
    %2637 = vmatpush1.bf16.msra.mxu0 %v1973
    %2638 = vmatprep.subr.bf16.mxu0 %v1970
    %2639 = vmatpush1.bf16.msra.mxu0 %v1969
    %2640 = vmatprep.subr.bf16.mxu0 %v1966
    %2641 = vmatpush1.bf16.msra.mxu0 %v1965
    %2642 = vmatprep.subr.bf16.mxu0 %v1962
    %2643 = vmatpush1.bf16.msra.mxu0 %v1961
    %2644 = vmatprep.subr.bf16.mxu0 %v1958
    %2645 = vmatpush1.bf16.msra.mxu0 %v1957
    %2646 = vmatprep.subr.bf16.mxu0 %v2018
    %2647 = vmatpush2.bf16.msra.mxu0 %v2017
    %2648 = vmatprep.subr.bf16.mxu0 %v2014
    %2649 = vmatpush2.bf16.msra.mxu0 %v2013
    %2650 = vmatprep.subr.bf16.mxu0 %v2010
    %2651 = vmatpush2.bf16.msra.mxu0 %v2009
    %2652 = vmatprep.subr.bf16.mxu0 %v2006
    %2653 = vmatpush2.bf16.msra.mxu0 %v2005
    %2654 = vmatprep.subr.bf16.mxu0 %v2002
    %2655 = vmatpush2.bf16.msra.mxu0 %v2001
    %2656 = vmatprep.subr.bf16.mxu0 %v1998
    %2657 = vmatpush2.bf16.msra.mxu0 %v1997
    %2658 = vmatprep.subr.bf16.mxu0 %v1994
    %2659 = vmatpush2.bf16.msra.mxu0 %v1993
    %2660 = vmatprep.subr.bf16.mxu0 %v1990
    %2661 = vmatpush2.bf16.msra.mxu0 %v1989
    %2662 = vmatprep.mubr.bf16.mxu0 %v1611
    %2663 = vmatmul.mubr.bf16.gmra.mxu0 %v1610
    %v2664 = vpop.f32.mrf.mxu0
    %v2665 = vadd.f32 %v2622, %v2664
    %v2666 = vpop.f32.mrf.mxu0
    %v2667 = vadd.f32 %v2624, %v2666
    %v2668 = vpop.f32.mrf.mxu0
    %v2669 = vadd.f32 %v2626, %v2668
    %v2670 = vpop.f32.mrf.mxu0
    %v2671 = vadd.f32 %v2628, %v2670
    %2672 = vdwg.mxu0
    %2673 = vmatprep.subr.bf16.mxu0 %v2050
    %2674 = vmatpush1.bf16.msra.mxu0 %v2049
    %2675 = vmatprep.subr.bf16.mxu0 %v2046
    %2676 = vmatpush1.bf16.msra.mxu0 %v2045
    %2677 = vmatprep.subr.bf16.mxu0 %v2042
    %2678 = vmatpush1.bf16.msra.mxu0 %v2041
    %2679 = vmatprep.subr.bf16.mxu0 %v2038
    %2680 = vmatpush1.bf16.msra.mxu0 %v2037
    %2681 = vmatprep.subr.bf16.mxu0 %v2034
    %2682 = vmatpush1.bf16.msra.mxu0 %v2033
    %2683 = vmatprep.subr.bf16.mxu0 %v2030
    %2684 = vmatpush1.bf16.msra.mxu0 %v2029
    %2685 = vmatprep.subr.bf16.mxu0 %v2026
    %2686 = vmatpush1.bf16.msra.mxu0 %v2025
    %2687 = vmatprep.subr.bf16.mxu0 %v2022
    %2688 = vmatpush1.bf16.msra.mxu0 %v2021
    %2689 = vmatprep.subr.bf16.mxu0 %v2082
    %2690 = vmatpush2.bf16.msra.mxu0 %v2081
    %2691 = vmatprep.subr.bf16.mxu0 %v2078
    %2692 = vmatpush2.bf16.msra.mxu0 %v2077
    %2693 = vmatprep.subr.bf16.mxu0 %v2074
    %2694 = vmatpush2.bf16.msra.mxu0 %v2073
    %2695 = vmatprep.subr.bf16.mxu0 %v2070
    %2696 = vmatpush2.bf16.msra.mxu0 %v2069
    %2697 = vmatprep.subr.bf16.mxu0 %v2066
    %2698 = vmatpush2.bf16.msra.mxu0 %v2065
    %2699 = vmatprep.subr.bf16.mxu0 %v2062
    %2700 = vmatpush2.bf16.msra.mxu0 %v2061
    %2701 = vmatprep.subr.bf16.mxu0 %v2058
    %2702 = vmatpush2.bf16.msra.mxu0 %v2057
    %2703 = vmatprep.subr.bf16.mxu0 %v2054
    %2704 = vmatpush2.bf16.msra.mxu0 %v2053
    %2705 = vmatprep.mubr.bf16.mxu0 %v1613
    %2706 = vmatmul.mubr.bf16.gmra.mxu0 %v1612
    %v2707 = vpop.f32.mrf.mxu0
    %v2708 = vadd.f32 %v2665, %v2707
    %v2709 = vpop.f32.mrf.mxu0
    %v2710 = vadd.f32 %v2667, %v2709
    %v2711 = vpop.f32.mrf.mxu0
    %v2712 = vadd.f32 %v2669, %v2711
    %v2713 = vpop.f32.mrf.mxu0
    %v2714 = vadd.f32 %v2671, %v2713
    %2715 = vdwg.mxu0
    %2716 = vmatprep.subr.bf16.mxu0 %v2114
    %2717 = vmatpush1.bf16.msra.mxu0 %v2113
    %2718 = vmatprep.subr.bf16.mxu0 %v2110
    %2719 = vmatpush1.bf16.msra.mxu0 %v2109
    %2720 = vmatprep.subr.bf16.mxu0 %v2106
    %2721 = vmatpush1.bf16.msra.mxu0 %v2105
    %2722 = vmatprep.subr.bf16.mxu0 %v2102
    %2723 = vmatpush1.bf16.msra.mxu0 %v2101
    %2724 = vmatprep.subr.bf16.mxu0 %v2098
    %2725 = vmatpush1.bf16.msra.mxu0 %v2097
    %2726 = vmatprep.subr.bf16.mxu0 %v2094
    %2727 = vmatpush1.bf16.msra.mxu0 %v2093
    %2728 = vmatprep.subr.bf16.mxu0 %v2090
    %2729 = vmatpush1.bf16.msra.mxu0 %v2089
    %2730 = vmatprep.subr.bf16.mxu0 %v2086
    %2731 = vmatpush1.bf16.msra.mxu0 %v2085
    %2732 = vmatprep.subr.bf16.mxu0 %v2146
    %2733 = vmatpush2.bf16.msra.mxu0 %v2145
    %2734 = vmatprep.subr.bf16.mxu0 %v2142
    %2735 = vmatpush2.bf16.msra.mxu0 %v2141
    %2736 = vmatprep.subr.bf16.mxu0 %v2138
    %2737 = vmatpush2.bf16.msra.mxu0 %v2137
    %2738 = vmatprep.subr.bf16.mxu0 %v2134
    %2739 = vmatpush2.bf16.msra.mxu0 %v2133
    %2740 = vmatprep.subr.bf16.mxu0 %v2130
    %2741 = vmatpush2.bf16.msra.mxu0 %v2129
    %2742 = vmatprep.subr.bf16.mxu0 %v2126
    %2743 = vmatpush2.bf16.msra.mxu0 %v2125
    %2744 = vmatprep.subr.bf16.mxu0 %v2122
    %2745 = vmatpush2.bf16.msra.mxu0 %v2121
    %2746 = vmatprep.subr.bf16.mxu0 %v2118
    %2747 = vmatpush2.bf16.msra.mxu0 %v2117
    %2748 = vmatprep.mubr.bf16.mxu0 %v1615
    %2749 = vmatmul.mubr.bf16.gmra.mxu0 %v1614
    %v2750 = vpop.f32.mrf.mxu0
    %v2751 = vadd.f32 %v2708, %v2750
    %v2752 = vpop.f32.mrf.mxu0
    %v2753 = vadd.f32 %v2710, %v2752
    %v2754 = vpop.f32.mrf.mxu0
    %v2755 = vadd.f32 %v2712, %v2754
    %v2756 = vpop.f32.mrf.mxu0
    %v2757 = vadd.f32 %v2714, %v2756
    %2758 = vdwg.mxu0
    %2759 = vmatprep.subr.bf16.mxu0 %v2178
    %2760 = vmatpush1.bf16.msra.mxu0 %v2177
    %2761 = vmatprep.subr.bf16.mxu0 %v2174
    %2762 = vmatpush1.bf16.msra.mxu0 %v2173
    %2763 = vmatprep.subr.bf16.mxu0 %v2170
    %2764 = vmatpush1.bf16.msra.mxu0 %v2169
    %2765 = vmatprep.subr.bf16.mxu0 %v2166
    %2766 = vmatpush1.bf16.msra.mxu0 %v2165
    %2767 = vmatprep.subr.bf16.mxu0 %v2162
    %2768 = vmatpush1.bf16.msra.mxu0 %v2161
    %2769 = vmatprep.subr.bf16.mxu0 %v2158
    %2770 = vmatpush1.bf16.msra.mxu0 %v2157
    %2771 = vmatprep.subr.bf16.mxu0 %v2154
    %2772 = vmatpush1.bf16.msra.mxu0 %v2153
    %2773 = vmatprep.subr.bf16.mxu0 %v2150
    %2774 = vmatpush1.bf16.msra.mxu0 %v2149
    %2775 = vmatprep.subr.bf16.mxu0 %v2210
    %2776 = vmatpush2.bf16.msra.mxu0 %v2209
    %2777 = vmatprep.subr.bf16.mxu0 %v2206
    %2778 = vmatpush2.bf16.msra.mxu0 %v2205
    %2779 = vmatprep.subr.bf16.mxu0 %v2202
    %2780 = vmatpush2.bf16.msra.mxu0 %v2201
    %2781 = vmatprep.subr.bf16.mxu0 %v2198
    %2782 = vmatpush2.bf16.msra.mxu0 %v2197
    %2783 = vmatprep.subr.bf16.mxu0 %v2194
    %2784 = vmatpush2.bf16.msra.mxu0 %v2193
    %2785 = vmatprep.subr.bf16.mxu0 %v2190
    %2786 = vmatpush2.bf16.msra.mxu0 %v2189
    %2787 = vmatprep.subr.bf16.mxu0 %v2186
    %2788 = vmatpush2.bf16.msra.mxu0 %v2185
    %2789 = vmatprep.subr.bf16.mxu0 %v2182
    %2790 = vmatpush2.bf16.msra.mxu0 %v2181
    %2791 = vmatprep.mubr.bf16.mxu0 %v1617
    %2792 = vmatmul.mubr.bf16.gmra.mxu0 %v1616
    %v2793 = vpop.f32.mrf.mxu0
    %v2794 = vadd.f32 %v2751, %v2793
    %v2795 = vpop.f32.mrf.mxu0
    %v2796 = vadd.f32 %v2753, %v2795
    %v2797 = vpop.f32.mrf.mxu0
    %v2798 = vadd.f32 %v2755, %v2797
    %v2799 = vpop.f32.mrf.mxu0
    %v2800 = vadd.f32 %v2757, %v2799
    %2801 = vdwg.mxu0
    %2802 = vmatprep.subr.bf16.mxu0 %v2242
    %2803 = vmatpush1.bf16.msra.mxu0 %v2241
    %2804 = vmatprep.subr.bf16.mxu0 %v2238
    %2805 = vmatpush1.bf16.msra.mxu0 %v2237
    %2806 = vmatprep.subr.bf16.mxu0 %v2234
    %2807 = vmatpush1.bf16.msra.mxu0 %v2233
    %2808 = vmatprep.subr.bf16.mxu0 %v2230
    %2809 = vmatpush1.bf16.msra.mxu0 %v2229
    %2810 = vmatprep.subr.bf16.mxu0 %v2226
    %2811 = vmatpush1.bf16.msra.mxu0 %v2225
    %2812 = vmatprep.subr.bf16.mxu0 %v2222
    %2813 = vmatpush1.bf16.msra.mxu0 %v2221
    %2814 = vmatprep.subr.bf16.mxu0 %v2218
    %2815 = vmatpush1.bf16.msra.mxu0 %v2217
    %2816 = vmatprep.subr.bf16.mxu0 %v2214
    %2817 = vmatpush1.bf16.msra.mxu0 %v2213
    %2818 = vmatprep.subr.bf16.mxu0 0
    %2819 = vmatpush2.bf16.msra.mxu0 0
    %2820 = vmatprep.subr.bf16.mxu0 0
    %2821 = vmatpush2.bf16.msra.mxu0 0
    %2822 = vmatprep.subr.bf16.mxu0 0
    %2823 = vmatpush2.bf16.msra.mxu0 0
    %2824 = vmatprep.subr.bf16.mxu0 0
    %2825 = vmatpush2.bf16.msra.mxu0 0
    %2826 = vmatprep.subr.bf16.mxu0 0
    %2827 = vmatpush2.bf16.msra.mxu0 0
    %2828 = vmatprep.subr.bf16.mxu0 0
    %2829 = vmatpush2.bf16.msra.mxu0 0
    %2830 = vmatprep.subr.bf16.mxu0 0
    %2831 = vmatpush2.bf16.msra.mxu0 0
    %2832 = vmatprep.subr.bf16.mxu0 0
    %2833 = vmatpush2.bf16.msra.mxu0 0
    %2834 = vmatprep.mubr.bf16.mxu0 0
    %2835 = vmatmul.mubr.bf16.gmra.mxu0 %v1618
    %v2836 = vpop.f32.mrf.mxu0
    %v2837 = vadd.f32 %v2794, %v2836
    %v2838 = vpop.f32.mrf.mxu0
    %v2839 = vadd.f32 %v2796, %v2838
    %v2840 = vpop.f32.mrf.mxu0
    %v2841 = vadd.f32 %v2798, %v2840
    %v2842 = vpop.f32.mrf.mxu0
    %v2843 = vadd.f32 %v2800, %v2842
    %2844 = vdwg.mxu0
    %s2845 = scalar_lea.vmem [#allocation13], 1
    %v2846 = vld [vmem:[%s2845] ss:$8 sm:$0xf]
    %s2847 = scalar_lea.vmem [#allocation13], 105
    %v2848 = vld [vmem:[%s2847] ss:$8 sm:$0xf]
    %v2850 = vlaneseq
    %v2851 = vshrl.u32 %v2850, 7
    %v2852 = vsub.s32 0, %v2851
    %v2853 = vrot.slane %v2846, %v2852
    %v2854 = vlaneseq
    %v2855 = vshrl.u32 %v2854, 7
    %v2856 = vsub.s32 1, %v2855
    %v2857 = vrot.slane %v2846, %v2856
    %v2858 = vlaneseq
    %v2859 = vshrl.u32 %v2858, 7
    %v2860 = vsub.s32 2, %v2859
    %v2861 = vrot.slane %v2846, %v2860
    %v2862 = vlaneseq
    %v2863 = vshrl.u32 %v2862, 7
    %v2864 = vsub.s32 3, %v2863
    %v2865 = vrot.slane %v2846, %v2864
    %v2870 = vmul.f32 %v2536, %v2853
    %v2871 = vmul.f32 %v2538, %v2857
    %v2872 = vmul.f32 %v2837, %v2861
    %v2873 = vmul.f32 %v2839, %v2865
    %v2874 = vmul.f32 %v2540, %v2853
    %v2875 = vmul.f32 %v2542, %v2857
    %v2876 = vmul.f32 %v2841, %v2861
    %v2877 = vmul.f32 %v2843, %v2865
    %v2879 = vlaneseq
    %v2880 = vshrl.u32 %v2879, 7
    %v2881 = vsub.s32 0, %v2880
    %v2882 = vrot.slane %v2848, %v2881
    %v2883 = vlaneseq
    %v2884 = vshrl.u32 %v2883, 7
    %v2885 = vsub.s32 1, %v2884
    %v2886 = vrot.slane %v2848, %v2885
    %v2887 = vlaneseq
    %v2888 = vshrl.u32 %v2887, 7
    %v2889 = vsub.s32 2, %v2888
    %v2890 = vrot.slane %v2848, %v2889
    %v2891 = vlaneseq
    %v2892 = vshrl.u32 %v2891, 7
    %v2893 = vsub.s32 3, %v2892
    %v2894 = vrot.slane %v2848, %v2893
    %v2899 = vadd.f32 %v2870, %v2882
    %v2900 = vadd.f32 %v2871, %v2886
    %v2901 = vadd.f32 %v2872, %v2890
    %v2902 = vadd.f32 %v2873, %v2894
    %v2903 = vadd.f32 %v2874, %v2882
    %v2904 = vadd.f32 %v2875, %v2886
    %v2905 = vadd.f32 %v2876, %v2890
    %v2906 = vadd.f32 %v2877, %v2894
    %v2907 = vmax.f32 %v2899, 0.0
    %v2908 = vmax.f32 %v2900, 0.0
    %v2909 = vmax.f32 %v2901, 0.0
    %v2910 = vmax.f32 %v2902, 0.0
    %v2911 = vmax.f32 %v2903, 0.0
    %v2912 = vmax.f32 %v2904, 0.0
    %v2913 = vmax.f32 %v2905, 0.0
    %v2914 = vmax.f32 %v2906, 0.0
    %v2915 = vpack.c.bf16 %v2911, %v2907
    %v2916 = vpack.c.bf16 %v2912, %v2908
    %v2917 = vpack.c.bf16 %v2913, %v2909
    %v2918 = vpack.c.bf16 %v2914, %v2910
    %v2919 = vld [vmem:[#allocation6] sm:$0xff]
    %v2920 = vld [vmem:[#allocation6 + $0x8] sm:$0xff]
    %v2921 = vld [vmem:[#allocation6 + $0x10] sm:$0xff]
    %v2922 = vld [vmem:[#allocation6 + $0x18] sm:$0xff]
    %v2923 = vld [vmem:[#allocation6 + $0x20] sm:$0xff]
    %v2924 = vld [vmem:[#allocation6 + $0x28] sm:$0xff]
    %v2925 = vld [vmem:[#allocation6 + $0x30] sm:$0xff]
    %v2926 = vld [vmem:[#allocation6 + $0x38] sm:$0xff]
    %v2927 = vld [vmem:[#allocation6 + $0x40] sm:$0xff]
    %v2928 = vld [vmem:[#allocation6 + $0x48] sm:$0xff]
    %v2929 = vld [vmem:[#allocation6 + $0x50] sm:$0xff]
    %v2930 = vld [vmem:[#allocation6 + $0x58] sm:$0xff]
    %v2931 = vld [vmem:[#allocation6 + $0x60] sm:$0xff]
    %v2932 = vld [vmem:[#allocation6 + $0x68] sm:$0xff]
    %v2933 = vld [vmem:[#allocation6 + $0x70] sm:$0xff]
    %v2934 = vld [vmem:[#allocation6 + $0x78] sm:$0xff]
    %v2935 = vld [vmem:[#allocation6 + $0x80] sm:$0xff]
    %v2936 = vld [vmem:[#allocation6 + $0x88] sm:$0xff]
    %v2937 = vld [vmem:[#allocation6 + $0x90] sm:$0xff]
    %v2938 = vld [vmem:[#allocation6 + $0x98] sm:$0xff]
    %v2939 = vld [vmem:[#allocation6 + $0xa0] sm:$0xff]
    %v2940 = vld [vmem:[#allocation6 + $0xa8] sm:$0xff]
    %v2941 = vld [vmem:[#allocation6 + $0xb0] sm:$0xff]
    %v2942 = vld [vmem:[#allocation6 + $0xb8] sm:$0xff]
    %v2943 = vld [vmem:[#allocation6 + $0xc0] sm:$0xff]
    %v2944 = vld [vmem:[#allocation6 + $0xc8] sm:$0xff]
    %v2945 = vld [vmem:[#allocation6 + $0xd0] sm:$0xff]
    %v2946 = vld [vmem:[#allocation6 + $0xd8] sm:$0xff]
    %v2947 = vld [vmem:[#allocation6 + $0xe0] sm:$0xff]
    %v2948 = vld [vmem:[#allocation6 + $0xe8] sm:$0xff]
    %v2949 = vld [vmem:[#allocation6 + $0xf0] sm:$0xff]
    %v2950 = vld [vmem:[#allocation6 + $0xf8] sm:$0xff]
    %v2951 = vld [vmem:[#allocation6 + $0x100] sm:$0xff]
    %v2952 = vld [vmem:[#allocation6 + $0x108] sm:$0xff]
    %v2953 = vld [vmem:[#allocation6 + $0x110] sm:$0xff]
    %v2954 = vld [vmem:[#allocation6 + $0x118] sm:$0xff]
    %v2955 = vld [vmem:[#allocation6 + $0x120] sm:$0xff]
    %v2956 = vld [vmem:[#allocation6 + $0x128] sm:$0xff]
    %v2957 = vld [vmem:[#allocation6 + $0x130] sm:$0xff]
    %v2958 = vld [vmem:[#allocation6 + $0x138] sm:$0xff]
    %v2959 = vld [vmem:[#allocation6 + $0x140] sm:$0xff]
    %v2960 = vld [vmem:[#allocation6 + $0x148] sm:$0xff]
    %v2961 = vld [vmem:[#allocation6 + $0x150] sm:$0xff]
    %v2962 = vld [vmem:[#allocation6 + $0x158] sm:$0xff]
    %v2963 = vld [vmem:[#allocation6 + $0x160] sm:$0xff]
    %v2964 = vld [vmem:[#allocation6 + $0x168] sm:$0xff]
    %v2965 = vld [vmem:[#allocation6 + $0x170] sm:$0xff]
    %v2966 = vld [vmem:[#allocation6 + $0x178] sm:$0xff]
    %v2967 = vld [vmem:[#allocation6 + $0x180] sm:$0xff]
    %v2968 = vld [vmem:[#allocation6 + $0x188] sm:$0xff]
    %v2969 = vld [vmem:[#allocation6 + $0x190] sm:$0xff]
    %v2970 = vld [vmem:[#allocation6 + $0x198] sm:$0xff]
    %v2971 = vld [vmem:[#allocation6 + $0x1a0] sm:$0xff]
    %v2972 = vld [vmem:[#allocation6 + $0x1a8] sm:$0xff]
    %v2973 = vld [vmem:[#allocation6 + $0x1b0] sm:$0xff]
    %v2974 = vld [vmem:[#allocation6 + $0x1b8] sm:$0xff]
    %v2975 = vld [vmem:[#allocation6 + $0x1c0] sm:$0xff]
    %v2976 = vld [vmem:[#allocation6 + $0x1c8] sm:$0xff]
    %v2977 = vld [vmem:[#allocation6 + $0x1d0] sm:$0xff]
    %v2978 = vld [vmem:[#allocation6 + $0x1d8] sm:$0xff]
    %v2979 = vld [vmem:[#allocation6 + $0x1e0] sm:$0xff]
    %v2980 = vld [vmem:[#allocation6 + $0x1e8] sm:$0xff]
    %v2981 = vld [vmem:[#allocation6 + $0x1f0] sm:$0xff]
    %v2982 = vld [vmem:[#allocation6 + $0x1f8] sm:$0xff]
    %v2983 = vld [vmem:[#allocation6 + $0x200] sm:$0xff]
    %v2984 = vld [vmem:[#allocation6 + $0x208] sm:$0xff]
    %v2985 = vld [vmem:[#allocation6 + $0x210] sm:$0xff]
    %v2986 = vld [vmem:[#allocation6 + $0x218] sm:$0xff]
    %v2987 = vld [vmem:[#allocation6 + $0x220] sm:$0xff]
    %v2988 = vld [vmem:[#allocation6 + $0x228] sm:$0xff]
    %v2989 = vld [vmem:[#allocation6 + $0x230] sm:$0xff]
    %v2990 = vld [vmem:[#allocation6 + $0x238] sm:$0xff]
    %v2991 = vld [vmem:[#allocation6 + $0x240] sm:$0xff]
    %v2992 = vld [vmem:[#allocation6 + $0x248] sm:$0xff]
    %v2993 = vld [vmem:[#allocation6 + $0x250] sm:$0xff]
    %v2994 = vld [vmem:[#allocation6 + $0x258] sm:$0xff]
    %v2995 = vld [vmem:[#allocation6 + $0x260] sm:$0xff]
    %v2996 = vld [vmem:[#allocation6 + $0x268] sm:$0xff]
    %v2997 = vld [vmem:[#allocation6 + $0x270] sm:$0xff]
    %v2998 = vld [vmem:[#allocation6 + $0x278] sm:$0xff]
    %v2999 = vunpack.c.l.s8.bf16 %v2919
    %v3000 = vunpack.c.l.s8.bf16 %v2920
    %v3001 = vunpack.c.l.s8.bf16 %v2921
    %v3002 = vunpack.c.l.s8.bf16 %v2922
    %v3003 = vunpack.c.l.s8.bf16 %v2923
    %v3004 = vunpack.c.h.s8.bf16 %v2919
    %v3005 = vunpack.c.h.s8.bf16 %v2920
    %v3006 = vunpack.c.h.s8.bf16 %v2921
    %v3007 = vunpack.c.h.s8.bf16 %v2922
    %v3008 = vunpack.c.h.s8.bf16 %v2923
    %v3009 = vunpack.c.l.s8.bf16 %v2924
    %v3010 = vunpack.c.l.s8.bf16 %v2925
    %v3011 = vunpack.c.l.s8.bf16 %v2926
    %v3012 = vunpack.c.l.s8.bf16 %v2927
    %v3013 = vunpack.c.l.s8.bf16 %v2928
    %v3014 = vunpack.c.h.s8.bf16 %v2924
    %v3015 = vunpack.c.h.s8.bf16 %v2925
    %v3016 = vunpack.c.h.s8.bf16 %v2926
    %v3017 = vunpack.c.h.s8.bf16 %v2927
    %v3018 = vunpack.c.h.s8.bf16 %v2928
    %v3019 = vunpack.c.l.s8.bf16 %v2929
    %v3020 = vunpack.c.l.s8.bf16 %v2930
    %v3021 = vunpack.c.l.s8.bf16 %v2931
    %v3022 = vunpack.c.l.s8.bf16 %v2932
    %v3023 = vunpack.c.l.s8.bf16 %v2933
    %v3024 = vunpack.c.h.s8.bf16 %v2929
    %v3025 = vunpack.c.h.s8.bf16 %v2930
    %v3026 = vunpack.c.h.s8.bf16 %v2931
    %v3027 = vunpack.c.h.s8.bf16 %v2932
    %v3028 = vunpack.c.h.s8.bf16 %v2933
    %v3029 = vunpack.c.l.s8.bf16 %v2934
    %v3030 = vunpack.c.l.s8.bf16 %v2935
    %v3031 = vunpack.c.l.s8.bf16 %v2936
    %v3032 = vunpack.c.l.s8.bf16 %v2937
    %v3033 = vunpack.c.l.s8.bf16 %v2938
    %v3034 = vunpack.c.h.s8.bf16 %v2934
    %v3035 = vunpack.c.h.s8.bf16 %v2935
    %v3036 = vunpack.c.h.s8.bf16 %v2936
    %v3037 = vunpack.c.h.s8.bf16 %v2937
    %v3038 = vunpack.c.h.s8.bf16 %v2938
    %v3039 = vunpack.c.l.s8.bf16 %v2939
    %v3040 = vunpack.c.l.s8.bf16 %v2940
    %v3041 = vunpack.c.l.s8.bf16 %v2941
    %v3042 = vunpack.c.l.s8.bf16 %v2942
    %v3043 = vunpack.c.l.s8.bf16 %v2943
    %v3044 = vunpack.c.h.s8.bf16 %v2939
    %v3045 = vunpack.c.h.s8.bf16 %v2940
    %v3046 = vunpack.c.h.s8.bf16 %v2941
    %v3047 = vunpack.c.h.s8.bf16 %v2942
    %v3048 = vunpack.c.h.s8.bf16 %v2943
    %v3049 = vunpack.c.l.s8.bf16 %v2944
    %v3050 = vunpack.c.l.s8.bf16 %v2945
    %v3051 = vunpack.c.l.s8.bf16 %v2946
    %v3052 = vunpack.c.l.s8.bf16 %v2947
    %v3053 = vunpack.c.l.s8.bf16 %v2948
    %v3054 = vunpack.c.h.s8.bf16 %v2944
    %v3055 = vunpack.c.h.s8.bf16 %v2945
    %v3056 = vunpack.c.h.s8.bf16 %v2946
    %v3057 = vunpack.c.h.s8.bf16 %v2947
    %v3058 = vunpack.c.h.s8.bf16 %v2948
    %v3059 = vunpack.c.l.s8.bf16 %v2949
    %v3060 = vunpack.c.l.s8.bf16 %v2950
    %v3061 = vunpack.c.l.s8.bf16 %v2951
    %v3062 = vunpack.c.l.s8.bf16 %v2952
    %v3063 = vunpack.c.l.s8.bf16 %v2953
    %v3064 = vunpack.c.h.s8.bf16 %v2949
    %v3065 = vunpack.c.h.s8.bf16 %v2950
    %v3066 = vunpack.c.h.s8.bf16 %v2951
    %v3067 = vunpack.c.h.s8.bf16 %v2952
    %v3068 = vunpack.c.h.s8.bf16 %v2953
    %v3069 = vunpack.c.l.s8.bf16 %v2954
    %v3070 = vunpack.c.l.s8.bf16 %v2955
    %v3071 = vunpack.c.l.s8.bf16 %v2956
    %v3072 = vunpack.c.l.s8.bf16 %v2957
    %v3073 = vunpack.c.l.s8.bf16 %v2958
    %v3074 = vunpack.c.h.s8.bf16 %v2954
    %v3075 = vunpack.c.h.s8.bf16 %v2955
    %v3076 = vunpack.c.h.s8.bf16 %v2956
    %v3077 = vunpack.c.h.s8.bf16 %v2957
    %v3078 = vunpack.c.h.s8.bf16 %v2958
    %v3079 = vunpack.c.l.s8.bf16 %v2959
    %v3080 = vunpack.c.l.s8.bf16 %v2960
    %v3081 = vunpack.c.l.s8.bf16 %v2961
    %v3082 = vunpack.c.l.s8.bf16 %v2962
    %v3083 = vunpack.c.l.s8.bf16 %v2963
    %v3084 = vunpack.c.h.s8.bf16 %v2959
    %v3085 = vunpack.c.h.s8.bf16 %v2960
    %v3086 = vunpack.c.h.s8.bf16 %v2961
    %v3087 = vunpack.c.h.s8.bf16 %v2962
    %v3088 = vunpack.c.h.s8.bf16 %v2963
    %v3089 = vunpack.c.l.s8.bf16 %v2964
    %v3090 = vunpack.c.l.s8.bf16 %v2965
    %v3091 = vunpack.c.l.s8.bf16 %v2966
    %v3092 = vunpack.c.l.s8.bf16 %v2967
    %v3093 = vunpack.c.l.s8.bf16 %v2968
    %v3094 = vunpack.c.h.s8.bf16 %v2964
    %v3095 = vunpack.c.h.s8.bf16 %v2965
    %v3096 = vunpack.c.h.s8.bf16 %v2966
    %v3097 = vunpack.c.h.s8.bf16 %v2967
    %v3098 = vunpack.c.h.s8.bf16 %v2968
    %v3099 = vunpack.c.l.s8.bf16 %v2969
    %v3100 = vunpack.c.l.s8.bf16 %v2970
    %v3101 = vunpack.c.l.s8.bf16 %v2971
    %v3102 = vunpack.c.l.s8.bf16 %v2972
    %v3103 = vunpack.c.l.s8.bf16 %v2973
    %v3104 = vunpack.c.h.s8.bf16 %v2969
    %v3105 = vunpack.c.h.s8.bf16 %v2970
    %v3106 = vunpack.c.h.s8.bf16 %v2971
    %v3107 = vunpack.c.h.s8.bf16 %v2972
    %v3108 = vunpack.c.h.s8.bf16 %v2973
    %v3109 = vunpack.c.l.s8.bf16 %v2974
    %v3110 = vunpack.c.l.s8.bf16 %v2975
    %v3111 = vunpack.c.l.s8.bf16 %v2976
    %v3112 = vunpack.c.l.s8.bf16 %v2977
    %v3113 = vunpack.c.l.s8.bf16 %v2978
    %v3114 = vunpack.c.h.s8.bf16 %v2974
    %v3115 = vunpack.c.h.s8.bf16 %v2975
    %v3116 = vunpack.c.h.s8.bf16 %v2976
    %v3117 = vunpack.c.h.s8.bf16 %v2977
    %v3118 = vunpack.c.h.s8.bf16 %v2978
    %v3119 = vunpack.c.l.s8.bf16 %v2979
    %v3120 = vunpack.c.l.s8.bf16 %v2980
    %v3121 = vunpack.c.l.s8.bf16 %v2981
    %v3122 = vunpack.c.l.s8.bf16 %v2982
    %v3123 = vunpack.c.l.s8.bf16 %v2983
    %v3124 = vunpack.c.h.s8.bf16 %v2979
    %v3125 = vunpack.c.h.s8.bf16 %v2980
    %v3126 = vunpack.c.h.s8.bf16 %v2981
    %v3127 = vunpack.c.h.s8.bf16 %v2982
    %v3128 = vunpack.c.h.s8.bf16 %v2983
    %v3129 = vunpack.c.l.s8.bf16 %v2984
    %v3130 = vunpack.c.l.s8.bf16 %v2985
    %v3131 = vunpack.c.l.s8.bf16 %v2986
    %v3132 = vunpack.c.l.s8.bf16 %v2987
    %v3133 = vunpack.c.l.s8.bf16 %v2988
    %v3134 = vunpack.c.h.s8.bf16 %v2984
    %v3135 = vunpack.c.h.s8.bf16 %v2985
    %v3136 = vunpack.c.h.s8.bf16 %v2986
    %v3137 = vunpack.c.h.s8.bf16 %v2987
    %v3138 = vunpack.c.h.s8.bf16 %v2988
    %v3139 = vunpack.c.l.s8.bf16 %v2989
    %v3140 = vunpack.c.l.s8.bf16 %v2990
    %v3141 = vunpack.c.l.s8.bf16 %v2991
    %v3142 = vunpack.c.l.s8.bf16 %v2992
    %v3143 = vunpack.c.l.s8.bf16 %v2993
    %v3144 = vunpack.c.h.s8.bf16 %v2989
    %v3145 = vunpack.c.h.s8.bf16 %v2990
    %v3146 = vunpack.c.h.s8.bf16 %v2991
    %v3147 = vunpack.c.h.s8.bf16 %v2992
    %v3148 = vunpack.c.h.s8.bf16 %v2993
    %v3149 = vunpack.c.l.s8.bf16 %v2994
    %v3150 = vunpack.c.l.s8.bf16 %v2995
    %v3151 = vunpack.c.l.s8.bf16 %v2996
    %v3152 = vunpack.c.l.s8.bf16 %v2997
    %v3153 = vunpack.c.l.s8.bf16 %v2998
    %v3154 = vunpack.c.h.s8.bf16 %v2994
    %v3155 = vunpack.c.h.s8.bf16 %v2995
    %v3156 = vunpack.c.h.s8.bf16 %v2996
    %v3157 = vunpack.c.h.s8.bf16 %v2997
    %v3158 = vunpack.c.h.s8.bf16 %v2998
    %3159 = vmatprep.subr.bf16.mxu0 %v3035
    %3160 = vmatpush1.bf16.msra.mxu0 %v3034
    %3161 = vmatprep.subr.bf16.mxu0 %v3030
    %3162 = vmatpush1.bf16.msra.mxu0 %v3029
    %3163 = vmatprep.subr.bf16.mxu0 %v3025
    %3164 = vmatpush1.bf16.msra.mxu0 %v3024
    %3165 = vmatprep.subr.bf16.mxu0 %v3020
    %3166 = vmatpush1.bf16.msra.mxu0 %v3019
    %3167 = vmatprep.subr.bf16.mxu0 %v3015
    %3168 = vmatpush1.bf16.msra.mxu0 %v3014
    %3169 = vmatprep.subr.bf16.mxu0 %v3010
    %3170 = vmatpush1.bf16.msra.mxu0 %v3009
    %3171 = vmatprep.subr.bf16.mxu0 %v3005
    %3172 = vmatpush1.bf16.msra.mxu0 %v3004
    %3173 = vmatprep.subr.bf16.mxu0 %v3000
    %3174 = vmatpush1.bf16.msra.mxu0 %v2999
    %3175 = vmatprep.subr.bf16.mxu0 %v3075
    %3176 = vmatpush2.bf16.msra.mxu0 %v3074
    %3177 = vmatprep.subr.bf16.mxu0 %v3070
    %3178 = vmatpush2.bf16.msra.mxu0 %v3069
    %3179 = vmatprep.subr.bf16.mxu0 %v3065
    %3180 = vmatpush2.bf16.msra.mxu0 %v3064
    %3181 = vmatprep.subr.bf16.mxu0 %v3060
    %3182 = vmatpush2.bf16.msra.mxu0 %v3059
    %3183 = vmatprep.subr.bf16.mxu0 %v3055
    %3184 = vmatpush2.bf16.msra.mxu0 %v3054
    %3185 = vmatprep.subr.bf16.mxu0 %v3050
    %3186 = vmatpush2.bf16.msra.mxu0 %v3049
    %3187 = vmatprep.subr.bf16.mxu0 %v3045
    %3188 = vmatpush2.bf16.msra.mxu0 %v3044
    %3189 = vmatprep.subr.bf16.mxu0 %v3040
    %3190 = vmatpush2.bf16.msra.mxu0 %v3039
    %3191 = vmatprep.mubr.bf16.mxu0 %v2916
    %3192 = vmatmul.mubr.bf16.gmra.mxu0 %v2915
    %v3193 = vpop.f32.mrf.mxu0
    %v3194 = vadd.f32 0.0, %v3193
    %v3195 = vpop.f32.mrf.mxu0
    %v3196 = vadd.f32 0.0, %v3195
    %v3197 = vpop.f32.mrf.mxu0
    %v3198 = vadd.f32 0.0, %v3197
    %v3199 = vpop.f32.mrf.mxu0
    %v3200 = vadd.f32 0.0, %v3199
    %3201 = vdwg.mxu0
    %3202 = vmatprep.subr.bf16.mxu0 %v3115
    %3203 = vmatpush1.bf16.msra.mxu0 %v3114
    %3204 = vmatprep.subr.bf16.mxu0 %v3110
    %3205 = vmatpush1.bf16.msra.mxu0 %v3109
    %3206 = vmatprep.subr.bf16.mxu0 %v3105
    %3207 = vmatpush1.bf16.msra.mxu0 %v3104
    %3208 = vmatprep.subr.bf16.mxu0 %v3100
    %3209 = vmatpush1.bf16.msra.mxu0 %v3099
    %3210 = vmatprep.subr.bf16.mxu0 %v3095
    %3211 = vmatpush1.bf16.msra.mxu0 %v3094
    %3212 = vmatprep.subr.bf16.mxu0 %v3090
    %3213 = vmatpush1.bf16.msra.mxu0 %v3089
    %3214 = vmatprep.subr.bf16.mxu0 %v3085
    %3215 = vmatpush1.bf16.msra.mxu0 %v3084
    %3216 = vmatprep.subr.bf16.mxu0 %v3080
    %3217 = vmatpush1.bf16.msra.mxu0 %v3079
    %3218 = vmatprep.subr.bf16.mxu0 %v3155
    %3219 = vmatpush2.bf16.msra.mxu0 %v3154
    %3220 = vmatprep.subr.bf16.mxu0 %v3150
    %3221 = vmatpush2.bf16.msra.mxu0 %v3149
    %3222 = vmatprep.subr.bf16.mxu0 %v3145
    %3223 = vmatpush2.bf16.msra.mxu0 %v3144
    %3224 = vmatprep.subr.bf16.mxu0 %v3140
    %3225 = vmatpush2.bf16.msra.mxu0 %v3139
    %3226 = vmatprep.subr.bf16.mxu0 %v3135
    %3227 = vmatpush2.bf16.msra.mxu0 %v3134
    %3228 = vmatprep.subr.bf16.mxu0 %v3130
    %3229 = vmatpush2.bf16.msra.mxu0 %v3129
    %3230 = vmatprep.subr.bf16.mxu0 %v3125
    %3231 = vmatpush2.bf16.msra.mxu0 %v3124
    %3232 = vmatprep.subr.bf16.mxu0 %v3120
    %3233 = vmatpush2.bf16.msra.mxu0 %v3119
    %3234 = vmatprep.mubr.bf16.mxu0 %v2918
    %3235 = vmatmul.mubr.bf16.gmra.mxu0 %v2917
    %v3236 = vpop.f32.mrf.mxu0
    %v3237 = vadd.f32 %v3194, %v3236
    %v3238 = vpop.f32.mrf.mxu0
    %v3239 = vadd.f32 %v3196, %v3238
    %v3240 = vpop.f32.mrf.mxu0
    %v3241 = vadd.f32 %v3198, %v3240
    %v3242 = vpop.f32.mrf.mxu0
    %v3243 = vadd.f32 %v3200, %v3242
    %3244 = vdwg.mxu0
    %3245 = vmatprep.subr.bf16.mxu0 %v3037
    %3246 = vmatpush1.bf16.msra.mxu0 %v3036
    %3247 = vmatprep.subr.bf16.mxu0 %v3032
    %3248 = vmatpush1.bf16.msra.mxu0 %v3031
    %3249 = vmatprep.subr.bf16.mxu0 %v3027
    %3250 = vmatpush1.bf16.msra.mxu0 %v3026
    %3251 = vmatprep.subr.bf16.mxu0 %v3022
    %3252 = vmatpush1.bf16.msra.mxu0 %v3021
    %3253 = vmatprep.subr.bf16.mxu0 %v3017
    %3254 = vmatpush1.bf16.msra.mxu0 %v3016
    %3255 = vmatprep.subr.bf16.mxu0 %v3012
    %3256 = vmatpush1.bf16.msra.mxu0 %v3011
    %3257 = vmatprep.subr.bf16.mxu0 %v3007
    %3258 = vmatpush1.bf16.msra.mxu0 %v3006
    %3259 = vmatprep.subr.bf16.mxu0 %v3002
    %3260 = vmatpush1.bf16.msra.mxu0 %v3001
    %3261 = vmatprep.subr.bf16.mxu0 %v3077
    %3262 = vmatpush2.bf16.msra.mxu0 %v3076
    %3263 = vmatprep.subr.bf16.mxu0 %v3072
    %3264 = vmatpush2.bf16.msra.mxu0 %v3071
    %3265 = vmatprep.subr.bf16.mxu0 %v3067
    %3266 = vmatpush2.bf16.msra.mxu0 %v3066
    %3267 = vmatprep.subr.bf16.mxu0 %v3062
    %3268 = vmatpush2.bf16.msra.mxu0 %v3061
    %3269 = vmatprep.subr.bf16.mxu0 %v3057
    %3270 = vmatpush2.bf16.msra.mxu0 %v3056
    %3271 = vmatprep.subr.bf16.mxu0 %v3052
    %3272 = vmatpush2.bf16.msra.mxu0 %v3051
    %3273 = vmatprep.subr.bf16.mxu0 %v3047
    %3274 = vmatpush2.bf16.msra.mxu0 %v3046
    %3275 = vmatprep.subr.bf16.mxu0 %v3042
    %3276 = vmatpush2.bf16.msra.mxu0 %v3041
    %3277 = vmatprep.mubr.bf16.mxu0 %v2916
    %3278 = vmatmul.mubr.bf16.gmra.mxu0 %v2915
    %v3279 = vpop.f32.mrf.mxu0
    %v3280 = vadd.f32 0.0, %v3279
    %v3281 = vpop.f32.mrf.mxu0
    %v3282 = vadd.f32 0.0, %v3281
    %v3283 = vpop.f32.mrf.mxu0
    %v3284 = vadd.f32 0.0, %v3283
    %v3285 = vpop.f32.mrf.mxu0
    %v3286 = vadd.f32 0.0, %v3285
    %3287 = vdwg.mxu0
    %3288 = vmatprep.subr.bf16.mxu0 %v3117
    %3289 = vmatpush1.bf16.msra.mxu0 %v3116
    %3290 = vmatprep.subr.bf16.mxu0 %v3112
    %3291 = vmatpush1.bf16.msra.mxu0 %v3111
    %3292 = vmatprep.subr.bf16.mxu0 %v3107
    %3293 = vmatpush1.bf16.msra.mxu0 %v3106
    %3294 = vmatprep.subr.bf16.mxu0 %v3102
    %3295 = vmatpush1.bf16.msra.mxu0 %v3101
    %3296 = vmatprep.subr.bf16.mxu0 %v3097
    %3297 = vmatpush1.bf16.msra.mxu0 %v3096
    %3298 = vmatprep.subr.bf16.mxu0 %v3092
    %3299 = vmatpush1.bf16.msra.mxu0 %v3091
    %3300 = vmatprep.subr.bf16.mxu0 %v3087
    %3301 = vmatpush1.bf16.msra.mxu0 %v3086
    %3302 = vmatprep.subr.bf16.mxu0 %v3082
    %3303 = vmatpush1.bf16.msra.mxu0 %v3081
    %3304 = vmatprep.subr.bf16.mxu0 %v3157
    %3305 = vmatpush2.bf16.msra.mxu0 %v3156
    %3306 = vmatprep.subr.bf16.mxu0 %v3152
    %3307 = vmatpush2.bf16.msra.mxu0 %v3151
    %3308 = vmatprep.subr.bf16.mxu0 %v3147
    %3309 = vmatpush2.bf16.msra.mxu0 %v3146
    %3310 = vmatprep.subr.bf16.mxu0 %v3142
    %3311 = vmatpush2.bf16.msra.mxu0 %v3141
    %3312 = vmatprep.subr.bf16.mxu0 %v3137
    %3313 = vmatpush2.bf16.msra.mxu0 %v3136
    %3314 = vmatprep.subr.bf16.mxu0 %v3132
    %3315 = vmatpush2.bf16.msra.mxu0 %v3131
    %3316 = vmatprep.subr.bf16.mxu0 %v3127
    %3317 = vmatpush2.bf16.msra.mxu0 %v3126
    %3318 = vmatprep.subr.bf16.mxu0 %v3122
    %3319 = vmatpush2.bf16.msra.mxu0 %v3121
    %3320 = vmatprep.mubr.bf16.mxu0 %v2918
    %3321 = vmatmul.mubr.bf16.gmra.mxu0 %v2917
    %v3322 = vpop.f32.mrf.mxu0
    %v3323 = vadd.f32 %v3280, %v3322
    %v3324 = vpop.f32.mrf.mxu0
    %v3325 = vadd.f32 %v3282, %v3324
    %v3326 = vpop.f32.mrf.mxu0
    %v3327 = vadd.f32 %v3284, %v3326
    %v3328 = vpop.f32.mrf.mxu0
    %v3329 = vadd.f32 %v3286, %v3328
    %3330 = vdwg.mxu0
    %3331 = vmatprep.subr.bf16.mxu0 0
    %3332 = vmatpush1.bf16.msra.mxu0 %v3038
    %3333 = vmatprep.subr.bf16.mxu0 0
    %3334 = vmatpush1.bf16.msra.mxu0 %v3033
    %3335 = vmatprep.subr.bf16.mxu0 0
    %3336 = vmatpush1.bf16.msra.mxu0 %v3028
    %3337 = vmatprep.subr.bf16.mxu0 0
    %3338 = vmatpush1.bf16.msra.mxu0 %v3023
    %3339 = vmatprep.subr.bf16.mxu0 0
    %3340 = vmatpush1.bf16.msra.mxu0 %v3018
    %3341 = vmatprep.subr.bf16.mxu0 0
    %3342 = vmatpush1.bf16.msra.mxu0 %v3013
    %3343 = vmatprep.subr.bf16.mxu0 0
    %3344 = vmatpush1.bf16.msra.mxu0 %v3008
    %3345 = vmatprep.subr.bf16.mxu0 0
    %3346 = vmatpush1.bf16.msra.mxu0 %v3003
    %3347 = vmatprep.subr.bf16.mxu0 0
    %3348 = vmatpush2.bf16.msra.mxu0 %v3078
    %3349 = vmatprep.subr.bf16.mxu0 0
    %3350 = vmatpush2.bf16.msra.mxu0 %v3073
    %3351 = vmatprep.subr.bf16.mxu0 0
    %3352 = vmatpush2.bf16.msra.mxu0 %v3068
    %3353 = vmatprep.subr.bf16.mxu0 0
    %3354 = vmatpush2.bf16.msra.mxu0 %v3063
    %3355 = vmatprep.subr.bf16.mxu0 0
    %3356 = vmatpush2.bf16.msra.mxu0 %v3058
    %3357 = vmatprep.subr.bf16.mxu0 0
    %3358 = vmatpush2.bf16.msra.mxu0 %v3053
    %3359 = vmatprep.subr.bf16.mxu0 0
    %3360 = vmatpush2.bf16.msra.mxu0 %v3048
    %3361 = vmatprep.subr.bf16.mxu0 0
    %3362 = vmatpush2.bf16.msra.mxu0 %v3043
    %3363 = vmatprep.mubr.bf16.mxu0 %v2916
    %3364 = vmatmul.mubr.bf16.gmra.mxu0 %v2915
    %v3365 = vpop.f32.mrf.mxu0
    %v3366 = vadd.f32 0.0, %v3365
    %v3367 = vpop.f32.mrf.mxu0
    %v3368 = vpop.f32.mrf.mxu0
    %v3369 = vadd.f32 0.0, %v3368
    %v3370 = vpop.f32.mrf.mxu0
    %3371 = vdwg.mxu0
    %3372 = vmatprep.subr.bf16.mxu0 0
    %3373 = vmatpush1.bf16.msra.mxu0 %v3118
    %3374 = vmatprep.subr.bf16.mxu0 0
    %3375 = vmatpush1.bf16.msra.mxu0 %v3113
    %3376 = vmatprep.subr.bf16.mxu0 0
    %3377 = vmatpush1.bf16.msra.mxu0 %v3108
    %3378 = vmatprep.subr.bf16.mxu0 0
    %3379 = vmatpush1.bf16.msra.mxu0 %v3103
    %3380 = vmatprep.subr.bf16.mxu0 0
    %3381 = vmatpush1.bf16.msra.mxu0 %v3098
    %3382 = vmatprep.subr.bf16.mxu0 0
    %3383 = vmatpush1.bf16.msra.mxu0 %v3093
    %3384 = vmatprep.subr.bf16.mxu0 0
    %3385 = vmatpush1.bf16.msra.mxu0 %v3088
    %3386 = vmatprep.subr.bf16.mxu0 0
    %3387 = vmatpush1.bf16.msra.mxu0 %v3083
    %3388 = vmatprep.subr.bf16.mxu0 0
    %3389 = vmatpush2.bf16.msra.mxu0 %v3158
    %3390 = vmatprep.subr.bf16.mxu0 0
    %3391 = vmatpush2.bf16.msra.mxu0 %v3153
    %3392 = vmatprep.subr.bf16.mxu0 0
    %3393 = vmatpush2.bf16.msra.mxu0 %v3148
    %3394 = vmatprep.subr.bf16.mxu0 0
    %3395 = vmatpush2.bf16.msra.mxu0 %v3143
    %3396 = vmatprep.subr.bf16.mxu0 0
    %3397 = vmatpush2.bf16.msra.mxu0 %v3138
    %3398 = vmatprep.subr.bf16.mxu0 0
    %3399 = vmatpush2.bf16.msra.mxu0 %v3133
    %3400 = vmatprep.subr.bf16.mxu0 0
    %3401 = vmatpush2.bf16.msra.mxu0 %v3128
    %3402 = vmatprep.subr.bf16.mxu0 0
    %3403 = vmatpush2.bf16.msra.mxu0 %v3123
    %3404 = vmatprep.mubr.bf16.mxu0 %v2918
    %3405 = vmatmul.mubr.bf16.gmra.mxu0 %v2917
    %v3406 = vpop.f32.mrf.mxu0
    %v3407 = vadd.f32 %v3366, %v3406
    %v3408 = vpop.f32.mrf.mxu0
    %v3409 = vpop.f32.mrf.mxu0
    %v3410 = vadd.f32 %v3369, %v3409
    %v3411 = vpop.f32.mrf.mxu0
    %3412 = vdwg.mxu0
    %s3413 = scalar_lea.vmem [#allocation13], 2
    %v3414 = vld [vmem:[%s3413] ss:$8 sm:$0xf]
    %v3415 = vld [vmem:[%s3413] ss:$8 sm:$0x10]
    %v3416 = vor.u32 %v3414, %v3415
    %s3417 = scalar_lea.vmem [#allocation13], 106
    %v3418 = vld [vmem:[%s3417] ss:$8 sm:$0xf]
    %v3419 = vld [vmem:[%s3417] ss:$8 sm:$0x10]
    %v3420 = vor.u32 %v3418, %v3419
    %v3422 = vlaneseq
    %v3423 = vshrl.u32 %v3422, 7
    %v3424 = vsub.s32 0, %v3423
    %v3425 = vrot.slane %v3416, %v3424
    %v3426 = vlaneseq
    %v3427 = vshrl.u32 %v3426, 7
    %v3428 = vsub.s32 1, %v3427
    %v3429 = vrot.slane %v3416, %v3428
    %v3430 = vlaneseq
    %v3431 = vshrl.u32 %v3430, 7
    %v3432 = vsub.s32 2, %v3431
    %v3433 = vrot.slane %v3416, %v3432
    %v3434 = vlaneseq
    %v3435 = vshrl.u32 %v3434, 7
    %v3436 = vsub.s32 3, %v3435
    %v3437 = vrot.slane %v3416, %v3436
    %v3438 = vlaneseq
    %v3439 = vshrl.u32 %v3438, 7
    %v3440 = vsub.s32 4, %v3439
    %v3441 = vrot.slane %v3416, %v3440
    %v3447 = vmul.f32 %v3237, %v3425
    %v3448 = vmul.f32 %v3239, %v3429
    %v3449 = vmul.f32 %v3323, %v3433
    %v3450 = vmul.f32 %v3325, %v3437
    %v3451 = vmul.f32 %v3407, %v3441
    %v3452 = vmul.f32 %v3241, %v3425
    %v3453 = vmul.f32 %v3243, %v3429
    %v3454 = vmul.f32 %v3327, %v3433
    %v3455 = vmul.f32 %v3329, %v3437
    %v3456 = vmul.f32 %v3410, %v3441
    %v3458 = vlaneseq
    %v3459 = vshrl.u32 %v3458, 7
    %v3460 = vsub.s32 0, %v3459
    %v3461 = vrot.slane %v3420, %v3460
    %v3462 = vlaneseq
    %v3463 = vshrl.u32 %v3462, 7
    %v3464 = vsub.s32 1, %v3463
    %v3465 = vrot.slane %v3420, %v3464
    %v3466 = vlaneseq
    %v3467 = vshrl.u32 %v3466, 7
    %v3468 = vsub.s32 2, %v3467
    %v3469 = vrot.slane %v3420, %v3468
    %v3470 = vlaneseq
    %v3471 = vshrl.u32 %v3470, 7
    %v3472 = vsub.s32 3, %v3471
    %v3473 = vrot.slane %v3420, %v3472
    %v3474 = vlaneseq
    %v3475 = vshrl.u32 %v3474, 7
    %v3476 = vsub.s32 4, %v3475
    %v3477 = vrot.slane %v3420, %v3476
    %v3483 = vadd.f32 %v3447, %v3461
    %v3484 = vadd.f32 %v3448, %v3465
    %v3485 = vadd.f32 %v3449, %v3469
    %v3486 = vadd.f32 %v3450, %v3473
    %v3487 = vadd.f32 %v3451, %v3477
    %v3488 = vadd.f32 %v3452, %v3461
    %v3489 = vadd.f32 %v3453, %v3465
    %v3490 = vadd.f32 %v3454, %v3469
    %v3491 = vadd.f32 %v3455, %v3473
    %v3492 = vadd.f32 %v3456, %v3477
    %v3493 = vmax.f32 %v3483, 0.0
    %v3494 = vmax.f32 %v3484, 0.0
    %v3495 = vmax.f32 %v3485, 0.0
    %v3496 = vmax.f32 %v3486, 0.0
    %v3497 = vmax.f32 %v3487, 0.0
    %v3498 = vmax.f32 %v3488, 0.0
    %v3499 = vmax.f32 %v3489, 0.0
    %v3500 = vmax.f32 %v3490, 0.0
    %v3501 = vmax.f32 %v3491, 0.0
    %v3502 = vmax.f32 %v3492, 0.0
    %v3503 = vpack.c.bf16 %v3498, %v3493
    %v3504 = vpack.c.bf16 %v3499, %v3494
    %v3505 = vpack.c.bf16 %v3500, %v3495
    %v3506 = vpack.c.bf16 %v3501, %v3496
    %v3507 = vpack.c.bf16 %v3502, %v3497
    %v3508 = vld [vmem:[%s4] sm:$0xff]
    %v3509 = vld [vmem:[%s4 + $0x8] sm:$0xff]
    %v3510 = vld [vmem:[%s4 + $0x10] sm:$0xff]
    %v3511 = vld [vmem:[%s4 + $0x18] sm:$0xff]
    %v3512 = vld [vmem:[%s4 + $0x20] sm:$0xff]
    %v3513 = vld [vmem:[%s4 + $0x28] sm:$0xff]
    %v3514 = vld [vmem:[%s4 + $0x30] sm:$0xff]
    %v3515 = vld [vmem:[%s4 + $0x38] sm:$0xff]
    %v3516 = vld [vmem:[%s4 + $0x40] sm:$0xff]
    %v3517 = vld [vmem:[%s4 + $0x48] sm:$0xff]
    %v3518 = vld [vmem:[%s4 + $0x50] sm:$0xff]
    %v3519 = vld [vmem:[%s4 + $0x58] sm:$0xff]
    %v3520 = vld [vmem:[%s4 + $0x60] sm:$0xff]
    %v3521 = vld [vmem:[%s4 + $0x68] sm:$0xff]
    %v3522 = vld [vmem:[%s4 + $0x70] sm:$0xff]
    %v3523 = vld [vmem:[%s4 + $0x78] sm:$0xff]
    %v3524 = vld [vmem:[%s4 + $0x80] sm:$0xff]
    %v3525 = vld [vmem:[%s4 + $0x88] sm:$0xff]
    %v3526 = vld [vmem:[%s4 + $0x90] sm:$0xff]
    %v3527 = vld [vmem:[%s4 + $0x98] sm:$0xff]
    %v3528 = vld [vmem:[%s4 + $0xa0] sm:$0xff]
    %v3529 = vld [vmem:[%s4 + $0xa8] sm:$0xff]
    %v3530 = vld [vmem:[%s4 + $0xb0] sm:$0xff]
    %v3531 = vld [vmem:[%s4 + $0xb8] sm:$0xff]
    %v3532 = vld [vmem:[%s4 + $0xc0] sm:$0xff]
    %v3533 = vld [vmem:[%s4 + $0xc8] sm:$0xff]
    %v3534 = vld [vmem:[%s4 + $0xd0] sm:$0xff]
    %v3535 = vld [vmem:[%s4 + $0xd8] sm:$0xff]
    %v3536 = vld [vmem:[%s4 + $0xe0] sm:$0xff]
    %v3537 = vld [vmem:[%s4 + $0xe8] sm:$0xff]
    %v3538 = vld [vmem:[%s4 + $0xf0] sm:$0xff]
    %v3539 = vld [vmem:[%s4 + $0xf8] sm:$0xff]
    %v3540 = vld [vmem:[%s4 + $0x100] sm:$0xff]
    %v3541 = vld [vmem:[%s4 + $0x108] sm:$0xff]
    %v3542 = vld [vmem:[%s4 + $0x110] sm:$0xff]
    %v3543 = vld [vmem:[%s4 + $0x118] sm:$0xff]
    %v3544 = vld [vmem:[%s4 + $0x120] sm:$0xff]
    %v3545 = vld [vmem:[%s4 + $0x128] sm:$0xff]
    %v3546 = vld [vmem:[%s4 + $0x130] sm:$0xff]
    %v3547 = vld [vmem:[%s4 + $0x138] sm:$0xff]
    %v3548 = vunpack.c.l.s8.bf16 %v3508
    %v3549 = vunpack.c.l.s8.bf16 %v3509
    %v3550 = vunpack.c.h.s8.bf16 %v3508
    %v3551 = vunpack.c.h.s8.bf16 %v3509
    %v3552 = vunpack.c.l.s8.bf16 %v3510
    %v3553 = vunpack.c.l.s8.bf16 %v3511
    %v3554 = vunpack.c.h.s8.bf16 %v3510
    %v3555 = vunpack.c.h.s8.bf16 %v3511
    %v3556 = vunpack.c.l.s8.bf16 %v3512
    %v3557 = vunpack.c.l.s8.bf16 %v3513
    %v3558 = vunpack.c.h.s8.bf16 %v3512
    %v3559 = vunpack.c.h.s8.bf16 %v3513
    %v3560 = vunpack.c.l.s8.bf16 %v3514
    %v3561 = vunpack.c.l.s8.bf16 %v3515
    %v3562 = vunpack.c.h.s8.bf16 %v3514
    %v3563 = vunpack.c.h.s8.bf16 %v3515
    %v3564 = vunpack.c.l.s8.bf16 %v3516
    %v3565 = vunpack.c.l.s8.bf16 %v3517
    %v3566 = vunpack.c.h.s8.bf16 %v3516
    %v3567 = vunpack.c.h.s8.bf16 %v3517
    %v3568 = vunpack.c.l.s8.bf16 %v3518
    %v3569 = vunpack.c.l.s8.bf16 %v3519
    %v3570 = vunpack.c.h.s8.bf16 %v3518
    %v3571 = vunpack.c.h.s8.bf16 %v3519
    %v3572 = vunpack.c.l.s8.bf16 %v3520
    %v3573 = vunpack.c.l.s8.bf16 %v3521
    %v3574 = vunpack.c.h.s8.bf16 %v3520
    %v3575 = vunpack.c.h.s8.bf16 %v3521
    %v3576 = vunpack.c.l.s8.bf16 %v3522
    %v3577 = vunpack.c.l.s8.bf16 %v3523
    %v3578 = vunpack.c.h.s8.bf16 %v3522
    %v3579 = vunpack.c.h.s8.bf16 %v3523
    %v3580 = vunpack.c.l.s8.bf16 %v3524
    %v3581 = vunpack.c.l.s8.bf16 %v3525
    %v3582 = vunpack.c.h.s8.bf16 %v3524
    %v3583 = vunpack.c.h.s8.bf16 %v3525
    %v3584 = vunpack.c.l.s8.bf16 %v3526
    %v3585 = vunpack.c.l.s8.bf16 %v3527
    %v3586 = vunpack.c.h.s8.bf16 %v3526
    %v3587 = vunpack.c.h.s8.bf16 %v3527
    %v3588 = vunpack.c.l.s8.bf16 %v3528
    %v3589 = vunpack.c.l.s8.bf16 %v3529
    %v3590 = vunpack.c.h.s8.bf16 %v3528
    %v3591 = vunpack.c.h.s8.bf16 %v3529
    %v3592 = vunpack.c.l.s8.bf16 %v3530
    %v3593 = vunpack.c.l.s8.bf16 %v3531
    %v3594 = vunpack.c.h.s8.bf16 %v3530
    %v3595 = vunpack.c.h.s8.bf16 %v3531
    %v3596 = vunpack.c.l.s8.bf16 %v3532
    %v3597 = vunpack.c.l.s8.bf16 %v3533
    %v3598 = vunpack.c.h.s8.bf16 %v3532
    %v3599 = vunpack.c.h.s8.bf16 %v3533
    %v3600 = vunpack.c.l.s8.bf16 %v3534
    %v3601 = vunpack.c.l.s8.bf16 %v3535
    %v3602 = vunpack.c.h.s8.bf16 %v3534
    %v3603 = vunpack.c.h.s8.bf16 %v3535
    %v3604 = vunpack.c.l.s8.bf16 %v3536
    %v3605 = vunpack.c.l.s8.bf16 %v3537
    %v3606 = vunpack.c.h.s8.bf16 %v3536
    %v3607 = vunpack.c.h.s8.bf16 %v3537
    %v3608 = vunpack.c.l.s8.bf16 %v3538
    %v3609 = vunpack.c.l.s8.bf16 %v3539
    %v3610 = vunpack.c.h.s8.bf16 %v3538
    %v3611 = vunpack.c.h.s8.bf16 %v3539
    %v3612 = vunpack.c.l.s8.bf16 %v3540
    %v3613 = vunpack.c.l.s8.bf16 %v3541
    %v3614 = vunpack.c.h.s8.bf16 %v3540
    %v3615 = vunpack.c.h.s8.bf16 %v3541
    %v3616 = vunpack.c.l.s8.bf16 %v3542
    %v3617 = vunpack.c.l.s8.bf16 %v3543
    %v3618 = vunpack.c.h.s8.bf16 %v3542
    %v3619 = vunpack.c.h.s8.bf16 %v3543
    %v3620 = vunpack.c.l.s8.bf16 %v3544
    %v3621 = vunpack.c.l.s8.bf16 %v3545
    %v3622 = vunpack.c.h.s8.bf16 %v3544
    %v3623 = vunpack.c.h.s8.bf16 %v3545
    %v3624 = vunpack.c.l.s8.bf16 %v3546
    %v3625 = vunpack.c.l.s8.bf16 %v3547
    %v3626 = vunpack.c.h.s8.bf16 %v3546
    %v3627 = vunpack.c.h.s8.bf16 %v3547
    %3628 = vmatprep.subr.bf16.mxu0 %v3563
    %3629 = vmatpush1.bf16.msra.mxu0 %v3562
    %3630 = vmatprep.subr.bf16.mxu0 %v3561
    %3631 = vmatpush1.bf16.msra.mxu0 %v3560
    %3632 = vmatprep.subr.bf16.mxu0 %v3559
    %3633 = vmatpush1.bf16.msra.mxu0 %v3558
    %3634 = vmatprep.subr.bf16.mxu0 %v3557
    %3635 = vmatpush1.bf16.msra.mxu0 %v3556
    %3636 = vmatprep.subr.bf16.mxu0 %v3555
    %3637 = vmatpush1.bf16.msra.mxu0 %v3554
    %3638 = vmatprep.subr.bf16.mxu0 %v3553
    %3639 = vmatpush1.bf16.msra.mxu0 %v3552
    %3640 = vmatprep.subr.bf16.mxu0 %v3551
    %3641 = vmatpush1.bf16.msra.mxu0 %v3550
    %3642 = vmatprep.subr.bf16.mxu0 %v3549
    %3643 = vmatpush1.bf16.msra.mxu0 %v3548
    %3644 = vmatprep.subr.bf16.mxu0 %v3579
    %3645 = vmatpush2.bf16.msra.mxu0 %v3578
    %3646 = vmatprep.subr.bf16.mxu0 %v3577
    %3647 = vmatpush2.bf16.msra.mxu0 %v3576
    %3648 = vmatprep.subr.bf16.mxu0 %v3575
    %3649 = vmatpush2.bf16.msra.mxu0 %v3574
    %3650 = vmatprep.subr.bf16.mxu0 %v3573
    %3651 = vmatpush2.bf16.msra.mxu0 %v3572
    %3652 = vmatprep.subr.bf16.mxu0 %v3571
    %3653 = vmatpush2.bf16.msra.mxu0 %v3570
    %3654 = vmatprep.subr.bf16.mxu0 %v3569
    %3655 = vmatpush2.bf16.msra.mxu0 %v3568
    %3656 = vmatprep.subr.bf16.mxu0 %v3567
    %3657 = vmatpush2.bf16.msra.mxu0 %v3566
    %3658 = vmatprep.subr.bf16.mxu0 %v3565
    %3659 = vmatpush2.bf16.msra.mxu0 %v3564
    %3660 = vmatprep.mubr.bf16.mxu0 %v3504
    %3661 = vmatmul.mubr.bf16.gmra.mxu0 %v3503
    %v3662 = vpop.f32.mrf.mxu0
    %v3663 = vadd.f32 0.0, %v3662
    %v3664 = vpop.f32.mrf.mxu0
    %v3665 = vadd.f32 0.0, %v3664
    %v3666 = vpop.f32.mrf.mxu0
    %v3667 = vadd.f32 0.0, %v3666
    %v3668 = vpop.f32.mrf.mxu0
    %v3669 = vadd.f32 0.0, %v3668
    %3670 = vdwg.mxu0
    %3671 = vmatprep.subr.bf16.mxu0 %v3595
    %3672 = vmatpush1.bf16.msra.mxu0 %v3594
    %3673 = vmatprep.subr.bf16.mxu0 %v3593
    %3674 = vmatpush1.bf16.msra.mxu0 %v3592
    %3675 = vmatprep.subr.bf16.mxu0 %v3591
    %3676 = vmatpush1.bf16.msra.mxu0 %v3590
    %3677 = vmatprep.subr.bf16.mxu0 %v3589
    %3678 = vmatpush1.bf16.msra.mxu0 %v3588
    %3679 = vmatprep.subr.bf16.mxu0 %v3587
    %3680 = vmatpush1.bf16.msra.mxu0 %v3586
    %3681 = vmatprep.subr.bf16.mxu0 %v3585
    %3682 = vmatpush1.bf16.msra.mxu0 %v3584
    %3683 = vmatprep.subr.bf16.mxu0 %v3583
    %3684 = vmatpush1.bf16.msra.mxu0 %v3582
    %3685 = vmatprep.subr.bf16.mxu0 %v3581
    %3686 = vmatpush1.bf16.msra.mxu0 %v3580
    %3687 = vmatprep.subr.bf16.mxu0 %v3611
    %3688 = vmatpush2.bf16.msra.mxu0 %v3610
    %3689 = vmatprep.subr.bf16.mxu0 %v3609
    %3690 = vmatpush2.bf16.msra.mxu0 %v3608
    %3691 = vmatprep.subr.bf16.mxu0 %v3607
    %3692 = vmatpush2.bf16.msra.mxu0 %v3606
    %3693 = vmatprep.subr.bf16.mxu0 %v3605
    %3694 = vmatpush2.bf16.msra.mxu0 %v3604
    %3695 = vmatprep.subr.bf16.mxu0 %v3603
    %3696 = vmatpush2.bf16.msra.mxu0 %v3602
    %3697 = vmatprep.subr.bf16.mxu0 %v3601
    %3698 = vmatpush2.bf16.msra.mxu0 %v3600
    %3699 = vmatprep.subr.bf16.mxu0 %v3599
    %3700 = vmatpush2.bf16.msra.mxu0 %v3598
    %3701 = vmatprep.subr.bf16.mxu0 %v3597
    %3702 = vmatpush2.bf16.msra.mxu0 %v3596
    %3703 = vmatprep.mubr.bf16.mxu0 %v3506
    %3704 = vmatmul.mubr.bf16.gmra.mxu0 %v3505
    %v3705 = vpop.f32.mrf.mxu0
    %v3706 = vadd.f32 %v3663, %v3705
    %v3707 = vpop.f32.mrf.mxu0
    %v3708 = vadd.f32 %v3665, %v3707
    %v3709 = vpop.f32.mrf.mxu0
    %v3710 = vadd.f32 %v3667, %v3709
    %v3711 = vpop.f32.mrf.mxu0
    %v3712 = vadd.f32 %v3669, %v3711
    %3713 = vdwg.mxu0
    %3714 = vmatprep.subr.bf16.mxu0 %v3627
    %3715 = vmatpush1.bf16.msra.mxu0 %v3626
    %3716 = vmatprep.subr.bf16.mxu0 %v3625
    %3717 = vmatpush1.bf16.msra.mxu0 %v3624
    %3718 = vmatprep.subr.bf16.mxu0 %v3623
    %3719 = vmatpush1.bf16.msra.mxu0 %v3622
    %3720 = vmatprep.subr.bf16.mxu0 %v3621
    %3721 = vmatpush1.bf16.msra.mxu0 %v3620
    %3722 = vmatprep.subr.bf16.mxu0 %v3619
    %3723 = vmatpush1.bf16.msra.mxu0 %v3618
    %3724 = vmatprep.subr.bf16.mxu0 %v3617
    %3725 = vmatpush1.bf16.msra.mxu0 %v3616
    %3726 = vmatprep.subr.bf16.mxu0 %v3615
    %3727 = vmatpush1.bf16.msra.mxu0 %v3614
    %3728 = vmatprep.subr.bf16.mxu0 %v3613
    %3729 = vmatpush1.bf16.msra.mxu0 %v3612
    %3730 = vmatprep.subr.bf16.mxu0 0
    %3731 = vmatpush2.bf16.msra.mxu0 0
    %3732 = vmatprep.subr.bf16.mxu0 0
    %3733 = vmatpush2.bf16.msra.mxu0 0
    %3734 = vmatprep.subr.bf16.mxu0 0
    %3735 = vmatpush2.bf16.msra.mxu0 0
    %3736 = vmatprep.subr.bf16.mxu0 0
    %3737 = vmatpush2.bf16.msra.mxu0 0
    %3738 = vmatprep.subr.bf16.mxu0 0
    %3739 = vmatpush2.bf16.msra.mxu0 0
    %3740 = vmatprep.subr.bf16.mxu0 0
    %3741 = vmatpush2.bf16.msra.mxu0 0
    %3742 = vmatprep.subr.bf16.mxu0 0
    %3743 = vmatpush2.bf16.msra.mxu0 0
    %3744 = vmatprep.subr.bf16.mxu0 0
    %3745 = vmatpush2.bf16.msra.mxu0 0
    %3746 = vmatprep.mubr.bf16.mxu0 0
    %3747 = vmatmul.mubr.bf16.gmra.mxu0 %v3507
    %v3748 = vpop.f32.mrf.mxu0
    %v3749 = vadd.f32 %v3706, %v3748
    %v3750 = vpop.f32.mrf.mxu0
    %v3751 = vadd.f32 %v3708, %v3750
    %v3752 = vpop.f32.mrf.mxu0
    %v3753 = vadd.f32 %v3710, %v3752
    %v3754 = vpop.f32.mrf.mxu0
    %v3755 = vadd.f32 %v3712, %v3754
    %3756 = vdwg.mxu0
    %s3757 = scalar_lea.vmem [#allocation13], 3
    %v3758 = vld [vmem:[%s3757] ss:$8 sm:$0x3]
    %s3759 = scalar_lea.vmem [#allocation13], 107
    %v3760 = vld [vmem:[%s3759] ss:$8 sm:$0x3]
    %v3762 = vlaneseq
    %v3763 = vshrl.u32 %v3762, 7
    %v3764 = vsub.s32 0, %v3763
    %v3765 = vrot.slane %v3758, %v3764
    %v3766 = vlaneseq
    %v3767 = vshrl.u32 %v3766, 7
    %v3768 = vsub.s32 1, %v3767
    %v3769 = vrot.slane %v3758, %v3768
    %v3772 = vmul.f32 %v3749, %v3765
    %v3773 = vmul.f32 %v3751, %v3769
    %v3774 = vmul.f32 %v3753, %v3765
    %v3775 = vmul.f32 %v3755, %v3769
    %v3777 = vlaneseq
    %v3778 = vshrl.u32 %v3777, 7
    %v3779 = vsub.s32 0, %v3778
    %v3780 = vrot.slane %v3760, %v3779
    %v3781 = vlaneseq
    %v3782 = vshrl.u32 %v3781, 7
    %v3783 = vsub.s32 1, %v3782
    %v3784 = vrot.slane %v3760, %v3783
    %v3787 = vadd.f32 %v3772, %v3780
    %v3788 = vadd.f32 %v3773, %v3784
    %v3789 = vadd.f32 %v3774, %v3780
    %v3790 = vadd.f32 %v3775, %v3784
    %v3791 = vmax.f32 %v3787, 0.0
    %v3792 = vmax.f32 %v3788, 0.0
    %v3793 = vmax.f32 %v3789, 0.0
    %v3794 = vmax.f32 %v3790, 0.0
    %v3795 = vpack.c.bf16 %v3793, %v3791
    %v3796 = vpack.c.bf16 %v3794, %v3792
    %v3797 = vld [vmem:[#allocation7] sm:$0xff]
    %v3798 = vld [vmem:[#allocation7 + $0x8] sm:$0xff]
    %v3799 = vld [vmem:[#allocation7 + $0x10] sm:$0xff]
    %v3800 = vld [vmem:[#allocation7 + $0x18] sm:$0xff]
    %v3801 = vld [vmem:[#allocation7 + $0x20] sm:$0xff]
    %v3802 = vld [vmem:[#allocation7 + $0x28] sm:$0xff]
    %v3803 = vld [vmem:[#allocation7 + $0x30] sm:$0xff]
    %v3804 = vld [vmem:[#allocation7 + $0x38] sm:$0xff]
    %v3805 = vld [vmem:[#allocation7 + $0x40] sm:$0xff]
    %v3806 = vld [vmem:[#allocation7 + $0x48] sm:$0xff]
    %v3807 = vld [vmem:[#allocation7 + $0x50] sm:$0xff]
    %v3808 = vld [vmem:[#allocation7 + $0x58] sm:$0xff]
    %v3809 = vld [vmem:[#allocation7 + $0x60] sm:$0xff]
    %v3810 = vld [vmem:[#allocation7 + $0x68] sm:$0xff]
    %v3811 = vld [vmem:[#allocation7 + $0x70] sm:$0xff]
    %v3812 = vld [vmem:[#allocation7 + $0x78] sm:$0xff]
    %v3813 = vunpack.c.l.s8.bf16 %v3797
    %v3814 = vunpack.c.l.s8.bf16 %v3798
    %v3815 = vunpack.c.h.s8.bf16 %v3797
    %v3816 = vunpack.c.h.s8.bf16 %v3798
    %v3817 = vunpack.c.l.s8.bf16 %v3799
    %v3818 = vunpack.c.l.s8.bf16 %v3800
    %v3819 = vunpack.c.h.s8.bf16 %v3799
    %v3820 = vunpack.c.h.s8.bf16 %v3800
    %v3821 = vunpack.c.l.s8.bf16 %v3801
    %v3822 = vunpack.c.l.s8.bf16 %v3802
    %v3823 = vunpack.c.h.s8.bf16 %v3801
    %v3824 = vunpack.c.h.s8.bf16 %v3802
    %v3825 = vunpack.c.l.s8.bf16 %v3803
    %v3826 = vunpack.c.l.s8.bf16 %v3804
    %v3827 = vunpack.c.h.s8.bf16 %v3803
    %v3828 = vunpack.c.h.s8.bf16 %v3804
    %v3829 = vunpack.c.l.s8.bf16 %v3805
    %v3830 = vunpack.c.l.s8.bf16 %v3806
    %v3831 = vunpack.c.h.s8.bf16 %v3805
    %v3832 = vunpack.c.h.s8.bf16 %v3806
    %v3833 = vunpack.c.l.s8.bf16 %v3807
    %v3834 = vunpack.c.l.s8.bf16 %v3808
    %v3835 = vunpack.c.h.s8.bf16 %v3807
    %v3836 = vunpack.c.h.s8.bf16 %v3808
    %v3837 = vunpack.c.l.s8.bf16 %v3809
    %v3838 = vunpack.c.l.s8.bf16 %v3810
    %v3839 = vunpack.c.h.s8.bf16 %v3809
    %v3840 = vunpack.c.h.s8.bf16 %v3810
    %v3841 = vunpack.c.l.s8.bf16 %v3811
    %v3842 = vunpack.c.l.s8.bf16 %v3812
    %v3843 = vunpack.c.h.s8.bf16 %v3811
    %v3844 = vunpack.c.h.s8.bf16 %v3812
    %3845 = vmatprep.subr.bf16.mxu0 %v3828
    %3846 = vmatpush1.bf16.msra.mxu0 %v3827
    %3847 = vmatprep.subr.bf16.mxu0 %v3826
    %3848 = vmatpush1.bf16.msra.mxu0 %v3825
    %3849 = vmatprep.subr.bf16.mxu0 %v3824
    %3850 = vmatpush1.bf16.msra.mxu0 %v3823
    %3851 = vmatprep.subr.bf16.mxu0 %v3822
    %3852 = vmatpush1.bf16.msra.mxu0 %v3821
    %3853 = vmatprep.subr.bf16.mxu0 %v3820
    %3854 = vmatpush1.bf16.msra.mxu0 %v3819
    %3855 = vmatprep.subr.bf16.mxu0 %v3818
    %3856 = vmatpush1.bf16.msra.mxu0 %v3817
    %3857 = vmatprep.subr.bf16.mxu0 %v3816
    %3858 = vmatpush1.bf16.msra.mxu0 %v3815
    %3859 = vmatprep.subr.bf16.mxu0 %v3814
    %3860 = vmatpush1.bf16.msra.mxu0 %v3813
    %3861 = vmatprep.subr.bf16.mxu0 %v3844
    %3862 = vmatpush2.bf16.msra.mxu0 %v3843
    %3863 = vmatprep.subr.bf16.mxu0 %v3842
    %3864 = vmatpush2.bf16.msra.mxu0 %v3841
    %3865 = vmatprep.subr.bf16.mxu0 %v3840
    %3866 = vmatpush2.bf16.msra.mxu0 %v3839
    %3867 = vmatprep.subr.bf16.mxu0 %v3838
    %3868 = vmatpush2.bf16.msra.mxu0 %v3837
    %3869 = vmatprep.subr.bf16.mxu0 %v3836
    %3870 = vmatpush2.bf16.msra.mxu0 %v3835
    %3871 = vmatprep.subr.bf16.mxu0 %v3834
    %3872 = vmatpush2.bf16.msra.mxu0 %v3833
    %3873 = vmatprep.subr.bf16.mxu0 %v3832
    %3874 = vmatpush2.bf16.msra.mxu0 %v3831
    %3875 = vmatprep.subr.bf16.mxu0 %v3830
    %3876 = vmatpush2.bf16.msra.mxu0 %v3829
    %3877 = vmatprep.mubr.bf16.mxu0 %v3796
    %3878 = vmatmul.mubr.bf16.gmra.mxu0 %v3795
    %v3879 = vpop.f32.mrf.mxu0
    %v3880 = vadd.f32 0.0, %v3879
    %v3881 = vpop.f32.mrf.mxu0
    %v3882 = vadd.f32 0.0, %v3881
    %v3883 = vpop.f32.mrf.mxu0
    %v3884 = vadd.f32 0.0, %v3883
    %v3885 = vpop.f32.mrf.mxu0
    %v3886 = vadd.f32 0.0, %v3885
    %3887 = vdwg.mxu0
    %s3888 = scalar_lea.vmem [#allocation13], 4
    %v3889 = vld [vmem:[%s3888] ss:$8 sm:$0x3]
    %s3890 = scalar_lea.vmem [#allocation13], 108
    %v3891 = vld [vmem:[%s3890] ss:$8 sm:$0x3]
    %v3893 = vlaneseq
    %v3894 = vshrl.u32 %v3893, 7
    %v3895 = vsub.s32 0, %v3894
    %v3896 = vrot.slane %v3889, %v3895
    %v3897 = vlaneseq
    %v3898 = vshrl.u32 %v3897, 7
    %v3899 = vsub.s32 1, %v3898
    %v3900 = vrot.slane %v3889, %v3899
    %v3903 = vmul.f32 %v3880, %v3896
    %v3904 = vmul.f32 %v3882, %v3900
    %v3905 = vmul.f32 %v3884, %v3896
    %v3906 = vmul.f32 %v3886, %v3900
    %v3908 = vlaneseq
    %v3909 = vshrl.u32 %v3908, 7
    %v3910 = vsub.s32 0, %v3909
    %v3911 = vrot.slane %v3891, %v3910
    %v3912 = vlaneseq
    %v3913 = vshrl.u32 %v3912, 7
    %v3914 = vsub.s32 1, %v3913
    %v3915 = vrot.slane %v3891, %v3914
    %v3918 = vadd.f32 %v3903, %v3911
    %v3919 = vadd.f32 %v3904, %v3915
    %v3920 = vadd.f32 %v3905, %v3911
    %v3921 = vadd.f32 %v3906, %v3915
    %v3922 = vmax.f32 %v3918, 0.0
    %v3923 = vmax.f32 %v3919, 0.0
    %v3924 = vmax.f32 %v3920, 0.0
    %v3925 = vmax.f32 %v3921, 0.0
    %v3926 = vpack.c.bf16 %v3924, %v3922
    %v3927 = vpack.c.bf16 %v3925, %v3923
    %v3928 = vld [vmem:[#allocation9] sm:$0xff]
    %v3929 = vld [vmem:[#allocation9 + $0x8] sm:$0xff]
    %v3930 = vld [vmem:[#allocation9 + $0x10] sm:$0xff]
    %v3931 = vld [vmem:[#allocation9 + $0x18] sm:$0xff]
    %v3932 = vld [vmem:[#allocation9 + $0x20] sm:$0xff]
    %v3933 = vld [vmem:[#allocation9 + $0x28] sm:$0xff]
    %v3934 = vld [vmem:[#allocation9 + $0x30] sm:$0xff]
    %v3935 = vld [vmem:[#allocation9 + $0x38] sm:$0xff]
    %v3936 = vld [vmem:[#allocation9 + $0x40] sm:$0xff]
    %v3937 = vld [vmem:[#allocation9 + $0x48] sm:$0xff]
    %v3938 = vld [vmem:[#allocation9 + $0x50] sm:$0xff]
    %v3939 = vld [vmem:[#allocation9 + $0x58] sm:$0xff]
    %v3940 = vld [vmem:[#allocation9 + $0x60] sm:$0xff]
    %v3941 = vld [vmem:[#allocation9 + $0x68] sm:$0xff]
    %v3942 = vld [vmem:[#allocation9 + $0x70] sm:$0xff]
    %v3943 = vld [vmem:[#allocation9 + $0x78] sm:$0xff]
    %v3944 = vld [vmem:[#allocation9 + $0x80] sm:$0xff]
    %v3945 = vld [vmem:[#allocation9 + $0x88] sm:$0xff]
    %v3946 = vld [vmem:[#allocation9 + $0x90] sm:$0xff]
    %v3947 = vld [vmem:[#allocation9 + $0x98] sm:$0xff]
    %v3948 = vld [vmem:[#allocation9 + $0xa0] sm:$0xff]
    %v3949 = vld [vmem:[#allocation9 + $0xa8] sm:$0xff]
    %v3950 = vld [vmem:[#allocation9 + $0xb0] sm:$0xff]
    %v3951 = vld [vmem:[#allocation9 + $0xb8] sm:$0xff]
    %v3952 = vld [vmem:[#allocation9 + $0xc0] sm:$0xff]
    %v3953 = vld [vmem:[#allocation9 + $0xc8] sm:$0xff]
    %v3954 = vld [vmem:[#allocation9 + $0xd0] sm:$0xff]
    %v3955 = vld [vmem:[#allocation9 + $0xd8] sm:$0xff]
    %v3956 = vld [vmem:[#allocation9 + $0xe0] sm:$0xff]
    %v3957 = vld [vmem:[#allocation9 + $0xe8] sm:$0xff]
    %v3958 = vld [vmem:[#allocation9 + $0xf0] sm:$0xff]
    %v3959 = vld [vmem:[#allocation9 + $0xf8] sm:$0xff]
    %v3960 = vunpack.c.l.s8.bf16 %v3928
    %v3961 = vunpack.c.l.s8.bf16 %v3929
    %v3962 = vunpack.c.l.s8.bf16 %v3930
    %v3963 = vunpack.c.l.s8.bf16 %v3931
    %v3964 = vunpack.c.h.s8.bf16 %v3928
    %v3965 = vunpack.c.h.s8.bf16 %v3929
    %v3966 = vunpack.c.h.s8.bf16 %v3930
    %v3967 = vunpack.c.h.s8.bf16 %v3931
    %v3968 = vunpack.c.l.s8.bf16 %v3932
    %v3969 = vunpack.c.l.s8.bf16 %v3933
    %v3970 = vunpack.c.l.s8.bf16 %v3934
    %v3971 = vunpack.c.l.s8.bf16 %v3935
    %v3972 = vunpack.c.h.s8.bf16 %v3932
    %v3973 = vunpack.c.h.s8.bf16 %v3933
    %v3974 = vunpack.c.h.s8.bf16 %v3934
    %v3975 = vunpack.c.h.s8.bf16 %v3935
    %v3976 = vunpack.c.l.s8.bf16 %v3936
    %v3977 = vunpack.c.l.s8.bf16 %v3937
    %v3978 = vunpack.c.l.s8.bf16 %v3938
    %v3979 = vunpack.c.l.s8.bf16 %v3939
    %v3980 = vunpack.c.h.s8.bf16 %v3936
    %v3981 = vunpack.c.h.s8.bf16 %v3937
    %v3982 = vunpack.c.h.s8.bf16 %v3938
    %v3983 = vunpack.c.h.s8.bf16 %v3939
    %v3984 = vunpack.c.l.s8.bf16 %v3940
    %v3985 = vunpack.c.l.s8.bf16 %v3941
    %v3986 = vunpack.c.l.s8.bf16 %v3942
    %v3987 = vunpack.c.l.s8.bf16 %v3943
    %v3988 = vunpack.c.h.s8.bf16 %v3940
    %v3989 = vunpack.c.h.s8.bf16 %v3941
    %v3990 = vunpack.c.h.s8.bf16 %v3942
    %v3991 = vunpack.c.h.s8.bf16 %v3943
    %v3992 = vunpack.c.l.s8.bf16 %v3944
    %v3993 = vunpack.c.l.s8.bf16 %v3945
    %v3994 = vunpack.c.l.s8.bf16 %v3946
    %v3995 = vunpack.c.l.s8.bf16 %v3947
    %v3996 = vunpack.c.h.s8.bf16 %v3944
    %v3997 = vunpack.c.h.s8.bf16 %v3945
    %v3998 = vunpack.c.h.s8.bf16 %v3946
    %v3999 = vunpack.c.h.s8.bf16 %v3947
    %v4000 = vunpack.c.l.s8.bf16 %v3948
    %v4001 = vunpack.c.l.s8.bf16 %v3949
    %v4002 = vunpack.c.l.s8.bf16 %v3950
    %v4003 = vunpack.c.l.s8.bf16 %v3951
    %v4004 = vunpack.c.h.s8.bf16 %v3948
    %v4005 = vunpack.c.h.s8.bf16 %v3949
    %v4006 = vunpack.c.h.s8.bf16 %v3950
    %v4007 = vunpack.c.h.s8.bf16 %v3951
    %v4008 = vunpack.c.l.s8.bf16 %v3952
    %v4009 = vunpack.c.l.s8.bf16 %v3953
    %v4010 = vunpack.c.l.s8.bf16 %v3954
    %v4011 = vunpack.c.l.s8.bf16 %v3955
    %v4012 = vunpack.c.h.s8.bf16 %v3952
    %v4013 = vunpack.c.h.s8.bf16 %v3953
    %v4014 = vunpack.c.h.s8.bf16 %v3954
    %v4015 = vunpack.c.h.s8.bf16 %v3955
    %v4016 = vunpack.c.l.s8.bf16 %v3956
    %v4017 = vunpack.c.l.s8.bf16 %v3957
    %v4018 = vunpack.c.l.s8.bf16 %v3958
    %v4019 = vunpack.c.l.s8.bf16 %v3959
    %v4020 = vunpack.c.h.s8.bf16 %v3956
    %v4021 = vunpack.c.h.s8.bf16 %v3957
    %v4022 = vunpack.c.h.s8.bf16 %v3958
    %v4023 = vunpack.c.h.s8.bf16 %v3959
    %4024 = vmatprep.subr.bf16.mxu0 %v3989
    %4025 = vmatpush1.bf16.msra.mxu0 %v3988
    %4026 = vmatprep.subr.bf16.mxu0 %v3985
    %4027 = vmatpush1.bf16.msra.mxu0 %v3984
    %4028 = vmatprep.subr.bf16.mxu0 %v3981
    %4029 = vmatpush1.bf16.msra.mxu0 %v3980
    %4030 = vmatprep.subr.bf16.mxu0 %v3977
    %4031 = vmatpush1.bf16.msra.mxu0 %v3976
    %4032 = vmatprep.subr.bf16.mxu0 %v3973
    %4033 = vmatpush1.bf16.msra.mxu0 %v3972
    %4034 = vmatprep.subr.bf16.mxu0 %v3969
    %4035 = vmatpush1.bf16.msra.mxu0 %v3968
    %4036 = vmatprep.subr.bf16.mxu0 %v3965
    %4037 = vmatpush1.bf16.msra.mxu0 %v3964
    %4038 = vmatprep.subr.bf16.mxu0 %v3961
    %4039 = vmatpush1.bf16.msra.mxu0 %v3960
    %4040 = vmatprep.subr.bf16.mxu0 %v4021
    %4041 = vmatpush2.bf16.msra.mxu0 %v4020
    %4042 = vmatprep.subr.bf16.mxu0 %v4017
    %4043 = vmatpush2.bf16.msra.mxu0 %v4016
    %4044 = vmatprep.subr.bf16.mxu0 %v4013
    %4045 = vmatpush2.bf16.msra.mxu0 %v4012
    %4046 = vmatprep.subr.bf16.mxu0 %v4009
    %4047 = vmatpush2.bf16.msra.mxu0 %v4008
    %4048 = vmatprep.subr.bf16.mxu0 %v4005
    %4049 = vmatpush2.bf16.msra.mxu0 %v4004
    %4050 = vmatprep.subr.bf16.mxu0 %v4001
    %4051 = vmatpush2.bf16.msra.mxu0 %v4000
    %4052 = vmatprep.subr.bf16.mxu0 %v3997
    %4053 = vmatpush2.bf16.msra.mxu0 %v3996
    %4054 = vmatprep.subr.bf16.mxu0 %v3993
    %4055 = vmatpush2.bf16.msra.mxu0 %v3992
    %4056 = vmatprep.mubr.bf16.mxu0 %v3927
    %4057 = vmatmul.mubr.bf16.gmra.mxu0 %v3926
    %v4058 = vpop.f32.mrf.mxu0
    %v4059 = vadd.f32 0.0, %v4058
    %v4060 = vpop.f32.mrf.mxu0
    %v4061 = vadd.f32 0.0, %v4060
    %v4062 = vpop.f32.mrf.mxu0
    %v4063 = vadd.f32 0.0, %v4062
    %v4064 = vpop.f32.mrf.mxu0
    %v4065 = vadd.f32 0.0, %v4064
    %4066 = vdwg.mxu0
    %4067 = vmatprep.subr.bf16.mxu0 %v3991
    %4068 = vmatpush1.bf16.msra.mxu0 %v3990
    %4069 = vmatprep.subr.bf16.mxu0 %v3987
    %4070 = vmatpush1.bf16.msra.mxu0 %v3986
    %4071 = vmatprep.subr.bf16.mxu0 %v3983
    %4072 = vmatpush1.bf16.msra.mxu0 %v3982
    %4073 = vmatprep.subr.bf16.mxu0 %v3979
    %4074 = vmatpush1.bf16.msra.mxu0 %v3978
    %4075 = vmatprep.subr.bf16.mxu0 %v3975
    %4076 = vmatpush1.bf16.msra.mxu0 %v3974
    %4077 = vmatprep.subr.bf16.mxu0 %v3971
    %4078 = vmatpush1.bf16.msra.mxu0 %v3970
    %4079 = vmatprep.subr.bf16.mxu0 %v3967
    %4080 = vmatpush1.bf16.msra.mxu0 %v3966
    %4081 = vmatprep.subr.bf16.mxu0 %v3963
    %4082 = vmatpush1.bf16.msra.mxu0 %v3962
    %4083 = vmatprep.subr.bf16.mxu0 %v4023
    %4084 = vmatpush2.bf16.msra.mxu0 %v4022
    %4085 = vmatprep.subr.bf16.mxu0 %v4019
    %4086 = vmatpush2.bf16.msra.mxu0 %v4018
    %4087 = vmatprep.subr.bf16.mxu0 %v4015
    %4088 = vmatpush2.bf16.msra.mxu0 %v4014
    %4089 = vmatprep.subr.bf16.mxu0 %v4011
    %4090 = vmatpush2.bf16.msra.mxu0 %v4010
    %4091 = vmatprep.subr.bf16.mxu0 %v4007
    %4092 = vmatpush2.bf16.msra.mxu0 %v4006
    %4093 = vmatprep.subr.bf16.mxu0 %v4003
    %4094 = vmatpush2.bf16.msra.mxu0 %v4002
    %4095 = vmatprep.subr.bf16.mxu0 %v3999
    %4096 = vmatpush2.bf16.msra.mxu0 %v3998
    %4097 = vmatprep.subr.bf16.mxu0 %v3995
    %4098 = vmatpush2.bf16.msra.mxu0 %v3994
    %4099 = vmatprep.mubr.bf16.mxu0 %v3927
    %4100 = vmatmul.mubr.bf16.gmra.mxu0 %v3926
    %v4101 = vpop.f32.mrf.mxu0
    %v4102 = vadd.f32 0.0, %v4101
    %v4103 = vpop.f32.mrf.mxu0
    %v4104 = vadd.f32 0.0, %v4103
    %v4105 = vpop.f32.mrf.mxu0
    %v4106 = vadd.f32 0.0, %v4105
    %v4107 = vpop.f32.mrf.mxu0
    %v4108 = vadd.f32 0.0, %v4107
    %4109 = vdwg.mxu0
    %s4110 = scalar_lea.vmem [#allocation13], 5
    %v4111 = vld [vmem:[%s4110] ss:$8 sm:$0xf]
    %s4112 = scalar_lea.vmem [#allocation13], 109
    %v4113 = vld [vmem:[%s4112] ss:$8 sm:$0xf]
    %v4115 = vlaneseq
    %v4116 = vshrl.u32 %v4115, 7
    %v4117 = vsub.s32 0, %v4116
    %v4118 = vrot.slane %v4111, %v4117
    %v4119 = vlaneseq
    %v4120 = vshrl.u32 %v4119, 7
    %v4121 = vsub.s32 1, %v4120
    %v4122 = vrot.slane %v4111, %v4121
    %v4123 = vlaneseq
    %v4124 = vshrl.u32 %v4123, 7
    %v4125 = vsub.s32 2, %v4124
    %v4126 = vrot.slane %v4111, %v4125
    %v4127 = vlaneseq
    %v4128 = vshrl.u32 %v4127, 7
    %v4129 = vsub.s32 3, %v4128
    %v4130 = vrot.slane %v4111, %v4129
    %v4135 = vmul.f32 %v4059, %v4118
    %v4136 = vmul.f32 %v4061, %v4122
    %v4137 = vmul.f32 %v4102, %v4126
    %v4138 = vmul.f32 %v4104, %v4130
    %v4139 = vmul.f32 %v4063, %v4118
    %v4140 = vmul.f32 %v4065, %v4122
    %v4141 = vmul.f32 %v4106, %v4126
    %v4142 = vmul.f32 %v4108, %v4130
    %v4144 = vlaneseq
    %v4145 = vshrl.u32 %v4144, 7
    %v4146 = vsub.s32 0, %v4145
    %v4147 = vrot.slane %v4113, %v4146
    %v4148 = vlaneseq
    %v4149 = vshrl.u32 %v4148, 7
    %v4150 = vsub.s32 1, %v4149
    %v4151 = vrot.slane %v4113, %v4150
    %v4152 = vlaneseq
    %v4153 = vshrl.u32 %v4152, 7
    %v4154 = vsub.s32 2, %v4153
    %v4155 = vrot.slane %v4113, %v4154
    %v4156 = vlaneseq
    %v4157 = vshrl.u32 %v4156, 7
    %v4158 = vsub.s32 3, %v4157
    %v4159 = vrot.slane %v4113, %v4158
    %v4164 = vadd.f32 %v4135, %v4147
    %v4165 = vadd.f32 %v4136, %v4151
    %v4166 = vadd.f32 %v4137, %v4155
    %v4167 = vadd.f32 %v4138, %v4159
    %v4168 = vadd.f32 %v4139, %v4147
    %v4169 = vadd.f32 %v4140, %v4151
    %v4170 = vadd.f32 %v4141, %v4155
    %v4171 = vadd.f32 %v4142, %v4159
    %v4172 = vmax.f32 %v4164, 0.0
    %v4173 = vmax.f32 %v4165, 0.0
    %v4174 = vmax.f32 %v4166, 0.0
    %v4175 = vmax.f32 %v4167, 0.0
    %v4176 = vmax.f32 %v4168, 0.0
    %v4177 = vmax.f32 %v4169, 0.0
    %v4178 = vmax.f32 %v4170, 0.0
    %v4179 = vmax.f32 %v4171, 0.0
    %v4180 = vpack.c.bf16 %v4176, %v4172
    %v4181 = vpack.c.bf16 %v4177, %v4173
    %v4182 = vpack.c.bf16 %v4178, %v4174
    %v4183 = vpack.c.bf16 %v4179, %v4175
    %v4184 = vld [vmem:[#allocation10] sm:$0xff]
    %v4185 = vld [vmem:[#allocation10 + $0x8] sm:$0xff]
    %v4186 = vld [vmem:[#allocation10 + $0x10] sm:$0xff]
    %v4187 = vld [vmem:[#allocation10 + $0x18] sm:$0xff]
    %v4188 = vld [vmem:[#allocation10 + $0x20] sm:$0xff]
    %v4189 = vld [vmem:[#allocation10 + $0x28] sm:$0xff]
    %v4190 = vld [vmem:[#allocation10 + $0x30] sm:$0xff]
    %v4191 = vld [vmem:[#allocation10 + $0x38] sm:$0xff]
    %v4192 = vld [vmem:[#allocation10 + $0x40] sm:$0xff]
    %v4193 = vld [vmem:[#allocation10 + $0x48] sm:$0xff]
    %v4194 = vld [vmem:[#allocation10 + $0x50] sm:$0xff]
    %v4195 = vld [vmem:[#allocation10 + $0x58] sm:$0xff]
    %v4196 = vld [vmem:[#allocation10 + $0x60] sm:$0xff]
    %v4197 = vld [vmem:[#allocation10 + $0x68] sm:$0xff]
    %v4198 = vld [vmem:[#allocation10 + $0x70] sm:$0xff]
    %v4199 = vld [vmem:[#allocation10 + $0x78] sm:$0xff]
    %v4200 = vld [vmem:[#allocation10 + $0x80] sm:$0xff]
    %v4201 = vld [vmem:[#allocation10 + $0x88] sm:$0xff]
    %v4202 = vld [vmem:[#allocation10 + $0x90] sm:$0xff]
    %v4203 = vld [vmem:[#allocation10 + $0x98] sm:$0xff]
    %v4204 = vld [vmem:[#allocation10 + $0xa0] sm:$0xff]
    %v4205 = vld [vmem:[#allocation10 + $0xa8] sm:$0xff]
    %v4206 = vld [vmem:[#allocation10 + $0xb0] sm:$0xff]
    %v4207 = vld [vmem:[#allocation10 + $0xb8] sm:$0xff]
    %v4208 = vld [vmem:[#allocation10 + $0xc0] sm:$0xff]
    %v4209 = vld [vmem:[#allocation10 + $0xc8] sm:$0xff]
    %v4210 = vld [vmem:[#allocation10 + $0xd0] sm:$0xff]
    %v4211 = vld [vmem:[#allocation10 + $0xd8] sm:$0xff]
    %v4212 = vld [vmem:[#allocation10 + $0xe0] sm:$0xff]
    %v4213 = vld [vmem:[#allocation10 + $0xe8] sm:$0xff]
    %v4214 = vld [vmem:[#allocation10 + $0xf0] sm:$0xff]
    %v4215 = vld [vmem:[#allocation10 + $0xf8] sm:$0xff]
    %v4216 = vld [vmem:[#allocation10 + $0x100] sm:$0xff]
    %v4217 = vld [vmem:[#allocation10 + $0x108] sm:$0xff]
    %v4218 = vld [vmem:[#allocation10 + $0x110] sm:$0xff]
    %v4219 = vld [vmem:[#allocation10 + $0x118] sm:$0xff]
    %v4220 = vld [vmem:[#allocation10 + $0x120] sm:$0xff]
    %v4221 = vld [vmem:[#allocation10 + $0x128] sm:$0xff]
    %v4222 = vld [vmem:[#allocation10 + $0x130] sm:$0xff]
    %v4223 = vld [vmem:[#allocation10 + $0x138] sm:$0xff]
    %v4224 = vld [vmem:[#allocation10 + $0x140] sm:$0xff]
    %v4225 = vld [vmem:[#allocation10 + $0x148] sm:$0xff]
    %v4226 = vld [vmem:[#allocation10 + $0x150] sm:$0xff]
    %v4227 = vld [vmem:[#allocation10 + $0x158] sm:$0xff]
    %v4228 = vld [vmem:[#allocation10 + $0x160] sm:$0xff]
    %v4229 = vld [vmem:[#allocation10 + $0x168] sm:$0xff]
    %v4230 = vld [vmem:[#allocation10 + $0x170] sm:$0xff]
    %v4231 = vld [vmem:[#allocation10 + $0x178] sm:$0xff]
    %v4232 = vld [vmem:[#allocation10 + $0x180] sm:$0xff]
    %v4233 = vld [vmem:[#allocation10 + $0x188] sm:$0xff]
    %v4234 = vld [vmem:[#allocation10 + $0x190] sm:$0xff]
    %v4235 = vld [vmem:[#allocation10 + $0x198] sm:$0xff]
    %v4236 = vld [vmem:[#allocation10 + $0x1a0] sm:$0xff]
    %v4237 = vld [vmem:[#allocation10 + $0x1a8] sm:$0xff]
    %v4238 = vld [vmem:[#allocation10 + $0x1b0] sm:$0xff]
    %v4239 = vld [vmem:[#allocation10 + $0x1b8] sm:$0xff]
    %v4240 = vld [vmem:[#allocation10 + $0x1c0] sm:$0xff]
    %v4241 = vld [vmem:[#allocation10 + $0x1c8] sm:$0xff]
    %v4242 = vld [vmem:[#allocation10 + $0x1d0] sm:$0xff]
    %v4243 = vld [vmem:[#allocation10 + $0x1d8] sm:$0xff]
    %v4244 = vld [vmem:[#allocation10 + $0x1e0] sm:$0xff]
    %v4245 = vld [vmem:[#allocation10 + $0x1e8] sm:$0xff]
    %v4246 = vld [vmem:[#allocation10 + $0x1f0] sm:$0xff]
    %v4247 = vld [vmem:[#allocation10 + $0x1f8] sm:$0xff]
    %v4248 = vld [vmem:[#allocation10 + $0x200] sm:$0xff]
    %v4249 = vld [vmem:[#allocation10 + $0x208] sm:$0xff]
    %v4250 = vld [vmem:[#allocation10 + $0x210] sm:$0xff]
    %v4251 = vld [vmem:[#allocation10 + $0x218] sm:$0xff]
    %v4252 = vld [vmem:[#allocation10 + $0x220] sm:$0xff]
    %v4253 = vld [vmem:[#allocation10 + $0x228] sm:$0xff]
    %v4254 = vld [vmem:[#allocation10 + $0x230] sm:$0xff]
    %v4255 = vld [vmem:[#allocation10 + $0x238] sm:$0xff]
    %v4256 = vld [vmem:[#allocation10 + $0x240] sm:$0xff]
    %v4257 = vld [vmem:[#allocation10 + $0x248] sm:$0xff]
    %v4258 = vld [vmem:[#allocation10 + $0x250] sm:$0xff]
    %v4259 = vld [vmem:[#allocation10 + $0x258] sm:$0xff]
    %v4260 = vld [vmem:[#allocation10 + $0x260] sm:$0xff]
    %v4261 = vld [vmem:[#allocation10 + $0x268] sm:$0xff]
    %v4262 = vld [vmem:[#allocation10 + $0x270] sm:$0xff]
    %v4263 = vld [vmem:[#allocation10 + $0x278] sm:$0xff]
    %v4264 = vld [vmem:[#allocation10 + $0x280] sm:$0xff]
    %v4265 = vld [vmem:[#allocation10 + $0x288] sm:$0xff]
    %v4266 = vld [vmem:[#allocation10 + $0x290] sm:$0xff]
    %v4267 = vld [vmem:[#allocation10 + $0x298] sm:$0xff]
    %v4268 = vld [vmem:[#allocation10 + $0x2a0] sm:$0xff]
    %v4269 = vld [vmem:[#allocation10 + $0x2a8] sm:$0xff]
    %v4270 = vld [vmem:[#allocation10 + $0x2b0] sm:$0xff]
    %v4271 = vld [vmem:[#allocation10 + $0x2b8] sm:$0xff]
    %v4272 = vld [vmem:[#allocation10 + $0x2c0] sm:$0xff]
    %v4273 = vld [vmem:[#allocation10 + $0x2c8] sm:$0xff]
    %v4274 = vld [vmem:[#allocation10 + $0x2d0] sm:$0xff]
    %v4275 = vld [vmem:[#allocation10 + $0x2d8] sm:$0xff]
    %v4276 = vld [vmem:[#allocation10 + $0x2e0] sm:$0xff]
    %v4277 = vld [vmem:[#allocation10 + $0x2e8] sm:$0xff]
    %v4278 = vld [vmem:[#allocation10 + $0x2f0] sm:$0xff]
    %v4279 = vld [vmem:[#allocation10 + $0x2f8] sm:$0xff]
    %v4280 = vld [vmem:[#allocation10 + $0x300] sm:$0xff]
    %v4281 = vld [vmem:[#allocation10 + $0x308] sm:$0xff]
    %v4282 = vld [vmem:[#allocation10 + $0x310] sm:$0xff]
    %v4283 = vld [vmem:[#allocation10 + $0x318] sm:$0xff]
    %v4284 = vld [vmem:[#allocation10 + $0x320] sm:$0xff]
    %v4285 = vld [vmem:[#allocation10 + $0x328] sm:$0xff]
    %v4286 = vld [vmem:[#allocation10 + $0x330] sm:$0xff]
    %v4287 = vld [vmem:[#allocation10 + $0x338] sm:$0xff]
    %v4288 = vld [vmem:[#allocation10 + $0x340] sm:$0xff]
    %v4289 = vld [vmem:[#allocation10 + $0x348] sm:$0xff]
    %v4290 = vld [vmem:[#allocation10 + $0x350] sm:$0xff]
    %v4291 = vld [vmem:[#allocation10 + $0x358] sm:$0xff]
    %v4292 = vld [vmem:[#allocation10 + $0x360] sm:$0xff]
    %v4293 = vld [vmem:[#allocation10 + $0x368] sm:$0xff]
    %v4294 = vld [vmem:[#allocation10 + $0x370] sm:$0xff]
    %v4295 = vld [vmem:[#allocation10 + $0x378] sm:$0xff]
    %v4296 = vld [vmem:[#allocation10 + $0x380] sm:$0xff]
    %v4297 = vld [vmem:[#allocation10 + $0x388] sm:$0xff]
    %v4298 = vld [vmem:[#allocation10 + $0x390] sm:$0xff]
    %v4299 = vld [vmem:[#allocation10 + $0x398] sm:$0xff]
    %v4300 = vld [vmem:[#allocation10 + $0x3a0] sm:$0xff]
    %v4301 = vld [vmem:[#allocation10 + $0x3a8] sm:$0xff]
    %v4302 = vld [vmem:[#allocation10 + $0x3b0] sm:$0xff]
    %v4303 = vld [vmem:[#allocation10 + $0x3b8] sm:$0xff]
    %v4304 = vld [vmem:[#allocation10 + $0x3c0] sm:$0xff]
    %v4305 = vld [vmem:[#allocation10 + $0x3c8] sm:$0xff]
    %v4306 = vld [vmem:[#allocation10 + $0x3d0] sm:$0xff]
    %v4307 = vld [vmem:[#allocation10 + $0x3d8] sm:$0xff]
    %v4308 = vld [vmem:[#allocation10 + $0x3e0] sm:$0xff]
    %v4309 = vld [vmem:[#allocation10 + $0x3e8] sm:$0xff]
    %v4310 = vld [vmem:[#allocation10 + $0x3f0] sm:$0xff]
    %v4311 = vld [vmem:[#allocation10 + $0x3f8] sm:$0xff]
    %v4312 = vld [vmem:[#allocation10 + $0x400] sm:$0xff]
    %v4313 = vld [vmem:[#allocation10 + $0x408] sm:$0xff]
    %v4314 = vld [vmem:[#allocation10 + $0x410] sm:$0xff]
    %v4315 = vld [vmem:[#allocation10 + $0x418] sm:$0xff]
    %v4316 = vld [vmem:[#allocation10 + $0x420] sm:$0xff]
    %v4317 = vld [vmem:[#allocation10 + $0x428] sm:$0xff]
    %v4318 = vld [vmem:[#allocation10 + $0x430] sm:$0xff]
    %v4319 = vld [vmem:[#allocation10 + $0x438] sm:$0xff]
    %v4320 = vld [vmem:[#allocation10 + $0x440] sm:$0xff]
    %v4321 = vld [vmem:[#allocation10 + $0x448] sm:$0xff]
    %v4322 = vld [vmem:[#allocation10 + $0x450] sm:$0xff]
    %v4323 = vld [vmem:[#allocation10 + $0x458] sm:$0xff]
    %v4324 = vld [vmem:[#allocation10 + $0x460] sm:$0xff]
    %v4325 = vld [vmem:[#allocation10 + $0x468] sm:$0xff]
    %v4326 = vld [vmem:[#allocation10 + $0x470] sm:$0xff]
    %v4327 = vld [vmem:[#allocation10 + $0x478] sm:$0xff]
    %v4328 = vunpack.c.l.s8.bf16 %v4184
    %v4329 = vunpack.c.l.s8.bf16 %v4185
    %v4330 = vunpack.c.l.s8.bf16 %v4186
    %v4331 = vunpack.c.l.s8.bf16 %v4187
    %v4332 = vunpack.c.l.s8.bf16 %v4188
    %v4333 = vunpack.c.l.s8.bf16 %v4189
    %v4334 = vunpack.c.l.s8.bf16 %v4190
    %v4335 = vunpack.c.l.s8.bf16 %v4191
    %v4336 = vunpack.c.l.s8.bf16 %v4192
    %v4337 = vunpack.c.h.s8.bf16 %v4184
    %v4338 = vunpack.c.h.s8.bf16 %v4185
    %v4339 = vunpack.c.h.s8.bf16 %v4186
    %v4340 = vunpack.c.h.s8.bf16 %v4187
    %v4341 = vunpack.c.h.s8.bf16 %v4188
    %v4342 = vunpack.c.h.s8.bf16 %v4189
    %v4343 = vunpack.c.h.s8.bf16 %v4190
    %v4344 = vunpack.c.h.s8.bf16 %v4191
    %v4345 = vunpack.c.h.s8.bf16 %v4192
    %v4346 = vunpack.c.l.s8.bf16 %v4193
    %v4347 = vunpack.c.l.s8.bf16 %v4194
    %v4348 = vunpack.c.l.s8.bf16 %v4195
    %v4349 = vunpack.c.l.s8.bf16 %v4196
    %v4350 = vunpack.c.l.s8.bf16 %v4197
    %v4351 = vunpack.c.l.s8.bf16 %v4198
    %v4352 = vunpack.c.l.s8.bf16 %v4199
    %v4353 = vunpack.c.l.s8.bf16 %v4200
    %v4354 = vunpack.c.l.s8.bf16 %v4201
    %v4355 = vunpack.c.h.s8.bf16 %v4193
    %v4356 = vunpack.c.h.s8.bf16 %v4194
    %v4357 = vunpack.c.h.s8.bf16 %v4195
    %v4358 = vunpack.c.h.s8.bf16 %v4196
    %v4359 = vunpack.c.h.s8.bf16 %v4197
    %v4360 = vunpack.c.h.s8.bf16 %v4198
    %v4361 = vunpack.c.h.s8.bf16 %v4199
    %v4362 = vunpack.c.h.s8.bf16 %v4200
    %v4363 = vunpack.c.h.s8.bf16 %v4201
    %v4364 = vunpack.c.l.s8.bf16 %v4202
    %v4365 = vunpack.c.l.s8.bf16 %v4203
    %v4366 = vunpack.c.l.s8.bf16 %v4204
    %v4367 = vunpack.c.l.s8.bf16 %v4205
    %v4368 = vunpack.c.l.s8.bf16 %v4206
    %v4369 = vunpack.c.l.s8.bf16 %v4207
    %v4370 = vunpack.c.l.s8.bf16 %v4208
    %v4371 = vunpack.c.l.s8.bf16 %v4209
    %v4372 = vunpack.c.l.s8.bf16 %v4210
    %v4373 = vunpack.c.h.s8.bf16 %v4202
    %v4374 = vunpack.c.h.s8.bf16 %v4203
    %v4375 = vunpack.c.h.s8.bf16 %v4204
    %v4376 = vunpack.c.h.s8.bf16 %v4205
    %v4377 = vunpack.c.h.s8.bf16 %v4206
    %v4378 = vunpack.c.h.s8.bf16 %v4207
    %v4379 = vunpack.c.h.s8.bf16 %v4208
    %v4380 = vunpack.c.h.s8.bf16 %v4209
    %v4381 = vunpack.c.h.s8.bf16 %v4210
    %v4382 = vunpack.c.l.s8.bf16 %v4211
    %v4383 = vunpack.c.l.s8.bf16 %v4212
    %v4384 = vunpack.c.l.s8.bf16 %v4213
    %v4385 = vunpack.c.l.s8.bf16 %v4214
    %v4386 = vunpack.c.l.s8.bf16 %v4215
    %v4387 = vunpack.c.l.s8.bf16 %v4216
    %v4388 = vunpack.c.l.s8.bf16 %v4217
    %v4389 = vunpack.c.l.s8.bf16 %v4218
    %v4390 = vunpack.c.l.s8.bf16 %v4219
    %v4391 = vunpack.c.h.s8.bf16 %v4211
    %v4392 = vunpack.c.h.s8.bf16 %v4212
    %v4393 = vunpack.c.h.s8.bf16 %v4213
    %v4394 = vunpack.c.h.s8.bf16 %v4214
    %v4395 = vunpack.c.h.s8.bf16 %v4215
    %v4396 = vunpack.c.h.s8.bf16 %v4216
    %v4397 = vunpack.c.h.s8.bf16 %v4217
    %v4398 = vunpack.c.h.s8.bf16 %v4218
    %v4399 = vunpack.c.h.s8.bf16 %v4219
    %v4400 = vunpack.c.l.s8.bf16 %v4220
    %v4401 = vunpack.c.l.s8.bf16 %v4221
    %v4402 = vunpack.c.l.s8.bf16 %v4222
    %v4403 = vunpack.c.l.s8.bf16 %v4223
    %v4404 = vunpack.c.l.s8.bf16 %v4224
    %v4405 = vunpack.c.l.s8.bf16 %v4225
    %v4406 = vunpack.c.l.s8.bf16 %v4226
    %v4407 = vunpack.c.l.s8.bf16 %v4227
    %v4408 = vunpack.c.l.s8.bf16 %v4228
    %v4409 = vunpack.c.h.s8.bf16 %v4220
    %v4410 = vunpack.c.h.s8.bf16 %v4221
    %v4411 = vunpack.c.h.s8.bf16 %v4222
    %v4412 = vunpack.c.h.s8.bf16 %v4223
    %v4413 = vunpack.c.h.s8.bf16 %v4224
    %v4414 = vunpack.c.h.s8.bf16 %v4225
    %v4415 = vunpack.c.h.s8.bf16 %v4226
    %v4416 = vunpack.c.h.s8.bf16 %v4227
    %v4417 = vunpack.c.h.s8.bf16 %v4228
    %v4418 = vunpack.c.l.s8.bf16 %v4229
    %v4419 = vunpack.c.l.s8.bf16 %v4230
    %v4420 = vunpack.c.l.s8.bf16 %v4231
    %v4421 = vunpack.c.l.s8.bf16 %v4232
    %v4422 = vunpack.c.l.s8.bf16 %v4233
    %v4423 = vunpack.c.l.s8.bf16 %v4234
    %v4424 = vunpack.c.l.s8.bf16 %v4235
    %v4425 = vunpack.c.l.s8.bf16 %v4236
    %v4426 = vunpack.c.l.s8.bf16 %v4237
    %v4427 = vunpack.c.h.s8.bf16 %v4229
    %v4428 = vunpack.c.h.s8.bf16 %v4230
    %v4429 = vunpack.c.h.s8.bf16 %v4231
    %v4430 = vunpack.c.h.s8.bf16 %v4232
    %v4431 = vunpack.c.h.s8.bf16 %v4233
    %v4432 = vunpack.c.h.s8.bf16 %v4234
    %v4433 = vunpack.c.h.s8.bf16 %v4235
    %v4434 = vunpack.c.h.s8.bf16 %v4236
    %v4435 = vunpack.c.h.s8.bf16 %v4237
    %v4436 = vunpack.c.l.s8.bf16 %v4238
    %v4437 = vunpack.c.l.s8.bf16 %v4239
    %v4438 = vunpack.c.l.s8.bf16 %v4240
    %v4439 = vunpack.c.l.s8.bf16 %v4241
    %v4440 = vunpack.c.l.s8.bf16 %v4242
    %v4441 = vunpack.c.l.s8.bf16 %v4243
    %v4442 = vunpack.c.l.s8.bf16 %v4244
    %v4443 = vunpack.c.l.s8.bf16 %v4245
    %v4444 = vunpack.c.l.s8.bf16 %v4246
    %v4445 = vunpack.c.h.s8.bf16 %v4238
    %v4446 = vunpack.c.h.s8.bf16 %v4239
    %v4447 = vunpack.c.h.s8.bf16 %v4240
    %v4448 = vunpack.c.h.s8.bf16 %v4241
    %v4449 = vunpack.c.h.s8.bf16 %v4242
    %v4450 = vunpack.c.h.s8.bf16 %v4243
    %v4451 = vunpack.c.h.s8.bf16 %v4244
    %v4452 = vunpack.c.h.s8.bf16 %v4245
    %v4453 = vunpack.c.h.s8.bf16 %v4246
    %v4454 = vunpack.c.l.s8.bf16 %v4247
    %v4455 = vunpack.c.l.s8.bf16 %v4248
    %v4456 = vunpack.c.l.s8.bf16 %v4249
    %v4457 = vunpack.c.l.s8.bf16 %v4250
    %v4458 = vunpack.c.l.s8.bf16 %v4251
    %v4459 = vunpack.c.l.s8.bf16 %v4252
    %v4460 = vunpack.c.l.s8.bf16 %v4253
    %v4461 = vunpack.c.l.s8.bf16 %v4254
    %v4462 = vunpack.c.l.s8.bf16 %v4255
    %v4463 = vunpack.c.h.s8.bf16 %v4247
    %v4464 = vunpack.c.h.s8.bf16 %v4248
    %v4465 = vunpack.c.h.s8.bf16 %v4249
    %v4466 = vunpack.c.h.s8.bf16 %v4250
    %v4467 = vunpack.c.h.s8.bf16 %v4251
    %v4468 = vunpack.c.h.s8.bf16 %v4252
    %v4469 = vunpack.c.h.s8.bf16 %v4253
    %v4470 = vunpack.c.h.s8.bf16 %v4254
    %v4471 = vunpack.c.h.s8.bf16 %v4255
    %v4472 = vunpack.c.l.s8.bf16 %v4256
    %v4473 = vunpack.c.l.s8.bf16 %v4257
    %v4474 = vunpack.c.l.s8.bf16 %v4258
    %v4475 = vunpack.c.l.s8.bf16 %v4259
    %v4476 = vunpack.c.l.s8.bf16 %v4260
    %v4477 = vunpack.c.l.s8.bf16 %v4261
    %v4478 = vunpack.c.l.s8.bf16 %v4262
    %v4479 = vunpack.c.l.s8.bf16 %v4263
    %v4480 = vunpack.c.l.s8.bf16 %v4264
    %v4481 = vunpack.c.h.s8.bf16 %v4256
    %v4482 = vunpack.c.h.s8.bf16 %v4257
    %v4483 = vunpack.c.h.s8.bf16 %v4258
    %v4484 = vunpack.c.h.s8.bf16 %v4259
    %v4485 = vunpack.c.h.s8.bf16 %v4260
    %v4486 = vunpack.c.h.s8.bf16 %v4261
    %v4487 = vunpack.c.h.s8.bf16 %v4262
    %v4488 = vunpack.c.h.s8.bf16 %v4263
    %v4489 = vunpack.c.h.s8.bf16 %v4264
    %v4490 = vunpack.c.l.s8.bf16 %v4265
    %v4491 = vunpack.c.l.s8.bf16 %v4266
    %v4492 = vunpack.c.l.s8.bf16 %v4267
    %v4493 = vunpack.c.l.s8.bf16 %v4268
    %v4494 = vunpack.c.l.s8.bf16 %v4269
    %v4495 = vunpack.c.l.s8.bf16 %v4270
    %v4496 = vunpack.c.l.s8.bf16 %v4271
    %v4497 = vunpack.c.l.s8.bf16 %v4272
    %v4498 = vunpack.c.l.s8.bf16 %v4273
    %v4499 = vunpack.c.h.s8.bf16 %v4265
    %v4500 = vunpack.c.h.s8.bf16 %v4266
    %v4501 = vunpack.c.h.s8.bf16 %v4267
    %v4502 = vunpack.c.h.s8.bf16 %v4268
    %v4503 = vunpack.c.h.s8.bf16 %v4269
    %v4504 = vunpack.c.h.s8.bf16 %v4270
    %v4505 = vunpack.c.h.s8.bf16 %v4271
    %v4506 = vunpack.c.h.s8.bf16 %v4272
    %v4507 = vunpack.c.h.s8.bf16 %v4273
    %v4508 = vunpack.c.l.s8.bf16 %v4274
    %v4509 = vunpack.c.l.s8.bf16 %v4275
    %v4510 = vunpack.c.l.s8.bf16 %v4276
    %v4511 = vunpack.c.l.s8.bf16 %v4277
    %v4512 = vunpack.c.l.s8.bf16 %v4278
    %v4513 = vunpack.c.l.s8.bf16 %v4279
    %v4514 = vunpack.c.l.s8.bf16 %v4280
    %v4515 = vunpack.c.l.s8.bf16 %v4281
    %v4516 = vunpack.c.l.s8.bf16 %v4282
    %v4517 = vunpack.c.h.s8.bf16 %v4274
    %v4518 = vunpack.c.h.s8.bf16 %v4275
    %v4519 = vunpack.c.h.s8.bf16 %v4276
    %v4520 = vunpack.c.h.s8.bf16 %v4277
    %v4521 = vunpack.c.h.s8.bf16 %v4278
    %v4522 = vunpack.c.h.s8.bf16 %v4279
    %v4523 = vunpack.c.h.s8.bf16 %v4280
    %v4524 = vunpack.c.h.s8.bf16 %v4281
    %v4525 = vunpack.c.h.s8.bf16 %v4282
    %v4526 = vunpack.c.l.s8.bf16 %v4283
    %v4527 = vunpack.c.l.s8.bf16 %v4284
    %v4528 = vunpack.c.l.s8.bf16 %v4285
    %v4529 = vunpack.c.l.s8.bf16 %v4286
    %v4530 = vunpack.c.l.s8.bf16 %v4287
    %v4531 = vunpack.c.l.s8.bf16 %v4288
    %v4532 = vunpack.c.l.s8.bf16 %v4289
    %v4533 = vunpack.c.l.s8.bf16 %v4290
    %v4534 = vunpack.c.l.s8.bf16 %v4291
    %v4535 = vunpack.c.h.s8.bf16 %v4283
    %v4536 = vunpack.c.h.s8.bf16 %v4284
    %v4537 = vunpack.c.h.s8.bf16 %v4285
    %v4538 = vunpack.c.h.s8.bf16 %v4286
    %v4539 = vunpack.c.h.s8.bf16 %v4287
    %v4540 = vunpack.c.h.s8.bf16 %v4288
    %v4541 = vunpack.c.h.s8.bf16 %v4289
    %v4542 = vunpack.c.h.s8.bf16 %v4290
    %v4543 = vunpack.c.h.s8.bf16 %v4291
    %v4544 = vunpack.c.l.s8.bf16 %v4292
    %v4545 = vunpack.c.l.s8.bf16 %v4293
    %v4546 = vunpack.c.l.s8.bf16 %v4294
    %v4547 = vunpack.c.l.s8.bf16 %v4295
    %v4548 = vunpack.c.l.s8.bf16 %v4296
    %v4549 = vunpack.c.l.s8.bf16 %v4297
    %v4550 = vunpack.c.l.s8.bf16 %v4298
    %v4551 = vunpack.c.l.s8.bf16 %v4299
    %v4552 = vunpack.c.l.s8.bf16 %v4300
    %v4553 = vunpack.c.h.s8.bf16 %v4292
    %v4554 = vunpack.c.h.s8.bf16 %v4293
    %v4555 = vunpack.c.h.s8.bf16 %v4294
    %v4556 = vunpack.c.h.s8.bf16 %v4295
    %v4557 = vunpack.c.h.s8.bf16 %v4296
    %v4558 = vunpack.c.h.s8.bf16 %v4297
    %v4559 = vunpack.c.h.s8.bf16 %v4298
    %v4560 = vunpack.c.h.s8.bf16 %v4299
    %v4561 = vunpack.c.h.s8.bf16 %v4300
    %v4562 = vunpack.c.l.s8.bf16 %v4301
    %v4563 = vunpack.c.l.s8.bf16 %v4302
    %v4564 = vunpack.c.l.s8.bf16 %v4303
    %v4565 = vunpack.c.l.s8.bf16 %v4304
    %v4566 = vunpack.c.l.s8.bf16 %v4305
    %v4567 = vunpack.c.l.s8.bf16 %v4306
    %v4568 = vunpack.c.l.s8.bf16 %v4307
    %v4569 = vunpack.c.l.s8.bf16 %v4308
    %v4570 = vunpack.c.l.s8.bf16 %v4309
    %v4571 = vunpack.c.h.s8.bf16 %v4301
    %v4572 = vunpack.c.h.s8.bf16 %v4302
    %v4573 = vunpack.c.h.s8.bf16 %v4303
    %v4574 = vunpack.c.h.s8.bf16 %v4304
    %v4575 = vunpack.c.h.s8.bf16 %v4305
    %v4576 = vunpack.c.h.s8.bf16 %v4306
    %v4577 = vunpack.c.h.s8.bf16 %v4307
    %v4578 = vunpack.c.h.s8.bf16 %v4308
    %v4579 = vunpack.c.h.s8.bf16 %v4309
    %v4580 = vunpack.c.l.s8.bf16 %v4310
    %v4581 = vunpack.c.l.s8.bf16 %v4311
    %v4582 = vunpack.c.l.s8.bf16 %v4312
    %v4583 = vunpack.c.l.s8.bf16 %v4313
    %v4584 = vunpack.c.l.s8.bf16 %v4314
    %v4585 = vunpack.c.l.s8.bf16 %v4315
    %v4586 = vunpack.c.l.s8.bf16 %v4316
    %v4587 = vunpack.c.l.s8.bf16 %v4317
    %v4588 = vunpack.c.l.s8.bf16 %v4318
    %v4589 = vunpack.c.h.s8.bf16 %v4310
    %v4590 = vunpack.c.h.s8.bf16 %v4311
    %v4591 = vunpack.c.h.s8.bf16 %v4312
    %v4592 = vunpack.c.h.s8.bf16 %v4313
    %v4593 = vunpack.c.h.s8.bf16 %v4314
    %v4594 = vunpack.c.h.s8.bf16 %v4315
    %v4595 = vunpack.c.h.s8.bf16 %v4316
    %v4596 = vunpack.c.h.s8.bf16 %v4317
    %v4597 = vunpack.c.h.s8.bf16 %v4318
    %v4598 = vunpack.c.l.s8.bf16 %v4319
    %v4599 = vunpack.c.l.s8.bf16 %v4320
    %v4600 = vunpack.c.l.s8.bf16 %v4321
    %v4601 = vunpack.c.l.s8.bf16 %v4322
    %v4602 = vunpack.c.l.s8.bf16 %v4323
    %v4603 = vunpack.c.l.s8.bf16 %v4324
    %v4604 = vunpack.c.l.s8.bf16 %v4325
    %v4605 = vunpack.c.l.s8.bf16 %v4326
    %v4606 = vunpack.c.l.s8.bf16 %v4327
    %v4607 = vunpack.c.h.s8.bf16 %v4319
    %v4608 = vunpack.c.h.s8.bf16 %v4320
    %v4609 = vunpack.c.h.s8.bf16 %v4321
    %v4610 = vunpack.c.h.s8.bf16 %v4322
    %v4611 = vunpack.c.h.s8.bf16 %v4323
    %v4612 = vunpack.c.h.s8.bf16 %v4324
    %v4613 = vunpack.c.h.s8.bf16 %v4325
    %v4614 = vunpack.c.h.s8.bf16 %v4326
    %v4615 = vunpack.c.h.s8.bf16 %v4327
    %4616 = vmatprep.subr.bf16.mxu0 %v4392
    %4617 = vmatpush1.bf16.msra.mxu0 %v4391
    %4618 = vmatprep.subr.bf16.mxu0 %v4383
    %4619 = vmatpush1.bf16.msra.mxu0 %v4382
    %4620 = vmatprep.subr.bf16.mxu0 %v4374
    %4621 = vmatpush1.bf16.msra.mxu0 %v4373
    %4622 = vmatprep.subr.bf16.mxu0 %v4365
    %4623 = vmatpush1.bf16.msra.mxu0 %v4364
    %4624 = vmatprep.subr.bf16.mxu0 %v4356
    %4625 = vmatpush1.bf16.msra.mxu0 %v4355
    %4626 = vmatprep.subr.bf16.mxu0 %v4347
    %4627 = vmatpush1.bf16.msra.mxu0 %v4346
    %4628 = vmatprep.subr.bf16.mxu0 %v4338
    %4629 = vmatpush1.bf16.msra.mxu0 %v4337
    %4630 = vmatprep.subr.bf16.mxu0 %v4329
    %4631 = vmatpush1.bf16.msra.mxu0 %v4328
    %4632 = vmatprep.subr.bf16.mxu0 %v4464
    %4633 = vmatpush2.bf16.msra.mxu0 %v4463
    %4634 = vmatprep.subr.bf16.mxu0 %v4455
    %4635 = vmatpush2.bf16.msra.mxu0 %v4454
    %4636 = vmatprep.subr.bf16.mxu0 %v4446
    %4637 = vmatpush2.bf16.msra.mxu0 %v4445
    %4638 = vmatprep.subr.bf16.mxu0 %v4437
    %4639 = vmatpush2.bf16.msra.mxu0 %v4436
    %4640 = vmatprep.subr.bf16.mxu0 %v4428
    %4641 = vmatpush2.bf16.msra.mxu0 %v4427
    %4642 = vmatprep.subr.bf16.mxu0 %v4419
    %4643 = vmatpush2.bf16.msra.mxu0 %v4418
    %4644 = vmatprep.subr.bf16.mxu0 %v4410
    %4645 = vmatpush2.bf16.msra.mxu0 %v4409
    %4646 = vmatprep.subr.bf16.mxu0 %v4401
    %4647 = vmatpush2.bf16.msra.mxu0 %v4400
    %4648 = vmatprep.mubr.bf16.mxu0 %v4181
    %4649 = vmatmul.mubr.bf16.gmra.mxu0 %v4180
    %v4650 = vpop.f32.mrf.mxu0
    %v4651 = vadd.f32 0.0, %v4650
    %v4652 = vpop.f32.mrf.mxu0
    %v4653 = vadd.f32 0.0, %v4652
    %v4654 = vpop.f32.mrf.mxu0
    %v4655 = vadd.f32 0.0, %v4654
    %v4656 = vpop.f32.mrf.mxu0
    %v4657 = vadd.f32 0.0, %v4656
    %4658 = vdwg.mxu0
    %4659 = vmatprep.subr.bf16.mxu0 %v4536
    %4660 = vmatpush1.bf16.msra.mxu0 %v4535
    %4661 = vmatprep.subr.bf16.mxu0 %v4527
    %4662 = vmatpush1.bf16.msra.mxu0 %v4526
    %4663 = vmatprep.subr.bf16.mxu0 %v4518
    %4664 = vmatpush1.bf16.msra.mxu0 %v4517
    %4665 = vmatprep.subr.bf16.mxu0 %v4509
    %4666 = vmatpush1.bf16.msra.mxu0 %v4508
    %4667 = vmatprep.subr.bf16.mxu0 %v4500
    %4668 = vmatpush1.bf16.msra.mxu0 %v4499
    %4669 = vmatprep.subr.bf16.mxu0 %v4491
    %4670 = vmatpush1.bf16.msra.mxu0 %v4490
    %4671 = vmatprep.subr.bf16.mxu0 %v4482
    %4672 = vmatpush1.bf16.msra.mxu0 %v4481
    %4673 = vmatprep.subr.bf16.mxu0 %v4473
    %4674 = vmatpush1.bf16.msra.mxu0 %v4472
    %4675 = vmatprep.subr.bf16.mxu0 %v4608
    %4676 = vmatpush2.bf16.msra.mxu0 %v4607
    %4677 = vmatprep.subr.bf16.mxu0 %v4599
    %4678 = vmatpush2.bf16.msra.mxu0 %v4598
    %4679 = vmatprep.subr.bf16.mxu0 %v4590
    %4680 = vmatpush2.bf16.msra.mxu0 %v4589
    %4681 = vmatprep.subr.bf16.mxu0 %v4581
    %4682 = vmatpush2.bf16.msra.mxu0 %v4580
    %4683 = vmatprep.subr.bf16.mxu0 %v4572
    %4684 = vmatpush2.bf16.msra.mxu0 %v4571
    %4685 = vmatprep.subr.bf16.mxu0 %v4563
    %4686 = vmatpush2.bf16.msra.mxu0 %v4562
    %4687 = vmatprep.subr.bf16.mxu0 %v4554
    %4688 = vmatpush2.bf16.msra.mxu0 %v4553
    %4689 = vmatprep.subr.bf16.mxu0 %v4545
    %4690 = vmatpush2.bf16.msra.mxu0 %v4544
    %4691 = vmatprep.mubr.bf16.mxu0 %v4183
    %4692 = vmatmul.mubr.bf16.gmra.mxu0 %v4182
    %v4693 = vpop.f32.mrf.mxu0
    %v4694 = vadd.f32 %v4651, %v4693
    %v4695 = vpop.f32.mrf.mxu0
    %v4696 = vadd.f32 %v4653, %v4695
    %v4697 = vpop.f32.mrf.mxu0
    %v4698 = vadd.f32 %v4655, %v4697
    %v4699 = vpop.f32.mrf.mxu0
    %v4700 = vadd.f32 %v4657, %v4699
    %4701 = vdwg.mxu0
    %4702 = vmatprep.subr.bf16.mxu0 %v4394
    %4703 = vmatpush1.bf16.msra.mxu0 %v4393
    %4704 = vmatprep.subr.bf16.mxu0 %v4385
    %4705 = vmatpush1.bf16.msra.mxu0 %v4384
    %4706 = vmatprep.subr.bf16.mxu0 %v4376
    %4707 = vmatpush1.bf16.msra.mxu0 %v4375
    %4708 = vmatprep.subr.bf16.mxu0 %v4367
    %4709 = vmatpush1.bf16.msra.mxu0 %v4366
    %4710 = vmatprep.subr.bf16.mxu0 %v4358
    %4711 = vmatpush1.bf16.msra.mxu0 %v4357
    %4712 = vmatprep.subr.bf16.mxu0 %v4349
    %4713 = vmatpush1.bf16.msra.mxu0 %v4348
    %4714 = vmatprep.subr.bf16.mxu0 %v4340
    %4715 = vmatpush1.bf16.msra.mxu0 %v4339
    %4716 = vmatprep.subr.bf16.mxu0 %v4331
    %4717 = vmatpush1.bf16.msra.mxu0 %v4330
    %4718 = vmatprep.subr.bf16.mxu0 %v4466
    %4719 = vmatpush2.bf16.msra.mxu0 %v4465
    %4720 = vmatprep.subr.bf16.mxu0 %v4457
    %4721 = vmatpush2.bf16.msra.mxu0 %v4456
    %4722 = vmatprep.subr.bf16.mxu0 %v4448
    %4723 = vmatpush2.bf16.msra.mxu0 %v4447
    %4724 = vmatprep.subr.bf16.mxu0 %v4439
    %4725 = vmatpush2.bf16.msra.mxu0 %v4438
    %4726 = vmatprep.subr.bf16.mxu0 %v4430
    %4727 = vmatpush2.bf16.msra.mxu0 %v4429
    %4728 = vmatprep.subr.bf16.mxu0 %v4421
    %4729 = vmatpush2.bf16.msra.mxu0 %v4420
    %4730 = vmatprep.subr.bf16.mxu0 %v4412
    %4731 = vmatpush2.bf16.msra.mxu0 %v4411
    %4732 = vmatprep.subr.bf16.mxu0 %v4403
    %4733 = vmatpush2.bf16.msra.mxu0 %v4402
    %4734 = vmatprep.mubr.bf16.mxu0 %v4181
    %4735 = vmatmul.mubr.bf16.gmra.mxu0 %v4180
    %v4736 = vpop.f32.mrf.mxu0
    %v4737 = vadd.f32 0.0, %v4736
    %v4738 = vpop.f32.mrf.mxu0
    %v4739 = vadd.f32 0.0, %v4738
    %v4740 = vpop.f32.mrf.mxu0
    %v4741 = vadd.f32 0.0, %v4740
    %v4742 = vpop.f32.mrf.mxu0
    %v4743 = vadd.f32 0.0, %v4742
    %4744 = vdwg.mxu0
    %4745 = vmatprep.subr.bf16.mxu0 %v4538
    %4746 = vmatpush1.bf16.msra.mxu0 %v4537
    %4747 = vmatprep.subr.bf16.mxu0 %v4529
    %4748 = vmatpush1.bf16.msra.mxu0 %v4528
    %4749 = vmatprep.subr.bf16.mxu0 %v4520
    %4750 = vmatpush1.bf16.msra.mxu0 %v4519
    %4751 = vmatprep.subr.bf16.mxu0 %v4511
    %4752 = vmatpush1.bf16.msra.mxu0 %v4510
    %4753 = vmatprep.subr.bf16.mxu0 %v4502
    %4754 = vmatpush1.bf16.msra.mxu0 %v4501
    %4755 = vmatprep.subr.bf16.mxu0 %v4493
    %4756 = vmatpush1.bf16.msra.mxu0 %v4492
    %4757 = vmatprep.subr.bf16.mxu0 %v4484
    %4758 = vmatpush1.bf16.msra.mxu0 %v4483
    %4759 = vmatprep.subr.bf16.mxu0 %v4475
    %4760 = vmatpush1.bf16.msra.mxu0 %v4474
    %4761 = vmatprep.subr.bf16.mxu0 %v4610
    %4762 = vmatpush2.bf16.msra.mxu0 %v4609
    %4763 = vmatprep.subr.bf16.mxu0 %v4601
    %4764 = vmatpush2.bf16.msra.mxu0 %v4600
    %4765 = vmatprep.subr.bf16.mxu0 %v4592
    %4766 = vmatpush2.bf16.msra.mxu0 %v4591
    %4767 = vmatprep.subr.bf16.mxu0 %v4583
    %4768 = vmatpush2.bf16.msra.mxu0 %v4582
    %4769 = vmatprep.subr.bf16.mxu0 %v4574
    %4770 = vmatpush2.bf16.msra.mxu0 %v4573
    %4771 = vmatprep.subr.bf16.mxu0 %v4565
    %4772 = vmatpush2.bf16.msra.mxu0 %v4564
    %4773 = vmatprep.subr.bf16.mxu0 %v4556
    %4774 = vmatpush2.bf16.msra.mxu0 %v4555
    %4775 = vmatprep.subr.bf16.mxu0 %v4547
    %4776 = vmatpush2.bf16.msra.mxu0 %v4546
    %4777 = vmatprep.mubr.bf16.mxu0 %v4183
    %4778 = vmatmul.mubr.bf16.gmra.mxu0 %v4182
    %v4779 = vpop.f32.mrf.mxu0
    %v4780 = vadd.f32 %v4737, %v4779
    %v4781 = vpop.f32.mrf.mxu0
    %v4782 = vadd.f32 %v4739, %v4781
    %v4783 = vpop.f32.mrf.mxu0
    %v4784 = vadd.f32 %v4741, %v4783
    %v4785 = vpop.f32.mrf.mxu0
    %v4786 = vadd.f32 %v4743, %v4785
    %4787 = vdwg.mxu0
    %4788 = vmatprep.subr.bf16.mxu0 %v4396
    %4789 = vmatpush1.bf16.msra.mxu0 %v4395
    %4790 = vmatprep.subr.bf16.mxu0 %v4387
    %4791 = vmatpush1.bf16.msra.mxu0 %v4386
    %4792 = vmatprep.subr.bf16.mxu0 %v4378
    %4793 = vmatpush1.bf16.msra.mxu0 %v4377
    %4794 = vmatprep.subr.bf16.mxu0 %v4369
    %4795 = vmatpush1.bf16.msra.mxu0 %v4368
    %4796 = vmatprep.subr.bf16.mxu0 %v4360
    %4797 = vmatpush1.bf16.msra.mxu0 %v4359
    %4798 = vmatprep.subr.bf16.mxu0 %v4351
    %4799 = vmatpush1.bf16.msra.mxu0 %v4350
    %4800 = vmatprep.subr.bf16.mxu0 %v4342
    %4801 = vmatpush1.bf16.msra.mxu0 %v4341
    %4802 = vmatprep.subr.bf16.mxu0 %v4333
    %4803 = vmatpush1.bf16.msra.mxu0 %v4332
    %4804 = vmatprep.subr.bf16.mxu0 %v4468
    %4805 = vmatpush2.bf16.msra.mxu0 %v4467
    %4806 = vmatprep.subr.bf16.mxu0 %v4459
    %4807 = vmatpush2.bf16.msra.mxu0 %v4458
    %4808 = vmatprep.subr.bf16.mxu0 %v4450
    %4809 = vmatpush2.bf16.msra.mxu0 %v4449
    %4810 = vmatprep.subr.bf16.mxu0 %v4441
    %4811 = vmatpush2.bf16.msra.mxu0 %v4440
    %4812 = vmatprep.subr.bf16.mxu0 %v4432
    %4813 = vmatpush2.bf16.msra.mxu0 %v4431
    %4814 = vmatprep.subr.bf16.mxu0 %v4423
    %4815 = vmatpush2.bf16.msra.mxu0 %v4422
    %4816 = vmatprep.subr.bf16.mxu0 %v4414
    %4817 = vmatpush2.bf16.msra.mxu0 %v4413
    %4818 = vmatprep.subr.bf16.mxu0 %v4405
    %4819 = vmatpush2.bf16.msra.mxu0 %v4404
    %4820 = vmatprep.mubr.bf16.mxu0 %v4181
    %4821 = vmatmul.mubr.bf16.gmra.mxu0 %v4180
    %v4822 = vpop.f32.mrf.mxu0
    %v4823 = vadd.f32 0.0, %v4822
    %v4824 = vpop.f32.mrf.mxu0
    %v4825 = vadd.f32 0.0, %v4824
    %v4826 = vpop.f32.mrf.mxu0
    %v4827 = vadd.f32 0.0, %v4826
    %v4828 = vpop.f32.mrf.mxu0
    %v4829 = vadd.f32 0.0, %v4828
    %4830 = vdwg.mxu0
    %4831 = vmatprep.subr.bf16.mxu0 %v4540
    %4832 = vmatpush1.bf16.msra.mxu0 %v4539
    %4833 = vmatprep.subr.bf16.mxu0 %v4531
    %4834 = vmatpush1.bf16.msra.mxu0 %v4530
    %4835 = vmatprep.subr.bf16.mxu0 %v4522
    %4836 = vmatpush1.bf16.msra.mxu0 %v4521
    %4837 = vmatprep.subr.bf16.mxu0 %v4513
    %4838 = vmatpush1.bf16.msra.mxu0 %v4512
    %4839 = vmatprep.subr.bf16.mxu0 %v4504
    %4840 = vmatpush1.bf16.msra.mxu0 %v4503
    %4841 = vmatprep.subr.bf16.mxu0 %v4495
    %4842 = vmatpush1.bf16.msra.mxu0 %v4494
    %4843 = vmatprep.subr.bf16.mxu0 %v4486
    %4844 = vmatpush1.bf16.msra.mxu0 %v4485
    %4845 = vmatprep.subr.bf16.mxu0 %v4477
    %4846 = vmatpush1.bf16.msra.mxu0 %v4476
    %4847 = vmatprep.subr.bf16.mxu0 %v4612
    %4848 = vmatpush2.bf16.msra.mxu0 %v4611
    %4849 = vmatprep.subr.bf16.mxu0 %v4603
    %4850 = vmatpush2.bf16.msra.mxu0 %v4602
    %4851 = vmatprep.subr.bf16.mxu0 %v4594
    %4852 = vmatpush2.bf16.msra.mxu0 %v4593
    %4853 = vmatprep.subr.bf16.mxu0 %v4585
    %4854 = vmatpush2.bf16.msra.mxu0 %v4584
    %4855 = vmatprep.subr.bf16.mxu0 %v4576
    %4856 = vmatpush2.bf16.msra.mxu0 %v4575
    %4857 = vmatprep.subr.bf16.mxu0 %v4567
    %4858 = vmatpush2.bf16.msra.mxu0 %v4566
    %4859 = vmatprep.subr.bf16.mxu0 %v4558
    %4860 = vmatpush2.bf16.msra.mxu0 %v4557
    %4861 = vmatprep.subr.bf16.mxu0 %v4549
    %4862 = vmatpush2.bf16.msra.mxu0 %v4548
    %4863 = vmatprep.mubr.bf16.mxu0 %v4183
    %4864 = vmatmul.mubr.bf16.gmra.mxu0 %v4182
    %v4865 = vpop.f32.mrf.mxu0
    %v4866 = vadd.f32 %v4823, %v4865
    %v4867 = vpop.f32.mrf.mxu0
    %v4868 = vadd.f32 %v4825, %v4867
    %v4869 = vpop.f32.mrf.mxu0
    %v4870 = vadd.f32 %v4827, %v4869
    %v4871 = vpop.f32.mrf.mxu0
    %v4872 = vadd.f32 %v4829, %v4871
    %4873 = vdwg.mxu0
    %4874 = vmatprep.subr.bf16.mxu0 %v4398
    %4875 = vmatpush1.bf16.msra.mxu0 %v4397
    %4876 = vmatprep.subr.bf16.mxu0 %v4389
    %4877 = vmatpush1.bf16.msra.mxu0 %v4388
    %4878 = vmatprep.subr.bf16.mxu0 %v4380
    %4879 = vmatpush1.bf16.msra.mxu0 %v4379
    %4880 = vmatprep.subr.bf16.mxu0 %v4371
    %4881 = vmatpush1.bf16.msra.mxu0 %v4370
    %4882 = vmatprep.subr.bf16.mxu0 %v4362
    %4883 = vmatpush1.bf16.msra.mxu0 %v4361
    %4884 = vmatprep.subr.bf16.mxu0 %v4353
    %4885 = vmatpush1.bf16.msra.mxu0 %v4352
    %4886 = vmatprep.subr.bf16.mxu0 %v4344
    %4887 = vmatpush1.bf16.msra.mxu0 %v4343
    %4888 = vmatprep.subr.bf16.mxu0 %v4335
    %4889 = vmatpush1.bf16.msra.mxu0 %v4334
    %4890 = vmatprep.subr.bf16.mxu0 %v4470
    %4891 = vmatpush2.bf16.msra.mxu0 %v4469
    %4892 = vmatprep.subr.bf16.mxu0 %v4461
    %4893 = vmatpush2.bf16.msra.mxu0 %v4460
    %4894 = vmatprep.subr.bf16.mxu0 %v4452
    %4895 = vmatpush2.bf16.msra.mxu0 %v4451
    %4896 = vmatprep.subr.bf16.mxu0 %v4443
    %4897 = vmatpush2.bf16.msra.mxu0 %v4442
    %4898 = vmatprep.subr.bf16.mxu0 %v4434
    %4899 = vmatpush2.bf16.msra.mxu0 %v4433
    %4900 = vmatprep.subr.bf16.mxu0 %v4425
    %4901 = vmatpush2.bf16.msra.mxu0 %v4424
    %4902 = vmatprep.subr.bf16.mxu0 %v4416
    %4903 = vmatpush2.bf16.msra.mxu0 %v4415
    %4904 = vmatprep.subr.bf16.mxu0 %v4407
    %4905 = vmatpush2.bf16.msra.mxu0 %v4406
    %4906 = vmatprep.mubr.bf16.mxu0 %v4181
    %4907 = vmatmul.mubr.bf16.gmra.mxu0 %v4180
    %v4908 = vpop.f32.mrf.mxu0
    %v4909 = vadd.f32 0.0, %v4908
    %v4910 = vpop.f32.mrf.mxu0
    %v4911 = vadd.f32 0.0, %v4910
    %v4912 = vpop.f32.mrf.mxu0
    %v4913 = vadd.f32 0.0, %v4912
    %v4914 = vpop.f32.mrf.mxu0
    %v4915 = vadd.f32 0.0, %v4914
    %4916 = vdwg.mxu0
    %4917 = vmatprep.subr.bf16.mxu0 %v4542
    %4918 = vmatpush1.bf16.msra.mxu0 %v4541
    %4919 = vmatprep.subr.bf16.mxu0 %v4533
    %4920 = vmatpush1.bf16.msra.mxu0 %v4532
    %4921 = vmatprep.subr.bf16.mxu0 %v4524
    %4922 = vmatpush1.bf16.msra.mxu0 %v4523
    %4923 = vmatprep.subr.bf16.mxu0 %v4515
    %4924 = vmatpush1.bf16.msra.mxu0 %v4514
    %4925 = vmatprep.subr.bf16.mxu0 %v4506
    %4926 = vmatpush1.bf16.msra.mxu0 %v4505
    %4927 = vmatprep.subr.bf16.mxu0 %v4497
    %4928 = vmatpush1.bf16.msra.mxu0 %v4496
    %4929 = vmatprep.subr.bf16.mxu0 %v4488
    %4930 = vmatpush1.bf16.msra.mxu0 %v4487
    %4931 = vmatprep.subr.bf16.mxu0 %v4479
    %4932 = vmatpush1.bf16.msra.mxu0 %v4478
    %4933 = vmatprep.subr.bf16.mxu0 %v4614
    %4934 = vmatpush2.bf16.msra.mxu0 %v4613
    %4935 = vmatprep.subr.bf16.mxu0 %v4605
    %4936 = vmatpush2.bf16.msra.mxu0 %v4604
    %4937 = vmatprep.subr.bf16.mxu0 %v4596
    %4938 = vmatpush2.bf16.msra.mxu0 %v4595
    %4939 = vmatprep.subr.bf16.mxu0 %v4587
    %4940 = vmatpush2.bf16.msra.mxu0 %v4586
    %4941 = vmatprep.subr.bf16.mxu0 %v4578
    %4942 = vmatpush2.bf16.msra.mxu0 %v4577
    %4943 = vmatprep.subr.bf16.mxu0 %v4569
    %4944 = vmatpush2.bf16.msra.mxu0 %v4568
    %4945 = vmatprep.subr.bf16.mxu0 %v4560
    %4946 = vmatpush2.bf16.msra.mxu0 %v4559
    %4947 = vmatprep.subr.bf16.mxu0 %v4551
    %4948 = vmatpush2.bf16.msra.mxu0 %v4550
    %4949 = vmatprep.mubr.bf16.mxu0 %v4183
    %4950 = vmatmul.mubr.bf16.gmra.mxu0 %v4182
    %v4951 = vpop.f32.mrf.mxu0
    %v4952 = vadd.f32 %v4909, %v4951
    %v4953 = vpop.f32.mrf.mxu0
    %v4954 = vadd.f32 %v4911, %v4953
    %v4955 = vpop.f32.mrf.mxu0
    %v4956 = vadd.f32 %v4913, %v4955
    %v4957 = vpop.f32.mrf.mxu0
    %v4958 = vadd.f32 %v4915, %v4957
    %4959 = vdwg.mxu0
    %4960 = vmatprep.subr.bf16.mxu0 0
    %4961 = vmatpush1.bf16.msra.mxu0 %v4399
    %4962 = vmatprep.subr.bf16.mxu0 0
    %4963 = vmatpush1.bf16.msra.mxu0 %v4390
    %4964 = vmatprep.subr.bf16.mxu0 0
    %4965 = vmatpush1.bf16.msra.mxu0 %v4381
    %4966 = vmatprep.subr.bf16.mxu0 0
    %4967 = vmatpush1.bf16.msra.mxu0 %v4372
    %4968 = vmatprep.subr.bf16.mxu0 0
    %4969 = vmatpush1.bf16.msra.mxu0 %v4363
    %4970 = vmatprep.subr.bf16.mxu0 0
    %4971 = vmatpush1.bf16.msra.mxu0 %v4354
    %4972 = vmatprep.subr.bf16.mxu0 0
    %4973 = vmatpush1.bf16.msra.mxu0 %v4345
    %4974 = vmatprep.subr.bf16.mxu0 0
    %4975 = vmatpush1.bf16.msra.mxu0 %v4336
    %4976 = vmatprep.subr.bf16.mxu0 0
    %4977 = vmatpush2.bf16.msra.mxu0 %v4471
    %4978 = vmatprep.subr.bf16.mxu0 0
    %4979 = vmatpush2.bf16.msra.mxu0 %v4462
    %4980 = vmatprep.subr.bf16.mxu0 0
    %4981 = vmatpush2.bf16.msra.mxu0 %v4453
    %4982 = vmatprep.subr.bf16.mxu0 0
    %4983 = vmatpush2.bf16.msra.mxu0 %v4444
    %4984 = vmatprep.subr.bf16.mxu0 0
    %4985 = vmatpush2.bf16.msra.mxu0 %v4435
    %4986 = vmatprep.subr.bf16.mxu0 0
    %4987 = vmatpush2.bf16.msra.mxu0 %v4426
    %4988 = vmatprep.subr.bf16.mxu0 0
    %4989 = vmatpush2.bf16.msra.mxu0 %v4417
    %4990 = vmatprep.subr.bf16.mxu0 0
    %4991 = vmatpush2.bf16.msra.mxu0 %v4408
    %4992 = vmatprep.mubr.bf16.mxu0 %v4181
    %4993 = vmatmul.mubr.bf16.gmra.mxu0 %v4180
    %v4994 = vpop.f32.mrf.mxu0
    %v4995 = vadd.f32 0.0, %v4994
    %v4996 = vpop.f32.mrf.mxu0
    %v4997 = vpop.f32.mrf.mxu0
    %v4998 = vadd.f32 0.0, %v4997
    %v4999 = vpop.f32.mrf.mxu0
    %5000 = vdwg.mxu0
    %5001 = vmatprep.subr.bf16.mxu0 0
    %5002 = vmatpush1.bf16.msra.mxu0 %v4543
    %5003 = vmatprep.subr.bf16.mxu0 0
    %5004 = vmatpush1.bf16.msra.mxu0 %v4534
    %5005 = vmatprep.subr.bf16.mxu0 0
    %5006 = vmatpush1.bf16.msra.mxu0 %v4525
    %5007 = vmatprep.subr.bf16.mxu0 0
    %5008 = vmatpush1.bf16.msra.mxu0 %v4516
    %5009 = vmatprep.subr.bf16.mxu0 0
    %5010 = vmatpush1.bf16.msra.mxu0 %v4507
    %5011 = vmatprep.subr.bf16.mxu0 0
    %5012 = vmatpush1.bf16.msra.mxu0 %v4498
    %5013 = vmatprep.subr.bf16.mxu0 0
    %5014 = vmatpush1.bf16.msra.mxu0 %v4489
    %5015 = vmatprep.subr.bf16.mxu0 0
    %5016 = vmatpush1.bf16.msra.mxu0 %v4480
    %5017 = vmatprep.subr.bf16.mxu0 0
    %5018 = vmatpush2.bf16.msra.mxu0 %v4615
    %5019 = vmatprep.subr.bf16.mxu0 0
    %5020 = vmatpush2.bf16.msra.mxu0 %v4606
    %5021 = vmatprep.subr.bf16.mxu0 0
    %5022 = vmatpush2.bf16.msra.mxu0 %v4597
    %5023 = vmatprep.subr.bf16.mxu0 0
    %5024 = vmatpush2.bf16.msra.mxu0 %v4588
    %5025 = vmatprep.subr.bf16.mxu0 0
    %5026 = vmatpush2.bf16.msra.mxu0 %v4579
    %5027 = vmatprep.subr.bf16.mxu0 0
    %5028 = vmatpush2.bf16.msra.mxu0 %v4570
    %5029 = vmatprep.subr.bf16.mxu0 0
    %5030 = vmatpush2.bf16.msra.mxu0 %v4561
    %5031 = vmatprep.subr.bf16.mxu0 0
    %5032 = vmatpush2.bf16.msra.mxu0 %v4552
    %5033 = vmatprep.mubr.bf16.mxu0 %v4183
    %5034 = vmatmul.mubr.bf16.gmra.mxu0 %v4182
    %v5035 = vpop.f32.mrf.mxu0
    %v5036 = vadd.f32 %v4995, %v5035
    %v5037 = vpop.f32.mrf.mxu0
    %v5038 = vpop.f32.mrf.mxu0
    %v5039 = vadd.f32 %v4998, %v5038
    %v5040 = vpop.f32.mrf.mxu0
    %5041 = vdwg.mxu0
    %s5042 = scalar_lea.vmem [#allocation13], 6
    %v5043 = vld [vmem:[%s5042] ss:$8 sm:$0xf]
    %v5044 = vld [vmem:[%s5042] ss:$8 sm:$0xf0]
    %v5045 = vor.u32 %v5043, %v5044
    %s5046 = scalar_lea.vmem [#allocation13], 70
    %v5047 = vld [vmem:[%s5046] ss:$8 sm:$0x1]
    %s5048 = scalar_lea.vmem [#allocation13], 110
    %v5049 = vld [vmem:[%s5048] ss:$8 sm:$0xf]
    %v5050 = vld [vmem:[%s5048] ss:$8 sm:$0xf0]
    %v5051 = vor.u32 %v5049, %v5050
    %s5052 = scalar_lea.vmem [#allocation13], 174
    %v5053 = vld [vmem:[%s5052] ss:$8 sm:$0x1]
    %v5056 = vlaneseq
    %v5057 = vshrl.u32 %v5056, 7
    %v5058 = vsub.s32 0, %v5057
    %v5059 = vrot.slane %v5045, %v5058
    %v5060 = vlaneseq
    %v5061 = vshrl.u32 %v5060, 7
    %v5062 = vsub.s32 1, %v5061
    %v5063 = vrot.slane %v5045, %v5062
    %v5064 = vlaneseq
    %v5065 = vshrl.u32 %v5064, 7
    %v5066 = vsub.s32 2, %v5065
    %v5067 = vrot.slane %v5045, %v5066
    %v5068 = vlaneseq
    %v5069 = vshrl.u32 %v5068, 7
    %v5070 = vsub.s32 3, %v5069
    %v5071 = vrot.slane %v5045, %v5070
    %v5072 = vlaneseq
    %v5073 = vshrl.u32 %v5072, 7
    %v5074 = vsub.s32 4, %v5073
    %v5075 = vrot.slane %v5045, %v5074
    %v5076 = vlaneseq
    %v5077 = vshrl.u32 %v5076, 7
    %v5078 = vsub.s32 5, %v5077
    %v5079 = vrot.slane %v5045, %v5078
    %v5080 = vlaneseq
    %v5081 = vshrl.u32 %v5080, 7
    %v5082 = vsub.s32 6, %v5081
    %v5083 = vrot.slane %v5045, %v5082
    %v5084 = vlaneseq
    %v5085 = vshrl.u32 %v5084, 7
    %v5086 = vsub.s32 7, %v5085
    %v5087 = vrot.slane %v5045, %v5086
    %v5088 = vlaneseq
    %v5089 = vshrl.u32 %v5088, 7
    %v5090 = vsub.s32 0, %v5089
    %v5091 = vrot.slane %v5047, %v5090
    %v5101 = vmul.f32 %v4694, %v5059
    %v5102 = vmul.f32 %v4696, %v5063
    %v5103 = vmul.f32 %v4780, %v5067
    %v5104 = vmul.f32 %v4782, %v5071
    %v5105 = vmul.f32 %v4866, %v5075
    %v5106 = vmul.f32 %v4868, %v5079
    %v5107 = vmul.f32 %v4952, %v5083
    %v5108 = vmul.f32 %v4954, %v5087
    %v5109 = vmul.f32 %v5036, %v5091
    %v5110 = vmul.f32 %v4698, %v5059
    %v5111 = vmul.f32 %v4700, %v5063
    %v5112 = vmul.f32 %v4784, %v5067
    %v5113 = vmul.f32 %v4786, %v5071
    %v5114 = vmul.f32 %v4870, %v5075
    %v5115 = vmul.f32 %v4872, %v5079
    %v5116 = vmul.f32 %v4956, %v5083
    %v5117 = vmul.f32 %v4958, %v5087
    %v5118 = vmul.f32 %v5039, %v5091
    %v5121 = vlaneseq
    %v5122 = vshrl.u32 %v5121, 7
    %v5123 = vsub.s32 0, %v5122
    %v5124 = vrot.slane %v5051, %v5123
    %v5125 = vlaneseq
    %v5126 = vshrl.u32 %v5125, 7
    %v5127 = vsub.s32 1, %v5126
    %v5128 = vrot.slane %v5051, %v5127
    %v5129 = vlaneseq
    %v5130 = vshrl.u32 %v5129, 7
    %v5131 = vsub.s32 2, %v5130
    %v5132 = vrot.slane %v5051, %v5131
    %v5133 = vlaneseq
    %v5134 = vshrl.u32 %v5133, 7
    %v5135 = vsub.s32 3, %v5134
    %v5136 = vrot.slane %v5051, %v5135
    %v5137 = vlaneseq
    %v5138 = vshrl.u32 %v5137, 7
    %v5139 = vsub.s32 4, %v5138
    %v5140 = vrot.slane %v5051, %v5139
    %v5141 = vlaneseq
    %v5142 = vshrl.u32 %v5141, 7
    %v5143 = vsub.s32 5, %v5142
    %v5144 = vrot.slane %v5051, %v5143
    %v5145 = vlaneseq
    %v5146 = vshrl.u32 %v5145, 7
    %v5147 = vsub.s32 6, %v5146
    %v5148 = vrot.slane %v5051, %v5147
    %v5149 = vlaneseq
    %v5150 = vshrl.u32 %v5149, 7
    %v5151 = vsub.s32 7, %v5150
    %v5152 = vrot.slane %v5051, %v5151
    %v5153 = vlaneseq
    %v5154 = vshrl.u32 %v5153, 7
    %v5155 = vsub.s32 0, %v5154
    %v5156 = vrot.slane %v5053, %v5155
    %v5166 = vadd.f32 %v5101, %v5124
    %v5167 = vadd.f32 %v5102, %v5128
    %v5168 = vadd.f32 %v5103, %v5132
    %v5169 = vadd.f32 %v5104, %v5136
    %v5170 = vadd.f32 %v5105, %v5140
    %v5171 = vadd.f32 %v5106, %v5144
    %v5172 = vadd.f32 %v5107, %v5148
    %v5173 = vadd.f32 %v5108, %v5152
    %v5174 = vadd.f32 %v5109, %v5156
    %v5175 = vadd.f32 %v5110, %v5124
    %v5176 = vadd.f32 %v5111, %v5128
    %v5177 = vadd.f32 %v5112, %v5132
    %v5178 = vadd.f32 %v5113, %v5136
    %v5179 = vadd.f32 %v5114, %v5140
    %v5180 = vadd.f32 %v5115, %v5144
    %v5181 = vadd.f32 %v5116, %v5148
    %v5182 = vadd.f32 %v5117, %v5152
    %v5183 = vadd.f32 %v5118, %v5156
    %v5184 = vmax.f32 %v5166, 0.0
    %v5185 = vmax.f32 %v5167, 0.0
    %v5186 = vmax.f32 %v5168, 0.0
    %v5187 = vmax.f32 %v5169, 0.0
    %v5188 = vmax.f32 %v5170, 0.0
    %v5189 = vmax.f32 %v5171, 0.0
    %v5190 = vmax.f32 %v5172, 0.0
    %v5191 = vmax.f32 %v5173, 0.0
    %v5192 = vmax.f32 %v5174, 0.0
    %v5193 = vmax.f32 %v5175, 0.0
    %v5194 = vmax.f32 %v5176, 0.0
    %v5195 = vmax.f32 %v5177, 0.0
    %v5196 = vmax.f32 %v5178, 0.0
    %v5197 = vmax.f32 %v5179, 0.0
    %v5198 = vmax.f32 %v5180, 0.0
    %v5199 = vmax.f32 %v5181, 0.0
    %v5200 = vmax.f32 %v5182, 0.0
    %v5201 = vmax.f32 %v5183, 0.0
    %v5202 = vpack.c.bf16 %v5193, %v5184
    %v5203 = vpack.c.bf16 %v5194, %v5185
    %v5204 = vpack.c.bf16 %v5195, %v5186
    %v5205 = vpack.c.bf16 %v5196, %v5187
    %v5206 = vpack.c.bf16 %v5197, %v5188
    %v5207 = vpack.c.bf16 %v5198, %v5189
    %v5208 = vpack.c.bf16 %v5199, %v5190
    %v5209 = vpack.c.bf16 %v5200, %v5191
    %v5210 = vpack.c.bf16 %v5201, %v5192
    %v5211 = vld [vmem:[#allocation12] sm:$0xff]
    %v5212 = vld [vmem:[#allocation12 + $0x8] sm:$0xff]
    %v5213 = vld [vmem:[#allocation12 + $0x10] sm:$0xff]
    %v5214 = vld [vmem:[#allocation12 + $0x18] sm:$0xff]
    %v5215 = vld [vmem:[#allocation12 + $0x20] sm:$0xff]
    %v5216 = vld [vmem:[#allocation12 + $0x28] sm:$0xff]
    %v5217 = vld [vmem:[#allocation12 + $0x30] sm:$0xff]
    %v5218 = vld [vmem:[#allocation12 + $0x38] sm:$0xff]
    %v5219 = vld [vmem:[#allocation12 + $0x40] sm:$0xff]
    %v5220 = vld [vmem:[#allocation12 + $0x48] sm:$0xff]
    %v5221 = vld [vmem:[#allocation12 + $0x50] sm:$0xff]
    %v5222 = vld [vmem:[#allocation12 + $0x58] sm:$0xff]
    %v5223 = vld [vmem:[#allocation12 + $0x60] sm:$0xff]
    %v5224 = vld [vmem:[#allocation12 + $0x68] sm:$0xff]
    %v5225 = vld [vmem:[#allocation12 + $0x70] sm:$0xff]
    %v5226 = vld [vmem:[#allocation12 + $0x78] sm:$0xff]
    %v5227 = vld [vmem:[#allocation12 + $0x80] sm:$0xff]
    %v5228 = vld [vmem:[#allocation12 + $0x88] sm:$0xff]
    %v5229 = vld [vmem:[#allocation12 + $0x90] sm:$0xff]
    %v5230 = vld [vmem:[#allocation12 + $0x98] sm:$0xff]
    %v5231 = vld [vmem:[#allocation12 + $0xa0] sm:$0xff]
    %v5232 = vld [vmem:[#allocation12 + $0xa8] sm:$0xff]
    %v5233 = vld [vmem:[#allocation12 + $0xb0] sm:$0xff]
    %v5234 = vld [vmem:[#allocation12 + $0xb8] sm:$0xff]
    %v5235 = vld [vmem:[#allocation12 + $0xc0] sm:$0xff]
    %v5236 = vld [vmem:[#allocation12 + $0xc8] sm:$0xff]
    %v5237 = vld [vmem:[#allocation12 + $0xd0] sm:$0xff]
    %v5238 = vld [vmem:[#allocation12 + $0xd8] sm:$0xff]
    %v5239 = vld [vmem:[#allocation12 + $0xe0] sm:$0xff]
    %v5240 = vld [vmem:[#allocation12 + $0xe8] sm:$0xff]
    %v5241 = vld [vmem:[#allocation12 + $0xf0] sm:$0xff]
    %v5242 = vld [vmem:[#allocation12 + $0xf8] sm:$0xff]
    %v5243 = vld [vmem:[#allocation12 + $0x100] sm:$0xff]
    %v5244 = vld [vmem:[#allocation12 + $0x108] sm:$0xff]
    %v5245 = vld [vmem:[#allocation12 + $0x110] sm:$0xff]
    %v5246 = vld [vmem:[#allocation12 + $0x118] sm:$0xff]
    %v5247 = vld [vmem:[#allocation12 + $0x120] sm:$0xff]
    %v5248 = vld [vmem:[#allocation12 + $0x128] sm:$0xff]
    %v5249 = vld [vmem:[#allocation12 + $0x130] sm:$0xff]
    %v5250 = vld [vmem:[#allocation12 + $0x138] sm:$0xff]
    %v5251 = vld [vmem:[#allocation12 + $0x140] sm:$0xff]
    %v5252 = vld [vmem:[#allocation12 + $0x148] sm:$0xff]
    %v5253 = vld [vmem:[#allocation12 + $0x150] sm:$0xff]
    %v5254 = vld [vmem:[#allocation12 + $0x158] sm:$0xff]
    %v5255 = vld [vmem:[#allocation12 + $0x160] sm:$0xff]
    %v5256 = vld [vmem:[#allocation12 + $0x168] sm:$0xff]
    %v5257 = vld [vmem:[#allocation12 + $0x170] sm:$0xff]
    %v5258 = vld [vmem:[#allocation12 + $0x178] sm:$0xff]
    %v5259 = vld [vmem:[#allocation12 + $0x180] sm:$0xff]
    %v5260 = vld [vmem:[#allocation12 + $0x188] sm:$0xff]
    %v5261 = vld [vmem:[#allocation12 + $0x190] sm:$0xff]
    %v5262 = vld [vmem:[#allocation12 + $0x198] sm:$0xff]
    %v5263 = vld [vmem:[#allocation12 + $0x1a0] sm:$0xff]
    %v5264 = vld [vmem:[#allocation12 + $0x1a8] sm:$0xff]
    %v5265 = vld [vmem:[#allocation12 + $0x1b0] sm:$0xff]
    %v5266 = vld [vmem:[#allocation12 + $0x1b8] sm:$0xff]
    %v5267 = vld [vmem:[#allocation12 + $0x1c0] sm:$0xff]
    %v5268 = vld [vmem:[#allocation12 + $0x1c8] sm:$0xff]
    %v5269 = vld [vmem:[#allocation12 + $0x1d0] sm:$0xff]
    %v5270 = vld [vmem:[#allocation12 + $0x1d8] sm:$0xff]
    %v5271 = vld [vmem:[#allocation12 + $0x1e0] sm:$0xff]
    %v5272 = vld [vmem:[#allocation12 + $0x1e8] sm:$0xff]
    %v5273 = vld [vmem:[#allocation12 + $0x1f0] sm:$0xff]
    %v5274 = vld [vmem:[#allocation12 + $0x1f8] sm:$0xff]
    %v5275 = vld [vmem:[#allocation12 + $0x200] sm:$0xff]
    %v5276 = vld [vmem:[#allocation12 + $0x208] sm:$0xff]
    %v5277 = vld [vmem:[#allocation12 + $0x210] sm:$0xff]
    %v5278 = vld [vmem:[#allocation12 + $0x218] sm:$0xff]
    %v5279 = vld [vmem:[#allocation12 + $0x220] sm:$0xff]
    %v5280 = vld [vmem:[#allocation12 + $0x228] sm:$0xff]
    %v5281 = vld [vmem:[#allocation12 + $0x230] sm:$0xff]
    %v5282 = vld [vmem:[#allocation12 + $0x238] sm:$0xff]
    %v5283 = vld [vmem:[#allocation12 + $0x240] sm:$0xff]
    %v5284 = vld [vmem:[#allocation12 + $0x248] sm:$0xff]
    %v5285 = vld [vmem:[#allocation12 + $0x250] sm:$0xff]
    %v5286 = vld [vmem:[#allocation12 + $0x258] sm:$0xff]
    %v5287 = vld [vmem:[#allocation12 + $0x260] sm:$0xff]
    %v5288 = vld [vmem:[#allocation12 + $0x268] sm:$0xff]
    %v5289 = vld [vmem:[#allocation12 + $0x270] sm:$0xff]
    %v5290 = vld [vmem:[#allocation12 + $0x278] sm:$0xff]
    %v5291 = vld [vmem:[#allocation12 + $0x280] sm:$0xff]
    %v5292 = vld [vmem:[#allocation12 + $0x288] sm:$0xff]
    %v5293 = vld [vmem:[#allocation12 + $0x290] sm:$0xff]
    %v5294 = vld [vmem:[#allocation12 + $0x298] sm:$0xff]
    %v5295 = vld [vmem:[#allocation12 + $0x2a0] sm:$0xff]
    %v5296 = vld [vmem:[#allocation12 + $0x2a8] sm:$0xff]
    %v5297 = vld [vmem:[#allocation12 + $0x2b0] sm:$0xff]
    %v5298 = vld [vmem:[#allocation12 + $0x2b8] sm:$0xff]
    %v5299 = vld [vmem:[#allocation12 + $0x2c0] sm:$0xff]
    %v5300 = vld [vmem:[#allocation12 + $0x2c8] sm:$0xff]
    %v5301 = vld [vmem:[#allocation12 + $0x2d0] sm:$0xff]
    %v5302 = vld [vmem:[#allocation12 + $0x2d8] sm:$0xff]
    %v5303 = vld [vmem:[#allocation12 + $0x2e0] sm:$0xff]
    %v5304 = vld [vmem:[#allocation12 + $0x2e8] sm:$0xff]
    %v5305 = vld [vmem:[#allocation12 + $0x2f0] sm:$0xff]
    %v5306 = vld [vmem:[#allocation12 + $0x2f8] sm:$0xff]
    %v5307 = vld [vmem:[#allocation12 + $0x300] sm:$0xff]
    %v5308 = vld [vmem:[#allocation12 + $0x308] sm:$0xff]
    %v5309 = vld [vmem:[#allocation12 + $0x310] sm:$0xff]
    %v5310 = vld [vmem:[#allocation12 + $0x318] sm:$0xff]
    %v5311 = vld [vmem:[#allocation12 + $0x320] sm:$0xff]
    %v5312 = vld [vmem:[#allocation12 + $0x328] sm:$0xff]
    %v5313 = vld [vmem:[#allocation12 + $0x330] sm:$0xff]
    %v5314 = vld [vmem:[#allocation12 + $0x338] sm:$0xff]
    %v5315 = vld [vmem:[#allocation12 + $0x340] sm:$0xff]
    %v5316 = vld [vmem:[#allocation12 + $0x348] sm:$0xff]
    %v5317 = vld [vmem:[#allocation12 + $0x350] sm:$0xff]
    %v5318 = vld [vmem:[#allocation12 + $0x358] sm:$0xff]
    %v5319 = vld [vmem:[#allocation12 + $0x360] sm:$0xff]
    %v5320 = vld [vmem:[#allocation12 + $0x368] sm:$0xff]
    %v5321 = vld [vmem:[#allocation12 + $0x370] sm:$0xff]
    %v5322 = vld [vmem:[#allocation12 + $0x378] sm:$0xff]
    %v5323 = vld [vmem:[#allocation12 + $0x380] sm:$0xff]
    %v5324 = vld [vmem:[#allocation12 + $0x388] sm:$0xff]
    %v5325 = vld [vmem:[#allocation12 + $0x390] sm:$0xff]
    %v5326 = vld [vmem:[#allocation12 + $0x398] sm:$0xff]
    %v5327 = vld [vmem:[#allocation12 + $0x3a0] sm:$0xff]
    %v5328 = vld [vmem:[#allocation12 + $0x3a8] sm:$0xff]
    %v5329 = vld [vmem:[#allocation12 + $0x3b0] sm:$0xff]
    %v5330 = vld [vmem:[#allocation12 + $0x3b8] sm:$0xff]
    %v5331 = vld [vmem:[#allocation12 + $0x3c0] sm:$0xff]
    %v5332 = vld [vmem:[#allocation12 + $0x3c8] sm:$0xff]
    %v5333 = vld [vmem:[#allocation12 + $0x3d0] sm:$0xff]
    %v5334 = vld [vmem:[#allocation12 + $0x3d8] sm:$0xff]
    %v5335 = vld [vmem:[#allocation12 + $0x3e0] sm:$0xff]
    %v5336 = vld [vmem:[#allocation12 + $0x3e8] sm:$0xff]
    %v5337 = vld [vmem:[#allocation12 + $0x3f0] sm:$0xff]
    %v5338 = vld [vmem:[#allocation12 + $0x3f8] sm:$0xff]
    %v5339 = vld [vmem:[#allocation12 + $0x400] sm:$0xff]
    %v5340 = vld [vmem:[#allocation12 + $0x408] sm:$0xff]
    %v5341 = vld [vmem:[#allocation12 + $0x410] sm:$0xff]
    %v5342 = vld [vmem:[#allocation12 + $0x418] sm:$0xff]
    %v5343 = vld [vmem:[#allocation12 + $0x420] sm:$0xff]
    %v5344 = vld [vmem:[#allocation12 + $0x428] sm:$0xff]
    %v5345 = vld [vmem:[#allocation12 + $0x430] sm:$0xff]
    %v5346 = vld [vmem:[#allocation12 + $0x438] sm:$0xff]
    %v5347 = vld [vmem:[#allocation12 + $0x440] sm:$0xff]
    %v5348 = vld [vmem:[#allocation12 + $0x448] sm:$0xff]
    %v5349 = vld [vmem:[#allocation12 + $0x450] sm:$0xff]
    %v5350 = vld [vmem:[#allocation12 + $0x458] sm:$0xff]
    %v5351 = vld [vmem:[#allocation12 + $0x460] sm:$0xff]
    %v5352 = vld [vmem:[#allocation12 + $0x468] sm:$0xff]
    %v5353 = vld [vmem:[#allocation12 + $0x470] sm:$0xff]
    %v5354 = vld [vmem:[#allocation12 + $0x478] sm:$0xff]
    %v5355 = vunpack.c.l.s8.bf16 %v5211
    %v5356 = vunpack.c.l.s8.bf16 %v5212
    %v5357 = vunpack.c.l.s8.bf16 %v5213
    %v5358 = vunpack.c.l.s8.bf16 %v5214
    %v5359 = vunpack.c.h.s8.bf16 %v5211
    %v5360 = vunpack.c.h.s8.bf16 %v5212
    %v5361 = vunpack.c.h.s8.bf16 %v5213
    %v5362 = vunpack.c.h.s8.bf16 %v5214
    %v5363 = vunpack.c.l.s8.bf16 %v5215
    %v5364 = vunpack.c.l.s8.bf16 %v5216
    %v5365 = vunpack.c.l.s8.bf16 %v5217
    %v5366 = vunpack.c.l.s8.bf16 %v5218
    %v5367 = vunpack.c.h.s8.bf16 %v5215
    %v5368 = vunpack.c.h.s8.bf16 %v5216
    %v5369 = vunpack.c.h.s8.bf16 %v5217
    %v5370 = vunpack.c.h.s8.bf16 %v5218
    %v5371 = vunpack.c.l.s8.bf16 %v5219
    %v5372 = vunpack.c.l.s8.bf16 %v5220
    %v5373 = vunpack.c.l.s8.bf16 %v5221
    %v5374 = vunpack.c.l.s8.bf16 %v5222
    %v5375 = vunpack.c.h.s8.bf16 %v5219
    %v5376 = vunpack.c.h.s8.bf16 %v5220
    %v5377 = vunpack.c.h.s8.bf16 %v5221
    %v5378 = vunpack.c.h.s8.bf16 %v5222
    %v5379 = vunpack.c.l.s8.bf16 %v5223
    %v5380 = vunpack.c.l.s8.bf16 %v5224
    %v5381 = vunpack.c.l.s8.bf16 %v5225
    %v5382 = vunpack.c.l.s8.bf16 %v5226
    %v5383 = vunpack.c.h.s8.bf16 %v5223
    %v5384 = vunpack.c.h.s8.bf16 %v5224
    %v5385 = vunpack.c.h.s8.bf16 %v5225
    %v5386 = vunpack.c.h.s8.bf16 %v5226
    %v5387 = vunpack.c.l.s8.bf16 %v5227
    %v5388 = vunpack.c.l.s8.bf16 %v5228
    %v5389 = vunpack.c.l.s8.bf16 %v5229
    %v5390 = vunpack.c.l.s8.bf16 %v5230
    %v5391 = vunpack.c.h.s8.bf16 %v5227
    %v5392 = vunpack.c.h.s8.bf16 %v5228
    %v5393 = vunpack.c.h.s8.bf16 %v5229
    %v5394 = vunpack.c.h.s8.bf16 %v5230
    %v5395 = vunpack.c.l.s8.bf16 %v5231
    %v5396 = vunpack.c.l.s8.bf16 %v5232
    %v5397 = vunpack.c.l.s8.bf16 %v5233
    %v5398 = vunpack.c.l.s8.bf16 %v5234
    %v5399 = vunpack.c.h.s8.bf16 %v5231
    %v5400 = vunpack.c.h.s8.bf16 %v5232
    %v5401 = vunpack.c.h.s8.bf16 %v5233
    %v5402 = vunpack.c.h.s8.bf16 %v5234
    %v5403 = vunpack.c.l.s8.bf16 %v5235
    %v5404 = vunpack.c.l.s8.bf16 %v5236
    %v5405 = vunpack.c.l.s8.bf16 %v5237
    %v5406 = vunpack.c.l.s8.bf16 %v5238
    %v5407 = vunpack.c.h.s8.bf16 %v5235
    %v5408 = vunpack.c.h.s8.bf16 %v5236
    %v5409 = vunpack.c.h.s8.bf16 %v5237
    %v5410 = vunpack.c.h.s8.bf16 %v5238
    %v5411 = vunpack.c.l.s8.bf16 %v5239
    %v5412 = vunpack.c.l.s8.bf16 %v5240
    %v5413 = vunpack.c.l.s8.bf16 %v5241
    %v5414 = vunpack.c.l.s8.bf16 %v5242
    %v5415 = vunpack.c.h.s8.bf16 %v5239
    %v5416 = vunpack.c.h.s8.bf16 %v5240
    %v5417 = vunpack.c.h.s8.bf16 %v5241
    %v5418 = vunpack.c.h.s8.bf16 %v5242
    %v5419 = vunpack.c.l.s8.bf16 %v5243
    %v5420 = vunpack.c.l.s8.bf16 %v5244
    %v5421 = vunpack.c.l.s8.bf16 %v5245
    %v5422 = vunpack.c.l.s8.bf16 %v5246
    %v5423 = vunpack.c.h.s8.bf16 %v5243
    %v5424 = vunpack.c.h.s8.bf16 %v5244
    %v5425 = vunpack.c.h.s8.bf16 %v5245
    %v5426 = vunpack.c.h.s8.bf16 %v5246
    %v5427 = vunpack.c.l.s8.bf16 %v5247
    %v5428 = vunpack.c.l.s8.bf16 %v5248
    %v5429 = vunpack.c.l.s8.bf16 %v5249
    %v5430 = vunpack.c.l.s8.bf16 %v5250
    %v5431 = vunpack.c.h.s8.bf16 %v5247
    %v5432 = vunpack.c.h.s8.bf16 %v5248
    %v5433 = vunpack.c.h.s8.bf16 %v5249
    %v5434 = vunpack.c.h.s8.bf16 %v5250
    %v5435 = vunpack.c.l.s8.bf16 %v5251
    %v5436 = vunpack.c.l.s8.bf16 %v5252
    %v5437 = vunpack.c.l.s8.bf16 %v5253
    %v5438 = vunpack.c.l.s8.bf16 %v5254
    %v5439 = vunpack.c.h.s8.bf16 %v5251
    %v5440 = vunpack.c.h.s8.bf16 %v5252
    %v5441 = vunpack.c.h.s8.bf16 %v5253
    %v5442 = vunpack.c.h.s8.bf16 %v5254
    %v5443 = vunpack.c.l.s8.bf16 %v5255
    %v5444 = vunpack.c.l.s8.bf16 %v5256
    %v5445 = vunpack.c.l.s8.bf16 %v5257
    %v5446 = vunpack.c.l.s8.bf16 %v5258
    %v5447 = vunpack.c.h.s8.bf16 %v5255
    %v5448 = vunpack.c.h.s8.bf16 %v5256
    %v5449 = vunpack.c.h.s8.bf16 %v5257
    %v5450 = vunpack.c.h.s8.bf16 %v5258
    %v5451 = vunpack.c.l.s8.bf16 %v5259
    %v5452 = vunpack.c.l.s8.bf16 %v5260
    %v5453 = vunpack.c.l.s8.bf16 %v5261
    %v5454 = vunpack.c.l.s8.bf16 %v5262
    %v5455 = vunpack.c.h.s8.bf16 %v5259
    %v5456 = vunpack.c.h.s8.bf16 %v5260
    %v5457 = vunpack.c.h.s8.bf16 %v5261
    %v5458 = vunpack.c.h.s8.bf16 %v5262
    %v5459 = vunpack.c.l.s8.bf16 %v5263
    %v5460 = vunpack.c.l.s8.bf16 %v5264
    %v5461 = vunpack.c.l.s8.bf16 %v5265
    %v5462 = vunpack.c.l.s8.bf16 %v5266
    %v5463 = vunpack.c.h.s8.bf16 %v5263
    %v5464 = vunpack.c.h.s8.bf16 %v5264
    %v5465 = vunpack.c.h.s8.bf16 %v5265
    %v5466 = vunpack.c.h.s8.bf16 %v5266
    %v5467 = vunpack.c.l.s8.bf16 %v5267
    %v5468 = vunpack.c.l.s8.bf16 %v5268
    %v5469 = vunpack.c.l.s8.bf16 %v5269
    %v5470 = vunpack.c.l.s8.bf16 %v5270
    %v5471 = vunpack.c.h.s8.bf16 %v5267
    %v5472 = vunpack.c.h.s8.bf16 %v5268
    %v5473 = vunpack.c.h.s8.bf16 %v5269
    %v5474 = vunpack.c.h.s8.bf16 %v5270
    %v5475 = vunpack.c.l.s8.bf16 %v5271
    %v5476 = vunpack.c.l.s8.bf16 %v5272
    %v5477 = vunpack.c.l.s8.bf16 %v5273
    %v5478 = vunpack.c.l.s8.bf16 %v5274
    %v5479 = vunpack.c.h.s8.bf16 %v5271
    %v5480 = vunpack.c.h.s8.bf16 %v5272
    %v5481 = vunpack.c.h.s8.bf16 %v5273
    %v5482 = vunpack.c.h.s8.bf16 %v5274
    %v5483 = vunpack.c.l.s8.bf16 %v5275
    %v5484 = vunpack.c.l.s8.bf16 %v5276
    %v5485 = vunpack.c.l.s8.bf16 %v5277
    %v5486 = vunpack.c.l.s8.bf16 %v5278
    %v5487 = vunpack.c.h.s8.bf16 %v5275
    %v5488 = vunpack.c.h.s8.bf16 %v5276
    %v5489 = vunpack.c.h.s8.bf16 %v5277
    %v5490 = vunpack.c.h.s8.bf16 %v5278
    %v5491 = vunpack.c.l.s8.bf16 %v5279
    %v5492 = vunpack.c.l.s8.bf16 %v5280
    %v5493 = vunpack.c.l.s8.bf16 %v5281
    %v5494 = vunpack.c.l.s8.bf16 %v5282
    %v5495 = vunpack.c.h.s8.bf16 %v5279
    %v5496 = vunpack.c.h.s8.bf16 %v5280
    %v5497 = vunpack.c.h.s8.bf16 %v5281
    %v5498 = vunpack.c.h.s8.bf16 %v5282
    %v5499 = vunpack.c.l.s8.bf16 %v5283
    %v5500 = vunpack.c.l.s8.bf16 %v5284
    %v5501 = vunpack.c.l.s8.bf16 %v5285
    %v5502 = vunpack.c.l.s8.bf16 %v5286
    %v5503 = vunpack.c.h.s8.bf16 %v5283
    %v5504 = vunpack.c.h.s8.bf16 %v5284
    %v5505 = vunpack.c.h.s8.bf16 %v5285
    %v5506 = vunpack.c.h.s8.bf16 %v5286
    %v5507 = vunpack.c.l.s8.bf16 %v5287
    %v5508 = vunpack.c.l.s8.bf16 %v5288
    %v5509 = vunpack.c.l.s8.bf16 %v5289
    %v5510 = vunpack.c.l.s8.bf16 %v5290
    %v5511 = vunpack.c.h.s8.bf16 %v5287
    %v5512 = vunpack.c.h.s8.bf16 %v5288
    %v5513 = vunpack.c.h.s8.bf16 %v5289
    %v5514 = vunpack.c.h.s8.bf16 %v5290
    %v5515 = vunpack.c.l.s8.bf16 %v5291
    %v5516 = vunpack.c.l.s8.bf16 %v5292
    %v5517 = vunpack.c.l.s8.bf16 %v5293
    %v5518 = vunpack.c.l.s8.bf16 %v5294
    %v5519 = vunpack.c.h.s8.bf16 %v5291
    %v5520 = vunpack.c.h.s8.bf16 %v5292
    %v5521 = vunpack.c.h.s8.bf16 %v5293
    %v5522 = vunpack.c.h.s8.bf16 %v5294
    %v5523 = vunpack.c.l.s8.bf16 %v5295
    %v5524 = vunpack.c.l.s8.bf16 %v5296
    %v5525 = vunpack.c.l.s8.bf16 %v5297
    %v5526 = vunpack.c.l.s8.bf16 %v5298
    %v5527 = vunpack.c.h.s8.bf16 %v5295
    %v5528 = vunpack.c.h.s8.bf16 %v5296
    %v5529 = vunpack.c.h.s8.bf16 %v5297
    %v5530 = vunpack.c.h.s8.bf16 %v5298
    %v5531 = vunpack.c.l.s8.bf16 %v5299
    %v5532 = vunpack.c.l.s8.bf16 %v5300
    %v5533 = vunpack.c.l.s8.bf16 %v5301
    %v5534 = vunpack.c.l.s8.bf16 %v5302
    %v5535 = vunpack.c.h.s8.bf16 %v5299
    %v5536 = vunpack.c.h.s8.bf16 %v5300
    %v5537 = vunpack.c.h.s8.bf16 %v5301
    %v5538 = vunpack.c.h.s8.bf16 %v5302
    %v5539 = vunpack.c.l.s8.bf16 %v5303
    %v5540 = vunpack.c.l.s8.bf16 %v5304
    %v5541 = vunpack.c.l.s8.bf16 %v5305
    %v5542 = vunpack.c.l.s8.bf16 %v5306
    %v5543 = vunpack.c.h.s8.bf16 %v5303
    %v5544 = vunpack.c.h.s8.bf16 %v5304
    %v5545 = vunpack.c.h.s8.bf16 %v5305
    %v5546 = vunpack.c.h.s8.bf16 %v5306
    %v5547 = vunpack.c.l.s8.bf16 %v5307
    %v5548 = vunpack.c.l.s8.bf16 %v5308
    %v5549 = vunpack.c.l.s8.bf16 %v5309
    %v5550 = vunpack.c.l.s8.bf16 %v5310
    %v5551 = vunpack.c.h.s8.bf16 %v5307
    %v5552 = vunpack.c.h.s8.bf16 %v5308
    %v5553 = vunpack.c.h.s8.bf16 %v5309
    %v5554 = vunpack.c.h.s8.bf16 %v5310
    %v5555 = vunpack.c.l.s8.bf16 %v5311
    %v5556 = vunpack.c.l.s8.bf16 %v5312
    %v5557 = vunpack.c.l.s8.bf16 %v5313
    %v5558 = vunpack.c.l.s8.bf16 %v5314
    %v5559 = vunpack.c.h.s8.bf16 %v5311
    %v5560 = vunpack.c.h.s8.bf16 %v5312
    %v5561 = vunpack.c.h.s8.bf16 %v5313
    %v5562 = vunpack.c.h.s8.bf16 %v5314
    %v5563 = vunpack.c.l.s8.bf16 %v5315
    %v5564 = vunpack.c.l.s8.bf16 %v5316
    %v5565 = vunpack.c.l.s8.bf16 %v5317
    %v5566 = vunpack.c.l.s8.bf16 %v5318
    %v5567 = vunpack.c.h.s8.bf16 %v5315
    %v5568 = vunpack.c.h.s8.bf16 %v5316
    %v5569 = vunpack.c.h.s8.bf16 %v5317
    %v5570 = vunpack.c.h.s8.bf16 %v5318
    %v5571 = vunpack.c.l.s8.bf16 %v5319
    %v5572 = vunpack.c.l.s8.bf16 %v5320
    %v5573 = vunpack.c.l.s8.bf16 %v5321
    %v5574 = vunpack.c.l.s8.bf16 %v5322
    %v5575 = vunpack.c.h.s8.bf16 %v5319
    %v5576 = vunpack.c.h.s8.bf16 %v5320
    %v5577 = vunpack.c.h.s8.bf16 %v5321
    %v5578 = vunpack.c.h.s8.bf16 %v5322
    %v5579 = vunpack.c.l.s8.bf16 %v5323
    %v5580 = vunpack.c.l.s8.bf16 %v5324
    %v5581 = vunpack.c.l.s8.bf16 %v5325
    %v5582 = vunpack.c.l.s8.bf16 %v5326
    %v5583 = vunpack.c.h.s8.bf16 %v5323
    %v5584 = vunpack.c.h.s8.bf16 %v5324
    %v5585 = vunpack.c.h.s8.bf16 %v5325
    %v5586 = vunpack.c.h.s8.bf16 %v5326
    %v5587 = vunpack.c.l.s8.bf16 %v5327
    %v5588 = vunpack.c.l.s8.bf16 %v5328
    %v5589 = vunpack.c.l.s8.bf16 %v5329
    %v5590 = vunpack.c.l.s8.bf16 %v5330
    %v5591 = vunpack.c.h.s8.bf16 %v5327
    %v5592 = vunpack.c.h.s8.bf16 %v5328
    %v5593 = vunpack.c.h.s8.bf16 %v5329
    %v5594 = vunpack.c.h.s8.bf16 %v5330
    %v5595 = vunpack.c.l.s8.bf16 %v5331
    %v5596 = vunpack.c.l.s8.bf16 %v5332
    %v5597 = vunpack.c.l.s8.bf16 %v5333
    %v5598 = vunpack.c.l.s8.bf16 %v5334
    %v5599 = vunpack.c.h.s8.bf16 %v5331
    %v5600 = vunpack.c.h.s8.bf16 %v5332
    %v5601 = vunpack.c.h.s8.bf16 %v5333
    %v5602 = vunpack.c.h.s8.bf16 %v5334
    %v5603 = vunpack.c.l.s8.bf16 %v5335
    %v5604 = vunpack.c.l.s8.bf16 %v5336
    %v5605 = vunpack.c.l.s8.bf16 %v5337
    %v5606 = vunpack.c.l.s8.bf16 %v5338
    %v5607 = vunpack.c.h.s8.bf16 %v5335
    %v5608 = vunpack.c.h.s8.bf16 %v5336
    %v5609 = vunpack.c.h.s8.bf16 %v5337
    %v5610 = vunpack.c.h.s8.bf16 %v5338
    %v5611 = vunpack.c.l.s8.bf16 %v5339
    %v5612 = vunpack.c.l.s8.bf16 %v5340
    %v5613 = vunpack.c.l.s8.bf16 %v5341
    %v5614 = vunpack.c.l.s8.bf16 %v5342
    %v5615 = vunpack.c.h.s8.bf16 %v5339
    %v5616 = vunpack.c.h.s8.bf16 %v5340
    %v5617 = vunpack.c.h.s8.bf16 %v5341
    %v5618 = vunpack.c.h.s8.bf16 %v5342
    %v5619 = vunpack.c.l.s8.bf16 %v5343
    %v5620 = vunpack.c.l.s8.bf16 %v5344
    %v5621 = vunpack.c.l.s8.bf16 %v5345
    %v5622 = vunpack.c.l.s8.bf16 %v5346
    %v5623 = vunpack.c.h.s8.bf16 %v5343
    %v5624 = vunpack.c.h.s8.bf16 %v5344
    %v5625 = vunpack.c.h.s8.bf16 %v5345
    %v5626 = vunpack.c.h.s8.bf16 %v5346
    %v5627 = vunpack.c.l.s8.bf16 %v5347
    %v5628 = vunpack.c.l.s8.bf16 %v5348
    %v5629 = vunpack.c.l.s8.bf16 %v5349
    %v5630 = vunpack.c.l.s8.bf16 %v5350
    %v5631 = vunpack.c.h.s8.bf16 %v5347
    %v5632 = vunpack.c.h.s8.bf16 %v5348
    %v5633 = vunpack.c.h.s8.bf16 %v5349
    %v5634 = vunpack.c.h.s8.bf16 %v5350
    %v5635 = vunpack.c.l.s8.bf16 %v5351
    %v5636 = vunpack.c.l.s8.bf16 %v5352
    %v5637 = vunpack.c.l.s8.bf16 %v5353
    %v5638 = vunpack.c.l.s8.bf16 %v5354
    %v5639 = vunpack.c.h.s8.bf16 %v5351
    %v5640 = vunpack.c.h.s8.bf16 %v5352
    %v5641 = vunpack.c.h.s8.bf16 %v5353
    %v5642 = vunpack.c.h.s8.bf16 %v5354
    %5643 = vmatprep.subr.bf16.mxu0 %v5384
    %5644 = vmatpush1.bf16.msra.mxu0 %v5383
    %5645 = vmatprep.subr.bf16.mxu0 %v5380
    %5646 = vmatpush1.bf16.msra.mxu0 %v5379
    %5647 = vmatprep.subr.bf16.mxu0 %v5376
    %5648 = vmatpush1.bf16.msra.mxu0 %v5375
    %5649 = vmatprep.subr.bf16.mxu0 %v5372
    %5650 = vmatpush1.bf16.msra.mxu0 %v5371
    %5651 = vmatprep.subr.bf16.mxu0 %v5368
    %5652 = vmatpush1.bf16.msra.mxu0 %v5367
    %5653 = vmatprep.subr.bf16.mxu0 %v5364
    %5654 = vmatpush1.bf16.msra.mxu0 %v5363
    %5655 = vmatprep.subr.bf16.mxu0 %v5360
    %5656 = vmatpush1.bf16.msra.mxu0 %v5359
    %5657 = vmatprep.subr.bf16.mxu0 %v5356
    %5658 = vmatpush1.bf16.msra.mxu0 %v5355
    %5659 = vmatprep.subr.bf16.mxu0 %v5416
    %5660 = vmatpush2.bf16.msra.mxu0 %v5415
    %5661 = vmatprep.subr.bf16.mxu0 %v5412
    %5662 = vmatpush2.bf16.msra.mxu0 %v5411
    %5663 = vmatprep.subr.bf16.mxu0 %v5408
    %5664 = vmatpush2.bf16.msra.mxu0 %v5407
    %5665 = vmatprep.subr.bf16.mxu0 %v5404
    %5666 = vmatpush2.bf16.msra.mxu0 %v5403
    %5667 = vmatprep.subr.bf16.mxu0 %v5400
    %5668 = vmatpush2.bf16.msra.mxu0 %v5399
    %5669 = vmatprep.subr.bf16.mxu0 %v5396
    %5670 = vmatpush2.bf16.msra.mxu0 %v5395
    %5671 = vmatprep.subr.bf16.mxu0 %v5392
    %5672 = vmatpush2.bf16.msra.mxu0 %v5391
    %5673 = vmatprep.subr.bf16.mxu0 %v5388
    %5674 = vmatpush2.bf16.msra.mxu0 %v5387
    %5675 = vmatprep.mubr.bf16.mxu0 %v5203
    %5676 = vmatmul.mubr.bf16.gmra.mxu0 %v5202
    %v5677 = vpop.f32.mrf.mxu0
    %v5678 = vadd.f32 0.0, %v5677
    %v5679 = vpop.f32.mrf.mxu0
    %v5680 = vadd.f32 0.0, %v5679
    %v5681 = vpop.f32.mrf.mxu0
    %v5682 = vadd.f32 0.0, %v5681
    %v5683 = vpop.f32.mrf.mxu0
    %v5684 = vadd.f32 0.0, %v5683
    %5685 = vdwg.mxu0
    %5686 = vmatprep.subr.bf16.mxu0 %v5448
    %5687 = vmatpush1.bf16.msra.mxu0 %v5447
    %5688 = vmatprep.subr.bf16.mxu0 %v5444
    %5689 = vmatpush1.bf16.msra.mxu0 %v5443
    %5690 = vmatprep.subr.bf16.mxu0 %v5440
    %5691 = vmatpush1.bf16.msra.mxu0 %v5439
    %5692 = vmatprep.subr.bf16.mxu0 %v5436
    %5693 = vmatpush1.bf16.msra.mxu0 %v5435
    %5694 = vmatprep.subr.bf16.mxu0 %v5432
    %5695 = vmatpush1.bf16.msra.mxu0 %v5431
    %5696 = vmatprep.subr.bf16.mxu0 %v5428
    %5697 = vmatpush1.bf16.msra.mxu0 %v5427
    %5698 = vmatprep.subr.bf16.mxu0 %v5424
    %5699 = vmatpush1.bf16.msra.mxu0 %v5423
    %5700 = vmatprep.subr.bf16.mxu0 %v5420
    %5701 = vmatpush1.bf16.msra.mxu0 %v5419
    %5702 = vmatprep.subr.bf16.mxu0 %v5480
    %5703 = vmatpush2.bf16.msra.mxu0 %v5479
    %5704 = vmatprep.subr.bf16.mxu0 %v5476
    %5705 = vmatpush2.bf16.msra.mxu0 %v5475
    %5706 = vmatprep.subr.bf16.mxu0 %v5472
    %5707 = vmatpush2.bf16.msra.mxu0 %v5471
    %5708 = vmatprep.subr.bf16.mxu0 %v5468
    %5709 = vmatpush2.bf16.msra.mxu0 %v5467
    %5710 = vmatprep.subr.bf16.mxu0 %v5464
    %5711 = vmatpush2.bf16.msra.mxu0 %v5463
    %5712 = vmatprep.subr.bf16.mxu0 %v5460
    %5713 = vmatpush2.bf16.msra.mxu0 %v5459
    %5714 = vmatprep.subr.bf16.mxu0 %v5456
    %5715 = vmatpush2.bf16.msra.mxu0 %v5455
    %5716 = vmatprep.subr.bf16.mxu0 %v5452
    %5717 = vmatpush2.bf16.msra.mxu0 %v5451
    %5718 = vmatprep.mubr.bf16.mxu0 %v5205
    %5719 = vmatmul.mubr.bf16.gmra.mxu0 %v5204
    %v5720 = vpop.f32.mrf.mxu0
    %v5721 = vadd.f32 %v5678, %v5720
    %v5722 = vpop.f32.mrf.mxu0
    %v5723 = vadd.f32 %v5680, %v5722
    %v5724 = vpop.f32.mrf.mxu0
    %v5725 = vadd.f32 %v5682, %v5724
    %v5726 = vpop.f32.mrf.mxu0
    %v5727 = vadd.f32 %v5684, %v5726
    %5728 = vdwg.mxu0
    %5729 = vmatprep.subr.bf16.mxu0 %v5512
    %5730 = vmatpush1.bf16.msra.mxu0 %v5511
    %5731 = vmatprep.subr.bf16.mxu0 %v5508
    %5732 = vmatpush1.bf16.msra.mxu0 %v5507
    %5733 = vmatprep.subr.bf16.mxu0 %v5504
    %5734 = vmatpush1.bf16.msra.mxu0 %v5503
    %5735 = vmatprep.subr.bf16.mxu0 %v5500
    %5736 = vmatpush1.bf16.msra.mxu0 %v5499
    %5737 = vmatprep.subr.bf16.mxu0 %v5496
    %5738 = vmatpush1.bf16.msra.mxu0 %v5495
    %5739 = vmatprep.subr.bf16.mxu0 %v5492
    %5740 = vmatpush1.bf16.msra.mxu0 %v5491
    %5741 = vmatprep.subr.bf16.mxu0 %v5488
    %5742 = vmatpush1.bf16.msra.mxu0 %v5487
    %5743 = vmatprep.subr.bf16.mxu0 %v5484
    %5744 = vmatpush1.bf16.msra.mxu0 %v5483
    %5745 = vmatprep.subr.bf16.mxu0 %v5544
    %5746 = vmatpush2.bf16.msra.mxu0 %v5543
    %5747 = vmatprep.subr.bf16.mxu0 %v5540
    %5748 = vmatpush2.bf16.msra.mxu0 %v5539
    %5749 = vmatprep.subr.bf16.mxu0 %v5536
    %5750 = vmatpush2.bf16.msra.mxu0 %v5535
    %5751 = vmatprep.subr.bf16.mxu0 %v5532
    %5752 = vmatpush2.bf16.msra.mxu0 %v5531
    %5753 = vmatprep.subr.bf16.mxu0 %v5528
    %5754 = vmatpush2.bf16.msra.mxu0 %v5527
    %5755 = vmatprep.subr.bf16.mxu0 %v5524
    %5756 = vmatpush2.bf16.msra.mxu0 %v5523
    %5757 = vmatprep.subr.bf16.mxu0 %v5520
    %5758 = vmatpush2.bf16.msra.mxu0 %v5519
    %5759 = vmatprep.subr.bf16.mxu0 %v5516
    %5760 = vmatpush2.bf16.msra.mxu0 %v5515
    %5761 = vmatprep.mubr.bf16.mxu0 %v5207
    %5762 = vmatmul.mubr.bf16.gmra.mxu0 %v5206
    %v5763 = vpop.f32.mrf.mxu0
    %v5764 = vadd.f32 %v5721, %v5763
    %v5765 = vpop.f32.mrf.mxu0
    %v5766 = vadd.f32 %v5723, %v5765
    %v5767 = vpop.f32.mrf.mxu0
    %v5768 = vadd.f32 %v5725, %v5767
    %v5769 = vpop.f32.mrf.mxu0
    %v5770 = vadd.f32 %v5727, %v5769
    %5771 = vdwg.mxu0
    %5772 = vmatprep.subr.bf16.mxu0 %v5576
    %5773 = vmatpush1.bf16.msra.mxu0 %v5575
    %5774 = vmatprep.subr.bf16.mxu0 %v5572
    %5775 = vmatpush1.bf16.msra.mxu0 %v5571
    %5776 = vmatprep.subr.bf16.mxu0 %v5568
    %5777 = vmatpush1.bf16.msra.mxu0 %v5567
    %5778 = vmatprep.subr.bf16.mxu0 %v5564
    %5779 = vmatpush1.bf16.msra.mxu0 %v5563
    %5780 = vmatprep.subr.bf16.mxu0 %v5560
    %5781 = vmatpush1.bf16.msra.mxu0 %v5559
    %5782 = vmatprep.subr.bf16.mxu0 %v5556
    %5783 = vmatpush1.bf16.msra.mxu0 %v5555
    %5784 = vmatprep.subr.bf16.mxu0 %v5552
    %5785 = vmatpush1.bf16.msra.mxu0 %v5551
    %5786 = vmatprep.subr.bf16.mxu0 %v5548
    %5787 = vmatpush1.bf16.msra.mxu0 %v5547
    %5788 = vmatprep.subr.bf16.mxu0 %v5608
    %5789 = vmatpush2.bf16.msra.mxu0 %v5607
    %5790 = vmatprep.subr.bf16.mxu0 %v5604
    %5791 = vmatpush2.bf16.msra.mxu0 %v5603
    %5792 = vmatprep.subr.bf16.mxu0 %v5600
    %5793 = vmatpush2.bf16.msra.mxu0 %v5599
    %5794 = vmatprep.subr.bf16.mxu0 %v5596
    %5795 = vmatpush2.bf16.msra.mxu0 %v5595
    %5796 = vmatprep.subr.bf16.mxu0 %v5592
    %5797 = vmatpush2.bf16.msra.mxu0 %v5591
    %5798 = vmatprep.subr.bf16.mxu0 %v5588
    %5799 = vmatpush2.bf16.msra.mxu0 %v5587
    %5800 = vmatprep.subr.bf16.mxu0 %v5584
    %5801 = vmatpush2.bf16.msra.mxu0 %v5583
    %5802 = vmatprep.subr.bf16.mxu0 %v5580
    %5803 = vmatpush2.bf16.msra.mxu0 %v5579
    %5804 = vmatprep.mubr.bf16.mxu0 %v5209
    %5805 = vmatmul.mubr.bf16.gmra.mxu0 %v5208
    %v5806 = vpop.f32.mrf.mxu0
    %v5807 = vadd.f32 %v5764, %v5806
    %v5808 = vpop.f32.mrf.mxu0
    %v5809 = vadd.f32 %v5766, %v5808
    %v5810 = vpop.f32.mrf.mxu0
    %v5811 = vadd.f32 %v5768, %v5810
    %v5812 = vpop.f32.mrf.mxu0
    %v5813 = vadd.f32 %v5770, %v5812
    %5814 = vdwg.mxu0
    %5815 = vmatprep.subr.bf16.mxu0 %v5640
    %5816 = vmatpush1.bf16.msra.mxu0 %v5639
    %5817 = vmatprep.subr.bf16.mxu0 %v5636
    %5818 = vmatpush1.bf16.msra.mxu0 %v5635
    %5819 = vmatprep.subr.bf16.mxu0 %v5632
    %5820 = vmatpush1.bf16.msra.mxu0 %v5631
    %5821 = vmatprep.subr.bf16.mxu0 %v5628
    %5822 = vmatpush1.bf16.msra.mxu0 %v5627
    %5823 = vmatprep.subr.bf16.mxu0 %v5624
    %5824 = vmatpush1.bf16.msra.mxu0 %v5623
    %5825 = vmatprep.subr.bf16.mxu0 %v5620
    %5826 = vmatpush1.bf16.msra.mxu0 %v5619
    %5827 = vmatprep.subr.bf16.mxu0 %v5616
    %5828 = vmatpush1.bf16.msra.mxu0 %v5615
    %5829 = vmatprep.subr.bf16.mxu0 %v5612
    %5830 = vmatpush1.bf16.msra.mxu0 %v5611
    %5831 = vmatprep.subr.bf16.mxu0 0
    %5832 = vmatpush2.bf16.msra.mxu0 0
    %5833 = vmatprep.subr.bf16.mxu0 0
    %5834 = vmatpush2.bf16.msra.mxu0 0
    %5835 = vmatprep.subr.bf16.mxu0 0
    %5836 = vmatpush2.bf16.msra.mxu0 0
    %5837 = vmatprep.subr.bf16.mxu0 0
    %5838 = vmatpush2.bf16.msra.mxu0 0
    %5839 = vmatprep.subr.bf16.mxu0 0
    %5840 = vmatpush2.bf16.msra.mxu0 0
    %5841 = vmatprep.subr.bf16.mxu0 0
    %5842 = vmatpush2.bf16.msra.mxu0 0
    %5843 = vmatprep.subr.bf16.mxu0 0
    %5844 = vmatpush2.bf16.msra.mxu0 0
    %5845 = vmatprep.subr.bf16.mxu0 0
    %5846 = vmatpush2.bf16.msra.mxu0 0
    %5847 = vmatprep.mubr.bf16.mxu0 0
    %5848 = vmatmul.mubr.bf16.gmra.mxu0 %v5210
    %v5849 = vpop.f32.mrf.mxu0
    %v5850 = vadd.f32 %v5807, %v5849
    %v5851 = vpop.f32.mrf.mxu0
    %v5852 = vadd.f32 %v5809, %v5851
    %v5853 = vpop.f32.mrf.mxu0
    %v5854 = vadd.f32 %v5811, %v5853
    %v5855 = vpop.f32.mrf.mxu0
    %v5856 = vadd.f32 %v5813, %v5855
    %5857 = vdwg.mxu0
    %5858 = vmatprep.subr.bf16.mxu0 %v5386
    %5859 = vmatpush1.bf16.msra.mxu0 %v5385
    %5860 = vmatprep.subr.bf16.mxu0 %v5382
    %5861 = vmatpush1.bf16.msra.mxu0 %v5381
    %5862 = vmatprep.subr.bf16.mxu0 %v5378
    %5863 = vmatpush1.bf16.msra.mxu0 %v5377
    %5864 = vmatprep.subr.bf16.mxu0 %v5374
    %5865 = vmatpush1.bf16.msra.mxu0 %v5373
    %5866 = vmatprep.subr.bf16.mxu0 %v5370
    %5867 = vmatpush1.bf16.msra.mxu0 %v5369
    %5868 = vmatprep.subr.bf16.mxu0 %v5366
    %5869 = vmatpush1.bf16.msra.mxu0 %v5365
    %5870 = vmatprep.subr.bf16.mxu0 %v5362
    %5871 = vmatpush1.bf16.msra.mxu0 %v5361
    %5872 = vmatprep.subr.bf16.mxu0 %v5358
    %5873 = vmatpush1.bf16.msra.mxu0 %v5357
    %5874 = vmatprep.subr.bf16.mxu0 %v5418
    %5875 = vmatpush2.bf16.msra.mxu0 %v5417
    %5876 = vmatprep.subr.bf16.mxu0 %v5414
    %5877 = vmatpush2.bf16.msra.mxu0 %v5413
    %5878 = vmatprep.subr.bf16.mxu0 %v5410
    %5879 = vmatpush2.bf16.msra.mxu0 %v5409
    %5880 = vmatprep.subr.bf16.mxu0 %v5406
    %5881 = vmatpush2.bf16.msra.mxu0 %v5405
    %5882 = vmatprep.subr.bf16.mxu0 %v5402
    %5883 = vmatpush2.bf16.msra.mxu0 %v5401
    %5884 = vmatprep.subr.bf16.mxu0 %v5398
    %5885 = vmatpush2.bf16.msra.mxu0 %v5397
    %5886 = vmatprep.subr.bf16.mxu0 %v5394
    %5887 = vmatpush2.bf16.msra.mxu0 %v5393
    %5888 = vmatprep.subr.bf16.mxu0 %v5390
    %5889 = vmatpush2.bf16.msra.mxu0 %v5389
    %5890 = vmatprep.mubr.bf16.mxu0 %v5203
    %5891 = vmatmul.mubr.bf16.gmra.mxu0 %v5202
    %v5892 = vpop.f32.mrf.mxu0
    %v5893 = vadd.f32 0.0, %v5892
    %v5894 = vpop.f32.mrf.mxu0
    %v5895 = vadd.f32 0.0, %v5894
    %v5896 = vpop.f32.mrf.mxu0
    %v5897 = vadd.f32 0.0, %v5896
    %v5898 = vpop.f32.mrf.mxu0
    %v5899 = vadd.f32 0.0, %v5898
    %5900 = vdwg.mxu0
    %5901 = vmatprep.subr.bf16.mxu0 %v5450
    %5902 = vmatpush1.bf16.msra.mxu0 %v5449
    %5903 = vmatprep.subr.bf16.mxu0 %v5446
    %5904 = vmatpush1.bf16.msra.mxu0 %v5445
    %5905 = vmatprep.subr.bf16.mxu0 %v5442
    %5906 = vmatpush1.bf16.msra.mxu0 %v5441
    %5907 = vmatprep.subr.bf16.mxu0 %v5438
    %5908 = vmatpush1.bf16.msra.mxu0 %v5437
    %5909 = vmatprep.subr.bf16.mxu0 %v5434
    %5910 = vmatpush1.bf16.msra.mxu0 %v5433
    %5911 = vmatprep.subr.bf16.mxu0 %v5430
    %5912 = vmatpush1.bf16.msra.mxu0 %v5429
    %5913 = vmatprep.subr.bf16.mxu0 %v5426
    %5914 = vmatpush1.bf16.msra.mxu0 %v5425
    %5915 = vmatprep.subr.bf16.mxu0 %v5422
    %5916 = vmatpush1.bf16.msra.mxu0 %v5421
    %5917 = vmatprep.subr.bf16.mxu0 %v5482
    %5918 = vmatpush2.bf16.msra.mxu0 %v5481
    %5919 = vmatprep.subr.bf16.mxu0 %v5478
    %5920 = vmatpush2.bf16.msra.mxu0 %v5477
    %5921 = vmatprep.subr.bf16.mxu0 %v5474
    %5922 = vmatpush2.bf16.msra.mxu0 %v5473
    %5923 = vmatprep.subr.bf16.mxu0 %v5470
    %5924 = vmatpush2.bf16.msra.mxu0 %v5469
    %5925 = vmatprep.subr.bf16.mxu0 %v5466
    %5926 = vmatpush2.bf16.msra.mxu0 %v5465
    %5927 = vmatprep.subr.bf16.mxu0 %v5462
    %5928 = vmatpush2.bf16.msra.mxu0 %v5461
    %5929 = vmatprep.subr.bf16.mxu0 %v5458
    %5930 = vmatpush2.bf16.msra.mxu0 %v5457
    %5931 = vmatprep.subr.bf16.mxu0 %v5454
    %5932 = vmatpush2.bf16.msra.mxu0 %v5453
    %5933 = vmatprep.mubr.bf16.mxu0 %v5205
    %5934 = vmatmul.mubr.bf16.gmra.mxu0 %v5204
    %v5935 = vpop.f32.mrf.mxu0
    %v5936 = vadd.f32 %v5893, %v5935
    %v5937 = vpop.f32.mrf.mxu0
    %v5938 = vadd.f32 %v5895, %v5937
    %v5939 = vpop.f32.mrf.mxu0
    %v5940 = vadd.f32 %v5897, %v5939
    %v5941 = vpop.f32.mrf.mxu0
    %v5942 = vadd.f32 %v5899, %v5941
    %5943 = vdwg.mxu0
    %5944 = vmatprep.subr.bf16.mxu0 %v5514
    %5945 = vmatpush1.bf16.msra.mxu0 %v5513
    %5946 = vmatprep.subr.bf16.mxu0 %v5510
    %5947 = vmatpush1.bf16.msra.mxu0 %v5509
    %5948 = vmatprep.subr.bf16.mxu0 %v5506
    %5949 = vmatpush1.bf16.msra.mxu0 %v5505
    %5950 = vmatprep.subr.bf16.mxu0 %v5502
    %5951 = vmatpush1.bf16.msra.mxu0 %v5501
    %5952 = vmatprep.subr.bf16.mxu0 %v5498
    %5953 = vmatpush1.bf16.msra.mxu0 %v5497
    %5954 = vmatprep.subr.bf16.mxu0 %v5494
    %5955 = vmatpush1.bf16.msra.mxu0 %v5493
    %5956 = vmatprep.subr.bf16.mxu0 %v5490
    %5957 = vmatpush1.bf16.msra.mxu0 %v5489
    %5958 = vmatprep.subr.bf16.mxu0 %v5486
    %5959 = vmatpush1.bf16.msra.mxu0 %v5485
    %5960 = vmatprep.subr.bf16.mxu0 %v5546
    %5961 = vmatpush2.bf16.msra.mxu0 %v5545
    %5962 = vmatprep.subr.bf16.mxu0 %v5542
    %5963 = vmatpush2.bf16.msra.mxu0 %v5541
    %5964 = vmatprep.subr.bf16.mxu0 %v5538
    %5965 = vmatpush2.bf16.msra.mxu0 %v5537
    %5966 = vmatprep.subr.bf16.mxu0 %v5534
    %5967 = vmatpush2.bf16.msra.mxu0 %v5533
    %5968 = vmatprep.subr.bf16.mxu0 %v5530
    %5969 = vmatpush2.bf16.msra.mxu0 %v5529
    %5970 = vmatprep.subr.bf16.mxu0 %v5526
    %5971 = vmatpush2.bf16.msra.mxu0 %v5525
    %5972 = vmatprep.subr.bf16.mxu0 %v5522
    %5973 = vmatpush2.bf16.msra.mxu0 %v5521
    %5974 = vmatprep.subr.bf16.mxu0 %v5518
    %5975 = vmatpush2.bf16.msra.mxu0 %v5517
    %5976 = vmatprep.mubr.bf16.mxu0 %v5207
    %5977 = vmatmul.mubr.bf16.gmra.mxu0 %v5206
    %v5978 = vpop.f32.mrf.mxu0
    %v5979 = vadd.f32 %v5936, %v5978
    %v5980 = vpop.f32.mrf.mxu0
    %v5981 = vadd.f32 %v5938, %v5980
    %v5982 = vpop.f32.mrf.mxu0
    %v5983 = vadd.f32 %v5940, %v5982
    %v5984 = vpop.f32.mrf.mxu0
    %v5985 = vadd.f32 %v5942, %v5984
    %5986 = vdwg.mxu0
    %5987 = vmatprep.subr.bf16.mxu0 %v5578
    %5988 = vmatpush1.bf16.msra.mxu0 %v5577
    %5989 = vmatprep.subr.bf16.mxu0 %v5574
    %5990 = vmatpush1.bf16.msra.mxu0 %v5573
    %5991 = vmatprep.subr.bf16.mxu0 %v5570
    %5992 = vmatpush1.bf16.msra.mxu0 %v5569
    %5993 = vmatprep.subr.bf16.mxu0 %v5566
    %5994 = vmatpush1.bf16.msra.mxu0 %v5565
    %5995 = vmatprep.subr.bf16.mxu0 %v5562
    %5996 = vmatpush1.bf16.msra.mxu0 %v5561
    %5997 = vmatprep.subr.bf16.mxu0 %v5558
    %5998 = vmatpush1.bf16.msra.mxu0 %v5557
    %5999 = vmatprep.subr.bf16.mxu0 %v5554
    %6000 = vmatpush1.bf16.msra.mxu0 %v5553
    %6001 = vmatprep.subr.bf16.mxu0 %v5550
    %6002 = vmatpush1.bf16.msra.mxu0 %v5549
    %6003 = vmatprep.subr.bf16.mxu0 %v5610
    %6004 = vmatpush2.bf16.msra.mxu0 %v5609
    %6005 = vmatprep.subr.bf16.mxu0 %v5606
    %6006 = vmatpush2.bf16.msra.mxu0 %v5605
    %6007 = vmatprep.subr.bf16.mxu0 %v5602
    %6008 = vmatpush2.bf16.msra.mxu0 %v5601
    %6009 = vmatprep.subr.bf16.mxu0 %v5598
    %6010 = vmatpush2.bf16.msra.mxu0 %v5597
    %6011 = vmatprep.subr.bf16.mxu0 %v5594
    %6012 = vmatpush2.bf16.msra.mxu0 %v5593
    %6013 = vmatprep.subr.bf16.mxu0 %v5590
    %6014 = vmatpush2.bf16.msra.mxu0 %v5589
    %6015 = vmatprep.subr.bf16.mxu0 %v5586
    %6016 = vmatpush2.bf16.msra.mxu0 %v5585
    %6017 = vmatprep.subr.bf16.mxu0 %v5582
    %6018 = vmatpush2.bf16.msra.mxu0 %v5581
    %6019 = vmatprep.mubr.bf16.mxu0 %v5209
    %6020 = vmatmul.mubr.bf16.gmra.mxu0 %v5208
    %v6021 = vpop.f32.mrf.mxu0
    %v6022 = vadd.f32 %v5979, %v6021
    %v6023 = vpop.f32.mrf.mxu0
    %v6024 = vadd.f32 %v5981, %v6023
    %v6025 = vpop.f32.mrf.mxu0
    %v6026 = vadd.f32 %v5983, %v6025
    %v6027 = vpop.f32.mrf.mxu0
    %v6028 = vadd.f32 %v5985, %v6027
    %6029 = vdwg.mxu0
    %6030 = vmatprep.subr.bf16.mxu0 %v5642
    %6031 = vmatpush1.bf16.msra.mxu0 %v5641
    %6032 = vmatprep.subr.bf16.mxu0 %v5638
    %6033 = vmatpush1.bf16.msra.mxu0 %v5637
    %6034 = vmatprep.subr.bf16.mxu0 %v5634
    %6035 = vmatpush1.bf16.msra.mxu0 %v5633
    %6036 = vmatprep.subr.bf16.mxu0 %v5630
    %6037 = vmatpush1.bf16.msra.mxu0 %v5629
    %6038 = vmatprep.subr.bf16.mxu0 %v5626
    %6039 = vmatpush1.bf16.msra.mxu0 %v5625
    %6040 = vmatprep.subr.bf16.mxu0 %v5622
    %6041 = vmatpush1.bf16.msra.mxu0 %v5621
    %6042 = vmatprep.subr.bf16.mxu0 %v5618
    %6043 = vmatpush1.bf16.msra.mxu0 %v5617
    %6044 = vmatprep.subr.bf16.mxu0 %v5614
    %6045 = vmatpush1.bf16.msra.mxu0 %v5613
    %6046 = vmatprep.subr.bf16.mxu0 0
    %6047 = vmatpush2.bf16.msra.mxu0 0
    %6048 = vmatprep.subr.bf16.mxu0 0
    %6049 = vmatpush2.bf16.msra.mxu0 0
    %6050 = vmatprep.subr.bf16.mxu0 0
    %6051 = vmatpush2.bf16.msra.mxu0 0
    %6052 = vmatprep.subr.bf16.mxu0 0
    %6053 = vmatpush2.bf16.msra.mxu0 0
    %6054 = vmatprep.subr.bf16.mxu0 0
    %6055 = vmatpush2.bf16.msra.mxu0 0
    %6056 = vmatprep.subr.bf16.mxu0 0
    %6057 = vmatpush2.bf16.msra.mxu0 0
    %6058 = vmatprep.subr.bf16.mxu0 0
    %6059 = vmatpush2.bf16.msra.mxu0 0
    %6060 = vmatprep.subr.bf16.mxu0 0
    %6061 = vmatpush2.bf16.msra.mxu0 0
    %6062 = vmatprep.mubr.bf16.mxu0 0
    %6063 = vmatmul.mubr.bf16.gmra.mxu0 %v5210
    %v6064 = vpop.f32.mrf.mxu0
    %v6065 = vadd.f32 %v6022, %v6064
    %v6066 = vpop.f32.mrf.mxu0
    %v6067 = vadd.f32 %v6024, %v6066
    %v6068 = vpop.f32.mrf.mxu0
    %v6069 = vadd.f32 %v6026, %v6068
    %v6070 = vpop.f32.mrf.mxu0
    %v6071 = vadd.f32 %v6028, %v6070
    %6072 = vdwg.mxu0
    %s6073 = scalar_lea.vmem [#allocation13], 7
    %v6074 = vld [vmem:[%s6073] ss:$8 sm:$0xf]
    %s6075 = scalar_lea.vmem [#allocation13], 111
    %v6076 = vld [vmem:[%s6075] ss:$8 sm:$0xf]
    %v6078 = vlaneseq
    %v6079 = vshrl.u32 %v6078, 7
    %v6080 = vsub.s32 0, %v6079
    %v6081 = vrot.slane %v6074, %v6080
    %v6082 = vlaneseq
    %v6083 = vshrl.u32 %v6082, 7
    %v6084 = vsub.s32 1, %v6083
    %v6085 = vrot.slane %v6074, %v6084
    %v6086 = vlaneseq
    %v6087 = vshrl.u32 %v6086, 7
    %v6088 = vsub.s32 2, %v6087
    %v6089 = vrot.slane %v6074, %v6088
    %v6090 = vlaneseq
    %v6091 = vshrl.u32 %v6090, 7
    %v6092 = vsub.s32 3, %v6091
    %v6093 = vrot.slane %v6074, %v6092
    %v6098 = vmul.f32 %v5850, %v6081
    %v6099 = vmul.f32 %v5852, %v6085
    %v6100 = vmul.f32 %v6065, %v6089
    %v6101 = vmul.f32 %v6067, %v6093
    %v6102 = vmul.f32 %v5854, %v6081
    %v6103 = vmul.f32 %v5856, %v6085
    %v6104 = vmul.f32 %v6069, %v6089
    %v6105 = vmul.f32 %v6071, %v6093
    %v6107 = vlaneseq
    %v6108 = vshrl.u32 %v6107, 7
    %v6109 = vsub.s32 0, %v6108
    %v6110 = vrot.slane %v6076, %v6109
    %v6111 = vlaneseq
    %v6112 = vshrl.u32 %v6111, 7
    %v6113 = vsub.s32 1, %v6112
    %v6114 = vrot.slane %v6076, %v6113
    %v6115 = vlaneseq
    %v6116 = vshrl.u32 %v6115, 7
    %v6117 = vsub.s32 2, %v6116
    %v6118 = vrot.slane %v6076, %v6117
    %v6119 = vlaneseq
    %v6120 = vshrl.u32 %v6119, 7
    %v6121 = vsub.s32 3, %v6120
    %v6122 = vrot.slane %v6076, %v6121
    %v6127 = vadd.f32 %v6098, %v6110
    %v6128 = vadd.f32 %v6099, %v6114
    %v6129 = vadd.f32 %v6100, %v6118
    %v6130 = vadd.f32 %v6101, %v6122
    %v6131 = vadd.f32 %v6102, %v6110
    %v6132 = vadd.f32 %v6103, %v6114
    %v6133 = vadd.f32 %v6104, %v6118
    %v6134 = vadd.f32 %v6105, %v6122
    %v6135 = vxor.u32 %v6127, 2147483648
    %v6136 = vxor.u32 %v6128, 2147483648
    %v6137 = vxor.u32 %v6129, 2147483648
    %v6138 = vxor.u32 %v6130, 2147483648
    %v6139 = vxor.u32 %v6131, 2147483648
    %v6140 = vxor.u32 %v6132, 2147483648
    %v6141 = vxor.u32 %v6133, 2147483648
    %v6142 = vxor.u32 %v6134, 2147483648
    %v6143 = vmul.f32 %v6135, 1.442695
    %v6144 = vpow.pop %v6143
    %v6145 = vmul.f32 %v6136, 1.442695
    %v6146 = vpow.pop %v6145
    %v6147 = vmul.f32 %v6137, 1.442695
    %v6148 = vpow.pop %v6147
    %v6149 = vmul.f32 %v6138, 1.442695
    %v6150 = vpow.pop %v6149
    %v6151 = vmul.f32 %v6139, 1.442695
    %v6152 = vpow.pop %v6151
    %v6153 = vmul.f32 %v6140, 1.442695
    %v6154 = vpow.pop %v6153
    %v6155 = vmul.f32 %v6141, 1.442695
    %v6156 = vpow.pop %v6155
    %v6157 = vmul.f32 %v6142, 1.442695
    %v6158 = vpow.pop %v6157
    %v6159 = vadd.f32 %v6144, 1.0
    %v6160 = vadd.f32 %v6146, 1.0
    %v6161 = vadd.f32 %v6148, 1.0
    %v6162 = vadd.f32 %v6150, 1.0
    %v6163 = vadd.f32 %v6152, 1.0
    %v6164 = vadd.f32 %v6154, 1.0
    %v6165 = vadd.f32 %v6156, 1.0
    %v6166 = vadd.f32 %v6158, 1.0
    %v6167 = vrcp.pop %v6159
    %v6168 = vmul.f32 1.0, %v6167
    %v6169 = vrcp.pop %v6160
    %v6170 = vmul.f32 1.0, %v6169
    %v6171 = vrcp.pop %v6161
    %v6172 = vmul.f32 1.0, %v6171
    %v6173 = vrcp.pop %v6162
    %v6174 = vmul.f32 1.0, %v6173
    %v6175 = vrcp.pop %v6163
    %v6176 = vmul.f32 1.0, %v6175
    %v6177 = vrcp.pop %v6164
    %v6178 = vmul.f32 1.0, %v6177
    %v6179 = vrcp.pop %v6165
    %v6180 = vmul.f32 1.0, %v6179
    %v6181 = vrcp.pop %v6166
    %v6182 = vmul.f32 1.0, %v6181
    %6183 = vst [vmem:[%s10] sm:$0xff] %v6168
    %6184 = vst [vmem:[%s10 + $0x8] sm:$0xff] %v6170
    %6185 = vst [vmem:[%s10 + $0x10] sm:$0xff] %v6172
    %6186 = vst [vmem:[%s10 + $0x18] sm:$0xff] %v6174
    %6187 = vst [vmem:[%s10 + $0x20] sm:$0xff] %v6176
    %6188 = vst [vmem:[%s10 + $0x28] sm:$0xff] %v6178
    %6189 = vst [vmem:[%s10 + $0x30] sm:$0xff] %v6180
    %6190 = vst [vmem:[%s10 + $0x38] sm:$0xff] %v6182
    // Predicated region
    $region74: #{gradcon_cae_forward.1} parent=1 // pred_check
      _
    $region75: #{gradcon_cae_forward.1} parent=1 // pred_check_branch
      %6192 = sbr.rel (0) target = $region77
    $region76: #{gradcon_cae_forward.1} parent=1 // pred_region
      _
    $region77: #{gradcon_cae_forward.1} parent=1 // pred_fallthru
      _
    // Predicated region
    $region78: #{gradcon_cae_forward.1} parent=1 // pred_check
      _
    $region79: #{gradcon_cae_forward.1} parent=1 // pred_check_branch
      %6194 = sbr.rel (0) target = $region81
    $region80: #{gradcon_cae_forward.1} parent=1 // pred_region
      _
    $region81: #{gradcon_cae_forward.1} parent=1 // pred_fallthru
      _
    %6195 = vsyncpa [#allocation3], 1
    %6196 = vsyncpa [#allocation5], 1
    %6197 = vsyncpa [#allocation8], 1
    %6198 = vsyncpa [#allocation11], 1
    %6199 = vsyncpa [#allocation14], 1

</llo_original>
